<compile_context>
chip_gen: v7x
topology: tpu7x:2x2x1
jax: 0.10.0
libtpu: 0.0.40
codegen_flags: <defaults>
</compile_context>

<pallas_src>
import functools

import numpy as np
import jax
import jax.numpy as jnp
from jax.experimental import pallas as pl
from jax.experimental.pallas import tpu as pltpu

LN_EPS = 1e-5   # PyTorch nn.LayerNorm default
LANES = 128     # packed-slab width / padded output channel width

# (kind, name, ...cfg) in forward order.
#   block : (C, n_heads, head_size)   (n_heads*head_size == C for every block)
#   linear: (C_in, C_out, relu)
LAYERS = (
    ("block",  "enc_b1", 18, 2, 9),
    ("linear", "enc_l1", 18, 32, True),
    ("block",  "enc_b2", 32, 4, 8),
    ("linear", "enc_l2", 32, 16, True),
    ("block",  "enc_b3", 16, 4, 4),
    ("linear", "enc_l3", 16, 8, False),
    ("block",  "dec_b1", 8, 2, 4),
    ("linear", "dec_l1", 8, 16, True),
    ("block",  "dec_b2", 16, 4, 4),
    ("linear", "dec_l2", 16, 32, True),
    ("block",  "dec_b3", 32, 4, 8),
    ("linear", "dec_l3", 32, 18, False),
)


# ---------------------------------------------------------------------------
# Static packing plan: every weight matrix gets an 8-aligned row slot in one
# (MAT_ROWS, 128) slab; every 1-D parameter gets one row of a (VEC_ROWS, 128)
# slab.  The kernel reads them with static, aligned ref slices.
# ---------------------------------------------------------------------------
def _build_plan():
    mat, vec = {}, {}
    mrow, vrow = [0], [0]

    def add_mat(name, cin, cout):
        mat[name] = (mrow[0], cin, cout)
        mrow[0] += -(-cin // 8) * 8          # keep sublane offsets 8-aligned

    def add_vec(name, n):
        vec[name] = (vrow[0], n)
        vrow[0] += 1

    add_vec("in_ln.g", 18)
    add_vec("in_ln.b", 18)
    for kind, name, *cfg in LAYERS:
        if kind == "block":
            c, nh, hs = cfg
            hd = nh * hs
            add_vec(f"{name}.ln1_g", c)
            add_vec(f"{name}.ln1_b", c)
            add_mat(f"{name}.w_qkv", c, 3 * hd)
            add_mat(f"{name}.w_proj", hd, c)
            add_vec(f"{name}.b_proj", c)
            add_vec(f"{name}.ln2_g", c)
            add_vec(f"{name}.ln2_b", c)
            add_mat(f"{name}.w1", c, 4 * c)
            add_vec(f"{name}.b1", 4 * c)
            add_mat(f"{name}.w2", 4 * c, c)
            add_vec(f"{name}.b2", c)
        else:
            cin, cout, _relu = cfg
            add_mat(f"{name}.w", cin, cout)
            add_vec(f"{name}.b", cout)
    return mat, vec, -(-mrow[0] // 8) * 8, -(-vrow[0] // 8) * 8


_MAT_SLOTS, _VEC_SLOTS, _MAT_ROWS, _VEC_ROWS = _build_plan()


def pack_params(params):
    """Pack the nested param dict into two VMEM-friendly slabs (call once)."""
    mat = jnp.zeros((_MAT_ROWS, LANES), jnp.float32)
    vec = jnp.zeros((_VEC_ROWS, LANES), jnp.float32)

    def put_mat(m, name, w):
        r, cin, cout = _MAT_SLOTS[name]
        return m.at[r:r + cin, :cout].set(w.astype(jnp.float32))

    def put_vec(v, name, b):
        r, n = _VEC_SLOTS[name]
        return v.at[r, :n].set(b.reshape(-1).astype(jnp.float32))

    vec = put_vec(vec, "in_ln.g", params["in_ln"]["g"])
    vec = put_vec(vec, "in_ln.b", params["in_ln"]["b"])
    for kind, name, *_cfg in LAYERS:
        p = params[name]
        if kind == "block":
            vec = put_vec(vec, f"{name}.ln1_g", p["ln1_g"])
            vec = put_vec(vec, f"{name}.ln1_b", p["ln1_b"])
            mat = put_mat(mat, f"{name}.w_qkv", p["w_qkv"])
            mat = put_mat(mat, f"{name}.w_proj", p["w_proj"])
            vec = put_vec(vec, f"{name}.b_proj", p["b_proj"])
            vec = put_vec(vec, f"{name}.ln2_g", p["ln2_g"])
            vec = put_vec(vec, f"{name}.ln2_b", p["ln2_b"])
            mat = put_mat(mat, f"{name}.w1", p["w1"])
            vec = put_vec(vec, f"{name}.b1", p["b1"])
            mat = put_mat(mat, f"{name}.w2", p["w2"])
            vec = put_vec(vec, f"{name}.b2", p["b2"])
        else:
            mat = put_mat(mat, f"{name}.w", p["w"])
            vec = put_vec(vec, f"{name}.b", p["b"])
    return {"mat": mat, "vec": vec}


# ---------------------------------------------------------------------------
# Kernel body (fully fused forward pass; one grid step = one batch block)
# ---------------------------------------------------------------------------
def _ln(x, g, b):
    m = jnp.mean(x, axis=-1, keepdims=True)
    v = jnp.mean((x - m) ** 2, axis=-1, keepdims=True)
    return (x - m) * jax.lax.rsqrt(v + LN_EPS) * g + b


def _fused_forward_kernel(x_ref, mat_ref, vec_ref, o_ref, *, t):
    rows, _c0 = x_ref.shape
    bb = rows // t
    out_w = o_ref.shape[-1]

    def vec(name, width=None):
        r, n = _VEC_SLOTS[name]
        return vec_ref[r:r + 1, :(n if width is None else width)]      # (1, n)

    def mat(name, width=None):
        r, cin, cout = _MAT_SLOTS[name]
        return mat_ref[r:r + cin, :(cout if width is None else width)]  # (cin, cout)

    h = x_ref[...]                                      # (rows, 18), f32
    # encoder's leading nn.LayerNorm(18)
    h = _ln(h, vec("in_ln.g"), vec("in_ln.b"))

    n_layers = len(LAYERS)
    for li, (kind, name, *cfg) in enumerate(LAYERS):
        if kind == "block":
            _c, nh, hs = cfg
            hd = nh * hs
            scale = 1.0 / float(np.sqrt(hs))

            # ---- x + MHA(LN1(x)): one fused qkv matmul, head-batched attention,
            # ---- one output-projection matmul.
            hn = _ln(h, vec(f"{name}.ln1_g"), vec(f"{name}.ln1_b"))
            qkv = jnp.dot(hn, mat(f"{name}.w_qkv"),
                          preferred_element_type=jnp.float32)           # (rows, 3*hd)
            qkv = qkv.reshape(bb, t, 3 * hd)

            def split_heads(base):
                # per-head lane slices, stacked on the leading (batch) axis
                return jnp.concatenate(
                    [qkv[:, :, base + hh * hs: base + (hh + 1) * hs]
                     for hh in range(nh)], axis=0)                      # (nh*bb, t, hs)

            q = split_heads(0)
            k = split_heads(hd)
            v = split_heads(2 * hd)
            s = jnp.einsum("bqd,bkd->bqk", q, k,
                           preferred_element_type=jnp.float32) * scale  # (nh*bb, t, t)
            s = s - jnp.max(s, axis=-1, keepdims=True)
            p = jnp.exp(s)
            p = p * pl.reciprocal(jnp.sum(p, axis=-1, keepdims=True), approx=True)
            o = jnp.einsum("bqk,bkd->bqd", p, v,
                           preferred_element_type=jnp.float32)           # (nh*bb, t, hs)
            o = o.reshape(nh, bb, t, hs)
            o = jnp.concatenate([o[hh] for hh in range(nh)], axis=-1)    # (bb, t, hd)
            att = jnp.dot(o.reshape(rows, hd), mat(f"{name}.w_proj"),
                          preferred_element_type=jnp.float32)            # (rows, C)
            h = h + att + vec(f"{name}.b_proj")

            # ---- x + FFN(LN2(x))
            hn2 = _ln(h, vec(f"{name}.ln2_g"), vec(f"{name}.ln2_b"))
            f = jnp.dot(hn2, mat(f"{name}.w1"),
                        preferred_element_type=jnp.float32) + vec(f"{name}.b1")
            f = jnp.maximum(f, 0.0)
            f = jnp.dot(f, mat(f"{name}.w2"),
                        preferred_element_type=jnp.float32) + vec(f"{name}.b2")
            h = h + f
        else:
            _cin, cout, relu = cfg
            # Final layer: use the full zero-padded 128 lanes so the HBM store
            # is lane-dense (wrapper slices back to [:, :18]).
            width = out_w if li == n_layers - 1 else cout
            h = jnp.dot(h, mat(f"{name}.w", width),
                        preferred_element_type=jnp.float32) + vec(f"{name}.b", width)
            if relu:
                h = jnp.maximum(h, 0.0)

    o_ref[...] = h


# ---------------------------------------------------------------------------
# Wrapper: single pallas_call, grid over row blocks, packed weights resident
# ---------------------------------------------------------------------------
@functools.partial(jax.jit, static_argnames=("batch_block",))
def anomaly_detector_forward(x, packed, batch_block=None):
    B, T, C = x.shape
    if batch_block is None:
        # Target ~1024 rows per grid step (amortizes ~0.35us/step, keeps the
        # MXU M-stream long), but keep >= 2 grid steps whenever B allows it so
        # v7x's two TensorCores both get work on the "parallel" batch axis.
        batch_block = max(1, min(B, max(1, 1024 // T)))
        if B >= 2:
            batch_block = min(batch_block, -(-B // 2))
    nb = -(-B // batch_block)
    block_rows = batch_block * T

    rows = B * T
    rows_p = nb * block_rows
    x2 = x.reshape(rows, C).astype(jnp.float32)
    if rows_p != rows:
        x2 = jnp.pad(x2, ((0, rows_p - rows), (0, 0)))

    kernel = functools.partial(_fused_forward_kernel, t=T)
    out = pl.pallas_call(
        kernel,
        out_shape=jax.ShapeDtypeStruct((rows_p, LANES), jnp.float32),
        grid=(nb,),
        in_specs=[
            pl.BlockSpec((block_rows, C), lambda i: (i, 0)),
            pl.BlockSpec(packed["mat"].shape, lambda i: (0, 0)),  # resident weights
            pl.BlockSpec(packed["vec"].shape, lambda i: (0, 0)),  # resident vectors
        ],
        out_specs=pl.BlockSpec((block_rows, LANES), lambda i: (i, 0)),
        compiler_params=pltpu.CompilerParams(
            dimension_semantics=("parallel",),       # v7x: shard batch over 2 TCs
            vmem_limit_bytes=32 * 1024 * 1024,
        ),
    )(x2, packed["mat"], packed["vec"])
    return out[:rows, :18].reshape(B, T, 18)


# ---------------------------------------------------------------------------
# Deterministic parameter init (PyTorch-style uniform(-1/sqrt(fan_in), ...))
# ---------------------------------------------------------------------------
def _uniform(key, shape, bound):
    return jax.random.uniform(key, shape, jnp.float32, -bound, bound)


def init_linear(key, cin, cout):
    kw, kb = jax.random.split(key)
    bound = 1.0 / float(np.sqrt(cin))
    return {"w": _uniform(kw, (cin, cout), bound),
            "b": _uniform(kb, (1, cout), bound)}


def init_block(key, c, n_heads, head_size):
    ks = jax.random.split(key, 7)
    hd = n_heads * head_size
    bq = 1.0 / float(np.sqrt(c))
    bp = 1.0 / float(np.sqrt(hd))
    bf1 = 1.0 / float(np.sqrt(c))
    bf2 = 1.0 / float(np.sqrt(4 * c))
    return {
        "ln1_g": jnp.ones((1, c), jnp.float32),
        "ln1_b": jnp.zeros((1, c), jnp.float32),
        "w_qkv": _uniform(ks[0], (c, 3 * hd), bq),   # [q | k | v], no bias
        "w_proj": _uniform(ks[1], (hd, c), bp),
        "b_proj": _uniform(ks[2], (1, c), bp),
        "ln2_g": jnp.ones((1, c), jnp.float32),
        "ln2_b": jnp.zeros((1, c), jnp.float32),
        "w1": _uniform(ks[3], (c, 4 * c), bf1),
        "b1": _uniform(ks[4], (1, 4 * c), bf1),
        "w2": _uniform(ks[5], (4 * c, c), bf2),
        "b2": _uniform(ks[6], (1, c), bf2),
    }


def init_params(key):
    ks = jax.random.split(key, len(LAYERS))
    params = {"in_ln": {"g": jnp.ones((1, 18), jnp.float32),
                        "b": jnp.zeros((1, 18), jnp.float32)}}
    for i, (kind, name, *cfg) in enumerate(LAYERS):
        if kind == "block":
            c, n_heads, head_size = cfg
            params[name] = init_block(ks[i], c, n_heads, head_size)
        else:
            cin, cout, _ = cfg
            params[name] = init_linear(ks[i], cin, cout)
    return params


# ---------------------------------------------------------------------------
# Pure-JAX reference (HIGHEST matmul precision) for the correctness check
# ---------------------------------------------------------------------------
_PREC = jax.lax.Precision.HIGHEST


def _ref_ln(x, g, b):
    m = x.mean(-1, keepdims=True)
    v = ((x - m) ** 2).mean(-1, keepdims=True)
    return (x - m) * jax.lax.rsqrt(v + LN_EPS) * g[0] + b[0]


def _ref_block(x, p, n_heads, head_size):
    B, T, C = x.shape
    hd = n_heads * head_size
    h = _ref_ln(x, p["ln1_g"], p["ln1_b"])
    qkv = jnp.einsum("btc,cf->btf", h, p["w_qkv"], precision=_PREC)
    q = qkv[..., 0 * hd:1 * hd].reshape(B, T, n_heads, head_size)
    k = qkv[..., 1 * hd:2 * hd].reshape(B, T, n_heads, head_size)
    v = qkv[..., 2 * hd:3 * hd].reshape(B, T, n_heads, head_size)
    s = jnp.einsum("bqhd,bkhd->bhqk", q, k, precision=_PREC) / np.sqrt(head_size)
    w = jax.nn.softmax(s, axis=-1)
    o = jnp.einsum("bhqk,bkhd->bqhd", w, v, precision=_PREC).reshape(B, T, hd)
    x = x + jnp.einsum("btf,fc->btc", o, p["w_proj"], precision=_PREC) + p["b_proj"][0]
    h2 = _ref_ln(x, p["ln2_g"], p["ln2_b"])
    f = jnp.einsum("btc,cf->btf", h2, p["w1"], precision=_PREC) + p["b1"][0]
    f = jnp.maximum(f, 0.0)
    f = jnp.einsum("btf,fc->btc", f, p["w2"], precision=_PREC) + p["b2"][0]
    return x + f


def ref_forward(x, params):
    h = _ref_ln(x, params["in_ln"]["g"], params["in_ln"]["b"])
    for kind, name, *cfg in LAYERS:
        p = params[name]
        if kind == "block":
            _c, n_heads, head_size = cfg
            h = _ref_block(h, p, n_heads, head_size)
        else:
            _cin, _cout, relu = cfg
            h = jnp.einsum("btc,cf->btf", h, p["w"], precision=_PREC) + p["b"][0]
            if relu:
                h = jnp.maximum(h, 0.0)
    return h


if __name__ == "__main__":
    key = jax.random.PRNGKey(0)
    kp, kx = jax.random.split(key)
    params = init_params(kp)
    packed = pack_params(params)

    B, T, C = 2, 8, 18
    x = jax.random.normal(kx, (B, T, C), jnp.float32)

    out = jax.block_until_ready(anomaly_detector_forward(x, packed))
    ref = jax.block_until_ready(ref_forward(x, params))

    assert out.shape == (B, T, C), out.shape
    # Tolerance bounded by the EUP approx-reciprocal in softmax (~2^-12 rel.)
    # plus MXU-vs-XLA f32 matmul rounding, vs a HIGHEST-precision reference.
    np.testing.assert_allclose(np.asarray(out), np.asarray(ref), rtol=2e-3, atol=2e-3)
    print("KERNEL_OK")
</pallas_src>

<mosaic_0001>
module attributes {stable_mosaic.version = 11 : i64} {
  func.func @_fused_forward_kernel(%arg0: i32, %arg1: memref<8x18xf32, #tpu.memory_space<vmem>>, %arg2: memref<1000x128xf32, #tpu.memory_space<vmem>>, %arg3: memref<56x128xf32, #tpu.memory_space<vmem>>, %arg4: memref<8x128xf32, #tpu.memory_space<vmem>>) attributes {dimension_semantics = [#tpu.dimension_semantics<parallel>], iteration_bounds = array<i64: 2>, scalar_prefetch = 0 : i64, scratch_operands = 0 : i64, tpu.core_type = #tpu.core_type<tc>, window_params = [{transform_indices = @transform_0, window_bounds = array<i64: 8, 18>}, {pipeline_mode = #tpu.pipeline_mode<synchronous>, transform_indices = @transform_1, window_bounds = array<i64: 1000, 128>}, {pipeline_mode = #tpu.pipeline_mode<synchronous>, transform_indices = @transform_2, window_bounds = array<i64: 56, 128>}, {transform_indices = @transform_3, window_bounds = array<i64: 8, 128>}]} {
    %c0 = arith.constant 0 : index
    %c0_0 = arith.constant 0 : index
    %0 = vector.load %arg1[%c0, %c0_0] : memref<8x18xf32, #tpu.memory_space<vmem>>, vector<8x18xf32>
    %c0_1 = arith.constant 0 : index
    %c0_2 = arith.constant 0 : index
    %1 = vector.load %arg3[%c0_1, %c0_2] : memref<56x128xf32, #tpu.memory_space<vmem>>, vector<1x18xf32>
    %c1 = arith.constant 1 : index
    %c0_3 = arith.constant 0 : index
    %2 = vector.load %arg3[%c1, %c0_3] : memref<56x128xf32, #tpu.memory_space<vmem>>, vector<1x18xf32>
    %cst = arith.constant dense<0.000000e+00> : vector<8xf32>
    %3 = vector.multi_reduction <add>, %0, %cst [1] : vector<8x18xf32> to vector<8xf32>
    %4 = vector.shape_cast %3 : vector<8xf32> to vector<8x1xf32>
    %cst_4 = arith.constant 1.800000e+01 : f32
    %5 = vector.broadcast %cst_4 : f32 to vector<8x1xf32>
    %6 = arith.divf %4, %5 : vector<8x1xf32>
    %7 = vector.broadcast %6 : vector<8x1xf32> to vector<8x18xf32>
    %8 = arith.subf %0, %7 : vector<8x18xf32>
    %9 = arith.mulf %8, %8 : vector<8x18xf32>
    %cst_5 = arith.constant dense<0.000000e+00> : vector<8xf32>
    %10 = vector.multi_reduction <add>, %9, %cst_5 [1] : vector<8x18xf32> to vector<8xf32>
    %11 = vector.shape_cast %10 : vector<8xf32> to vector<8x1xf32>
    %cst_6 = arith.constant 1.800000e+01 : f32
    %12 = vector.broadcast %cst_6 : f32 to vector<8x1xf32>
    %13 = arith.divf %11, %12 : vector<8x1xf32>
    %14 = vector.broadcast %6 : vector<8x1xf32> to vector<8x18xf32>
    %15 = arith.subf %0, %14 : vector<8x18xf32>
    %cst_7 = arith.constant 9.99999974E-6 : f32
    %16 = vector.broadcast %cst_7 : f32 to vector<8x1xf32>
    %17 = arith.addf %13, %16 : vector<8x1xf32>
    %18 = math.rsqrt %17 : vector<8x1xf32>
    %19 = vector.broadcast %18 : vector<8x1xf32> to vector<8x18xf32>
    %20 = arith.mulf %15, %19 : vector<8x18xf32>
    %21 = vector.broadcast %1 : vector<1x18xf32> to vector<8x18xf32>
    %22 = arith.mulf %20, %21 : vector<8x18xf32>
    %23 = vector.broadcast %2 : vector<1x18xf32> to vector<8x18xf32>
    %24 = arith.addf %22, %23 : vector<8x18xf32>
    %c2 = arith.constant 2 : index
    %c0_8 = arith.constant 0 : index
    %25 = vector.load %arg3[%c2, %c0_8] : memref<56x128xf32, #tpu.memory_space<vmem>>, vector<1x18xf32>
    %c3 = arith.constant 3 : index
    %c0_9 = arith.constant 0 : index
    %26 = vector.load %arg3[%c3, %c0_9] : memref<56x128xf32, #tpu.memory_space<vmem>>, vector<1x18xf32>
    %cst_10 = arith.constant dense<0.000000e+00> : vector<8xf32>
    %27 = vector.multi_reduction <add>, %24, %cst_10 [1] : vector<8x18xf32> to vector<8xf32>
    %28 = vector.shape_cast %27 : vector<8xf32> to vector<8x1xf32>
    %cst_11 = arith.constant 1.800000e+01 : f32
    %29 = vector.broadcast %cst_11 : f32 to vector<8x1xf32>
    %30 = arith.divf %28, %29 : vector<8x1xf32>
    %31 = vector.broadcast %30 : vector<8x1xf32> to vector<8x18xf32>
    %32 = arith.subf %24, %31 : vector<8x18xf32>
    %33 = arith.mulf %32, %32 : vector<8x18xf32>
    %cst_12 = arith.constant dense<0.000000e+00> : vector<8xf32>
    %34 = vector.multi_reduction <add>, %33, %cst_12 [1] : vector<8x18xf32> to vector<8xf32>
    %35 = vector.shape_cast %34 : vector<8xf32> to vector<8x1xf32>
    %cst_13 = arith.constant 1.800000e+01 : f32
    %36 = vector.broadcast %cst_13 : f32 to vector<8x1xf32>
    %37 = arith.divf %35, %36 : vector<8x1xf32>
    %38 = vector.broadcast %30 : vector<8x1xf32> to vector<8x18xf32>
    %39 = arith.subf %24, %38 : vector<8x18xf32>
    %cst_14 = arith.constant 9.99999974E-6 : f32
    %40 = vector.broadcast %cst_14 : f32 to vector<8x1xf32>
    %41 = arith.addf %37, %40 : vector<8x1xf32>
    %42 = math.rsqrt %41 : vector<8x1xf32>
    %43 = vector.broadcast %42 : vector<8x1xf32> to vector<8x18xf32>
    %44 = arith.mulf %39, %43 : vector<8x18xf32>
    %45 = vector.broadcast %25 : vector<1x18xf32> to vector<8x18xf32>
    %46 = arith.mulf %44, %45 : vector<8x18xf32>
    %47 = vector.broadcast %26 : vector<1x18xf32> to vector<8x18xf32>
    %48 = arith.addf %46, %47 : vector<8x18xf32>
    %c0_15 = arith.constant 0 : index
    %c0_16 = arith.constant 0 : index
    %49 = vector.load %arg2[%c0_15, %c0_16] : memref<1000x128xf32, #tpu.memory_space<vmem>>, vector<18x54xf32>
    %cst_17 = arith.constant dense<0.000000e+00> : vector<8x54xf32>
    %50 = tpu.matmul %48, %49, %cst_17 {dimension_numbers = #tpu.dot_dimension_numbers<[1], [0], [0], [1], [0, 0, 1, 1], [], []>} : vector<8x18xf32>, vector<18x54xf32>, vector<8x54xf32> -> vector<8x54xf32>
    %51 = vector.shape_cast %50 : vector<8x54xf32> to vector<1x8x54xf32>
    %52 = vector.extract_strided_slice %51 {offsets = [0, 0, 0], sizes = [1, 8, 9], strides = [1, 1, 1]} : vector<1x8x54xf32> to vector<1x8x9xf32>
    %53 = vector.extract_strided_slice %51 {offsets = [0, 0, 9], sizes = [1, 8, 9], strides = [1, 1, 1]} : vector<1x8x54xf32> to vector<1x8x9xf32>
    %54 = tpu.concatenate %52, %53 in 0 : vector<1x8x9xf32>, vector<1x8x9xf32> -> vector<2x8x9xf32>
    %55 = vector.extract_strided_slice %51 {offsets = [0, 0, 18], sizes = [1, 8, 9], strides = [1, 1, 1]} : vector<1x8x54xf32> to vector<1x8x9xf32>
    %56 = vector.extract_strided_slice %51 {offsets = [0, 0, 27], sizes = [1, 8, 9], strides = [1, 1, 1]} : vector<1x8x54xf32> to vector<1x8x9xf32>
    %57 = tpu.concatenate %55, %56 in 0 : vector<1x8x9xf32>, vector<1x8x9xf32> -> vector<2x8x9xf32>
    %58 = vector.extract_strided_slice %51 {offsets = [0, 0, 36], sizes = [1, 8, 9], strides = [1, 1, 1]} : vector<1x8x54xf32> to vector<1x8x9xf32>
    %59 = vector.extract_strided_slice %51 {offsets = [0, 0, 45], sizes = [1, 8, 9], strides = [1, 1, 1]} : vector<1x8x54xf32> to vector<1x8x9xf32>
    %60 = tpu.concatenate %58, %59 in 0 : vector<1x8x9xf32>, vector<1x8x9xf32> -> vector<2x8x9xf32>
    "tpu.trace_start"() <{level = 10 : i32, message = "bqd,bkd->bqk"}> : () -> ()
    %cst_18 = arith.constant dense<0.000000e+00> : vector<2x8x8xf32>
    %61 = tpu.matmul %54, %57, %cst_18 {dimension_numbers = #tpu.dot_dimension_numbers<[2], [2], [1], [1], [0, 0, 0, 1, 1, 1], [0], [0]>} : vector<2x8x9xf32>, vector<2x8x9xf32>, vector<2x8x8xf32> -> vector<2x8x8xf32>
    "tpu.trace_stop"() : () -> ()
    %cst_19 = arith.constant 0.333333343 : f32
    %62 = vector.broadcast %cst_19 : f32 to vector<2x8x8xf32>
    %63 = arith.mulf %61, %62 : vector<2x8x8xf32>
    %cst_20 = arith.constant dense<0xFF800000> : vector<2x8xf32>
    %64 = vector.multi_reduction <maximumf>, %63, %cst_20 [2] : vector<2x8x8xf32> to vector<2x8xf32>
    %65 = vector.shape_cast %64 : vector<2x8xf32> to vector<2x8x1xf32>
    %66 = vector.broadcast %65 : vector<2x8x1xf32> to vector<2x8x8xf32>
    %67 = arith.subf %63, %66 : vector<2x8x8xf32>
    %68 = math.exp %67 : vector<2x8x8xf32>
    %cst_21 = arith.constant dense<0.000000e+00> : vector<2x8xf32>
    %69 = vector.multi_reduction <add>, %68, %cst_21 [2] : vector<2x8x8xf32> to vector<2x8xf32>
    %70 = vector.shape_cast %69 : vector<2x8xf32> to vector<2x8x1xf32>
    %71 = tpu.reciprocal %70 {approx = true} : vector<2x8x1xf32> -> vector<2x8x1xf32>
    %72 = vector.broadcast %71 : vector<2x8x1xf32> to vector<2x8x8xf32>
    %73 = arith.mulf %68, %72 : vector<2x8x8xf32>
    "tpu.trace_start"() <{level = 10 : i32, message = "bqk,bkd->bqd"}> : () -> ()
    %cst_22 = arith.constant dense<0.000000e+00> : vector<2x8x9xf32>
    %74 = tpu.matmul %73, %60, %cst_22 {dimension_numbers = #tpu.dot_dimension_numbers<[2], [1], [1], [2], [0, 0, 0, 1, 1, 2], [0], [0]>} : vector<2x8x8xf32>, vector<2x8x9xf32>, vector<2x8x9xf32> -> vector<2x8x9xf32>
    "tpu.trace_stop"() : () -> ()
    %75 = vector.shape_cast %74 : vector<2x8x9xf32> to vector<2x1x8x9xf32>
    %76 = vector.extract_strided_slice %75 {offsets = [0, 0, 0, 0], sizes = [1, 1, 8, 9], strides = [1, 1, 1, 1]} : vector<2x1x8x9xf32> to vector<1x1x8x9xf32>
    %77 = vector.shape_cast %76 : vector<1x1x8x9xf32> to vector<1x8x9xf32>
    %78 = vector.extract_strided_slice %75 {offsets = [1, 0, 0, 0], sizes = [1, 1, 8, 9], strides = [1, 1, 1, 1]} : vector<2x1x8x9xf32> to vector<1x1x8x9xf32>
    %79 = vector.shape_cast %78 : vector<1x1x8x9xf32> to vector<1x8x9xf32>
    %80 = tpu.concatenate %77, %79 in 2 : vector<1x8x9xf32>, vector<1x8x9xf32> -> vector<1x8x18xf32>
    %81 = vector.shape_cast %80 : vector<1x8x18xf32> to vector<8x18xf32>
    %c24 = arith.constant 24 : index
    %c0_23 = arith.constant 0 : index
    %82 = vector.load %arg2[%c24, %c0_23] : memref<1000x128xf32, #tpu.memory_space<vmem>>, vector<18x18xf32>
    %cst_24 = arith.constant dense<0.000000e+00> : vector<8x18xf32>
    %83 = tpu.matmul %81, %82, %cst_24 {dimension_numbers = #tpu.dot_dimension_numbers<[1], [0], [0], [1], [0, 0, 1, 1], [], []>} : vector<8x18xf32>, vector<18x18xf32>, vector<8x18xf32> -> vector<8x18xf32>
    %84 = arith.addf %24, %83 : vector<8x18xf32>
    %c4 = arith.constant 4 : index
    %c0_25 = arith.constant 0 : index
    %85 = vector.load %arg3[%c4, %c0_25] : memref<56x128xf32, #tpu.memory_space<vmem>>, vector<1x18xf32>
    %86 = vector.broadcast %85 : vector<1x18xf32> to vector<8x18xf32>
    %87 = arith.addf %84, %86 : vector<8x18xf32>
    %c5 = arith.constant 5 : index
    %c0_26 = arith.constant 0 : index
    %88 = vector.load %arg3[%c5, %c0_26] : memref<56x128xf32, #tpu.memory_space<vmem>>, vector<1x18xf32>
    %c6 = arith.constant 6 : index
    %c0_27 = arith.constant 0 : index
    %89 = vector.load %arg3[%c6, %c0_27] : memref<56x128xf32, #tpu.memory_space<vmem>>, vector<1x18xf32>
    %cst_28 = arith.constant dense<0.000000e+00> : vector<8xf32>
    %90 = vector.multi_reduction <add>, %87, %cst_28 [1] : vector<8x18xf32> to vector<8xf32>
    %91 = vector.shape_cast %90 : vector<8xf32> to vector<8x1xf32>
    %cst_29 = arith.constant 1.800000e+01 : f32
    %92 = vector.broadcast %cst_29 : f32 to vector<8x1xf32>
    %93 = arith.divf %91, %92 : vector<8x1xf32>
    %94 = vector.broadcast %93 : vector<8x1xf32> to vector<8x18xf32>
    %95 = arith.subf %87, %94 : vector<8x18xf32>
    %96 = arith.mulf %95, %95 : vector<8x18xf32>
    %cst_30 = arith.constant dense<0.000000e+00> : vector<8xf32>
    %97 = vector.multi_reduction <add>, %96, %cst_30 [1] : vector<8x18xf32> to vector<8xf32>
    %98 = vector.shape_cast %97 : vector<8xf32> to vector<8x1xf32>
    %cst_31 = arith.constant 1.800000e+01 : f32
    %99 = vector.broadcast %cst_31 : f32 to vector<8x1xf32>
    %100 = arith.divf %98, %99 : vector<8x1xf32>
    %101 = vector.broadcast %93 : vector<8x1xf32> to vector<8x18xf32>
    %102 = arith.subf %87, %101 : vector<8x18xf32>
    %cst_32 = arith.constant 9.99999974E-6 : f32
    %103 = vector.broadcast %cst_32 : f32 to vector<8x1xf32>
    %104 = arith.addf %100, %103 : vector<8x1xf32>
    %105 = math.rsqrt %104 : vector<8x1xf32>
    %106 = vector.broadcast %105 : vector<8x1xf32> to vector<8x18xf32>
    %107 = arith.mulf %102, %106 : vector<8x18xf32>
    %108 = vector.broadcast %88 : vector<1x18xf32> to vector<8x18xf32>
    %109 = arith.mulf %107, %108 : vector<8x18xf32>
    %110 = vector.broadcast %89 : vector<1x18xf32> to vector<8x18xf32>
    %111 = arith.addf %109, %110 : vector<8x18xf32>
    %c48 = arith.constant 48 : index
    %c0_33 = arith.constant 0 : index
    %112 = vector.load %arg2[%c48, %c0_33] : memref<1000x128xf32, #tpu.memory_space<vmem>>, vector<18x72xf32>
    %cst_34 = arith.constant dense<0.000000e+00> : vector<8x72xf32>
    %113 = tpu.matmul %111, %112, %cst_34 {dimension_numbers = #tpu.dot_dimension_numbers<[1], [0], [0], [1], [0, 0, 1, 1], [], []>} : vector<8x18xf32>, vector<18x72xf32>, vector<8x72xf32> -> vector<8x72xf32>
    %c7 = arith.constant 7 : index
    %c0_35 = arith.constant 0 : index
    %114 = vector.load %arg3[%c7, %c0_35] : memref<56x128xf32, #tpu.memory_space<vmem>>, vector<1x72xf32>
    %115 = vector.broadcast %114 : vector<1x72xf32> to vector<8x72xf32>
    %116 = arith.addf %113, %115 : vector<8x72xf32>
    %cst_36 = arith.constant 0.000000e+00 : f32
    %117 = vector.broadcast %cst_36 : f32 to vector<8x72xf32>
    %118 = arith.maximumf %116, %117 : vector<8x72xf32>
    %c72 = arith.constant 72 : index
    %c0_37 = arith.constant 0 : index
    %119 = vector.load %arg2[%c72, %c0_37] : memref<1000x128xf32, #tpu.memory_space<vmem>>, vector<72x18xf32>
    %cst_38 = arith.constant dense<0.000000e+00> : vector<8x18xf32>
    %120 = tpu.matmul %118, %119, %cst_38 {dimension_numbers = #tpu.dot_dimension_numbers<[1], [0], [0], [1], [0, 0, 1, 1], [], []>} : vector<8x72xf32>, vector<72x18xf32>, vector<8x18xf32> -> vector<8x18xf32>
    %c8 = arith.constant 8 : index
    %c0_39 = arith.constant 0 : index
    %121 = vector.load %arg3[%c8, %c0_39] : memref<56x128xf32, #tpu.memory_space<vmem>>, vector<1x18xf32>
    %122 = vector.broadcast %121 : vector<1x18xf32> to vector<8x18xf32>
    %123 = arith.addf %120, %122 : vector<8x18xf32>
    %124 = arith.addf %87, %123 : vector<8x18xf32>
    %c144 = arith.constant 144 : index
    %c0_40 = arith.constant 0 : index
    %125 = vector.load %arg2[%c144, %c0_40] : memref<1000x128xf32, #tpu.memory_space<vmem>>, vector<18x32xf32>
    %cst_41 = arith.constant dense<0.000000e+00> : vector<8x32xf32>
    %126 = tpu.matmul %124, %125, %cst_41 {dimension_numbers = #tpu.dot_dimension_numbers<[1], [0], [0], [1], [0, 0, 1, 1], [], []>} : vector<8x18xf32>, vector<18x32xf32>, vector<8x32xf32> -> vector<8x32xf32>
    %c9 = arith.constant 9 : index
    %c0_42 = arith.constant 0 : index
    %127 = vector.load %arg3[%c9, %c0_42] : memref<56x128xf32, #tpu.memory_space<vmem>>, vector<1x32xf32>
    %128 = vector.broadcast %127 : vector<1x32xf32> to vector<8x32xf32>
    %129 = arith.addf %126, %128 : vector<8x32xf32>
    %cst_43 = arith.constant 0.000000e+00 : f32
    %130 = vector.broadcast %cst_43 : f32 to vector<8x32xf32>
    %131 = arith.maximumf %129, %130 : vector<8x32xf32>
    %c10 = arith.constant 10 : index
    %c0_44 = arith.constant 0 : index
    %132 = vector.load %arg3[%c10, %c0_44] : memref<56x128xf32, #tpu.memory_space<vmem>>, vector<1x32xf32>
    %c11 = arith.constant 11 : index
    %c0_45 = arith.constant 0 : index
    %133 = vector.load %arg3[%c11, %c0_45] : memref<56x128xf32, #tpu.memory_space<vmem>>, vector<1x32xf32>
    %cst_46 = arith.constant dense<0.000000e+00> : vector<8xf32>
    %134 = vector.multi_reduction <add>, %131, %cst_46 [1] : vector<8x32xf32> to vector<8xf32>
    %135 = vector.shape_cast %134 : vector<8xf32> to vector<8x1xf32>
    %cst_47 = arith.constant 3.200000e+01 : f32
    %136 = vector.broadcast %cst_47 : f32 to vector<8x1xf32>
    %137 = arith.divf %135, %136 : vector<8x1xf32>
    %138 = vector.broadcast %137 : vector<8x1xf32> to vector<8x32xf32>
    %139 = arith.subf %131, %138 : vector<8x32xf32>
    %140 = arith.mulf %139, %139 : vector<8x32xf32>
    %cst_48 = arith.constant dense<0.000000e+00> : vector<8xf32>
    %141 = vector.multi_reduction <add>, %140, %cst_48 [1] : vector<8x32xf32> to vector<8xf32>
    %142 = vector.shape_cast %141 : vector<8xf32> to vector<8x1xf32>
    %cst_49 = arith.constant 3.200000e+01 : f32
    %143 = vector.broadcast %cst_49 : f32 to vector<8x1xf32>
    %144 = arith.divf %142, %143 : vector<8x1xf32>
    %145 = vector.broadcast %137 : vector<8x1xf32> to vector<8x32xf32>
    %146 = arith.subf %131, %145 : vector<8x32xf32>
    %cst_50 = arith.constant 9.99999974E-6 : f32
    %147 = vector.broadcast %cst_50 : f32 to vector<8x1xf32>
    %148 = arith.addf %144, %147 : vector<8x1xf32>
    %149 = math.rsqrt %148 : vector<8x1xf32>
    %150 = vector.broadcast %149 : vector<8x1xf32> to vector<8x32xf32>
    %151 = arith.mulf %146, %150 : vector<8x32xf32>
    %152 = vector.broadcast %132 : vector<1x32xf32> to vector<8x32xf32>
    %153 = arith.mulf %151, %152 : vector<8x32xf32>
    %154 = vector.broadcast %133 : vector<1x32xf32> to vector<8x32xf32>
    %155 = arith.addf %153, %154 : vector<8x32xf32>
    %c168 = arith.constant 168 : index
    %c0_51 = arith.constant 0 : index
    %156 = vector.load %arg2[%c168, %c0_51] : memref<1000x128xf32, #tpu.memory_space<vmem>>, vector<32x96xf32>
    %cst_52 = arith.constant dense<0.000000e+00> : vector<8x96xf32>
    %157 = tpu.matmul %155, %156, %cst_52 {dimension_numbers = #tpu.dot_dimension_numbers<[1], [0], [0], [1], [0, 0, 1, 1], [], []>} : vector<8x32xf32>, vector<32x96xf32>, vector<8x96xf32> -> vector<8x96xf32>
    %158 = vector.shape_cast %157 : vector<8x96xf32> to vector<1x8x96xf32>
    %159 = vector.extract_strided_slice %158 {offsets = [0, 0, 0], sizes = [1, 8, 8], strides = [1, 1, 1]} : vector<1x8x96xf32> to vector<1x8x8xf32>
    %160 = vector.extract_strided_slice %158 {offsets = [0, 0, 8], sizes = [1, 8, 8], strides = [1, 1, 1]} : vector<1x8x96xf32> to vector<1x8x8xf32>
    %161 = vector.extract_strided_slice %158 {offsets = [0, 0, 16], sizes = [1, 8, 8], strides = [1, 1, 1]} : vector<1x8x96xf32> to vector<1x8x8xf32>
    %162 = vector.extract_strided_slice %158 {offsets = [0, 0, 24], sizes = [1, 8, 8], strides = [1, 1, 1]} : vector<1x8x96xf32> to vector<1x8x8xf32>
    %163 = tpu.concatenate %159, %160, %161, %162 in 0 : vector<1x8x8xf32>, vector<1x8x8xf32>, vector<1x8x8xf32>, vector<1x8x8xf32> -> vector<4x8x8xf32>
    %164 = vector.extract_strided_slice %158 {offsets = [0, 0, 32], sizes = [1, 8, 8], strides = [1, 1, 1]} : vector<1x8x96xf32> to vector<1x8x8xf32>
    %165 = vector.extract_strided_slice %158 {offsets = [0, 0, 40], sizes = [1, 8, 8], strides = [1, 1, 1]} : vector<1x8x96xf32> to vector<1x8x8xf32>
    %166 = vector.extract_strided_slice %158 {offsets = [0, 0, 48], sizes = [1, 8, 8], strides = [1, 1, 1]} : vector<1x8x96xf32> to vector<1x8x8xf32>
    %167 = vector.extract_strided_slice %158 {offsets = [0, 0, 56], sizes = [1, 8, 8], strides = [1, 1, 1]} : vector<1x8x96xf32> to vector<1x8x8xf32>
    %168 = tpu.concatenate %164, %165, %166, %167 in 0 : vector<1x8x8xf32>, vector<1x8x8xf32>, vector<1x8x8xf32>, vector<1x8x8xf32> -> vector<4x8x8xf32>
    %169 = vector.extract_strided_slice %158 {offsets = [0, 0, 64], sizes = [1, 8, 8], strides = [1, 1, 1]} : vector<1x8x96xf32> to vector<1x8x8xf32>
    %170 = vector.extract_strided_slice %158 {offsets = [0, 0, 72], sizes = [1, 8, 8], strides = [1, 1, 1]} : vector<1x8x96xf32> to vector<1x8x8xf32>
    %171 = vector.extract_strided_slice %158 {offsets = [0, 0, 80], sizes = [1, 8, 8], strides = [1, 1, 1]} : vector<1x8x96xf32> to vector<1x8x8xf32>
    %172 = vector.extract_strided_slice %158 {offsets = [0, 0, 88], sizes = [1, 8, 8], strides = [1, 1, 1]} : vector<1x8x96xf32> to vector<1x8x8xf32>
    %173 = tpu.concatenate %169, %170, %171, %172 in 0 : vector<1x8x8xf32>, vector<1x8x8xf32>, vector<1x8x8xf32>, vector<1x8x8xf32> -> vector<4x8x8xf32>
    "tpu.trace_start"() <{level = 10 : i32, message = "bqd,bkd->bqk"}> : () -> ()
    %cst_53 = arith.constant dense<0.000000e+00> : vector<4x8x8xf32>
    %174 = tpu.matmul %163, %168, %cst_53 {dimension_numbers = #tpu.dot_dimension_numbers<[2], [2], [1], [1], [0, 0, 0, 1, 1, 1], [0], [0]>} : vector<4x8x8xf32>, vector<4x8x8xf32>, vector<4x8x8xf32> -> vector<4x8x8xf32>
    "tpu.trace_stop"() : () -> ()
    %cst_54 = arith.constant 0.353553385 : f32
    %175 = vector.broadcast %cst_54 : f32 to vector<4x8x8xf32>
    %176 = arith.mulf %174, %175 : vector<4x8x8xf32>
    %cst_55 = arith.constant dense<0xFF800000> : vector<4x8xf32>
    %177 = vector.multi_reduction <maximumf>, %176, %cst_55 [2] : vector<4x8x8xf32> to vector<4x8xf32>
    %178 = vector.shape_cast %177 : vector<4x8xf32> to vector<4x8x1xf32>
    %179 = vector.broadcast %178 : vector<4x8x1xf32> to vector<4x8x8xf32>
    %180 = arith.subf %176, %179 : vector<4x8x8xf32>
    %181 = math.exp %180 : vector<4x8x8xf32>
    %cst_56 = arith.constant dense<0.000000e+00> : vector<4x8xf32>
    %182 = vector.multi_reduction <add>, %181, %cst_56 [2] : vector<4x8x8xf32> to vector<4x8xf32>
    %183 = vector.shape_cast %182 : vector<4x8xf32> to vector<4x8x1xf32>
    %184 = tpu.reciprocal %183 {approx = true} : vector<4x8x1xf32> -> vector<4x8x1xf32>
    %185 = vector.broadcast %184 : vector<4x8x1xf32> to vector<4x8x8xf32>
    %186 = arith.mulf %181, %185 : vector<4x8x8xf32>
    "tpu.trace_start"() <{level = 10 : i32, message = "bqk,bkd->bqd"}> : () -> ()
    %cst_57 = arith.constant dense<0.000000e+00> : vector<4x8x8xf32>
    %187 = tpu.matmul %186, %173, %cst_57 {dimension_numbers = #tpu.dot_dimension_numbers<[2], [1], [1], [2], [0, 0, 0, 1, 1, 2], [0], [0]>} : vector<4x8x8xf32>, vector<4x8x8xf32>, vector<4x8x8xf32> -> vector<4x8x8xf32>
    "tpu.trace_stop"() : () -> ()
    %188 = vector.shape_cast %187 : vector<4x8x8xf32> to vector<4x1x8x8xf32>
    %189 = vector.extract_strided_slice %188 {offsets = [0, 0, 0, 0], sizes = [1, 1, 8, 8], strides = [1, 1, 1, 1]} : vector<4x1x8x8xf32> to vector<1x1x8x8xf32>
    %190 = vector.shape_cast %189 : vector<1x1x8x8xf32> to vector<1x8x8xf32>
    %191 = vector.extract_strided_slice %188 {offsets = [1, 0, 0, 0], sizes = [1, 1, 8, 8], strides = [1, 1, 1, 1]} : vector<4x1x8x8xf32> to vector<1x1x8x8xf32>
    %192 = vector.shape_cast %191 : vector<1x1x8x8xf32> to vector<1x8x8xf32>
    %193 = vector.extract_strided_slice %188 {offsets = [2, 0, 0, 0], sizes = [1, 1, 8, 8], strides = [1, 1, 1, 1]} : vector<4x1x8x8xf32> to vector<1x1x8x8xf32>
    %194 = vector.shape_cast %193 : vector<1x1x8x8xf32> to vector<1x8x8xf32>
    %195 = vector.extract_strided_slice %188 {offsets = [3, 0, 0, 0], sizes = [1, 1, 8, 8], strides = [1, 1, 1, 1]} : vector<4x1x8x8xf32> to vector<1x1x8x8xf32>
    %196 = vector.shape_cast %195 : vector<1x1x8x8xf32> to vector<1x8x8xf32>
    %197 = tpu.concatenate %190, %192, %194, %196 in 2 : vector<1x8x8xf32>, vector<1x8x8xf32>, vector<1x8x8xf32>, vector<1x8x8xf32> -> vector<1x8x32xf32>
    %198 = vector.shape_cast %197 : vector<1x8x32xf32> to vector<8x32xf32>
    %c200 = arith.constant 200 : index
    %c0_58 = arith.constant 0 : index
    %199 = vector.load %arg2[%c200, %c0_58] : memref<1000x128xf32, #tpu.memory_space<vmem>>, vector<32x32xf32>
    %cst_59 = arith.constant dense<0.000000e+00> : vector<8x32xf32>
    %200 = tpu.matmul %198, %199, %cst_59 {dimension_numbers = #tpu.dot_dimension_numbers<[1], [0], [0], [1], [0, 0, 1, 1], [], []>} : vector<8x32xf32>, vector<32x32xf32>, vector<8x32xf32> -> vector<8x32xf32>
    %201 = arith.addf %131, %200 : vector<8x32xf32>
    %c12 = arith.constant 12 : index
    %c0_60 = arith.constant 0 : index
    %202 = vector.load %arg3[%c12, %c0_60] : memref<56x128xf32, #tpu.memory_space<vmem>>, vector<1x32xf32>
    %203 = vector.broadcast %202 : vector<1x32xf32> to vector<8x32xf32>
    %204 = arith.addf %201, %203 : vector<8x32xf32>
    %c13 = arith.constant 13 : index
    %c0_61 = arith.constant 0 : index
    %205 = vector.load %arg3[%c13, %c0_61] : memref<56x128xf32, #tpu.memory_space<vmem>>, vector<1x32xf32>
    %c14 = arith.constant 14 : index
    %c0_62 = arith.constant 0 : index
    %206 = vector.load %arg3[%c14, %c0_62] : memref<56x128xf32, #tpu.memory_space<vmem>>, vector<1x32xf32>
    %cst_63 = arith.constant dense<0.000000e+00> : vector<8xf32>
    %207 = vector.multi_reduction <add>, %204, %cst_63 [1] : vector<8x32xf32> to vector<8xf32>
    %208 = vector.shape_cast %207 : vector<8xf32> to vector<8x1xf32>
    %cst_64 = arith.constant 3.200000e+01 : f32
    %209 = vector.broadcast %cst_64 : f32 to vector<8x1xf32>
    %210 = arith.divf %208, %209 : vector<8x1xf32>
    %211 = vector.broadcast %210 : vector<8x1xf32> to vector<8x32xf32>
    %212 = arith.subf %204, %211 : vector<8x32xf32>
    %213 = arith.mulf %212, %212 : vector<8x32xf32>
    %cst_65 = arith.constant dense<0.000000e+00> : vector<8xf32>
    %214 = vector.multi_reduction <add>, %213, %cst_65 [1] : vector<8x32xf32> to vector<8xf32>
    %215 = vector.shape_cast %214 : vector<8xf32> to vector<8x1xf32>
    %cst_66 = arith.constant 3.200000e+01 : f32
    %216 = vector.broadcast %cst_66 : f32 to vector<8x1xf32>
    %217 = arith.divf %215, %216 : vector<8x1xf32>
    %218 = vector.broadcast %210 : vector<8x1xf32> to vector<8x32xf32>
    %219 = arith.subf %204, %218 : vector<8x32xf32>
    %cst_67 = arith.constant 9.99999974E-6 : f32
    %220 = vector.broadcast %cst_67 : f32 to vector<8x1xf32>
    %221 = arith.addf %217, %220 : vector<8x1xf32>
    %222 = math.rsqrt %221 : vector<8x1xf32>
    %223 = vector.broadcast %222 : vector<8x1xf32> to vector<8x32xf32>
    %224 = arith.mulf %219, %223 : vector<8x32xf32>
    %225 = vector.broadcast %205 : vector<1x32xf32> to vector<8x32xf32>
    %226 = arith.mulf %224, %225 : vector<8x32xf32>
    %227 = vector.broadcast %206 : vector<1x32xf32> to vector<8x32xf32>
    %228 = arith.addf %226, %227 : vector<8x32xf32>
    %c232 = arith.constant 232 : index
    %c0_68 = arith.constant 0 : index
    %229 = vector.load %arg2[%c232, %c0_68] : memref<1000x128xf32, #tpu.memory_space<vmem>>, vector<32x128xf32>
    %cst_69 = arith.constant dense<0.000000e+00> : vector<8x128xf32>
    %230 = tpu.matmul %228, %229, %cst_69 {dimension_numbers = #tpu.dot_dimension_numbers<[1], [0], [0], [1], [0, 0, 1, 1], [], []>} : vector<8x32xf32>, vector<32x128xf32>, vector<8x128xf32> -> vector<8x128xf32>
    %c15 = arith.constant 15 : index
    %c0_70 = arith.constant 0 : index
    %231 = vector.load %arg3[%c15, %c0_70] : memref<56x128xf32, #tpu.memory_space<vmem>>, vector<1x128xf32>
    %232 = vector.broadcast %231 : vector<1x128xf32> to vector<8x128xf32>
    %233 = arith.addf %230, %232 : vector<8x128xf32>
    %cst_71 = arith.constant 0.000000e+00 : f32
    %234 = vector.broadcast %cst_71 : f32 to vector<8x128xf32>
    %235 = arith.maximumf %233, %234 : vector<8x128xf32>
    %c264 = arith.constant 264 : index
    %c0_72 = arith.constant 0 : index
    %236 = vector.load %arg2[%c264, %c0_72] : memref<1000x128xf32, #tpu.memory_space<vmem>>, vector<128x32xf32>
    %cst_73 = arith.constant dense<0.000000e+00> : vector<8x32xf32>
    %237 = tpu.matmul %235, %236, %cst_73 {dimension_numbers = #tpu.dot_dimension_numbers<[1], [0], [0], [1], [0, 0, 1, 1], [], []>} : vector<8x128xf32>, vector<128x32xf32>, vector<8x32xf32> -> vector<8x32xf32>
    %c16 = arith.constant 16 : index
    %c0_74 = arith.constant 0 : index
    %238 = vector.load %arg3[%c16, %c0_74] : memref<56x128xf32, #tpu.memory_space<vmem>>, vector<1x32xf32>
    %239 = vector.broadcast %238 : vector<1x32xf32> to vector<8x32xf32>
    %240 = arith.addf %237, %239 : vector<8x32xf32>
    %241 = arith.addf %204, %240 : vector<8x32xf32>
    %c392 = arith.constant 392 : index
    %c0_75 = arith.constant 0 : index
    %242 = vector.load %arg2[%c392, %c0_75] : memref<1000x128xf32, #tpu.memory_space<vmem>>, vector<32x16xf32>
    %cst_76 = arith.constant dense<0.000000e+00> : vector<8x16xf32>
    %243 = tpu.matmul %241, %242, %cst_76 {dimension_numbers = #tpu.dot_dimension_numbers<[1], [0], [0], [1], [0, 0, 1, 1], [], []>} : vector<8x32xf32>, vector<32x16xf32>, vector<8x16xf32> -> vector<8x16xf32>
    %c17 = arith.constant 17 : index
    %c0_77 = arith.constant 0 : index
    %244 = vector.load %arg3[%c17, %c0_77] : memref<56x128xf32, #tpu.memory_space<vmem>>, vector<1x16xf32>
    %245 = vector.broadcast %244 : vector<1x16xf32> to vector<8x16xf32>
    %246 = arith.addf %243, %245 : vector<8x16xf32>
    %cst_78 = arith.constant 0.000000e+00 : f32
    %247 = vector.broadcast %cst_78 : f32 to vector<8x16xf32>
    %248 = arith.maximumf %246, %247 : vector<8x16xf32>
    %c18 = arith.constant 18 : index
    %c0_79 = arith.constant 0 : index
    %249 = vector.load %arg3[%c18, %c0_79] : memref<56x128xf32, #tpu.memory_space<vmem>>, vector<1x16xf32>
    %c19 = arith.constant 19 : index
    %c0_80 = arith.constant 0 : index
    %250 = vector.load %arg3[%c19, %c0_80] : memref<56x128xf32, #tpu.memory_space<vmem>>, vector<1x16xf32>
    %cst_81 = arith.constant dense<0.000000e+00> : vector<8xf32>
    %251 = vector.multi_reduction <add>, %248, %cst_81 [1] : vector<8x16xf32> to vector<8xf32>
    %252 = vector.shape_cast %251 : vector<8xf32> to vector<8x1xf32>
    %cst_82 = arith.constant 1.600000e+01 : f32
    %253 = vector.broadcast %cst_82 : f32 to vector<8x1xf32>
    %254 = arith.divf %252, %253 : vector<8x1xf32>
    %255 = vector.broadcast %254 : vector<8x1xf32> to vector<8x16xf32>
    %256 = arith.subf %248, %255 : vector<8x16xf32>
    %257 = arith.mulf %256, %256 : vector<8x16xf32>
    %cst_83 = arith.constant dense<0.000000e+00> : vector<8xf32>
    %258 = vector.multi_reduction <add>, %257, %cst_83 [1] : vector<8x16xf32> to vector<8xf32>
    %259 = vector.shape_cast %258 : vector<8xf32> to vector<8x1xf32>
    %cst_84 = arith.constant 1.600000e+01 : f32
    %260 = vector.broadcast %cst_84 : f32 to vector<8x1xf32>
    %261 = arith.divf %259, %260 : vector<8x1xf32>
    %262 = vector.broadcast %254 : vector<8x1xf32> to vector<8x16xf32>
    %263 = arith.subf %248, %262 : vector<8x16xf32>
    %cst_85 = arith.constant 9.99999974E-6 : f32
    %264 = vector.broadcast %cst_85 : f32 to vector<8x1xf32>
    %265 = arith.addf %261, %264 : vector<8x1xf32>
    %266 = math.rsqrt %265 : vector<8x1xf32>
    %267 = vector.broadcast %266 : vector<8x1xf32> to vector<8x16xf32>
    %268 = arith.mulf %263, %267 : vector<8x16xf32>
    %269 = vector.broadcast %249 : vector<1x16xf32> to vector<8x16xf32>
    %270 = arith.mulf %268, %269 : vector<8x16xf32>
    %271 = vector.broadcast %250 : vector<1x16xf32> to vector<8x16xf32>
    %272 = arith.addf %270, %271 : vector<8x16xf32>
    %c424 = arith.constant 424 : index
    %c0_86 = arith.constant 0 : index
    %273 = vector.load %arg2[%c424, %c0_86] : memref<1000x128xf32, #tpu.memory_space<vmem>>, vector<16x48xf32>
    %cst_87 = arith.constant dense<0.000000e+00> : vector<8x48xf32>
    %274 = tpu.matmul %272, %273, %cst_87 {dimension_numbers = #tpu.dot_dimension_numbers<[1], [0], [0], [1], [0, 0, 1, 1], [], []>} : vector<8x16xf32>, vector<16x48xf32>, vector<8x48xf32> -> vector<8x48xf32>
    %275 = vector.shape_cast %274 : vector<8x48xf32> to vector<1x8x48xf32>
    %276 = vector.extract_strided_slice %275 {offsets = [0, 0, 0], sizes = [1, 8, 4], strides = [1, 1, 1]} : vector<1x8x48xf32> to vector<1x8x4xf32>
    %277 = vector.extract_strided_slice %275 {offsets = [0, 0, 4], sizes = [1, 8, 4], strides = [1, 1, 1]} : vector<1x8x48xf32> to vector<1x8x4xf32>
    %278 = vector.extract_strided_slice %275 {offsets = [0, 0, 8], sizes = [1, 8, 4], strides = [1, 1, 1]} : vector<1x8x48xf32> to vector<1x8x4xf32>
    %279 = vector.extract_strided_slice %275 {offsets = [0, 0, 12], sizes = [1, 8, 4], strides = [1, 1, 1]} : vector<1x8x48xf32> to vector<1x8x4xf32>
    %280 = tpu.concatenate %276, %277, %278, %279 in 0 : vector<1x8x4xf32>, vector<1x8x4xf32>, vector<1x8x4xf32>, vector<1x8x4xf32> -> vector<4x8x4xf32>
    %281 = vector.extract_strided_slice %275 {offsets = [0, 0, 16], sizes = [1, 8, 4], strides = [1, 1, 1]} : vector<1x8x48xf32> to vector<1x8x4xf32>
    %282 = vector.extract_strided_slice %275 {offsets = [0, 0, 20], sizes = [1, 8, 4], strides = [1, 1, 1]} : vector<1x8x48xf32> to vector<1x8x4xf32>
    %283 = vector.extract_strided_slice %275 {offsets = [0, 0, 24], sizes = [1, 8, 4], strides = [1, 1, 1]} : vector<1x8x48xf32> to vector<1x8x4xf32>
    %284 = vector.extract_strided_slice %275 {offsets = [0, 0, 28], sizes = [1, 8, 4], strides = [1, 1, 1]} : vector<1x8x48xf32> to vector<1x8x4xf32>
    %285 = tpu.concatenate %281, %282, %283, %284 in 0 : vector<1x8x4xf32>, vector<1x8x4xf32>, vector<1x8x4xf32>, vector<1x8x4xf32> -> vector<4x8x4xf32>
    %286 = vector.extract_strided_slice %275 {offsets = [0, 0, 32], sizes = [1, 8, 4], strides = [1, 1, 1]} : vector<1x8x48xf32> to vector<1x8x4xf32>
    %287 = vector.extract_strided_slice %275 {offsets = [0, 0, 36], sizes = [1, 8, 4], strides = [1, 1, 1]} : vector<1x8x48xf32> to vector<1x8x4xf32>
    %288 = vector.extract_strided_slice %275 {offsets = [0, 0, 40], sizes = [1, 8, 4], strides = [1, 1, 1]} : vector<1x8x48xf32> to vector<1x8x4xf32>
    %289 = vector.extract_strided_slice %275 {offsets = [0, 0, 44], sizes = [1, 8, 4], strides = [1, 1, 1]} : vector<1x8x48xf32> to vector<1x8x4xf32>
    %290 = tpu.concatenate %286, %287, %288, %289 in 0 : vector<1x8x4xf32>, vector<1x8x4xf32>, vector<1x8x4xf32>, vector<1x8x4xf32> -> vector<4x8x4xf32>
    "tpu.trace_start"() <{level = 10 : i32, message = "bqd,bkd->bqk"}> : () -> ()
    %cst_88 = arith.constant dense<0.000000e+00> : vector<4x8x8xf32>
    %291 = tpu.matmul %280, %285, %cst_88 {dimension_numbers = #tpu.dot_dimension_numbers<[2], [2], [1], [1], [0, 0, 0, 1, 1, 1], [0], [0]>} : vector<4x8x4xf32>, vector<4x8x4xf32>, vector<4x8x8xf32> -> vector<4x8x8xf32>
    "tpu.trace_stop"() : () -> ()
    %cst_89 = arith.constant 5.000000e-01 : f32
    %292 = vector.broadcast %cst_89 : f32 to vector<4x8x8xf32>
    %293 = arith.mulf %291, %292 : vector<4x8x8xf32>
    %cst_90 = arith.constant dense<0xFF800000> : vector<4x8xf32>
    %294 = vector.multi_reduction <maximumf>, %293, %cst_90 [2] : vector<4x8x8xf32> to vector<4x8xf32>
    %295 = vector.shape_cast %294 : vector<4x8xf32> to vector<4x8x1xf32>
    %296 = vector.broadcast %295 : vector<4x8x1xf32> to vector<4x8x8xf32>
    %297 = arith.subf %293, %296 : vector<4x8x8xf32>
    %298 = math.exp %297 : vector<4x8x8xf32>
    %cst_91 = arith.constant dense<0.000000e+00> : vector<4x8xf32>
    %299 = vector.multi_reduction <add>, %298, %cst_91 [2] : vector<4x8x8xf32> to vector<4x8xf32>
    %300 = vector.shape_cast %299 : vector<4x8xf32> to vector<4x8x1xf32>
    %301 = tpu.reciprocal %300 {approx = true} : vector<4x8x1xf32> -> vector<4x8x1xf32>
    %302 = vector.broadcast %301 : vector<4x8x1xf32> to vector<4x8x8xf32>
    %303 = arith.mulf %298, %302 : vector<4x8x8xf32>
    "tpu.trace_start"() <{level = 10 : i32, message = "bqk,bkd->bqd"}> : () -> ()
    %cst_92 = arith.constant dense<0.000000e+00> : vector<4x8x4xf32>
    %304 = tpu.matmul %303, %290, %cst_92 {dimension_numbers = #tpu.dot_dimension_numbers<[2], [1], [1], [2], [0, 0, 0, 1, 1, 2], [0], [0]>} : vector<4x8x8xf32>, vector<4x8x4xf32>, vector<4x8x4xf32> -> vector<4x8x4xf32>
    "tpu.trace_stop"() : () -> ()
    %305 = vector.shape_cast %304 : vector<4x8x4xf32> to vector<4x1x8x4xf32>
    %306 = vector.extract_strided_slice %305 {offsets = [0, 0, 0, 0], sizes = [1, 1, 8, 4], strides = [1, 1, 1, 1]} : vector<4x1x8x4xf32> to vector<1x1x8x4xf32>
    %307 = vector.shape_cast %306 : vector<1x1x8x4xf32> to vector<1x8x4xf32>
    %308 = vector.extract_strided_slice %305 {offsets = [1, 0, 0, 0], sizes = [1, 1, 8, 4], strides = [1, 1, 1, 1]} : vector<4x1x8x4xf32> to vector<1x1x8x4xf32>
    %309 = vector.shape_cast %308 : vector<1x1x8x4xf32> to vector<1x8x4xf32>
    %310 = vector.extract_strided_slice %305 {offsets = [2, 0, 0, 0], sizes = [1, 1, 8, 4], strides = [1, 1, 1, 1]} : vector<4x1x8x4xf32> to vector<1x1x8x4xf32>
    %311 = vector.shape_cast %310 : vector<1x1x8x4xf32> to vector<1x8x4xf32>
    %312 = vector.extract_strided_slice %305 {offsets = [3, 0, 0, 0], sizes = [1, 1, 8, 4], strides = [1, 1, 1, 1]} : vector<4x1x8x4xf32> to vector<1x1x8x4xf32>
    %313 = vector.shape_cast %312 : vector<1x1x8x4xf32> to vector<1x8x4xf32>
    %314 = tpu.concatenate %307, %309, %311, %313 in 2 : vector<1x8x4xf32>, vector<1x8x4xf32>, vector<1x8x4xf32>, vector<1x8x4xf32> -> vector<1x8x16xf32>
    %315 = vector.shape_cast %314 : vector<1x8x16xf32> to vector<8x16xf32>
    %c440 = arith.constant 440 : index
    %c0_93 = arith.constant 0 : index
    %316 = vector.load %arg2[%c440, %c0_93] : memref<1000x128xf32, #tpu.memory_space<vmem>>, vector<16x16xf32>
    %cst_94 = arith.constant dense<0.000000e+00> : vector<8x16xf32>
    %317 = tpu.matmul %315, %316, %cst_94 {dimension_numbers = #tpu.dot_dimension_numbers<[1], [0], [0], [1], [0, 0, 1, 1], [], []>} : vector<8x16xf32>, vector<16x16xf32>, vector<8x16xf32> -> vector<8x16xf32>
    %318 = arith.addf %248, %317 : vector<8x16xf32>
    %c20 = arith.constant 20 : index
    %c0_95 = arith.constant 0 : index
    %319 = vector.load %arg3[%c20, %c0_95] : memref<56x128xf32, #tpu.memory_space<vmem>>, vector<1x16xf32>
    %320 = vector.broadcast %319 : vector<1x16xf32> to vector<8x16xf32>
    %321 = arith.addf %318, %320 : vector<8x16xf32>
    %c21 = arith.constant 21 : index
    %c0_96 = arith.constant 0 : index
    %322 = vector.load %arg3[%c21, %c0_96] : memref<56x128xf32, #tpu.memory_space<vmem>>, vector<1x16xf32>
    %c22 = arith.constant 22 : index
    %c0_97 = arith.constant 0 : index
    %323 = vector.load %arg3[%c22, %c0_97] : memref<56x128xf32, #tpu.memory_space<vmem>>, vector<1x16xf32>
    %cst_98 = arith.constant dense<0.000000e+00> : vector<8xf32>
    %324 = vector.multi_reduction <add>, %321, %cst_98 [1] : vector<8x16xf32> to vector<8xf32>
    %325 = vector.shape_cast %324 : vector<8xf32> to vector<8x1xf32>
    %cst_99 = arith.constant 1.600000e+01 : f32
    %326 = vector.broadcast %cst_99 : f32 to vector<8x1xf32>
    %327 = arith.divf %325, %326 : vector<8x1xf32>
    %328 = vector.broadcast %327 : vector<8x1xf32> to vector<8x16xf32>
    %329 = arith.subf %321, %328 : vector<8x16xf32>
    %330 = arith.mulf %329, %329 : vector<8x16xf32>
    %cst_100 = arith.constant dense<0.000000e+00> : vector<8xf32>
    %331 = vector.multi_reduction <add>, %330, %cst_100 [1] : vector<8x16xf32> to vector<8xf32>
    %332 = vector.shape_cast %331 : vector<8xf32> to vector<8x1xf32>
    %cst_101 = arith.constant 1.600000e+01 : f32
    %333 = vector.broadcast %cst_101 : f32 to vector<8x1xf32>
    %334 = arith.divf %332, %333 : vector<8x1xf32>
    %335 = vector.broadcast %327 : vector<8x1xf32> to vector<8x16xf32>
    %336 = arith.subf %321, %335 : vector<8x16xf32>
    %cst_102 = arith.constant 9.99999974E-6 : f32
    %337 = vector.broadcast %cst_102 : f32 to vector<8x1xf32>
    %338 = arith.addf %334, %337 : vector<8x1xf32>
    %339 = math.rsqrt %338 : vector<8x1xf32>
    %340 = vector.broadcast %339 : vector<8x1xf32> to vector<8x16xf32>
    %341 = arith.mulf %336, %340 : vector<8x16xf32>
    %342 = vector.broadcast %322 : vector<1x16xf32> to vector<8x16xf32>
    %343 = arith.mulf %341, %342 : vector<8x16xf32>
    %344 = vector.broadcast %323 : vector<1x16xf32> to vector<8x16xf32>
    %345 = arith.addf %343, %344 : vector<8x16xf32>
    %c456 = arith.constant 456 : index
    %c0_103 = arith.constant 0 : index
    %346 = vector.load %arg2[%c456, %c0_103] : memref<1000x128xf32, #tpu.memory_space<vmem>>, vector<16x64xf32>
    %cst_104 = arith.constant dense<0.000000e+00> : vector<8x64xf32>
    %347 = tpu.matmul %345, %346, %cst_104 {dimension_numbers = #tpu.dot_dimension_numbers<[1], [0], [0], [1], [0, 0, 1, 1], [], []>} : vector<8x16xf32>, vector<16x64xf32>, vector<8x64xf32> -> vector<8x64xf32>
    %c23 = arith.constant 23 : index
    %c0_105 = arith.constant 0 : index
    %348 = vector.load %arg3[%c23, %c0_105] : memref<56x128xf32, #tpu.memory_space<vmem>>, vector<1x64xf32>
    %349 = vector.broadcast %348 : vector<1x64xf32> to vector<8x64xf32>
    %350 = arith.addf %347, %349 : vector<8x64xf32>
    %cst_106 = arith.constant 0.000000e+00 : f32
    %351 = vector.broadcast %cst_106 : f32 to vector<8x64xf32>
    %352 = arith.maximumf %350, %351 : vector<8x64xf32>
    %c472 = arith.constant 472 : index
    %c0_107 = arith.constant 0 : index
    %353 = vector.load %arg2[%c472, %c0_107] : memref<1000x128xf32, #tpu.memory_space<vmem>>, vector<64x16xf32>
    %cst_108 = arith.constant dense<0.000000e+00> : vector<8x16xf32>
    %354 = tpu.matmul %352, %353, %cst_108 {dimension_numbers = #tpu.dot_dimension_numbers<[1], [0], [0], [1], [0, 0, 1, 1], [], []>} : vector<8x64xf32>, vector<64x16xf32>, vector<8x16xf32> -> vector<8x16xf32>
    %c24_109 = arith.constant 24 : index
    %c0_110 = arith.constant 0 : index
    %355 = vector.load %arg3[%c24_109, %c0_110] : memref<56x128xf32, #tpu.memory_space<vmem>>, vector<1x16xf32>
    %356 = vector.broadcast %355 : vector<1x16xf32> to vector<8x16xf32>
    %357 = arith.addf %354, %356 : vector<8x16xf32>
    %358 = arith.addf %321, %357 : vector<8x16xf32>
    %c536 = arith.constant 536 : index
    %c0_111 = arith.constant 0 : index
    %359 = vector.load %arg2[%c536, %c0_111] : memref<1000x128xf32, #tpu.memory_space<vmem>>, vector<16x8xf32>
    %cst_112 = arith.constant dense<0.000000e+00> : vector<8x8xf32>
    %360 = tpu.matmul %358, %359, %cst_112 {dimension_numbers = #tpu.dot_dimension_numbers<[1], [0], [0], [1], [0, 0, 1, 1], [], []>} : vector<8x16xf32>, vector<16x8xf32>, vector<8x8xf32> -> vector<8x8xf32>
    %c25 = arith.constant 25 : index
    %c0_113 = arith.constant 0 : index
    %361 = vector.load %arg3[%c25, %c0_113] : memref<56x128xf32, #tpu.memory_space<vmem>>, vector<1x8xf32>
    %362 = vector.broadcast %361 : vector<1x8xf32> to vector<8x8xf32>
    %363 = arith.addf %360, %362 : vector<8x8xf32>
    %c26 = arith.constant 26 : index
    %c0_114 = arith.constant 0 : index
    %364 = vector.load %arg3[%c26, %c0_114] : memref<56x128xf32, #tpu.memory_space<vmem>>, vector<1x8xf32>
    %c27 = arith.constant 27 : index
    %c0_115 = arith.constant 0 : index
    %365 = vector.load %arg3[%c27, %c0_115] : memref<56x128xf32, #tpu.memory_space<vmem>>, vector<1x8xf32>
    %cst_116 = arith.constant dense<0.000000e+00> : vector<8xf32>
    %366 = vector.multi_reduction <add>, %363, %cst_116 [1] : vector<8x8xf32> to vector<8xf32>
    %367 = vector.shape_cast %366 : vector<8xf32> to vector<8x1xf32>
    %cst_117 = arith.constant 8.000000e+00 : f32
    %368 = vector.broadcast %cst_117 : f32 to vector<8x1xf32>
    %369 = arith.divf %367, %368 : vector<8x1xf32>
    %370 = vector.broadcast %369 : vector<8x1xf32> to vector<8x8xf32>
    %371 = arith.subf %363, %370 : vector<8x8xf32>
    %372 = arith.mulf %371, %371 : vector<8x8xf32>
    %cst_118 = arith.constant dense<0.000000e+00> : vector<8xf32>
    %373 = vector.multi_reduction <add>, %372, %cst_118 [1] : vector<8x8xf32> to vector<8xf32>
    %374 = vector.shape_cast %373 : vector<8xf32> to vector<8x1xf32>
    %cst_119 = arith.constant 8.000000e+00 : f32
    %375 = vector.broadcast %cst_119 : f32 to vector<8x1xf32>
    %376 = arith.divf %374, %375 : vector<8x1xf32>
    %377 = vector.broadcast %369 : vector<8x1xf32> to vector<8x8xf32>
    %378 = arith.subf %363, %377 : vector<8x8xf32>
    %cst_120 = arith.constant 9.99999974E-6 : f32
    %379 = vector.broadcast %cst_120 : f32 to vector<8x1xf32>
    %380 = arith.addf %376, %379 : vector<8x1xf32>
    %381 = math.rsqrt %380 : vector<8x1xf32>
    %382 = vector.broadcast %381 : vector<8x1xf32> to vector<8x8xf32>
    %383 = arith.mulf %378, %382 : vector<8x8xf32>
    %384 = vector.broadcast %364 : vector<1x8xf32> to vector<8x8xf32>
    %385 = arith.mulf %383, %384 : vector<8x8xf32>
    %386 = vector.broadcast %365 : vector<1x8xf32> to vector<8x8xf32>
    %387 = arith.addf %385, %386 : vector<8x8xf32>
    %c552 = arith.constant 552 : index
    %c0_121 = arith.constant 0 : index
    %388 = vector.load %arg2[%c552, %c0_121] : memref<1000x128xf32, #tpu.memory_space<vmem>>, vector<8x24xf32>
    %cst_122 = arith.constant dense<0.000000e+00> : vector<8x24xf32>
    %389 = tpu.matmul %387, %388, %cst_122 {dimension_numbers = #tpu.dot_dimension_numbers<[1], [0], [0], [1], [0, 0, 1, 1], [], []>} : vector<8x8xf32>, vector<8x24xf32>, vector<8x24xf32> -> vector<8x24xf32>
    %390 = vector.shape_cast %389 : vector<8x24xf32> to vector<1x8x24xf32>
    %391 = vector.extract_strided_slice %390 {offsets = [0, 0, 0], sizes = [1, 8, 4], strides = [1, 1, 1]} : vector<1x8x24xf32> to vector<1x8x4xf32>
    %392 = vector.extract_strided_slice %390 {offsets = [0, 0, 4], sizes = [1, 8, 4], strides = [1, 1, 1]} : vector<1x8x24xf32> to vector<1x8x4xf32>
    %393 = tpu.concatenate %391, %392 in 0 : vector<1x8x4xf32>, vector<1x8x4xf32> -> vector<2x8x4xf32>
    %394 = vector.extract_strided_slice %390 {offsets = [0, 0, 8], sizes = [1, 8, 4], strides = [1, 1, 1]} : vector<1x8x24xf32> to vector<1x8x4xf32>
    %395 = vector.extract_strided_slice %390 {offsets = [0, 0, 12], sizes = [1, 8, 4], strides = [1, 1, 1]} : vector<1x8x24xf32> to vector<1x8x4xf32>
    %396 = tpu.concatenate %394, %395 in 0 : vector<1x8x4xf32>, vector<1x8x4xf32> -> vector<2x8x4xf32>
    %397 = vector.extract_strided_slice %390 {offsets = [0, 0, 16], sizes = [1, 8, 4], strides = [1, 1, 1]} : vector<1x8x24xf32> to vector<1x8x4xf32>
    %398 = vector.extract_strided_slice %390 {offsets = [0, 0, 20], sizes = [1, 8, 4], strides = [1, 1, 1]} : vector<1x8x24xf32> to vector<1x8x4xf32>
    %399 = tpu.concatenate %397, %398 in 0 : vector<1x8x4xf32>, vector<1x8x4xf32> -> vector<2x8x4xf32>
    "tpu.trace_start"() <{level = 10 : i32, message = "bqd,bkd->bqk"}> : () -> ()
    %cst_123 = arith.constant dense<0.000000e+00> : vector<2x8x8xf32>
    %400 = tpu.matmul %393, %396, %cst_123 {dimension_numbers = #tpu.dot_dimension_numbers<[2], [2], [1], [1], [0, 0, 0, 1, 1, 1], [0], [0]>} : vector<2x8x4xf32>, vector<2x8x4xf32>, vector<2x8x8xf32> -> vector<2x8x8xf32>
    "tpu.trace_stop"() : () -> ()
    %cst_124 = arith.constant 5.000000e-01 : f32
    %401 = vector.broadcast %cst_124 : f32 to vector<2x8x8xf32>
    %402 = arith.mulf %400, %401 : vector<2x8x8xf32>
    %cst_125 = arith.constant dense<0xFF800000> : vector<2x8xf32>
    %403 = vector.multi_reduction <maximumf>, %402, %cst_125 [2] : vector<2x8x8xf32> to vector<2x8xf32>
    %404 = vector.shape_cast %403 : vector<2x8xf32> to vector<2x8x1xf32>
    %405 = vector.broadcast %404 : vector<2x8x1xf32> to vector<2x8x8xf32>
    %406 = arith.subf %402, %405 : vector<2x8x8xf32>
    %407 = math.exp %406 : vector<2x8x8xf32>
    %cst_126 = arith.constant dense<0.000000e+00> : vector<2x8xf32>
    %408 = vector.multi_reduction <add>, %407, %cst_126 [2] : vector<2x8x8xf32> to vector<2x8xf32>
    %409 = vector.shape_cast %408 : vector<2x8xf32> to vector<2x8x1xf32>
    %410 = tpu.reciprocal %409 {approx = true} : vector<2x8x1xf32> -> vector<2x8x1xf32>
    %411 = vector.broadcast %410 : vector<2x8x1xf32> to vector<2x8x8xf32>
    %412 = arith.mulf %407, %411 : vector<2x8x8xf32>
    "tpu.trace_start"() <{level = 10 : i32, message = "bqk,bkd->bqd"}> : () -> ()
    %cst_127 = arith.constant dense<0.000000e+00> : vector<2x8x4xf32>
    %413 = tpu.matmul %412, %399, %cst_127 {dimension_numbers = #tpu.dot_dimension_numbers<[2], [1], [1], [2], [0, 0, 0, 1, 1, 2], [0], [0]>} : vector<2x8x8xf32>, vector<2x8x4xf32>, vector<2x8x4xf32> -> vector<2x8x4xf32>
    "tpu.trace_stop"() : () -> ()
    %414 = vector.shape_cast %413 : vector<2x8x4xf32> to vector<2x1x8x4xf32>
    %415 = vector.extract_strided_slice %414 {offsets = [0, 0, 0, 0], sizes = [1, 1, 8, 4], strides = [1, 1, 1, 1]} : vector<2x1x8x4xf32> to vector<1x1x8x4xf32>
    %416 = vector.shape_cast %415 : vector<1x1x8x4xf32> to vector<1x8x4xf32>
    %417 = vector.extract_strided_slice %414 {offsets = [1, 0, 0, 0], sizes = [1, 1, 8, 4], strides = [1, 1, 1, 1]} : vector<2x1x8x4xf32> to vector<1x1x8x4xf32>
    %418 = vector.shape_cast %417 : vector<1x1x8x4xf32> to vector<1x8x4xf32>
    %419 = tpu.concatenate %416, %418 in 2 : vector<1x8x4xf32>, vector<1x8x4xf32> -> vector<1x8x8xf32>
    %420 = vector.shape_cast %419 : vector<1x8x8xf32> to vector<8x8xf32>
    %c560 = arith.constant 560 : index
    %c0_128 = arith.constant 0 : index
    %421 = vector.load %arg2[%c560, %c0_128] : memref<1000x128xf32, #tpu.memory_space<vmem>>, vector<8x8xf32>
    %cst_129 = arith.constant dense<0.000000e+00> : vector<8x8xf32>
    %422 = tpu.matmul %420, %421, %cst_129 {dimension_numbers = #tpu.dot_dimension_numbers<[1], [0], [0], [1], [0, 0, 1, 1], [], []>} : vector<8x8xf32>, vector<8x8xf32>, vector<8x8xf32> -> vector<8x8xf32>
    %423 = arith.addf %363, %422 : vector<8x8xf32>
    %c28 = arith.constant 28 : index
    %c0_130 = arith.constant 0 : index
    %424 = vector.load %arg3[%c28, %c0_130] : memref<56x128xf32, #tpu.memory_space<vmem>>, vector<1x8xf32>
    %425 = vector.broadcast %424 : vector<1x8xf32> to vector<8x8xf32>
    %426 = arith.addf %423, %425 : vector<8x8xf32>
    %c29 = arith.constant 29 : index
    %c0_131 = arith.constant 0 : index
    %427 = vector.load %arg3[%c29, %c0_131] : memref<56x128xf32, #tpu.memory_space<vmem>>, vector<1x8xf32>
    %c30 = arith.constant 30 : index
    %c0_132 = arith.constant 0 : index
    %428 = vector.load %arg3[%c30, %c0_132] : memref<56x128xf32, #tpu.memory_space<vmem>>, vector<1x8xf32>
    %cst_133 = arith.constant dense<0.000000e+00> : vector<8xf32>
    %429 = vector.multi_reduction <add>, %426, %cst_133 [1] : vector<8x8xf32> to vector<8xf32>
    %430 = vector.shape_cast %429 : vector<8xf32> to vector<8x1xf32>
    %cst_134 = arith.constant 8.000000e+00 : f32
    %431 = vector.broadcast %cst_134 : f32 to vector<8x1xf32>
    %432 = arith.divf %430, %431 : vector<8x1xf32>
    %433 = vector.broadcast %432 : vector<8x1xf32> to vector<8x8xf32>
    %434 = arith.subf %426, %433 : vector<8x8xf32>
    %435 = arith.mulf %434, %434 : vector<8x8xf32>
    %cst_135 = arith.constant dense<0.000000e+00> : vector<8xf32>
    %436 = vector.multi_reduction <add>, %435, %cst_135 [1] : vector<8x8xf32> to vector<8xf32>
    %437 = vector.shape_cast %436 : vector<8xf32> to vector<8x1xf32>
    %cst_136 = arith.constant 8.000000e+00 : f32
    %438 = vector.broadcast %cst_136 : f32 to vector<8x1xf32>
    %439 = arith.divf %437, %438 : vector<8x1xf32>
    %440 = vector.broadcast %432 : vector<8x1xf32> to vector<8x8xf32>
    %441 = arith.subf %426, %440 : vector<8x8xf32>
    %cst_137 = arith.constant 9.99999974E-6 : f32
    %442 = vector.broadcast %cst_137 : f32 to vector<8x1xf32>
    %443 = arith.addf %439, %442 : vector<8x1xf32>
    %444 = math.rsqrt %443 : vector<8x1xf32>
    %445 = vector.broadcast %444 : vector<8x1xf32> to vector<8x8xf32>
    %446 = arith.mulf %441, %445 : vector<8x8xf32>
    %447 = vector.broadcast %427 : vector<1x8xf32> to vector<8x8xf32>
    %448 = arith.mulf %446, %447 : vector<8x8xf32>
    %449 = vector.broadcast %428 : vector<1x8xf32> to vector<8x8xf32>
    %450 = arith.addf %448, %449 : vector<8x8xf32>
    %c568 = arith.constant 568 : index
    %c0_138 = arith.constant 0 : index
    %451 = vector.load %arg2[%c568, %c0_138] : memref<1000x128xf32, #tpu.memory_space<vmem>>, vector<8x32xf32>
    %cst_139 = arith.constant dense<0.000000e+00> : vector<8x32xf32>
    %452 = tpu.matmul %450, %451, %cst_139 {dimension_numbers = #tpu.dot_dimension_numbers<[1], [0], [0], [1], [0, 0, 1, 1], [], []>} : vector<8x8xf32>, vector<8x32xf32>, vector<8x32xf32> -> vector<8x32xf32>
    %c31 = arith.constant 31 : index
    %c0_140 = arith.constant 0 : index
    %453 = vector.load %arg3[%c31, %c0_140] : memref<56x128xf32, #tpu.memory_space<vmem>>, vector<1x32xf32>
    %454 = vector.broadcast %453 : vector<1x32xf32> to vector<8x32xf32>
    %455 = arith.addf %452, %454 : vector<8x32xf32>
    %cst_141 = arith.constant 0.000000e+00 : f32
    %456 = vector.broadcast %cst_141 : f32 to vector<8x32xf32>
    %457 = arith.maximumf %455, %456 : vector<8x32xf32>
    %c576 = arith.constant 576 : index
    %c0_142 = arith.constant 0 : index
    %458 = vector.load %arg2[%c576, %c0_142] : memref<1000x128xf32, #tpu.memory_space<vmem>>, vector<32x8xf32>
    %cst_143 = arith.constant dense<0.000000e+00> : vector<8x8xf32>
    %459 = tpu.matmul %457, %458, %cst_143 {dimension_numbers = #tpu.dot_dimension_numbers<[1], [0], [0], [1], [0, 0, 1, 1], [], []>} : vector<8x32xf32>, vector<32x8xf32>, vector<8x8xf32> -> vector<8x8xf32>
    %c32 = arith.constant 32 : index
    %c0_144 = arith.constant 0 : index
    %460 = vector.load %arg3[%c32, %c0_144] : memref<56x128xf32, #tpu.memory_space<vmem>>, vector<1x8xf32>
    %461 = vector.broadcast %460 : vector<1x8xf32> to vector<8x8xf32>
    %462 = arith.addf %459, %461 : vector<8x8xf32>
    %463 = arith.addf %426, %462 : vector<8x8xf32>
    %c608 = arith.constant 608 : index
    %c0_145 = arith.constant 0 : index
    %464 = vector.load %arg2[%c608, %c0_145] : memref<1000x128xf32, #tpu.memory_space<vmem>>, vector<8x16xf32>
    %cst_146 = arith.constant dense<0.000000e+00> : vector<8x16xf32>
    %465 = tpu.matmul %463, %464, %cst_146 {dimension_numbers = #tpu.dot_dimension_numbers<[1], [0], [0], [1], [0, 0, 1, 1], [], []>} : vector<8x8xf32>, vector<8x16xf32>, vector<8x16xf32> -> vector<8x16xf32>
    %c33 = arith.constant 33 : index
    %c0_147 = arith.constant 0 : index
    %466 = vector.load %arg3[%c33, %c0_147] : memref<56x128xf32, #tpu.memory_space<vmem>>, vector<1x16xf32>
    %467 = vector.broadcast %466 : vector<1x16xf32> to vector<8x16xf32>
    %468 = arith.addf %465, %467 : vector<8x16xf32>
    %cst_148 = arith.constant 0.000000e+00 : f32
    %469 = vector.broadcast %cst_148 : f32 to vector<8x16xf32>
    %470 = arith.maximumf %468, %469 : vector<8x16xf32>
    %c34 = arith.constant 34 : index
    %c0_149 = arith.constant 0 : index
    %471 = vector.load %arg3[%c34, %c0_149] : memref<56x128xf32, #tpu.memory_space<vmem>>, vector<1x16xf32>
    %c35 = arith.constant 35 : index
    %c0_150 = arith.constant 0 : index
    %472 = vector.load %arg3[%c35, %c0_150] : memref<56x128xf32, #tpu.memory_space<vmem>>, vector<1x16xf32>
    %cst_151 = arith.constant dense<0.000000e+00> : vector<8xf32>
    %473 = vector.multi_reduction <add>, %470, %cst_151 [1] : vector<8x16xf32> to vector<8xf32>
    %474 = vector.shape_cast %473 : vector<8xf32> to vector<8x1xf32>
    %cst_152 = arith.constant 1.600000e+01 : f32
    %475 = vector.broadcast %cst_152 : f32 to vector<8x1xf32>
    %476 = arith.divf %474, %475 : vector<8x1xf32>
    %477 = vector.broadcast %476 : vector<8x1xf32> to vector<8x16xf32>
    %478 = arith.subf %470, %477 : vector<8x16xf32>
    %479 = arith.mulf %478, %478 : vector<8x16xf32>
    %cst_153 = arith.constant dense<0.000000e+00> : vector<8xf32>
    %480 = vector.multi_reduction <add>, %479, %cst_153 [1] : vector<8x16xf32> to vector<8xf32>
    %481 = vector.shape_cast %480 : vector<8xf32> to vector<8x1xf32>
    %cst_154 = arith.constant 1.600000e+01 : f32
    %482 = vector.broadcast %cst_154 : f32 to vector<8x1xf32>
    %483 = arith.divf %481, %482 : vector<8x1xf32>
    %484 = vector.broadcast %476 : vector<8x1xf32> to vector<8x16xf32>
    %485 = arith.subf %470, %484 : vector<8x16xf32>
    %cst_155 = arith.constant 9.99999974E-6 : f32
    %486 = vector.broadcast %cst_155 : f32 to vector<8x1xf32>
    %487 = arith.addf %483, %486 : vector<8x1xf32>
    %488 = math.rsqrt %487 : vector<8x1xf32>
    %489 = vector.broadcast %488 : vector<8x1xf32> to vector<8x16xf32>
    %490 = arith.mulf %485, %489 : vector<8x16xf32>
    %491 = vector.broadcast %471 : vector<1x16xf32> to vector<8x16xf32>
    %492 = arith.mulf %490, %491 : vector<8x16xf32>
    %493 = vector.broadcast %472 : vector<1x16xf32> to vector<8x16xf32>
    %494 = arith.addf %492, %493 : vector<8x16xf32>
    %c616 = arith.constant 616 : index
    %c0_156 = arith.constant 0 : index
    %495 = vector.load %arg2[%c616, %c0_156] : memref<1000x128xf32, #tpu.memory_space<vmem>>, vector<16x48xf32>
    %cst_157 = arith.constant dense<0.000000e+00> : vector<8x48xf32>
    %496 = tpu.matmul %494, %495, %cst_157 {dimension_numbers = #tpu.dot_dimension_numbers<[1], [0], [0], [1], [0, 0, 1, 1], [], []>} : vector<8x16xf32>, vector<16x48xf32>, vector<8x48xf32> -> vector<8x48xf32>
    %497 = vector.shape_cast %496 : vector<8x48xf32> to vector<1x8x48xf32>
    %498 = vector.extract_strided_slice %497 {offsets = [0, 0, 0], sizes = [1, 8, 4], strides = [1, 1, 1]} : vector<1x8x48xf32> to vector<1x8x4xf32>
    %499 = vector.extract_strided_slice %497 {offsets = [0, 0, 4], sizes = [1, 8, 4], strides = [1, 1, 1]} : vector<1x8x48xf32> to vector<1x8x4xf32>
    %500 = vector.extract_strided_slice %497 {offsets = [0, 0, 8], sizes = [1, 8, 4], strides = [1, 1, 1]} : vector<1x8x48xf32> to vector<1x8x4xf32>
    %501 = vector.extract_strided_slice %497 {offsets = [0, 0, 12], sizes = [1, 8, 4], strides = [1, 1, 1]} : vector<1x8x48xf32> to vector<1x8x4xf32>
    %502 = tpu.concatenate %498, %499, %500, %501 in 0 : vector<1x8x4xf32>, vector<1x8x4xf32>, vector<1x8x4xf32>, vector<1x8x4xf32> -> vector<4x8x4xf32>
    %503 = vector.extract_strided_slice %497 {offsets = [0, 0, 16], sizes = [1, 8, 4], strides = [1, 1, 1]} : vector<1x8x48xf32> to vector<1x8x4xf32>
    %504 = vector.extract_strided_slice %497 {offsets = [0, 0, 20], sizes = [1, 8, 4], strides = [1, 1, 1]} : vector<1x8x48xf32> to vector<1x8x4xf32>
    %505 = vector.extract_strided_slice %497 {offsets = [0, 0, 24], sizes = [1, 8, 4], strides = [1, 1, 1]} : vector<1x8x48xf32> to vector<1x8x4xf32>
    %506 = vector.extract_strided_slice %497 {offsets = [0, 0, 28], sizes = [1, 8, 4], strides = [1, 1, 1]} : vector<1x8x48xf32> to vector<1x8x4xf32>
    %507 = tpu.concatenate %503, %504, %505, %506 in 0 : vector<1x8x4xf32>, vector<1x8x4xf32>, vector<1x8x4xf32>, vector<1x8x4xf32> -> vector<4x8x4xf32>
    %508 = vector.extract_strided_slice %497 {offsets = [0, 0, 32], sizes = [1, 8, 4], strides = [1, 1, 1]} : vector<1x8x48xf32> to vector<1x8x4xf32>
    %509 = vector.extract_strided_slice %497 {offsets = [0, 0, 36], sizes = [1, 8, 4], strides = [1, 1, 1]} : vector<1x8x48xf32> to vector<1x8x4xf32>
    %510 = vector.extract_strided_slice %497 {offsets = [0, 0, 40], sizes = [1, 8, 4], strides = [1, 1, 1]} : vector<1x8x48xf32> to vector<1x8x4xf32>
    %511 = vector.extract_strided_slice %497 {offsets = [0, 0, 44], sizes = [1, 8, 4], strides = [1, 1, 1]} : vector<1x8x48xf32> to vector<1x8x4xf32>
    %512 = tpu.concatenate %508, %509, %510, %511 in 0 : vector<1x8x4xf32>, vector<1x8x4xf32>, vector<1x8x4xf32>, vector<1x8x4xf32> -> vector<4x8x4xf32>
    "tpu.trace_start"() <{level = 10 : i32, message = "bqd,bkd->bqk"}> : () -> ()
    %cst_158 = arith.constant dense<0.000000e+00> : vector<4x8x8xf32>
    %513 = tpu.matmul %502, %507, %cst_158 {dimension_numbers = #tpu.dot_dimension_numbers<[2], [2], [1], [1], [0, 0, 0, 1, 1, 1], [0], [0]>} : vector<4x8x4xf32>, vector<4x8x4xf32>, vector<4x8x8xf32> -> vector<4x8x8xf32>
    "tpu.trace_stop"() : () -> ()
    %cst_159 = arith.constant 5.000000e-01 : f32
    %514 = vector.broadcast %cst_159 : f32 to vector<4x8x8xf32>
    %515 = arith.mulf %513, %514 : vector<4x8x8xf32>
    %cst_160 = arith.constant dense<0xFF800000> : vector<4x8xf32>
    %516 = vector.multi_reduction <maximumf>, %515, %cst_160 [2] : vector<4x8x8xf32> to vector<4x8xf32>
    %517 = vector.shape_cast %516 : vector<4x8xf32> to vector<4x8x1xf32>
    %518 = vector.broadcast %517 : vector<4x8x1xf32> to vector<4x8x8xf32>
    %519 = arith.subf %515, %518 : vector<4x8x8xf32>
    %520 = math.exp %519 : vector<4x8x8xf32>
    %cst_161 = arith.constant dense<0.000000e+00> : vector<4x8xf32>
    %521 = vector.multi_reduction <add>, %520, %cst_161 [2] : vector<4x8x8xf32> to vector<4x8xf32>
    %522 = vector.shape_cast %521 : vector<4x8xf32> to vector<4x8x1xf32>
    %523 = tpu.reciprocal %522 {approx = true} : vector<4x8x1xf32> -> vector<4x8x1xf32>
    %524 = vector.broadcast %523 : vector<4x8x1xf32> to vector<4x8x8xf32>
    %525 = arith.mulf %520, %524 : vector<4x8x8xf32>
    "tpu.trace_start"() <{level = 10 : i32, message = "bqk,bkd->bqd"}> : () -> ()
    %cst_162 = arith.constant dense<0.000000e+00> : vector<4x8x4xf32>
    %526 = tpu.matmul %525, %512, %cst_162 {dimension_numbers = #tpu.dot_dimension_numbers<[2], [1], [1], [2], [0, 0, 0, 1, 1, 2], [0], [0]>} : vector<4x8x8xf32>, vector<4x8x4xf32>, vector<4x8x4xf32> -> vector<4x8x4xf32>
    "tpu.trace_stop"() : () -> ()
    %527 = vector.shape_cast %526 : vector<4x8x4xf32> to vector<4x1x8x4xf32>
    %528 = vector.extract_strided_slice %527 {offsets = [0, 0, 0, 0], sizes = [1, 1, 8, 4], strides = [1, 1, 1, 1]} : vector<4x1x8x4xf32> to vector<1x1x8x4xf32>
    %529 = vector.shape_cast %528 : vector<1x1x8x4xf32> to vector<1x8x4xf32>
    %530 = vector.extract_strided_slice %527 {offsets = [1, 0, 0, 0], sizes = [1, 1, 8, 4], strides = [1, 1, 1, 1]} : vector<4x1x8x4xf32> to vector<1x1x8x4xf32>
    %531 = vector.shape_cast %530 : vector<1x1x8x4xf32> to vector<1x8x4xf32>
    %532 = vector.extract_strided_slice %527 {offsets = [2, 0, 0, 0], sizes = [1, 1, 8, 4], strides = [1, 1, 1, 1]} : vector<4x1x8x4xf32> to vector<1x1x8x4xf32>
    %533 = vector.shape_cast %532 : vector<1x1x8x4xf32> to vector<1x8x4xf32>
    %534 = vector.extract_strided_slice %527 {offsets = [3, 0, 0, 0], sizes = [1, 1, 8, 4], strides = [1, 1, 1, 1]} : vector<4x1x8x4xf32> to vector<1x1x8x4xf32>
    %535 = vector.shape_cast %534 : vector<1x1x8x4xf32> to vector<1x8x4xf32>
    %536 = tpu.concatenate %529, %531, %533, %535 in 2 : vector<1x8x4xf32>, vector<1x8x4xf32>, vector<1x8x4xf32>, vector<1x8x4xf32> -> vector<1x8x16xf32>
    %537 = vector.shape_cast %536 : vector<1x8x16xf32> to vector<8x16xf32>
    %c632 = arith.constant 632 : index
    %c0_163 = arith.constant 0 : index
    %538 = vector.load %arg2[%c632, %c0_163] : memref<1000x128xf32, #tpu.memory_space<vmem>>, vector<16x16xf32>
    %cst_164 = arith.constant dense<0.000000e+00> : vector<8x16xf32>
    %539 = tpu.matmul %537, %538, %cst_164 {dimension_numbers = #tpu.dot_dimension_numbers<[1], [0], [0], [1], [0, 0, 1, 1], [], []>} : vector<8x16xf32>, vector<16x16xf32>, vector<8x16xf32> -> vector<8x16xf32>
    %540 = arith.addf %470, %539 : vector<8x16xf32>
    %c36 = arith.constant 36 : index
    %c0_165 = arith.constant 0 : index
    %541 = vector.load %arg3[%c36, %c0_165] : memref<56x128xf32, #tpu.memory_space<vmem>>, vector<1x16xf32>
    %542 = vector.broadcast %541 : vector<1x16xf32> to vector<8x16xf32>
    %543 = arith.addf %540, %542 : vector<8x16xf32>
    %c37 = arith.constant 37 : index
    %c0_166 = arith.constant 0 : index
    %544 = vector.load %arg3[%c37, %c0_166] : memref<56x128xf32, #tpu.memory_space<vmem>>, vector<1x16xf32>
    %c38 = arith.constant 38 : index
    %c0_167 = arith.constant 0 : index
    %545 = vector.load %arg3[%c38, %c0_167] : memref<56x128xf32, #tpu.memory_space<vmem>>, vector<1x16xf32>
    %cst_168 = arith.constant dense<0.000000e+00> : vector<8xf32>
    %546 = vector.multi_reduction <add>, %543, %cst_168 [1] : vector<8x16xf32> to vector<8xf32>
    %547 = vector.shape_cast %546 : vector<8xf32> to vector<8x1xf32>
    %cst_169 = arith.constant 1.600000e+01 : f32
    %548 = vector.broadcast %cst_169 : f32 to vector<8x1xf32>
    %549 = arith.divf %547, %548 : vector<8x1xf32>
    %550 = vector.broadcast %549 : vector<8x1xf32> to vector<8x16xf32>
    %551 = arith.subf %543, %550 : vector<8x16xf32>
    %552 = arith.mulf %551, %551 : vector<8x16xf32>
    %cst_170 = arith.constant dense<0.000000e+00> : vector<8xf32>
    %553 = vector.multi_reduction <add>, %552, %cst_170 [1] : vector<8x16xf32> to vector<8xf32>
    %554 = vector.shape_cast %553 : vector<8xf32> to vector<8x1xf32>
    %cst_171 = arith.constant 1.600000e+01 : f32
    %555 = vector.broadcast %cst_171 : f32 to vector<8x1xf32>
    %556 = arith.divf %554, %555 : vector<8x1xf32>
    %557 = vector.broadcast %549 : vector<8x1xf32> to vector<8x16xf32>
    %558 = arith.subf %543, %557 : vector<8x16xf32>
    %cst_172 = arith.constant 9.99999974E-6 : f32
    %559 = vector.broadcast %cst_172 : f32 to vector<8x1xf32>
    %560 = arith.addf %556, %559 : vector<8x1xf32>
    %561 = math.rsqrt %560 : vector<8x1xf32>
    %562 = vector.broadcast %561 : vector<8x1xf32> to vector<8x16xf32>
    %563 = arith.mulf %558, %562 : vector<8x16xf32>
    %564 = vector.broadcast %544 : vector<1x16xf32> to vector<8x16xf32>
    %565 = arith.mulf %563, %564 : vector<8x16xf32>
    %566 = vector.broadcast %545 : vector<1x16xf32> to vector<8x16xf32>
    %567 = arith.addf %565, %566 : vector<8x16xf32>
    %c648 = arith.constant 648 : index
    %c0_173 = arith.constant 0 : index
    %568 = vector.load %arg2[%c648, %c0_173] : memref<1000x128xf32, #tpu.memory_space<vmem>>, vector<16x64xf32>
    %cst_174 = arith.constant dense<0.000000e+00> : vector<8x64xf32>
    %569 = tpu.matmul %567, %568, %cst_174 {dimension_numbers = #tpu.dot_dimension_numbers<[1], [0], [0], [1], [0, 0, 1, 1], [], []>} : vector<8x16xf32>, vector<16x64xf32>, vector<8x64xf32> -> vector<8x64xf32>
    %c39 = arith.constant 39 : index
    %c0_175 = arith.constant 0 : index
    %570 = vector.load %arg3[%c39, %c0_175] : memref<56x128xf32, #tpu.memory_space<vmem>>, vector<1x64xf32>
    %571 = vector.broadcast %570 : vector<1x64xf32> to vector<8x64xf32>
    %572 = arith.addf %569, %571 : vector<8x64xf32>
    %cst_176 = arith.constant 0.000000e+00 : f32
    %573 = vector.broadcast %cst_176 : f32 to vector<8x64xf32>
    %574 = arith.maximumf %572, %573 : vector<8x64xf32>
    %c664 = arith.constant 664 : index
    %c0_177 = arith.constant 0 : index
    %575 = vector.load %arg2[%c664, %c0_177] : memref<1000x128xf32, #tpu.memory_space<vmem>>, vector<64x16xf32>
    %cst_178 = arith.constant dense<0.000000e+00> : vector<8x16xf32>
    %576 = tpu.matmul %574, %575, %cst_178 {dimension_numbers = #tpu.dot_dimension_numbers<[1], [0], [0], [1], [0, 0, 1, 1], [], []>} : vector<8x64xf32>, vector<64x16xf32>, vector<8x16xf32> -> vector<8x16xf32>
    %c40 = arith.constant 40 : index
    %c0_179 = arith.constant 0 : index
    %577 = vector.load %arg3[%c40, %c0_179] : memref<56x128xf32, #tpu.memory_space<vmem>>, vector<1x16xf32>
    %578 = vector.broadcast %577 : vector<1x16xf32> to vector<8x16xf32>
    %579 = arith.addf %576, %578 : vector<8x16xf32>
    %580 = arith.addf %543, %579 : vector<8x16xf32>
    %c728 = arith.constant 728 : index
    %c0_180 = arith.constant 0 : index
    %581 = vector.load %arg2[%c728, %c0_180] : memref<1000x128xf32, #tpu.memory_space<vmem>>, vector<16x32xf32>
    %cst_181 = arith.constant dense<0.000000e+00> : vector<8x32xf32>
    %582 = tpu.matmul %580, %581, %cst_181 {dimension_numbers = #tpu.dot_dimension_numbers<[1], [0], [0], [1], [0, 0, 1, 1], [], []>} : vector<8x16xf32>, vector<16x32xf32>, vector<8x32xf32> -> vector<8x32xf32>
    %c41 = arith.constant 41 : index
    %c0_182 = arith.constant 0 : index
    %583 = vector.load %arg3[%c41, %c0_182] : memref<56x128xf32, #tpu.memory_space<vmem>>, vector<1x32xf32>
    %584 = vector.broadcast %583 : vector<1x32xf32> to vector<8x32xf32>
    %585 = arith.addf %582, %584 : vector<8x32xf32>
    %cst_183 = arith.constant 0.000000e+00 : f32
    %586 = vector.broadcast %cst_183 : f32 to vector<8x32xf32>
    %587 = arith.maximumf %585, %586 : vector<8x32xf32>
    %c42 = arith.constant 42 : index
    %c0_184 = arith.constant 0 : index
    %588 = vector.load %arg3[%c42, %c0_184] : memref<56x128xf32, #tpu.memory_space<vmem>>, vector<1x32xf32>
    %c43 = arith.constant 43 : index
    %c0_185 = arith.constant 0 : index
    %589 = vector.load %arg3[%c43, %c0_185] : memref<56x128xf32, #tpu.memory_space<vmem>>, vector<1x32xf32>
    %cst_186 = arith.constant dense<0.000000e+00> : vector<8xf32>
    %590 = vector.multi_reduction <add>, %587, %cst_186 [1] : vector<8x32xf32> to vector<8xf32>
    %591 = vector.shape_cast %590 : vector<8xf32> to vector<8x1xf32>
    %cst_187 = arith.constant 3.200000e+01 : f32
    %592 = vector.broadcast %cst_187 : f32 to vector<8x1xf32>
    %593 = arith.divf %591, %592 : vector<8x1xf32>
    %594 = vector.broadcast %593 : vector<8x1xf32> to vector<8x32xf32>
    %595 = arith.subf %587, %594 : vector<8x32xf32>
    %596 = arith.mulf %595, %595 : vector<8x32xf32>
    %cst_188 = arith.constant dense<0.000000e+00> : vector<8xf32>
    %597 = vector.multi_reduction <add>, %596, %cst_188 [1] : vector<8x32xf32> to vector<8xf32>
    %598 = vector.shape_cast %597 : vector<8xf32> to vector<8x1xf32>
    %cst_189 = arith.constant 3.200000e+01 : f32
    %599 = vector.broadcast %cst_189 : f32 to vector<8x1xf32>
    %600 = arith.divf %598, %599 : vector<8x1xf32>
    %601 = vector.broadcast %593 : vector<8x1xf32> to vector<8x32xf32>
    %602 = arith.subf %587, %601 : vector<8x32xf32>
    %cst_190 = arith.constant 9.99999974E-6 : f32
    %603 = vector.broadcast %cst_190 : f32 to vector<8x1xf32>
    %604 = arith.addf %600, %603 : vector<8x1xf32>
    %605 = math.rsqrt %604 : vector<8x1xf32>
    %606 = vector.broadcast %605 : vector<8x1xf32> to vector<8x32xf32>
    %607 = arith.mulf %602, %606 : vector<8x32xf32>
    %608 = vector.broadcast %588 : vector<1x32xf32> to vector<8x32xf32>
    %609 = arith.mulf %607, %608 : vector<8x32xf32>
    %610 = vector.broadcast %589 : vector<1x32xf32> to vector<8x32xf32>
    %611 = arith.addf %609, %610 : vector<8x32xf32>
    %c744 = arith.constant 744 : index
    %c0_191 = arith.constant 0 : index
    %612 = vector.load %arg2[%c744, %c0_191] : memref<1000x128xf32, #tpu.memory_space<vmem>>, vector<32x96xf32>
    %cst_192 = arith.constant dense<0.000000e+00> : vector<8x96xf32>
    %613 = tpu.matmul %611, %612, %cst_192 {dimension_numbers = #tpu.dot_dimension_numbers<[1], [0], [0], [1], [0, 0, 1, 1], [], []>} : vector<8x32xf32>, vector<32x96xf32>, vector<8x96xf32> -> vector<8x96xf32>
    %614 = vector.shape_cast %613 : vector<8x96xf32> to vector<1x8x96xf32>
    %615 = vector.extract_strided_slice %614 {offsets = [0, 0, 0], sizes = [1, 8, 8], strides = [1, 1, 1]} : vector<1x8x96xf32> to vector<1x8x8xf32>
    %616 = vector.extract_strided_slice %614 {offsets = [0, 0, 8], sizes = [1, 8, 8], strides = [1, 1, 1]} : vector<1x8x96xf32> to vector<1x8x8xf32>
    %617 = vector.extract_strided_slice %614 {offsets = [0, 0, 16], sizes = [1, 8, 8], strides = [1, 1, 1]} : vector<1x8x96xf32> to vector<1x8x8xf32>
    %618 = vector.extract_strided_slice %614 {offsets = [0, 0, 24], sizes = [1, 8, 8], strides = [1, 1, 1]} : vector<1x8x96xf32> to vector<1x8x8xf32>
    %619 = tpu.concatenate %615, %616, %617, %618 in 0 : vector<1x8x8xf32>, vector<1x8x8xf32>, vector<1x8x8xf32>, vector<1x8x8xf32> -> vector<4x8x8xf32>
    %620 = vector.extract_strided_slice %614 {offsets = [0, 0, 32], sizes = [1, 8, 8], strides = [1, 1, 1]} : vector<1x8x96xf32> to vector<1x8x8xf32>
    %621 = vector.extract_strided_slice %614 {offsets = [0, 0, 40], sizes = [1, 8, 8], strides = [1, 1, 1]} : vector<1x8x96xf32> to vector<1x8x8xf32>
    %622 = vector.extract_strided_slice %614 {offsets = [0, 0, 48], sizes = [1, 8, 8], strides = [1, 1, 1]} : vector<1x8x96xf32> to vector<1x8x8xf32>
    %623 = vector.extract_strided_slice %614 {offsets = [0, 0, 56], sizes = [1, 8, 8], strides = [1, 1, 1]} : vector<1x8x96xf32> to vector<1x8x8xf32>
    %624 = tpu.concatenate %620, %621, %622, %623 in 0 : vector<1x8x8xf32>, vector<1x8x8xf32>, vector<1x8x8xf32>, vector<1x8x8xf32> -> vector<4x8x8xf32>
    %625 = vector.extract_strided_slice %614 {offsets = [0, 0, 64], sizes = [1, 8, 8], strides = [1, 1, 1]} : vector<1x8x96xf32> to vector<1x8x8xf32>
    %626 = vector.extract_strided_slice %614 {offsets = [0, 0, 72], sizes = [1, 8, 8], strides = [1, 1, 1]} : vector<1x8x96xf32> to vector<1x8x8xf32>
    %627 = vector.extract_strided_slice %614 {offsets = [0, 0, 80], sizes = [1, 8, 8], strides = [1, 1, 1]} : vector<1x8x96xf32> to vector<1x8x8xf32>
    %628 = vector.extract_strided_slice %614 {offsets = [0, 0, 88], sizes = [1, 8, 8], strides = [1, 1, 1]} : vector<1x8x96xf32> to vector<1x8x8xf32>
    %629 = tpu.concatenate %625, %626, %627, %628 in 0 : vector<1x8x8xf32>, vector<1x8x8xf32>, vector<1x8x8xf32>, vector<1x8x8xf32> -> vector<4x8x8xf32>
    "tpu.trace_start"() <{level = 10 : i32, message = "bqd,bkd->bqk"}> : () -> ()
    %cst_193 = arith.constant dense<0.000000e+00> : vector<4x8x8xf32>
    %630 = tpu.matmul %619, %624, %cst_193 {dimension_numbers = #tpu.dot_dimension_numbers<[2], [2], [1], [1], [0, 0, 0, 1, 1, 1], [0], [0]>} : vector<4x8x8xf32>, vector<4x8x8xf32>, vector<4x8x8xf32> -> vector<4x8x8xf32>
    "tpu.trace_stop"() : () -> ()
    %cst_194 = arith.constant 0.353553385 : f32
    %631 = vector.broadcast %cst_194 : f32 to vector<4x8x8xf32>
    %632 = arith.mulf %630, %631 : vector<4x8x8xf32>
    %cst_195 = arith.constant dense<0xFF800000> : vector<4x8xf32>
    %633 = vector.multi_reduction <maximumf>, %632, %cst_195 [2] : vector<4x8x8xf32> to vector<4x8xf32>
    %634 = vector.shape_cast %633 : vector<4x8xf32> to vector<4x8x1xf32>
    %635 = vector.broadcast %634 : vector<4x8x1xf32> to vector<4x8x8xf32>
    %636 = arith.subf %632, %635 : vector<4x8x8xf32>
    %637 = math.exp %636 : vector<4x8x8xf32>
    %cst_196 = arith.constant dense<0.000000e+00> : vector<4x8xf32>
    %638 = vector.multi_reduction <add>, %637, %cst_196 [2] : vector<4x8x8xf32> to vector<4x8xf32>
    %639 = vector.shape_cast %638 : vector<4x8xf32> to vector<4x8x1xf32>
    %640 = tpu.reciprocal %639 {approx = true} : vector<4x8x1xf32> -> vector<4x8x1xf32>
    %641 = vector.broadcast %640 : vector<4x8x1xf32> to vector<4x8x8xf32>
    %642 = arith.mulf %637, %641 : vector<4x8x8xf32>
    "tpu.trace_start"() <{level = 10 : i32, message = "bqk,bkd->bqd"}> : () -> ()
    %cst_197 = arith.constant dense<0.000000e+00> : vector<4x8x8xf32>
    %643 = tpu.matmul %642, %629, %cst_197 {dimension_numbers = #tpu.dot_dimension_numbers<[2], [1], [1], [2], [0, 0, 0, 1, 1, 2], [0], [0]>} : vector<4x8x8xf32>, vector<4x8x8xf32>, vector<4x8x8xf32> -> vector<4x8x8xf32>
    "tpu.trace_stop"() : () -> ()
    %644 = vector.shape_cast %643 : vector<4x8x8xf32> to vector<4x1x8x8xf32>
    %645 = vector.extract_strided_slice %644 {offsets = [0, 0, 0, 0], sizes = [1, 1, 8, 8], strides = [1, 1, 1, 1]} : vector<4x1x8x8xf32> to vector<1x1x8x8xf32>
    %646 = vector.shape_cast %645 : vector<1x1x8x8xf32> to vector<1x8x8xf32>
    %647 = vector.extract_strided_slice %644 {offsets = [1, 0, 0, 0], sizes = [1, 1, 8, 8], strides = [1, 1, 1, 1]} : vector<4x1x8x8xf32> to vector<1x1x8x8xf32>
    %648 = vector.shape_cast %647 : vector<1x1x8x8xf32> to vector<1x8x8xf32>
    %649 = vector.extract_strided_slice %644 {offsets = [2, 0, 0, 0], sizes = [1, 1, 8, 8], strides = [1, 1, 1, 1]} : vector<4x1x8x8xf32> to vector<1x1x8x8xf32>
    %650 = vector.shape_cast %649 : vector<1x1x8x8xf32> to vector<1x8x8xf32>
    %651 = vector.extract_strided_slice %644 {offsets = [3, 0, 0, 0], sizes = [1, 1, 8, 8], strides = [1, 1, 1, 1]} : vector<4x1x8x8xf32> to vector<1x1x8x8xf32>
    %652 = vector.shape_cast %651 : vector<1x1x8x8xf32> to vector<1x8x8xf32>
    %653 = tpu.concatenate %646, %648, %650, %652 in 2 : vector<1x8x8xf32>, vector<1x8x8xf32>, vector<1x8x8xf32>, vector<1x8x8xf32> -> vector<1x8x32xf32>
    %654 = vector.shape_cast %653 : vector<1x8x32xf32> to vector<8x32xf32>
    %c776 = arith.constant 776 : index
    %c0_198 = arith.constant 0 : index
    %655 = vector.load %arg2[%c776, %c0_198] : memref<1000x128xf32, #tpu.memory_space<vmem>>, vector<32x32xf32>
    %cst_199 = arith.constant dense<0.000000e+00> : vector<8x32xf32>
    %656 = tpu.matmul %654, %655, %cst_199 {dimension_numbers = #tpu.dot_dimension_numbers<[1], [0], [0], [1], [0, 0, 1, 1], [], []>} : vector<8x32xf32>, vector<32x32xf32>, vector<8x32xf32> -> vector<8x32xf32>
    %657 = arith.addf %587, %656 : vector<8x32xf32>
    %c44 = arith.constant 44 : index
    %c0_200 = arith.constant 0 : index
    %658 = vector.load %arg3[%c44, %c0_200] : memref<56x128xf32, #tpu.memory_space<vmem>>, vector<1x32xf32>
    %659 = vector.broadcast %658 : vector<1x32xf32> to vector<8x32xf32>
    %660 = arith.addf %657, %659 : vector<8x32xf32>
    %c45 = arith.constant 45 : index
    %c0_201 = arith.constant 0 : index
    %661 = vector.load %arg3[%c45, %c0_201] : memref<56x128xf32, #tpu.memory_space<vmem>>, vector<1x32xf32>
    %c46 = arith.constant 46 : index
    %c0_202 = arith.constant 0 : index
    %662 = vector.load %arg3[%c46, %c0_202] : memref<56x128xf32, #tpu.memory_space<vmem>>, vector<1x32xf32>
    %cst_203 = arith.constant dense<0.000000e+00> : vector<8xf32>
    %663 = vector.multi_reduction <add>, %660, %cst_203 [1] : vector<8x32xf32> to vector<8xf32>
    %664 = vector.shape_cast %663 : vector<8xf32> to vector<8x1xf32>
    %cst_204 = arith.constant 3.200000e+01 : f32
    %665 = vector.broadcast %cst_204 : f32 to vector<8x1xf32>
    %666 = arith.divf %664, %665 : vector<8x1xf32>
    %667 = vector.broadcast %666 : vector<8x1xf32> to vector<8x32xf32>
    %668 = arith.subf %660, %667 : vector<8x32xf32>
    %669 = arith.mulf %668, %668 : vector<8x32xf32>
    %cst_205 = arith.constant dense<0.000000e+00> : vector<8xf32>
    %670 = vector.multi_reduction <add>, %669, %cst_205 [1] : vector<8x32xf32> to vector<8xf32>
    %671 = vector.shape_cast %670 : vector<8xf32> to vector<8x1xf32>
    %cst_206 = arith.constant 3.200000e+01 : f32
    %672 = vector.broadcast %cst_206 : f32 to vector<8x1xf32>
    %673 = arith.divf %671, %672 : vector<8x1xf32>
    %674 = vector.broadcast %666 : vector<8x1xf32> to vector<8x32xf32>
    %675 = arith.subf %660, %674 : vector<8x32xf32>
    %cst_207 = arith.constant 9.99999974E-6 : f32
    %676 = vector.broadcast %cst_207 : f32 to vector<8x1xf32>
    %677 = arith.addf %673, %676 : vector<8x1xf32>
    %678 = math.rsqrt %677 : vector<8x1xf32>
    %679 = vector.broadcast %678 : vector<8x1xf32> to vector<8x32xf32>
    %680 = arith.mulf %675, %679 : vector<8x32xf32>
    %681 = vector.broadcast %661 : vector<1x32xf32> to vector<8x32xf32>
    %682 = arith.mulf %680, %681 : vector<8x32xf32>
    %683 = vector.broadcast %662 : vector<1x32xf32> to vector<8x32xf32>
    %684 = arith.addf %682, %683 : vector<8x32xf32>
    %c808 = arith.constant 808 : index
    %c0_208 = arith.constant 0 : index
    %685 = vector.load %arg2[%c808, %c0_208] : memref<1000x128xf32, #tpu.memory_space<vmem>>, vector<32x128xf32>
    %cst_209 = arith.constant dense<0.000000e+00> : vector<8x128xf32>
    %686 = tpu.matmul %684, %685, %cst_209 {dimension_numbers = #tpu.dot_dimension_numbers<[1], [0], [0], [1], [0, 0, 1, 1], [], []>} : vector<8x32xf32>, vector<32x128xf32>, vector<8x128xf32> -> vector<8x128xf32>
    %c47 = arith.constant 47 : index
    %c0_210 = arith.constant 0 : index
    %687 = vector.load %arg3[%c47, %c0_210] : memref<56x128xf32, #tpu.memory_space<vmem>>, vector<1x128xf32>
    %688 = vector.broadcast %687 : vector<1x128xf32> to vector<8x128xf32>
    %689 = arith.addf %686, %688 : vector<8x128xf32>
    %cst_211 = arith.constant 0.000000e+00 : f32
    %690 = vector.broadcast %cst_211 : f32 to vector<8x128xf32>
    %691 = arith.maximumf %689, %690 : vector<8x128xf32>
    %c840 = arith.constant 840 : index
    %c0_212 = arith.constant 0 : index
    %692 = vector.load %arg2[%c840, %c0_212] : memref<1000x128xf32, #tpu.memory_space<vmem>>, vector<128x32xf32>
    %cst_213 = arith.constant dense<0.000000e+00> : vector<8x32xf32>
    %693 = tpu.matmul %691, %692, %cst_213 {dimension_numbers = #tpu.dot_dimension_numbers<[1], [0], [0], [1], [0, 0, 1, 1], [], []>} : vector<8x128xf32>, vector<128x32xf32>, vector<8x32xf32> -> vector<8x32xf32>
    %c48_214 = arith.constant 48 : index
    %c0_215 = arith.constant 0 : index
    %694 = vector.load %arg3[%c48_214, %c0_215] : memref<56x128xf32, #tpu.memory_space<vmem>>, vector<1x32xf32>
    %695 = vector.broadcast %694 : vector<1x32xf32> to vector<8x32xf32>
    %696 = arith.addf %693, %695 : vector<8x32xf32>
    %697 = arith.addf %660, %696 : vector<8x32xf32>
    %c968 = arith.constant 968 : index
    %c0_216 = arith.constant 0 : index
    %698 = vector.load %arg2[%c968, %c0_216] : memref<1000x128xf32, #tpu.memory_space<vmem>>, vector<32x128xf32>
    %cst_217 = arith.constant dense<0.000000e+00> : vector<8x128xf32>
    %699 = tpu.matmul %697, %698, %cst_217 {dimension_numbers = #tpu.dot_dimension_numbers<[1], [0], [0], [1], [0, 0, 1, 1], [], []>} : vector<8x32xf32>, vector<32x128xf32>, vector<8x128xf32> -> vector<8x128xf32>
    %c49 = arith.constant 49 : index
    %c0_218 = arith.constant 0 : index
    %700 = vector.load %arg3[%c49, %c0_218] : memref<56x128xf32, #tpu.memory_space<vmem>>, vector<1x128xf32>
    %701 = vector.broadcast %700 : vector<1x128xf32> to vector<8x128xf32>
    %702 = arith.addf %699, %701 : vector<8x128xf32>
    %c0_219 = arith.constant 0 : index
    %c0_220 = arith.constant 0 : index
    %703 = vector.load %arg4[%c0_219, %c0_220] : memref<8x128xf32, #tpu.memory_space<vmem>>, vector<8x128xf32>
    tpu.vector_store %arg4[%c0_219, %c0_220], %702 {strides = array<i32>} : memref<8x128xf32, #tpu.memory_space<vmem>>, vector<8x128xf32>,
    return
  }
  func.func @transform_0(%arg0: i32) -> (i32, i32) {
    %c0_i32 = arith.constant 0 : i32
    %c0_i32_0 = arith.constant 0 : i32
    return %arg0, %c0_i32 : i32, i32
  }
  func.func @transform_1(%arg0: i32) -> (i32, i32) {
    %c0_i32 = arith.constant 0 : i32
    %c0_i32_0 = arith.constant 0 : i32
    %c0_i32_1 = arith.constant 0 : i32
    return %c0_i32, %c0_i32_0 : i32, i32
  }
  func.func @transform_2(%arg0: i32) -> (i32, i32) {
    %c0_i32 = arith.constant 0 : i32
    %c0_i32_0 = arith.constant 0 : i32
    %c0_i32_1 = arith.constant 0 : i32
    return %c0_i32, %c0_i32_0 : i32, i32
  }
  func.func @transform_3(%arg0: i32) -> (i32, i32) {
    %c0_i32 = arith.constant 0 : i32
    %c0_i32_0 = arith.constant 0 : i32
    return %arg0, %c0_i32 : i32, i32
  }
}

</mosaic_0001>

<llo_original>
// kernel: anomaly_detector_forward.1
$region0: #{anomaly_detector_forward.1}
  #allocation0 [shape = 'u32[]', space=smem, size = 0x4, offset = 0x4, fixed_abs, tag = 'smem constant byte address 0x4 - core index']
  #allocation1 [shape = 'u32[144,128]{1,0:T(1,128)}', space=vmem, size = 0x12000, scoped, tag = 'internal scratch']
  %s0 = inlined_call_operand.hbm [shape: f32[16,18], index: 0, kind: input, shape index: {}]
  %s1 = inlined_call_operand.hbm [shape: f32[1000,128], index: 1, kind: input, shape index: {}]
  %s2 = inlined_call_operand.hbm [shape: f32[56,128], index: 2, kind: input, shape index: {}]
  %s3 = inlined_call_operand.vmem [shape: f32[16,128], index: 3, kind: output, shape index: {}]
  %s4 = sld [smem:[#allocation0]]
  $region57: #{anomaly_detector_forward.1} parent=0
    _
  %s6 = ssub.s32 1, %s4
  %s7 = scalar_select 0, %s6, %s4
  $region1: #{anomaly_detector_forward.1} parent=0
    #allocation2 [shape = 'u8[8192]{0}', space=vmem, size = 0x2000, scoped, tag = 'input window, operand 0']
    #allocation3 [shape = 's32[2]{0}', space=sflag, size = 0x8, scoped, tag = 'scoped memory for anomaly_detector_forward.1']
    #allocation4 [shape = 'u8[512000]{0}', space=vmem, size = 0x7d000, scoped, tag = 'input window, operand 1, single buffered']
    #allocation5 [shape = 's32[1]{0}', space=sflag, size = 0x4, scoped, tag = 'scoped memory for anomaly_detector_forward.1']
    #allocation6 [shape = 'u8[28672]{0}', space=vmem, size = 0x7000, scoped, tag = 'input window, operand 2, single buffered']
    %8 = vsyncpa [#allocation3], 0
    %s9 = scalar_lea.sflag [#allocation3], 1
    %10 = vsyncpa %s9, 0
    %11 = vsyncpa [#allocation5], 0
    loop: start=0, step=1, limit=4
    $region2: #{anomaly_detector_forward.1} parent=1 // loop_pre_header
      _
    $region3: #{anomaly_detector_forward.1} parent=1 // loop_header
      %s13 = sphi 0, %s17
      %p14 = scmp.ge.s32.totalorder %s13, 4
      %s23 = sphi 0, %s25
      %s26 = sphi 0, %s23
      %s27 = sphi 0, %s26
      %s43 = sphi 0, %s27
      %s47 = sphi 0, %s47
      %s49 = sphi 0, %s47
      %s50 = sphi 0, %s49
      %s64 = sphi 0, %s50
      %s68 = sphi 0, %s68
      %s70 = sphi 0, %s68
      %s71 = sphi 0, %s70
      %s85 = sphi 0, %s71
      %s91 = sphi 0, %s93
      %s94 = sphi 0, %s91
      %s95 = sphi 0, %s94
      %s111 = sphi 0, %s95
    $region4: #{anomaly_detector_forward.1} parent=1 // loop_header_branch
      %16 = sbr.rel (%p14) target = $region8
    $region5: #{anomaly_detector_forward.1} parent=1 // loop_body
      %s18 = ssub.s32 %s13, 1
      %s19 = ssub.s32 %s13, 2
      %s20 = sadd.s32 %s13, 1
      %s21 = ssub.s32 %s13, %s20
      %p22 = scmp.eq.s32.totalorder %s21, 0
      %s24 = sadd.s32 %s23, 1
      %s25 = scalar_select %p22, %s23, %s24
      %p28 = pneg %p22
      %p29 = scmp.eq.s32.totalorder %s13, 1
      %p30 = por %p28, %p29
      %p31 = scmp.ne.s32.totalorder %s23, %s26
      %p32 = scmp.eq.s32.totalorder %s13, 0
      %p33 = por %p31, %p32
      %p34 = scmp.ne.s32.totalorder %s23, %s26
      %p35 = scmp.eq.s32.totalorder %s18, 1
      %p36 = por %p34, %p35
      %p37 = scmp.ne.s32.totalorder %s26, %s27
      %p38 = scmp.eq.s32.totalorder %s18, 0
      %p39 = por %p37, %p38
      %p40 = scmp.ne.s32.totalorder %s26, %s27
      %p41 = scmp.eq.s32.totalorder %s19, 1
      %p42 = por %p40, %p41
      %p44 = scmp.ne.s32.totalorder %s27, %s43
      %p45 = scmp.eq.s32.totalorder %s19, 0
      %p46 = por %p44, %p45
      %s48 = sadd.s32 %s47, 1
      %p51 = scmp.eq.s32.totalorder %s13, 1
      %p52 = scmp.ne.s32.totalorder %s47, %s49
      %p53 = scmp.eq.s32.totalorder %s13, 0
      %p54 = por %p52, %p53
      %p55 = scmp.ne.s32.totalorder %s47, %s49
      %p56 = scmp.eq.s32.totalorder %s18, 1
      %p57 = por %p55, %p56
      %p58 = scmp.ne.s32.totalorder %s49, %s50
      %p59 = scmp.eq.s32.totalorder %s18, 0
      %p60 = por %p58, %p59
      %p61 = scmp.ne.s32.totalorder %s49, %s50
      %p62 = scmp.eq.s32.totalorder %s19, 1
      %p63 = por %p61, %p62
      %p65 = scmp.ne.s32.totalorder %s50, %s64
      %p66 = scmp.eq.s32.totalorder %s19, 0
      %p67 = por %p65, %p66
      %s69 = sadd.s32 %s68, 1
      %p72 = scmp.eq.s32.totalorder %s13, 1
      %p73 = scmp.ne.s32.totalorder %s68, %s70
      %p74 = scmp.eq.s32.totalorder %s13, 0
      %p75 = por %p73, %p74
      %p76 = scmp.ne.s32.totalorder %s68, %s70
      %p77 = scmp.eq.s32.totalorder %s18, 1
      %p78 = por %p76, %p77
      %p79 = scmp.ne.s32.totalorder %s70, %s71
      %p80 = scmp.eq.s32.totalorder %s18, 0
      %p81 = por %p79, %p80
      %p82 = scmp.ne.s32.totalorder %s70, %s71
      %p83 = scmp.eq.s32.totalorder %s19, 1
      %p84 = por %p82, %p83
      %p86 = scmp.ne.s32.totalorder %s71, %s85
      %p87 = scmp.eq.s32.totalorder %s19, 0
      %p88 = por %p86, %p87
      %s89 = ssub.s32 %s13, %s20
      %p90 = scmp.eq.s32.totalorder %s89, 0
      %s92 = sadd.s32 %s91, 1
      %s93 = scalar_select %p90, %s91, %s92
      %p96 = pneg %p90
      %p97 = scmp.eq.s32.totalorder %s13, 1
      %p98 = por %p96, %p97
      %p99 = scmp.ne.s32.totalorder %s91, %s94
      %p100 = scmp.eq.s32.totalorder %s13, 0
      %p101 = por %p99, %p100
      %p102 = scmp.ne.s32.totalorder %s91, %s94
      %p103 = scmp.eq.s32.totalorder %s18, 1
      %p104 = por %p102, %p103
      %p105 = scmp.ne.s32.totalorder %s94, %s95
      %p106 = scmp.eq.s32.totalorder %s18, 0
      %p107 = por %p105, %p106
      %p108 = scmp.ne.s32.totalorder %s94, %s95
      %p109 = scmp.eq.s32.totalorder %s19, 1
      %p110 = por %p108, %p109
      %p112 = scmp.ne.s32.totalorder %s95, %s111
      %p113 = scmp.eq.s32.totalorder %s19, 0
      %p114 = por %p112, %p113
      %p115 = scmp.le.s32.totalorder 1, %s13
      %p116 = scmp.lt.s32.totalorder %s13, 3
      %p117 = pnand %p115, %p116
      %p118 = pneg %p117
      // Predicated region
      $region9: #{anomaly_detector_forward.1} parent=5 // pred_check
        _
      $region10: #{anomaly_detector_forward.1} parent=5 // pred_check_branch
        %120 = sbr.rel (%p117) target = $region12
      $region11: #{anomaly_detector_forward.1} parent=5 // pred_region
        %s121 = ssub.s32 %s13, 1
        // Predicated region
        $region13: #{anomaly_detector_forward.1} parent=11 // pred_check
          %p122 = pneg %p60
        $region14: #{anomaly_detector_forward.1} parent=11 // pred_check_branch
          %124 = sbr.rel (%p122) target = $region16
        $region15: #{anomaly_detector_forward.1} parent=11 // pred_region
          %s126 = ssub.s32 16000, 16000
          %127 = vsyncadd [#allocation5], %s126
          %s128 = sshll.u32 [#allocation4], 4
          %s129 = int_to_ptr.vmem [resolvable:$true] %s128
          %134 = dma.hbm_to_vmem [thread:$0]  %s1, 16000, %s129, [#allocation5], 128, 128, 8
        $region16: #{anomaly_detector_forward.1} parent=11 // pred_fallthru
          _
        // Predicated region
        $region17: #{anomaly_detector_forward.1} parent=11 // pred_check
          %p135 = pneg %p81
        $region18: #{anomaly_detector_forward.1} parent=11 // pred_check_branch
          %137 = sbr.rel (%p135) target = $region20
        $region19: #{anomaly_detector_forward.1} parent=11 // pred_region
          %s139 = ssub.s32 896, 896
          %140 = vsyncadd [#allocation5], %s139
          %s141 = sshll.u32 [#allocation6], 4
          %s142 = int_to_ptr.vmem [resolvable:$true] %s141
          %147 = dma.hbm_to_vmem [thread:$0]  %s2, 896, %s142, [#allocation5], 128, 128, 8
        $region20: #{anomaly_detector_forward.1} parent=11 // pred_fallthru
          _
      $region12: #{anomaly_detector_forward.1} parent=5 // pred_fallthru
        _
      %p148 = scmp.lt.s32.totalorder %s13, 2
      // Predicated region
      $region21: #{anomaly_detector_forward.1} parent=5 // pred_check
        %p149 = pneg %p148
      $region22: #{anomaly_detector_forward.1} parent=5 // pred_check_branch
        %151 = sbr.rel (%p149) target = $region24
      $region23: #{anomaly_detector_forward.1} parent=5 // pred_region
        // Predicated region
        $region25: #{anomaly_detector_forward.1} parent=23 // pred_check
          %p152 = pneg %p33
        $region26: #{anomaly_detector_forward.1} parent=23 // pred_check_branch
          %154 = sbr.rel (%p152) target = $region28
        $region27: #{anomaly_detector_forward.1} parent=23 // pred_region
          %s155 = sand.u32 %s23, 1
          %s156 = scalar_lea.sflag [#allocation3], %s155
          %s157 = sand.u32 %s23, 1
          %s158 = smul.addr %s157, 8
          %s159 = scalar_lea.vmem [#allocation2], %s158
          %s161 = ssub.s32 128, 128
          %162 = vsyncadd %s156, %s161
          %s163 = smul.addr %s13, 128
          %s164 = scalar_lea.hbm %s0, %s163
          %s166 = sshll.u32 %s159, 4
          %s167 = int_to_ptr.vmem [resolvable:$true] %s166
          %169 = dma.hbm_to_vmem [thread:$0]  %s164, 128, %s167, %s156
        $region28: #{anomaly_detector_forward.1} parent=23 // pred_fallthru
          _
      $region24: #{anomaly_detector_forward.1} parent=5 // pred_fallthru
        _
      %p170 = scmp.le.s32.totalorder 1, %s13
      %p171 = scmp.lt.s32.totalorder %s13, 3
      %p172 = pnand %p170, %p171
      %p173 = pneg %p172
      // Predicated region
      $region29: #{anomaly_detector_forward.1} parent=5 // pred_check
        _
      $region30: #{anomaly_detector_forward.1} parent=5 // pred_check_branch
        %175 = sbr.rel (%p172) target = $region32
      $region31: #{anomaly_detector_forward.1} parent=5 // pred_region
        %s176 = ssub.s32 %s13, 1
        %s177 = sand.u32 %s26, 1
        %s178 = scalar_lea.sflag [#allocation3], %s177
        %s179 = sand.u32 %s26, 1
        %s180 = smul.addr %s179, 8
        %s181 = scalar_lea.vmem [#allocation2], %s180
        // Predicated region
        $region33: #{anomaly_detector_forward.1} parent=31 // pred_check
          %p182 = pneg %p39
        $region34: #{anomaly_detector_forward.1} parent=31 // pred_check_branch
          %184 = sbr.rel (%p182) target = $region36
        $region35: #{anomaly_detector_forward.1} parent=31 // pred_region
          %185 = dma.done %s178, 128
        $region36: #{anomaly_detector_forward.1} parent=31 // pred_fallthru
          _
        // Predicated region
        $region37: #{anomaly_detector_forward.1} parent=31 // pred_check
          %p186 = pneg %p60
        $region38: #{anomaly_detector_forward.1} parent=31 // pred_check_branch
          %188 = sbr.rel (%p186) target = $region40
        $region39: #{anomaly_detector_forward.1} parent=31 // pred_region
          %189 = dma.done [#allocation5], 16000
        $region40: #{anomaly_detector_forward.1} parent=31 // pred_fallthru
          _
        // Predicated region
        $region41: #{anomaly_detector_forward.1} parent=31 // pred_check
          %p190 = pneg %p81
        $region42: #{anomaly_detector_forward.1} parent=31 // pred_check_branch
          %192 = sbr.rel (%p190) target = $region44
        $region43: #{anomaly_detector_forward.1} parent=31 // pred_region
          %193 = dma.done [#allocation5], 896
        $region44: #{anomaly_detector_forward.1} parent=31 // pred_fallthru
          _
        %s194 = sand.u32 %s26, 1
        %s195 = scalar_lea.sflag [#allocation3], %s194
        %s196 = sand.u32 %s26, 1
        %s197 = smul.addr %s196, 8
        %s198 = scalar_lea.vmem [#allocation2], %s197
        %p199 = pneg %p39
        %p200 = pneg %p36
        %p201 = pneg %p60
        %p202 = pneg %p57
        %p203 = pneg %p81
        %p204 = pneg %p78
        %p205 = pneg %p107
        %p206 = pneg %p104
        %p207 = scmp.lt.s32.totalorder %s18, 1
        %s208 = scalar_select %p207, %s18, 1
        %s209 = smul.addr %s208, 8
        %s210 = scalar_lea.vmem %s3, %s209
        %p211 = scmp.lt.s32.totalorder %s18, 1
        %s212 = scalar_select %p211, %s18, 1
        %s213 = smul.addr %s212, 8
        %s214 = scalar_lea.vmem %s3, %s213
        %v215 = vld [vmem:[%s181] sm:$0xff]
        %v216 = vld [vmem:[#allocation6] sm:$0x1]
        %v217 = vld [vmem:[#allocation6 + $0x1] sm:$0x1]
        %vm218 = vcmask 146432
        %v219 = vsel %vm218, %v215, 0.0
        %220 = vadd.xlane.f32.xlu0 %v219
        %v221 = vpop.xlane.xlu0 %220
        %v222 = vrcp.pop 18.0
        %v223 = vmul.f32 %v221, %v222
        %v224 = vsub.f32 %v215, %v223
        %v225 = vmul.f32 %v224, %v224
        %v226 = vsel %vm218, %v225, 0.0
        %227 = vadd.xlane.f32.xlu0 %v226
        %v228 = vpop.xlane.xlu0 %227
        %v229 = vmul.f32 %v228, %v222
        %v230 = vadd.f32 %v229, 1e-05
        %v231 = vrsqrt.pop %v230
        %v232 = vmul.f32 %v224, %v231
        %v233 = vlaneseq
        %v234 = vshrl.u32 %v233, 7
        %v235 = vsub.s32 0, %v234
        %v236 = vrot.slane %v216, %v235
        %v237 = vmul.f32 %v232, %v236
        %v238 = vlaneseq
        %v239 = vshrl.u32 %v238, 7
        %v240 = vsub.s32 0, %v239
        %v241 = vrot.slane %v217, %v240
        %v242 = vadd.f32 %v237, %v241
        %v243 = vld [vmem:[#allocation6 + $0x2] sm:$0x1]
        %v244 = vld [vmem:[#allocation6 + $0x3] sm:$0x1]
        %v245 = vsel %vm218, %v242, 0.0
        %246 = vadd.xlane.f32.xlu0 %v245
        %v247 = vpop.xlane.xlu0 %246
        %v248 = vmul.f32 %v247, %v222
        %v249 = vsub.f32 %v242, %v248
        %v250 = vmul.f32 %v249, %v249
        %v251 = vsel %vm218, %v250, 0.0
        %252 = vadd.xlane.f32.xlu0 %v251
        %v253 = vpop.xlane.xlu0 %252
        %v254 = vmul.f32 %v253, %v222
        %v255 = vadd.f32 %v254, 1e-05
        %v256 = vrsqrt.pop %v255
        %v257 = vmul.f32 %v249, %v256
        %v258 = vlaneseq
        %v259 = vshrl.u32 %v258, 7
        %v260 = vsub.s32 0, %v259
        %v261 = vrot.slane %v243, %v260
        %v262 = vmul.f32 %v257, %v261
        %v263 = vlaneseq
        %v264 = vshrl.u32 %v263, 7
        %v265 = vsub.s32 0, %v264
        %v266 = vrot.slane %v244, %v265
        %v267 = vadd.f32 %v262, %v266
        %v268 = vld [vmem:[#allocation4] sm:$0xff]
        %v269 = vld [vmem:[#allocation4 + $0x8] sm:$0xff]
        %v270 = vld [vmem:[#allocation4 + $0x10] sm:$0x3]
        %v272 = vsel %vm218, %v267, 0
        %vm274 = vcmask 1041408
        %v276 = vsel %vm274, %v270, 0
        %278 = vmatprep.subr.mxu0 0.0
        %279 = vmatpush1.msra.mxu0 %v268
        %280 = vmatprep.subr.mxu0 0.0
        %281 = vmatpush1.msra.mxu0 %v269
        %282 = vmatprep.subr.mxu0 0.0
        %283 = vmatpush1.msra.mxu0 %v276
        %284 = vmatprep.subr.mxu0 0.0
        %285 = vmatpush1.msra.mxu0 0.0
        %286 = vmatprep.subr.mxu0 0.0
        %287 = vmatpush1.msra.mxu0 0.0
        %288 = vmatprep.subr.mxu0 0.0
        %289 = vmatpush1.msra.mxu0 0.0
        %290 = vmatprep.subr.mxu0 0.0
        %291 = vmatpush1.msra.mxu0 0.0
        %292 = vmatprep.subr.mxu0 0.0
        %293 = vmatpush1.msra.mxu0 0.0
        %294 = vmatprep.subr.mxu0 0.0
        %295 = vmatpush1.msra.mxu0 0.0
        %296 = vmatprep.subr.mxu0 0.0
        %297 = vmatpush1.msra.mxu0 0.0
        %298 = vmatprep.subr.mxu0 0.0
        %299 = vmatpush1.msra.mxu0 0.0
        %300 = vmatprep.subr.mxu0 0.0
        %301 = vmatpush1.msra.mxu0 0.0
        %302 = vmatprep.subr.mxu0 0.0
        %303 = vmatpush1.msra.mxu0 0.0
        %304 = vmatprep.subr.mxu0 0.0
        %305 = vmatpush1.msra.mxu0 0.0
        %306 = vmatprep.subr.mxu0 0.0
        %307 = vmatpush1.msra.mxu0 0.0
        %308 = vmatprep.subr.mxu0 0.0
        %309 = vmatpush1.msra.mxu0 0.0
        %310 = vmatprep.subr.mxu0 0.0
        %311 = vmatpush1.msra.mxu0 0.0
        %312 = vmatprep.subr.mxu0 0.0
        %313 = vmatpush1.msra.mxu0 0.0
        %314 = vmatprep.subr.mxu0 0.0
        %315 = vmatpush1.msra.mxu0 0.0
        %316 = vmatprep.subr.mxu0 0.0
        %317 = vmatpush1.msra.mxu0 0.0
        %318 = vmatprep.subr.mxu0 0.0
        %319 = vmatpush1.msra.mxu0 0.0
        %320 = vmatprep.subr.mxu0 0.0
        %321 = vmatpush1.msra.mxu0 0.0
        %322 = vmatprep.subr.mxu0 0.0
        %323 = vmatpush1.msra.mxu0 0.0
        %324 = vmatprep.subr.mxu0 0.0
        %325 = vmatpush1.msra.mxu0 0.0
        %326 = vmatprep.subr.mxu0 0.0
        %327 = vmatpush1.msra.mxu0 0.0
        %328 = vmatprep.subr.mxu0 0.0
        %329 = vmatpush1.msra.mxu0 0.0
        %330 = vmatprep.subr.mxu0 0.0
        %331 = vmatpush1.msra.mxu0 0.0
        %332 = vmatprep.subr.mxu0 0.0
        %333 = vmatpush1.msra.mxu0 0.0
        %334 = vmatprep.subr.mxu0 0.0
        %335 = vmatpush1.msra.mxu0 0.0
        %336 = vmatprep.subr.mxu0 0.0
        %337 = vmatpush1.msra.mxu0 0.0
        %338 = vmatprep.subr.mxu0 0.0
        %339 = vmatpush1.msra.mxu0 0.0
        %340 = vmatprep.subr.mxu0 0.0
        %341 = vmatpush1.msra.mxu0 0.0
        %342 = vmatprep.mubr.f32.mxu0 0.0
        %343 = vmatmul.mubr.f32.gmra.mrb[0].mxu0 %v272
        %v344 = vpop.f32.mrb[0].mxu0
        %v345 = vadd.f32 0.0, %v344
        %v346 = vpop.f32.mrb[0].mxu0
        %347 = vdwg.mxu0
        %349 = vrot.lane.b32.xlu0 %v345, 119
        %v350 = vpop.permute.xlu0 %349
        %351 = vrot.lane.b32.xlu0 %v345, 110
        %v352 = vpop.permute.xlu0 %351
        %vm353 = vcmask 72704
        %v354 = vsel %vm353, %v345, 0
        %v356 = vsel %vm353, %v352, 0
        %358 = vmatprep.subr.mxu0 0.0
        %359 = vmatpush1.xpose.msra.mxu0 %v356
        %360 = vmatprep.subr.mxu0 0.0
        %361 = vmatpush1.xpose.msra.mxu0 0.0
        %362 = vmatprep.subr.mxu0 0.0
        %363 = vmatpush1.xpose.msra.mxu0 0.0
        %364 = vmatprep.subr.mxu0 0.0
        %365 = vmatpush1.xpose.msra.mxu0 0.0
        %366 = vmatprep.subr.mxu0 0.0
        %367 = vmatpush1.xpose.msra.mxu0 0.0
        %368 = vmatprep.subr.mxu0 0.0
        %369 = vmatpush1.xpose.msra.mxu0 0.0
        %370 = vmatprep.subr.mxu0 0.0
        %371 = vmatpush1.xpose.msra.mxu0 0.0
        %372 = vmatprep.subr.mxu0 0.0
        %373 = vmatpush1.xpose.msra.mxu0 0.0
        %374 = vmatprep.subr.mxu0 0.0
        %375 = vmatpush1.xpose.msra.mxu0 0.0
        %376 = vmatprep.subr.mxu0 0.0
        %377 = vmatpush1.xpose.msra.mxu0 0.0
        %378 = vmatprep.subr.mxu0 0.0
        %379 = vmatpush1.xpose.msra.mxu0 0.0
        %380 = vmatprep.subr.mxu0 0.0
        %381 = vmatpush1.xpose.msra.mxu0 0.0
        %382 = vmatprep.subr.mxu0 0.0
        %383 = vmatpush1.xpose.msra.mxu0 0.0
        %384 = vmatprep.subr.mxu0 0.0
        %385 = vmatpush1.xpose.msra.mxu0 0.0
        %386 = vmatprep.subr.mxu0 0.0
        %387 = vmatpush1.xpose.msra.mxu0 0.0
        %388 = vmatprep.subr.mxu0 0.0
        %389 = vmatpush1.xpose.msra.mxu0 0.0
        %390 = vmatprep.subr.mxu0 0.0
        %391 = vmatpush1.xpose.msra.mxu0 0.0
        %392 = vmatprep.subr.mxu0 0.0
        %393 = vmatpush1.xpose.msra.mxu0 0.0
        %394 = vmatprep.subr.mxu0 0.0
        %395 = vmatpush1.xpose.msra.mxu0 0.0
        %396 = vmatprep.subr.mxu0 0.0
        %397 = vmatpush1.xpose.msra.mxu0 0.0
        %398 = vmatprep.subr.mxu0 0.0
        %399 = vmatpush1.xpose.msra.mxu0 0.0
        %400 = vmatprep.subr.mxu0 0.0
        %401 = vmatpush1.xpose.msra.mxu0 0.0
        %402 = vmatprep.subr.mxu0 0.0
        %403 = vmatpush1.xpose.msra.mxu0 0.0
        %404 = vmatprep.subr.mxu0 0.0
        %405 = vmatpush1.xpose.msra.mxu0 0.0
        %406 = vmatprep.subr.mxu0 0.0
        %407 = vmatpush1.xpose.msra.mxu0 0.0
        %408 = vmatprep.subr.mxu0 0.0
        %409 = vmatpush1.xpose.msra.mxu0 0.0
        %410 = vmatprep.subr.mxu0 0.0
        %411 = vmatpush1.xpose.msra.mxu0 0.0
        %412 = vmatprep.subr.mxu0 0.0
        %413 = vmatpush1.xpose.msra.mxu0 0.0
        %414 = vmatprep.subr.mxu0 0.0
        %415 = vmatpush1.xpose.msra.mxu0 0.0
        %416 = vmatprep.subr.mxu0 0.0
        %417 = vmatpush1.xpose.msra.mxu0 0.0
        %418 = vmatprep.subr.mxu0 0.0
        %419 = vmatpush1.xpose.msra.mxu0 0.0
        %420 = vmatprep.subr.mxu0 0.0
        %421 = vmatpush1.xpose.msra.mxu0 0.0
        %422 = vmatprep.mubr.f32.mxu0 0.0
        %423 = vmatmul.mubr.f32.gmra.mrb[0].mxu0 %v354
        %v424 = vpop.f32.mrb[0].mxu0
        %v425 = vadd.f32 0.0, %v424
        %v426 = vpop.f32.mrb[0].mxu0
        %427 = vdwg.mxu0
        %428 = vrot.lane.b32.xlu0 %v350, 110
        %v429 = vpop.permute.xlu0 %428
        %v430 = vsel %vm353, %v350, 0
        %v432 = vsel %vm353, %v429, 0
        %434 = vmatprep.subr.mxu0 0.0
        %435 = vmatpush1.xpose.msra.mxu0 %v432
        %436 = vmatprep.subr.mxu0 0.0
        %437 = vmatpush1.xpose.msra.mxu0 0.0
        %438 = vmatprep.subr.mxu0 0.0
        %439 = vmatpush1.xpose.msra.mxu0 0.0
        %440 = vmatprep.subr.mxu0 0.0
        %441 = vmatpush1.xpose.msra.mxu0 0.0
        %442 = vmatprep.subr.mxu0 0.0
        %443 = vmatpush1.xpose.msra.mxu0 0.0
        %444 = vmatprep.subr.mxu0 0.0
        %445 = vmatpush1.xpose.msra.mxu0 0.0
        %446 = vmatprep.subr.mxu0 0.0
        %447 = vmatpush1.xpose.msra.mxu0 0.0
        %448 = vmatprep.subr.mxu0 0.0
        %449 = vmatpush1.xpose.msra.mxu0 0.0
        %450 = vmatprep.subr.mxu0 0.0
        %451 = vmatpush1.xpose.msra.mxu0 0.0
        %452 = vmatprep.subr.mxu0 0.0
        %453 = vmatpush1.xpose.msra.mxu0 0.0
        %454 = vmatprep.subr.mxu0 0.0
        %455 = vmatpush1.xpose.msra.mxu0 0.0
        %456 = vmatprep.subr.mxu0 0.0
        %457 = vmatpush1.xpose.msra.mxu0 0.0
        %458 = vmatprep.subr.mxu0 0.0
        %459 = vmatpush1.xpose.msra.mxu0 0.0
        %460 = vmatprep.subr.mxu0 0.0
        %461 = vmatpush1.xpose.msra.mxu0 0.0
        %462 = vmatprep.subr.mxu0 0.0
        %463 = vmatpush1.xpose.msra.mxu0 0.0
        %464 = vmatprep.subr.mxu0 0.0
        %465 = vmatpush1.xpose.msra.mxu0 0.0
        %466 = vmatprep.subr.mxu0 0.0
        %467 = vmatpush1.xpose.msra.mxu0 0.0
        %468 = vmatprep.subr.mxu0 0.0
        %469 = vmatpush1.xpose.msra.mxu0 0.0
        %470 = vmatprep.subr.mxu0 0.0
        %471 = vmatpush1.xpose.msra.mxu0 0.0
        %472 = vmatprep.subr.mxu0 0.0
        %473 = vmatpush1.xpose.msra.mxu0 0.0
        %474 = vmatprep.subr.mxu0 0.0
        %475 = vmatpush1.xpose.msra.mxu0 0.0
        %476 = vmatprep.subr.mxu0 0.0
        %477 = vmatpush1.xpose.msra.mxu0 0.0
        %478 = vmatprep.subr.mxu0 0.0
        %479 = vmatpush1.xpose.msra.mxu0 0.0
        %480 = vmatprep.subr.mxu0 0.0
        %481 = vmatpush1.xpose.msra.mxu0 0.0
        %482 = vmatprep.subr.mxu0 0.0
        %483 = vmatpush1.xpose.msra.mxu0 0.0
        %484 = vmatprep.subr.mxu0 0.0
        %485 = vmatpush1.xpose.msra.mxu0 0.0
        %486 = vmatprep.subr.mxu0 0.0
        %487 = vmatpush1.xpose.msra.mxu0 0.0
        %488 = vmatprep.subr.mxu0 0.0
        %489 = vmatpush1.xpose.msra.mxu0 0.0
        %490 = vmatprep.subr.mxu0 0.0
        %491 = vmatpush1.xpose.msra.mxu0 0.0
        %492 = vmatprep.subr.mxu0 0.0
        %493 = vmatpush1.xpose.msra.mxu0 0.0
        %494 = vmatprep.subr.mxu0 0.0
        %495 = vmatpush1.xpose.msra.mxu0 0.0
        %496 = vmatprep.subr.mxu0 0.0
        %497 = vmatpush1.xpose.msra.mxu0 0.0
        %498 = vmatprep.mubr.f32.mxu0 0.0
        %499 = vmatmul.mubr.f32.gmra.mrb[0].mxu0 %v430
        %v500 = vpop.f32.mrb[0].mxu0
        %v501 = vadd.f32 0.0, %v500
        %v502 = vpop.f32.mrb[0].mxu0
        %503 = vdwg.mxu0
        %v504 = vmul.f32 %v425, 0.33333334
        %v505 = vmul.f32 %v501, 0.33333334
        %vm506 = vcmask 64512
        %v507 = vsel %vm506, %v504, -inf
        %508 = vmax.xlane.f32.xlu0 %v507
        %v509 = vpop.xlane.xlu0 %508
        %v510 = vsel %vm506, %v505, -inf
        %511 = vmax.xlane.f32.xlu0 %v510
        %v512 = vpop.xlane.xlu0 %511
        %v513 = vsub.f32 %v504, %v509
        %v514 = vsub.f32 %v505, %v512
        %v515 = vmul.f32 %v513, 1.442695
        %v516 = vpow.pop %v515
        %v517 = vmul.f32 %v514, 1.442695
        %v518 = vpow.pop %v517
        %v519 = vsel %vm506, %v516, 0.0
        %520 = vadd.xlane.f32.xlu0 %v519
        %v521 = vpop.xlane.xlu0 %520
        %v522 = vsel %vm506, %v518, 0.0
        %523 = vadd.xlane.f32.xlu0 %v522
        %v524 = vpop.xlane.xlu0 %523
        %v525 = vrcp.pop %v521
        %v526 = vrcp.pop %v524
        %v527 = vmul.f32 %v516, %v525
        %v528 = vmul.f32 %v518, %v526
        %529 = vrot.lane.b32.xlu0 %v345, 92
        %v530 = vpop.permute.xlu0 %529
        %v533 = vsel %vm506, %v527, 0
        %535 = vmatprep.subr.mxu0 0.0
        %536 = vmatpush1.msra.mxu0 %v530
        %537 = vmatprep.subr.mxu0 0.0
        %538 = vmatpush1.msra.mxu0 0.0
        %539 = vmatprep.subr.mxu0 0.0
        %540 = vmatpush1.msra.mxu0 0.0
        %541 = vmatprep.subr.mxu0 0.0
        %542 = vmatpush1.msra.mxu0 0.0
        %543 = vmatprep.subr.mxu0 0.0
        %544 = vmatpush1.msra.mxu0 0.0
        %545 = vmatprep.subr.mxu0 0.0
        %546 = vmatpush1.msra.mxu0 0.0
        %547 = vmatprep.subr.mxu0 0.0
        %548 = vmatpush1.msra.mxu0 0.0
        %549 = vmatprep.subr.mxu0 0.0
        %550 = vmatpush1.msra.mxu0 0.0
        %551 = vmatprep.subr.mxu0 0.0
        %552 = vmatpush1.msra.mxu0 0.0
        %553 = vmatprep.subr.mxu0 0.0
        %554 = vmatpush1.msra.mxu0 0.0
        %555 = vmatprep.subr.mxu0 0.0
        %556 = vmatpush1.msra.mxu0 0.0
        %557 = vmatprep.subr.mxu0 0.0
        %558 = vmatpush1.msra.mxu0 0.0
        %559 = vmatprep.subr.mxu0 0.0
        %560 = vmatpush1.msra.mxu0 0.0
        %561 = vmatprep.subr.mxu0 0.0
        %562 = vmatpush1.msra.mxu0 0.0
        %563 = vmatprep.subr.mxu0 0.0
        %564 = vmatpush1.msra.mxu0 0.0
        %565 = vmatprep.subr.mxu0 0.0
        %566 = vmatpush1.msra.mxu0 0.0
        %567 = vmatprep.subr.mxu0 0.0
        %568 = vmatpush1.msra.mxu0 0.0
        %569 = vmatprep.subr.mxu0 0.0
        %570 = vmatpush1.msra.mxu0 0.0
        %571 = vmatprep.subr.mxu0 0.0
        %572 = vmatpush1.msra.mxu0 0.0
        %573 = vmatprep.subr.mxu0 0.0
        %574 = vmatpush1.msra.mxu0 0.0
        %575 = vmatprep.subr.mxu0 0.0
        %576 = vmatpush1.msra.mxu0 0.0
        %577 = vmatprep.subr.mxu0 0.0
        %578 = vmatpush1.msra.mxu0 0.0
        %579 = vmatprep.subr.mxu0 0.0
        %580 = vmatpush1.msra.mxu0 0.0
        %581 = vmatprep.subr.mxu0 0.0
        %582 = vmatpush1.msra.mxu0 0.0
        %583 = vmatprep.subr.mxu0 0.0
        %584 = vmatpush1.msra.mxu0 0.0
        %585 = vmatprep.subr.mxu0 0.0
        %586 = vmatpush1.msra.mxu0 0.0
        %587 = vmatprep.subr.mxu0 0.0
        %588 = vmatpush1.msra.mxu0 0.0
        %589 = vmatprep.subr.mxu0 0.0
        %590 = vmatpush1.msra.mxu0 0.0
        %591 = vmatprep.subr.mxu0 0.0
        %592 = vmatpush1.msra.mxu0 0.0
        %593 = vmatprep.subr.mxu0 0.0
        %594 = vmatpush1.msra.mxu0 0.0
        %595 = vmatprep.subr.mxu0 0.0
        %596 = vmatpush1.msra.mxu0 0.0
        %597 = vmatprep.subr.mxu0 0.0
        %598 = vmatpush1.msra.mxu0 0.0
        %599 = vmatprep.mubr.f32.mxu0 0.0
        %600 = vmatmul.mubr.f32.gmra.mrb[0].mxu0 %v533
        %v601 = vpop.f32.mrb[0].mxu0
        %v602 = vadd.f32 0.0, %v601
        %v603 = vpop.f32.mrb[0].mxu0
        %604 = vdwg.mxu0
        %605 = vrot.lane.b32.xlu0 %v350, 92
        %v606 = vpop.permute.xlu0 %605
        %v609 = vsel %vm506, %v528, 0
        %611 = vmatprep.subr.mxu0 0.0
        %612 = vmatpush1.msra.mxu0 %v606
        %613 = vmatprep.subr.mxu0 0.0
        %614 = vmatpush1.msra.mxu0 0.0
        %615 = vmatprep.subr.mxu0 0.0
        %616 = vmatpush1.msra.mxu0 0.0
        %617 = vmatprep.subr.mxu0 0.0
        %618 = vmatpush1.msra.mxu0 0.0
        %619 = vmatprep.subr.mxu0 0.0
        %620 = vmatpush1.msra.mxu0 0.0
        %621 = vmatprep.subr.mxu0 0.0
        %622 = vmatpush1.msra.mxu0 0.0
        %623 = vmatprep.subr.mxu0 0.0
        %624 = vmatpush1.msra.mxu0 0.0
        %625 = vmatprep.subr.mxu0 0.0
        %626 = vmatpush1.msra.mxu0 0.0
        %627 = vmatprep.subr.mxu0 0.0
        %628 = vmatpush1.msra.mxu0 0.0
        %629 = vmatprep.subr.mxu0 0.0
        %630 = vmatpush1.msra.mxu0 0.0
        %631 = vmatprep.subr.mxu0 0.0
        %632 = vmatpush1.msra.mxu0 0.0
        %633 = vmatprep.subr.mxu0 0.0
        %634 = vmatpush1.msra.mxu0 0.0
        %635 = vmatprep.subr.mxu0 0.0
        %636 = vmatpush1.msra.mxu0 0.0
        %637 = vmatprep.subr.mxu0 0.0
        %638 = vmatpush1.msra.mxu0 0.0
        %639 = vmatprep.subr.mxu0 0.0
        %640 = vmatpush1.msra.mxu0 0.0
        %641 = vmatprep.subr.mxu0 0.0
        %642 = vmatpush1.msra.mxu0 0.0
        %643 = vmatprep.subr.mxu0 0.0
        %644 = vmatpush1.msra.mxu0 0.0
        %645 = vmatprep.subr.mxu0 0.0
        %646 = vmatpush1.msra.mxu0 0.0
        %647 = vmatprep.subr.mxu0 0.0
        %648 = vmatpush1.msra.mxu0 0.0
        %649 = vmatprep.subr.mxu0 0.0
        %650 = vmatpush1.msra.mxu0 0.0
        %651 = vmatprep.subr.mxu0 0.0
        %652 = vmatpush1.msra.mxu0 0.0
        %653 = vmatprep.subr.mxu0 0.0
        %654 = vmatpush1.msra.mxu0 0.0
        %655 = vmatprep.subr.mxu0 0.0
        %656 = vmatpush1.msra.mxu0 0.0
        %657 = vmatprep.subr.mxu0 0.0
        %658 = vmatpush1.msra.mxu0 0.0
        %659 = vmatprep.subr.mxu0 0.0
        %660 = vmatpush1.msra.mxu0 0.0
        %661 = vmatprep.subr.mxu0 0.0
        %662 = vmatpush1.msra.mxu0 0.0
        %663 = vmatprep.subr.mxu0 0.0
        %664 = vmatpush1.msra.mxu0 0.0
        %665 = vmatprep.subr.mxu0 0.0
        %666 = vmatpush1.msra.mxu0 0.0
        %667 = vmatprep.subr.mxu0 0.0
        %668 = vmatpush1.msra.mxu0 0.0
        %669 = vmatprep.subr.mxu0 0.0
        %670 = vmatpush1.msra.mxu0 0.0
        %671 = vmatprep.subr.mxu0 0.0
        %672 = vmatpush1.msra.mxu0 0.0
        %673 = vmatprep.subr.mxu0 0.0
        %674 = vmatpush1.msra.mxu0 0.0
        %675 = vmatprep.mubr.f32.mxu0 0.0
        %676 = vmatmul.mubr.f32.gmra.mrb[0].mxu0 %v609
        %v677 = vpop.f32.mrb[0].mxu0
        %v678 = vadd.f32 0.0, %v677
        %v679 = vpop.f32.mrb[0].mxu0
        %680 = vdwg.mxu0
        %682 = vrot.lane.b32.xlu0 %v678, 9
        %v683 = vpop.permute.xlu0 %682
        %v685 = vsel %vm353, %v602, %v683
        %v686 = vld [vmem:[#allocation4 + $0x18] sm:$0xff]
        %v687 = vld [vmem:[#allocation4 + $0x20] sm:$0xff]
        %v688 = vld [vmem:[#allocation4 + $0x28] sm:$0x3]
        %v690 = vsel %vm218, %v685, 0
        %v693 = vsel %vm274, %v688, 0
        %695 = vmatprep.subr.mxu0 0.0
        %696 = vmatpush1.msra.mxu0 %v686
        %697 = vmatprep.subr.mxu0 0.0
        %698 = vmatpush1.msra.mxu0 %v687
        %699 = vmatprep.subr.mxu0 0.0
        %700 = vmatpush1.msra.mxu0 %v693
        %701 = vmatprep.subr.mxu0 0.0
        %702 = vmatpush1.msra.mxu0 0.0
        %703 = vmatprep.subr.mxu0 0.0
        %704 = vmatpush1.msra.mxu0 0.0
        %705 = vmatprep.subr.mxu0 0.0
        %706 = vmatpush1.msra.mxu0 0.0
        %707 = vmatprep.subr.mxu0 0.0
        %708 = vmatpush1.msra.mxu0 0.0
        %709 = vmatprep.subr.mxu0 0.0
        %710 = vmatpush1.msra.mxu0 0.0
        %711 = vmatprep.subr.mxu0 0.0
        %712 = vmatpush1.msra.mxu0 0.0
        %713 = vmatprep.subr.mxu0 0.0
        %714 = vmatpush1.msra.mxu0 0.0
        %715 = vmatprep.subr.mxu0 0.0
        %716 = vmatpush1.msra.mxu0 0.0
        %717 = vmatprep.subr.mxu0 0.0
        %718 = vmatpush1.msra.mxu0 0.0
        %719 = vmatprep.subr.mxu0 0.0
        %720 = vmatpush1.msra.mxu0 0.0
        %721 = vmatprep.subr.mxu0 0.0
        %722 = vmatpush1.msra.mxu0 0.0
        %723 = vmatprep.subr.mxu0 0.0
        %724 = vmatpush1.msra.mxu0 0.0
        %725 = vmatprep.subr.mxu0 0.0
        %726 = vmatpush1.msra.mxu0 0.0
        %727 = vmatprep.subr.mxu0 0.0
        %728 = vmatpush1.msra.mxu0 0.0
        %729 = vmatprep.subr.mxu0 0.0
        %730 = vmatpush1.msra.mxu0 0.0
        %731 = vmatprep.subr.mxu0 0.0
        %732 = vmatpush1.msra.mxu0 0.0
        %733 = vmatprep.subr.mxu0 0.0
        %734 = vmatpush1.msra.mxu0 0.0
        %735 = vmatprep.subr.mxu0 0.0
        %736 = vmatpush1.msra.mxu0 0.0
        %737 = vmatprep.subr.mxu0 0.0
        %738 = vmatpush1.msra.mxu0 0.0
        %739 = vmatprep.subr.mxu0 0.0
        %740 = vmatpush1.msra.mxu0 0.0
        %741 = vmatprep.subr.mxu0 0.0
        %742 = vmatpush1.msra.mxu0 0.0
        %743 = vmatprep.subr.mxu0 0.0
        %744 = vmatpush1.msra.mxu0 0.0
        %745 = vmatprep.subr.mxu0 0.0
        %746 = vmatpush1.msra.mxu0 0.0
        %747 = vmatprep.subr.mxu0 0.0
        %748 = vmatpush1.msra.mxu0 0.0
        %749 = vmatprep.subr.mxu0 0.0
        %750 = vmatpush1.msra.mxu0 0.0
        %751 = vmatprep.subr.mxu0 0.0
        %752 = vmatpush1.msra.mxu0 0.0
        %753 = vmatprep.subr.mxu0 0.0
        %754 = vmatpush1.msra.mxu0 0.0
        %755 = vmatprep.subr.mxu0 0.0
        %756 = vmatpush1.msra.mxu0 0.0
        %757 = vmatprep.subr.mxu0 0.0
        %758 = vmatpush1.msra.mxu0 0.0
        %759 = vmatprep.mubr.f32.mxu0 0.0
        %760 = vmatmul.mubr.f32.gmra.mrb[0].mxu0 %v690
        %v761 = vpop.f32.mrb[0].mxu0
        %v762 = vadd.f32 0.0, %v761
        %v763 = vpop.f32.mrb[0].mxu0
        %764 = vdwg.mxu0
        %v765 = vadd.f32 %v242, %v762
        %v766 = vld [vmem:[#allocation6 + $0x4] sm:$0x1]
        %v767 = vlaneseq
        %v768 = vshrl.u32 %v767, 7
        %v769 = vsub.s32 0, %v768
        %v770 = vrot.slane %v766, %v769
        %v771 = vadd.f32 %v765, %v770
        %v772 = vld [vmem:[#allocation6 + $0x5] sm:$0x1]
        %v773 = vld [vmem:[#allocation6 + $0x6] sm:$0x1]
        %v774 = vsel %vm218, %v771, 0.0
        %775 = vadd.xlane.f32.xlu0 %v774
        %v776 = vpop.xlane.xlu0 %775
        %v777 = vmul.f32 %v776, %v222
        %v778 = vsub.f32 %v771, %v777
        %v779 = vmul.f32 %v778, %v778
        %v780 = vsel %vm218, %v779, 0.0
        %781 = vadd.xlane.f32.xlu0 %v780
        %v782 = vpop.xlane.xlu0 %781
        %v783 = vmul.f32 %v782, %v222
        %v784 = vadd.f32 %v783, 1e-05
        %v785 = vrsqrt.pop %v784
        %v786 = vmul.f32 %v778, %v785
        %v787 = vlaneseq
        %v788 = vshrl.u32 %v787, 7
        %v789 = vsub.s32 0, %v788
        %v790 = vrot.slane %v772, %v789
        %v791 = vmul.f32 %v786, %v790
        %v792 = vlaneseq
        %v793 = vshrl.u32 %v792, 7
        %v794 = vsub.s32 0, %v793
        %v795 = vrot.slane %v773, %v794
        %v796 = vadd.f32 %v791, %v795
        %v797 = vld [vmem:[#allocation4 + $0x30] sm:$0xff]
        %v798 = vld [vmem:[#allocation4 + $0x38] sm:$0xff]
        %v799 = vld [vmem:[#allocation4 + $0x40] sm:$0x3]
        %v800 = vld [vmem:[#allocation6 + $0x7] sm:$0x1]
        %v801 = vlaneseq
        %v802 = vshrl.u32 %v801, 7
        %v803 = vsub.s32 0, %v802
        %v804 = vrot.slane %v800, %v803
        %v806 = vsel %vm218, %v796, 0
        %v809 = vsel %vm274, %v799, 0
        %811 = vmatprep.subr.mxu0 0.0
        %812 = vmatpush1.msra.mxu0 %v797
        %813 = vmatprep.subr.mxu0 0.0
        %814 = vmatpush1.msra.mxu0 %v798
        %815 = vmatprep.subr.mxu0 0.0
        %816 = vmatpush1.msra.mxu0 %v809
        %817 = vmatprep.subr.mxu0 0.0
        %818 = vmatpush1.msra.mxu0 0.0
        %819 = vmatprep.subr.mxu0 0.0
        %820 = vmatpush1.msra.mxu0 0.0
        %821 = vmatprep.subr.mxu0 0.0
        %822 = vmatpush1.msra.mxu0 0.0
        %823 = vmatprep.subr.mxu0 0.0
        %824 = vmatpush1.msra.mxu0 0.0
        %825 = vmatprep.subr.mxu0 0.0
        %826 = vmatpush1.msra.mxu0 0.0
        %827 = vmatprep.subr.mxu0 0.0
        %828 = vmatpush1.msra.mxu0 0.0
        %829 = vmatprep.subr.mxu0 0.0
        %830 = vmatpush1.msra.mxu0 0.0
        %831 = vmatprep.subr.mxu0 0.0
        %832 = vmatpush1.msra.mxu0 0.0
        %833 = vmatprep.subr.mxu0 0.0
        %834 = vmatpush1.msra.mxu0 0.0
        %835 = vmatprep.subr.mxu0 0.0
        %836 = vmatpush1.msra.mxu0 0.0
        %837 = vmatprep.subr.mxu0 0.0
        %838 = vmatpush1.msra.mxu0 0.0
        %839 = vmatprep.subr.mxu0 0.0
        %840 = vmatpush1.msra.mxu0 0.0
        %841 = vmatprep.subr.mxu0 0.0
        %842 = vmatpush1.msra.mxu0 0.0
        %843 = vmatprep.subr.mxu0 0.0
        %844 = vmatpush1.msra.mxu0 0.0
        %845 = vmatprep.subr.mxu0 0.0
        %846 = vmatpush1.msra.mxu0 0.0
        %847 = vmatprep.subr.mxu0 0.0
        %848 = vmatpush1.msra.mxu0 0.0
        %849 = vmatprep.subr.mxu0 0.0
        %850 = vmatpush1.msra.mxu0 0.0
        %851 = vmatprep.subr.mxu0 0.0
        %852 = vmatpush1.msra.mxu0 0.0
        %853 = vmatprep.subr.mxu0 0.0
        %854 = vmatpush1.msra.mxu0 0.0
        %855 = vmatprep.subr.mxu0 0.0
        %856 = vmatpush1.msra.mxu0 0.0
        %857 = vmatprep.subr.mxu0 0.0
        %858 = vmatpush1.msra.mxu0 0.0
        %859 = vmatprep.subr.mxu0 0.0
        %860 = vmatpush1.msra.mxu0 0.0
        %861 = vmatprep.subr.mxu0 0.0
        %862 = vmatpush1.msra.mxu0 0.0
        %863 = vmatprep.subr.mxu0 0.0
        %864 = vmatpush1.msra.mxu0 0.0
        %865 = vmatprep.subr.mxu0 0.0
        %866 = vmatpush1.msra.mxu0 0.0
        %867 = vmatprep.subr.mxu0 0.0
        %868 = vmatpush1.msra.mxu0 0.0
        %869 = vmatprep.subr.mxu0 0.0
        %870 = vmatpush1.msra.mxu0 0.0
        %871 = vmatprep.subr.mxu0 0.0
        %872 = vmatpush1.msra.mxu0 0.0
        %873 = vmatprep.subr.mxu0 0.0
        %874 = vmatpush1.msra.mxu0 0.0
        %875 = vmatprep.mubr.f32.mxu0 0.0
        %876 = vmatmul.mubr.f32.gmra.mrb[0].mxu0 %v806
        %v877 = vpop.f32.mrb[0].mxu0
        %v878 = vadd.f32 %v804, %v877
        %v879 = vpop.f32.mrb[0].mxu0
        %880 = vdwg.mxu0
        %v881 = vmax.f32 %v878, 0.0
        %v882 = vld [vmem:[#allocation4 + $0x48] sm:$0xff]
        %v883 = vld [vmem:[#allocation4 + $0x50] sm:$0xff]
        %v884 = vld [vmem:[#allocation4 + $0x58] sm:$0xff]
        %v885 = vld [vmem:[#allocation4 + $0x60] sm:$0xff]
        %v886 = vld [vmem:[#allocation4 + $0x68] sm:$0xff]
        %v887 = vld [vmem:[#allocation4 + $0x70] sm:$0xff]
        %v888 = vld [vmem:[#allocation4 + $0x78] sm:$0xff]
        %v889 = vld [vmem:[#allocation4 + $0x80] sm:$0xff]
        %v890 = vld [vmem:[#allocation4 + $0x88] sm:$0xff]
        %v891 = vld [vmem:[#allocation6 + $0x8] sm:$0x1]
        %v892 = vlaneseq
        %v893 = vshrl.u32 %v892, 7
        %v894 = vsub.s32 0, %v893
        %v895 = vrot.slane %v891, %v894
        %vm896 = vcmask 588800
        %v898 = vsel %vm896, %v881, 0
        %900 = vmatprep.subr.mxu0 0.0
        %901 = vmatpush1.msra.mxu0 %v882
        %902 = vmatprep.subr.mxu0 0.0
        %903 = vmatpush1.msra.mxu0 %v883
        %904 = vmatprep.subr.mxu0 0.0
        %905 = vmatpush1.msra.mxu0 %v884
        %906 = vmatprep.subr.mxu0 0.0
        %907 = vmatpush1.msra.mxu0 %v885
        %908 = vmatprep.subr.mxu0 0.0
        %909 = vmatpush1.msra.mxu0 %v886
        %910 = vmatprep.subr.mxu0 0.0
        %911 = vmatpush1.msra.mxu0 %v887
        %912 = vmatprep.subr.mxu0 0.0
        %913 = vmatpush1.msra.mxu0 %v888
        %914 = vmatprep.subr.mxu0 0.0
        %915 = vmatpush1.msra.mxu0 %v889
        %916 = vmatprep.subr.mxu0 0.0
        %917 = vmatpush1.msra.mxu0 %v890
        %918 = vmatprep.subr.mxu0 0.0
        %919 = vmatpush1.msra.mxu0 0.0
        %920 = vmatprep.subr.mxu0 0.0
        %921 = vmatpush1.msra.mxu0 0.0
        %922 = vmatprep.subr.mxu0 0.0
        %923 = vmatpush1.msra.mxu0 0.0
        %924 = vmatprep.subr.mxu0 0.0
        %925 = vmatpush1.msra.mxu0 0.0
        %926 = vmatprep.subr.mxu0 0.0
        %927 = vmatpush1.msra.mxu0 0.0
        %928 = vmatprep.subr.mxu0 0.0
        %929 = vmatpush1.msra.mxu0 0.0
        %930 = vmatprep.subr.mxu0 0.0
        %931 = vmatpush1.msra.mxu0 0.0
        %932 = vmatprep.subr.mxu0 0.0
        %933 = vmatpush1.msra.mxu0 0.0
        %934 = vmatprep.subr.mxu0 0.0
        %935 = vmatpush1.msra.mxu0 0.0
        %936 = vmatprep.subr.mxu0 0.0
        %937 = vmatpush1.msra.mxu0 0.0
        %938 = vmatprep.subr.mxu0 0.0
        %939 = vmatpush1.msra.mxu0 0.0
        %940 = vmatprep.subr.mxu0 0.0
        %941 = vmatpush1.msra.mxu0 0.0
        %942 = vmatprep.subr.mxu0 0.0
        %943 = vmatpush1.msra.mxu0 0.0
        %944 = vmatprep.subr.mxu0 0.0
        %945 = vmatpush1.msra.mxu0 0.0
        %946 = vmatprep.subr.mxu0 0.0
        %947 = vmatpush1.msra.mxu0 0.0
        %948 = vmatprep.subr.mxu0 0.0
        %949 = vmatpush1.msra.mxu0 0.0
        %950 = vmatprep.subr.mxu0 0.0
        %951 = vmatpush1.msra.mxu0 0.0
        %952 = vmatprep.subr.mxu0 0.0
        %953 = vmatpush1.msra.mxu0 0.0
        %954 = vmatprep.subr.mxu0 0.0
        %955 = vmatpush1.msra.mxu0 0.0
        %956 = vmatprep.subr.mxu0 0.0
        %957 = vmatpush1.msra.mxu0 0.0
        %958 = vmatprep.subr.mxu0 0.0
        %959 = vmatpush1.msra.mxu0 0.0
        %960 = vmatprep.subr.mxu0 0.0
        %961 = vmatpush1.msra.mxu0 0.0
        %962 = vmatprep.subr.mxu0 0.0
        %963 = vmatpush1.msra.mxu0 0.0
        %964 = vmatprep.mubr.f32.mxu0 0.0
        %965 = vmatmul.mubr.f32.gmra.mrb[0].mxu0 %v898
        %v966 = vpop.f32.mrb[0].mxu0
        %v967 = vadd.f32 %v895, %v966
        %v968 = vpop.f32.mrb[0].mxu0
        %969 = vdwg.mxu0
        %v970 = vadd.f32 %v771, %v967
        %v971 = vld [vmem:[#allocation4 + $0x90] sm:$0xff]
        %v972 = vld [vmem:[#allocation4 + $0x98] sm:$0xff]
        %v973 = vld [vmem:[#allocation4 + $0xa0] sm:$0x3]
        %v974 = vld [vmem:[#allocation6 + $0x9] sm:$0x1]
        %v975 = vlaneseq
        %v976 = vshrl.u32 %v975, 7
        %v977 = vsub.s32 0, %v976
        %v978 = vrot.slane %v974, %v977
        %v980 = vsel %vm218, %v970, 0
        %v983 = vsel %vm274, %v973, 0
        %985 = vmatprep.subr.mxu0 0.0
        %986 = vmatpush1.msra.mxu0 %v971
        %987 = vmatprep.subr.mxu0 0.0
        %988 = vmatpush1.msra.mxu0 %v972
        %989 = vmatprep.subr.mxu0 0.0
        %990 = vmatpush1.msra.mxu0 %v983
        %991 = vmatprep.subr.mxu0 0.0
        %992 = vmatpush1.msra.mxu0 0.0
        %993 = vmatprep.subr.mxu0 0.0
        %994 = vmatpush1.msra.mxu0 0.0
        %995 = vmatprep.subr.mxu0 0.0
        %996 = vmatpush1.msra.mxu0 0.0
        %997 = vmatprep.subr.mxu0 0.0
        %998 = vmatpush1.msra.mxu0 0.0
        %999 = vmatprep.subr.mxu0 0.0
        %1000 = vmatpush1.msra.mxu0 0.0
        %1001 = vmatprep.subr.mxu0 0.0
        %1002 = vmatpush1.msra.mxu0 0.0
        %1003 = vmatprep.subr.mxu0 0.0
        %1004 = vmatpush1.msra.mxu0 0.0
        %1005 = vmatprep.subr.mxu0 0.0
        %1006 = vmatpush1.msra.mxu0 0.0
        %1007 = vmatprep.subr.mxu0 0.0
        %1008 = vmatpush1.msra.mxu0 0.0
        %1009 = vmatprep.subr.mxu0 0.0
        %1010 = vmatpush1.msra.mxu0 0.0
        %1011 = vmatprep.subr.mxu0 0.0
        %1012 = vmatpush1.msra.mxu0 0.0
        %1013 = vmatprep.subr.mxu0 0.0
        %1014 = vmatpush1.msra.mxu0 0.0
        %1015 = vmatprep.subr.mxu0 0.0
        %1016 = vmatpush1.msra.mxu0 0.0
        %1017 = vmatprep.subr.mxu0 0.0
        %1018 = vmatpush1.msra.mxu0 0.0
        %1019 = vmatprep.subr.mxu0 0.0
        %1020 = vmatpush1.msra.mxu0 0.0
        %1021 = vmatprep.subr.mxu0 0.0
        %1022 = vmatpush1.msra.mxu0 0.0
        %1023 = vmatprep.subr.mxu0 0.0
        %1024 = vmatpush1.msra.mxu0 0.0
        %1025 = vmatprep.subr.mxu0 0.0
        %1026 = vmatpush1.msra.mxu0 0.0
        %1027 = vmatprep.subr.mxu0 0.0
        %1028 = vmatpush1.msra.mxu0 0.0
        %1029 = vmatprep.subr.mxu0 0.0
        %1030 = vmatpush1.msra.mxu0 0.0
        %1031 = vmatprep.subr.mxu0 0.0
        %1032 = vmatpush1.msra.mxu0 0.0
        %1033 = vmatprep.subr.mxu0 0.0
        %1034 = vmatpush1.msra.mxu0 0.0
        %1035 = vmatprep.subr.mxu0 0.0
        %1036 = vmatpush1.msra.mxu0 0.0
        %1037 = vmatprep.subr.mxu0 0.0
        %1038 = vmatpush1.msra.mxu0 0.0
        %1039 = vmatprep.subr.mxu0 0.0
        %1040 = vmatpush1.msra.mxu0 0.0
        %1041 = vmatprep.subr.mxu0 0.0
        %1042 = vmatpush1.msra.mxu0 0.0
        %1043 = vmatprep.subr.mxu0 0.0
        %1044 = vmatpush1.msra.mxu0 0.0
        %1045 = vmatprep.subr.mxu0 0.0
        %1046 = vmatpush1.msra.mxu0 0.0
        %1047 = vmatprep.subr.mxu0 0.0
        %1048 = vmatpush1.msra.mxu0 0.0
        %1049 = vmatprep.mubr.f32.mxu0 0.0
        %1050 = vmatmul.mubr.f32.gmra.mrb[0].mxu0 %v980
        %v1051 = vpop.f32.mrb[0].mxu0
        %v1052 = vadd.f32 %v978, %v1051
        %v1053 = vpop.f32.mrb[0].mxu0
        %1054 = vdwg.mxu0
        %v1055 = vmax.f32 %v1052, 0.0
        %v1056 = vld [vmem:[#allocation6 + $0xa] sm:$0x1]
        %v1057 = vld [vmem:[#allocation6 + $0xb] sm:$0x1]
        %vm1058 = vcmask 261120
        %v1059 = vsel %vm1058, %v1055, 0.0
        %1060 = vadd.xlane.f32.xlu0 %v1059
        %v1061 = vpop.xlane.xlu0 %1060
        %v1062 = vrcp.pop 32.0
        %v1063 = vmul.f32 %v1061, %v1062
        %v1064 = vsub.f32 %v1055, %v1063
        %v1065 = vmul.f32 %v1064, %v1064
        %v1066 = vsel %vm1058, %v1065, 0.0
        %1067 = vadd.xlane.f32.xlu0 %v1066
        %v1068 = vpop.xlane.xlu0 %1067
        %v1069 = vmul.f32 %v1068, %v1062
        %v1070 = vadd.f32 %v1069, 1e-05
        %v1071 = vrsqrt.pop %v1070
        %v1072 = vmul.f32 %v1064, %v1071
        %v1073 = vlaneseq
        %v1074 = vshrl.u32 %v1073, 7
        %v1075 = vsub.s32 0, %v1074
        %v1076 = vrot.slane %v1056, %v1075
        %v1077 = vmul.f32 %v1072, %v1076
        %v1078 = vlaneseq
        %v1079 = vshrl.u32 %v1078, 7
        %v1080 = vsub.s32 0, %v1079
        %v1081 = vrot.slane %v1057, %v1080
        %v1082 = vadd.f32 %v1077, %v1081
        %v1083 = vld [vmem:[#allocation4 + $0xa8] sm:$0xff]
        %v1084 = vld [vmem:[#allocation4 + $0xb0] sm:$0xff]
        %v1085 = vld [vmem:[#allocation4 + $0xb8] sm:$0xff]
        %v1086 = vld [vmem:[#allocation4 + $0xc0] sm:$0xff]
        %v1088 = vsel %vm1058, %v1082, 0
        %1090 = vmatprep.subr.mxu0 0.0
        %1091 = vmatpush1.msra.mxu0 %v1083
        %1092 = vmatprep.subr.mxu0 0.0
        %1093 = vmatpush1.msra.mxu0 %v1084
        %1094 = vmatprep.subr.mxu0 0.0
        %1095 = vmatpush1.msra.mxu0 %v1085
        %1096 = vmatprep.subr.mxu0 0.0
        %1097 = vmatpush1.msra.mxu0 %v1086
        %1098 = vmatprep.subr.mxu0 0.0
        %1099 = vmatpush1.msra.mxu0 0.0
        %1100 = vmatprep.subr.mxu0 0.0
        %1101 = vmatpush1.msra.mxu0 0.0
        %1102 = vmatprep.subr.mxu0 0.0
        %1103 = vmatpush1.msra.mxu0 0.0
        %1104 = vmatprep.subr.mxu0 0.0
        %1105 = vmatpush1.msra.mxu0 0.0
        %1106 = vmatprep.subr.mxu0 0.0
        %1107 = vmatpush1.msra.mxu0 0.0
        %1108 = vmatprep.subr.mxu0 0.0
        %1109 = vmatpush1.msra.mxu0 0.0
        %1110 = vmatprep.subr.mxu0 0.0
        %1111 = vmatpush1.msra.mxu0 0.0
        %1112 = vmatprep.subr.mxu0 0.0
        %1113 = vmatpush1.msra.mxu0 0.0
        %1114 = vmatprep.subr.mxu0 0.0
        %1115 = vmatpush1.msra.mxu0 0.0
        %1116 = vmatprep.subr.mxu0 0.0
        %1117 = vmatpush1.msra.mxu0 0.0
        %1118 = vmatprep.subr.mxu0 0.0
        %1119 = vmatpush1.msra.mxu0 0.0
        %1120 = vmatprep.subr.mxu0 0.0
        %1121 = vmatpush1.msra.mxu0 0.0
        %1122 = vmatprep.subr.mxu0 0.0
        %1123 = vmatpush1.msra.mxu0 0.0
        %1124 = vmatprep.subr.mxu0 0.0
        %1125 = vmatpush1.msra.mxu0 0.0
        %1126 = vmatprep.subr.mxu0 0.0
        %1127 = vmatpush1.msra.mxu0 0.0
        %1128 = vmatprep.subr.mxu0 0.0
        %1129 = vmatpush1.msra.mxu0 0.0
        %1130 = vmatprep.subr.mxu0 0.0
        %1131 = vmatpush1.msra.mxu0 0.0
        %1132 = vmatprep.subr.mxu0 0.0
        %1133 = vmatpush1.msra.mxu0 0.0
        %1134 = vmatprep.subr.mxu0 0.0
        %1135 = vmatpush1.msra.mxu0 0.0
        %1136 = vmatprep.subr.mxu0 0.0
        %1137 = vmatpush1.msra.mxu0 0.0
        %1138 = vmatprep.subr.mxu0 0.0
        %1139 = vmatpush1.msra.mxu0 0.0
        %1140 = vmatprep.subr.mxu0 0.0
        %1141 = vmatpush1.msra.mxu0 0.0
        %1142 = vmatprep.subr.mxu0 0.0
        %1143 = vmatpush1.msra.mxu0 0.0
        %1144 = vmatprep.subr.mxu0 0.0
        %1145 = vmatpush1.msra.mxu0 0.0
        %1146 = vmatprep.subr.mxu0 0.0
        %1147 = vmatpush1.msra.mxu0 0.0
        %1148 = vmatprep.subr.mxu0 0.0
        %1149 = vmatpush1.msra.mxu0 0.0
        %1150 = vmatprep.subr.mxu0 0.0
        %1151 = vmatpush1.msra.mxu0 0.0
        %1152 = vmatprep.subr.mxu0 0.0
        %1153 = vmatpush1.msra.mxu0 0.0
        %1154 = vmatprep.mubr.f32.mxu0 0.0
        %1155 = vmatmul.mubr.f32.gmra.mrb[0].mxu0 %v1088
        %v1156 = vpop.f32.mrb[0].mxu0
        %v1157 = vadd.f32 0.0, %v1156
        %v1158 = vpop.f32.mrb[0].mxu0
        %1159 = vdwg.mxu0
        %1161 = vrot.lane.b32.xlu0 %v1157, 120
        %v1162 = vpop.permute.xlu0 %1161
        %1163 = vrot.lane.b32.xlu0 %v1157, 112
        %v1164 = vpop.permute.xlu0 %1163
        %1165 = vrot.lane.b32.xlu0 %v1157, 104
        %v1166 = vpop.permute.xlu0 %1165
        %1167 = vrot.lane.b32.xlu0 %v1157, 96
        %v1168 = vpop.permute.xlu0 %1167
        %v1169 = vsel %vm506, %v1157, 0
        %v1171 = vsel %vm506, %v1168, 0
        %1173 = vmatprep.subr.mxu0 0.0
        %1174 = vmatpush1.xpose.msra.mxu0 %v1171
        %1175 = vmatprep.subr.mxu0 0.0
        %1176 = vmatpush1.xpose.msra.mxu0 0.0
        %1177 = vmatprep.subr.mxu0 0.0
        %1178 = vmatpush1.xpose.msra.mxu0 0.0
        %1179 = vmatprep.subr.mxu0 0.0
        %1180 = vmatpush1.xpose.msra.mxu0 0.0
        %1181 = vmatprep.subr.mxu0 0.0
        %1182 = vmatpush1.xpose.msra.mxu0 0.0
        %1183 = vmatprep.subr.mxu0 0.0
        %1184 = vmatpush1.xpose.msra.mxu0 0.0
        %1185 = vmatprep.subr.mxu0 0.0
        %1186 = vmatpush1.xpose.msra.mxu0 0.0
        %1187 = vmatprep.subr.mxu0 0.0
        %1188 = vmatpush1.xpose.msra.mxu0 0.0
        %1189 = vmatprep.subr.mxu0 0.0
        %1190 = vmatpush1.xpose.msra.mxu0 0.0
        %1191 = vmatprep.subr.mxu0 0.0
        %1192 = vmatpush1.xpose.msra.mxu0 0.0
        %1193 = vmatprep.subr.mxu0 0.0
        %1194 = vmatpush1.xpose.msra.mxu0 0.0
        %1195 = vmatprep.subr.mxu0 0.0
        %1196 = vmatpush1.xpose.msra.mxu0 0.0
        %1197 = vmatprep.subr.mxu0 0.0
        %1198 = vmatpush1.xpose.msra.mxu0 0.0
        %1199 = vmatprep.subr.mxu0 0.0
        %1200 = vmatpush1.xpose.msra.mxu0 0.0
        %1201 = vmatprep.subr.mxu0 0.0
        %1202 = vmatpush1.xpose.msra.mxu0 0.0
        %1203 = vmatprep.subr.mxu0 0.0
        %1204 = vmatpush1.xpose.msra.mxu0 0.0
        %1205 = vmatprep.subr.mxu0 0.0
        %1206 = vmatpush1.xpose.msra.mxu0 0.0
        %1207 = vmatprep.subr.mxu0 0.0
        %1208 = vmatpush1.xpose.msra.mxu0 0.0
        %1209 = vmatprep.subr.mxu0 0.0
        %1210 = vmatpush1.xpose.msra.mxu0 0.0
        %1211 = vmatprep.subr.mxu0 0.0
        %1212 = vmatpush1.xpose.msra.mxu0 0.0
        %1213 = vmatprep.subr.mxu0 0.0
        %1214 = vmatpush1.xpose.msra.mxu0 0.0
        %1215 = vmatprep.subr.mxu0 0.0
        %1216 = vmatpush1.xpose.msra.mxu0 0.0
        %1217 = vmatprep.subr.mxu0 0.0
        %1218 = vmatpush1.xpose.msra.mxu0 0.0
        %1219 = vmatprep.subr.mxu0 0.0
        %1220 = vmatpush1.xpose.msra.mxu0 0.0
        %1221 = vmatprep.subr.mxu0 0.0
        %1222 = vmatpush1.xpose.msra.mxu0 0.0
        %1223 = vmatprep.subr.mxu0 0.0
        %1224 = vmatpush1.xpose.msra.mxu0 0.0
        %1225 = vmatprep.subr.mxu0 0.0
        %1226 = vmatpush1.xpose.msra.mxu0 0.0
        %1227 = vmatprep.subr.mxu0 0.0
        %1228 = vmatpush1.xpose.msra.mxu0 0.0
        %1229 = vmatprep.subr.mxu0 0.0
        %1230 = vmatpush1.xpose.msra.mxu0 0.0
        %1231 = vmatprep.subr.mxu0 0.0
        %1232 = vmatpush1.xpose.msra.mxu0 0.0
        %1233 = vmatprep.subr.mxu0 0.0
        %1234 = vmatpush1.xpose.msra.mxu0 0.0
        %1235 = vmatprep.subr.mxu0 0.0
        %1236 = vmatpush1.xpose.msra.mxu0 0.0
        %1237 = vmatprep.mubr.f32.mxu0 0.0
        %1238 = vmatmul.mubr.f32.gmra.mrb[0].mxu0 %v1169
        %v1239 = vpop.f32.mrb[0].mxu0
        %v1240 = vadd.f32 0.0, %v1239
        %v1241 = vpop.f32.mrb[0].mxu0
        %1242 = vdwg.mxu0
        %1243 = vrot.lane.b32.xlu0 %v1162, 96
        %v1244 = vpop.permute.xlu0 %1243
        %v1245 = vsel %vm506, %v1162, 0
        %v1247 = vsel %vm506, %v1244, 0
        %1249 = vmatprep.subr.mxu0 0.0
        %1250 = vmatpush1.xpose.msra.mxu0 %v1247
        %1251 = vmatprep.subr.mxu0 0.0
        %1252 = vmatpush1.xpose.msra.mxu0 0.0
        %1253 = vmatprep.subr.mxu0 0.0
        %1254 = vmatpush1.xpose.msra.mxu0 0.0
        %1255 = vmatprep.subr.mxu0 0.0
        %1256 = vmatpush1.xpose.msra.mxu0 0.0
        %1257 = vmatprep.subr.mxu0 0.0
        %1258 = vmatpush1.xpose.msra.mxu0 0.0
        %1259 = vmatprep.subr.mxu0 0.0
        %1260 = vmatpush1.xpose.msra.mxu0 0.0
        %1261 = vmatprep.subr.mxu0 0.0
        %1262 = vmatpush1.xpose.msra.mxu0 0.0
        %1263 = vmatprep.subr.mxu0 0.0
        %1264 = vmatpush1.xpose.msra.mxu0 0.0
        %1265 = vmatprep.subr.mxu0 0.0
        %1266 = vmatpush1.xpose.msra.mxu0 0.0
        %1267 = vmatprep.subr.mxu0 0.0
        %1268 = vmatpush1.xpose.msra.mxu0 0.0
        %1269 = vmatprep.subr.mxu0 0.0
        %1270 = vmatpush1.xpose.msra.mxu0 0.0
        %1271 = vmatprep.subr.mxu0 0.0
        %1272 = vmatpush1.xpose.msra.mxu0 0.0
        %1273 = vmatprep.subr.mxu0 0.0
        %1274 = vmatpush1.xpose.msra.mxu0 0.0
        %1275 = vmatprep.subr.mxu0 0.0
        %1276 = vmatpush1.xpose.msra.mxu0 0.0
        %1277 = vmatprep.subr.mxu0 0.0
        %1278 = vmatpush1.xpose.msra.mxu0 0.0
        %1279 = vmatprep.subr.mxu0 0.0
        %1280 = vmatpush1.xpose.msra.mxu0 0.0
        %1281 = vmatprep.subr.mxu0 0.0
        %1282 = vmatpush1.xpose.msra.mxu0 0.0
        %1283 = vmatprep.subr.mxu0 0.0
        %1284 = vmatpush1.xpose.msra.mxu0 0.0
        %1285 = vmatprep.subr.mxu0 0.0
        %1286 = vmatpush1.xpose.msra.mxu0 0.0
        %1287 = vmatprep.subr.mxu0 0.0
        %1288 = vmatpush1.xpose.msra.mxu0 0.0
        %1289 = vmatprep.subr.mxu0 0.0
        %1290 = vmatpush1.xpose.msra.mxu0 0.0
        %1291 = vmatprep.subr.mxu0 0.0
        %1292 = vmatpush1.xpose.msra.mxu0 0.0
        %1293 = vmatprep.subr.mxu0 0.0
        %1294 = vmatpush1.xpose.msra.mxu0 0.0
        %1295 = vmatprep.subr.mxu0 0.0
        %1296 = vmatpush1.xpose.msra.mxu0 0.0
        %1297 = vmatprep.subr.mxu0 0.0
        %1298 = vmatpush1.xpose.msra.mxu0 0.0
        %1299 = vmatprep.subr.mxu0 0.0
        %1300 = vmatpush1.xpose.msra.mxu0 0.0
        %1301 = vmatprep.subr.mxu0 0.0
        %1302 = vmatpush1.xpose.msra.mxu0 0.0
        %1303 = vmatprep.subr.mxu0 0.0
        %1304 = vmatpush1.xpose.msra.mxu0 0.0
        %1305 = vmatprep.subr.mxu0 0.0
        %1306 = vmatpush1.xpose.msra.mxu0 0.0
        %1307 = vmatprep.subr.mxu0 0.0
        %1308 = vmatpush1.xpose.msra.mxu0 0.0
        %1309 = vmatprep.subr.mxu0 0.0
        %1310 = vmatpush1.xpose.msra.mxu0 0.0
        %1311 = vmatprep.subr.mxu0 0.0
        %1312 = vmatpush1.xpose.msra.mxu0 0.0
        %1313 = vmatprep.mubr.f32.mxu0 0.0
        %1314 = vmatmul.mubr.f32.gmra.mrb[0].mxu0 %v1245
        %v1315 = vpop.f32.mrb[0].mxu0
        %v1316 = vadd.f32 0.0, %v1315
        %v1317 = vpop.f32.mrb[0].mxu0
        %1318 = vdwg.mxu0
        %1319 = vrot.lane.b32.xlu0 %v1164, 96
        %v1320 = vpop.permute.xlu0 %1319
        %v1321 = vsel %vm506, %v1164, 0
        %v1323 = vsel %vm506, %v1320, 0
        %1325 = vmatprep.subr.mxu0 0.0
        %1326 = vmatpush1.xpose.msra.mxu0 %v1323
        %1327 = vmatprep.subr.mxu0 0.0
        %1328 = vmatpush1.xpose.msra.mxu0 0.0
        %1329 = vmatprep.subr.mxu0 0.0
        %1330 = vmatpush1.xpose.msra.mxu0 0.0
        %1331 = vmatprep.subr.mxu0 0.0
        %1332 = vmatpush1.xpose.msra.mxu0 0.0
        %1333 = vmatprep.subr.mxu0 0.0
        %1334 = vmatpush1.xpose.msra.mxu0 0.0
        %1335 = vmatprep.subr.mxu0 0.0
        %1336 = vmatpush1.xpose.msra.mxu0 0.0
        %1337 = vmatprep.subr.mxu0 0.0
        %1338 = vmatpush1.xpose.msra.mxu0 0.0
        %1339 = vmatprep.subr.mxu0 0.0
        %1340 = vmatpush1.xpose.msra.mxu0 0.0
        %1341 = vmatprep.subr.mxu0 0.0
        %1342 = vmatpush1.xpose.msra.mxu0 0.0
        %1343 = vmatprep.subr.mxu0 0.0
        %1344 = vmatpush1.xpose.msra.mxu0 0.0
        %1345 = vmatprep.subr.mxu0 0.0
        %1346 = vmatpush1.xpose.msra.mxu0 0.0
        %1347 = vmatprep.subr.mxu0 0.0
        %1348 = vmatpush1.xpose.msra.mxu0 0.0
        %1349 = vmatprep.subr.mxu0 0.0
        %1350 = vmatpush1.xpose.msra.mxu0 0.0
        %1351 = vmatprep.subr.mxu0 0.0
        %1352 = vmatpush1.xpose.msra.mxu0 0.0
        %1353 = vmatprep.subr.mxu0 0.0
        %1354 = vmatpush1.xpose.msra.mxu0 0.0
        %1355 = vmatprep.subr.mxu0 0.0
        %1356 = vmatpush1.xpose.msra.mxu0 0.0
        %1357 = vmatprep.subr.mxu0 0.0
        %1358 = vmatpush1.xpose.msra.mxu0 0.0
        %1359 = vmatprep.subr.mxu0 0.0
        %1360 = vmatpush1.xpose.msra.mxu0 0.0
        %1361 = vmatprep.subr.mxu0 0.0
        %1362 = vmatpush1.xpose.msra.mxu0 0.0
        %1363 = vmatprep.subr.mxu0 0.0
        %1364 = vmatpush1.xpose.msra.mxu0 0.0
        %1365 = vmatprep.subr.mxu0 0.0
        %1366 = vmatpush1.xpose.msra.mxu0 0.0
        %1367 = vmatprep.subr.mxu0 0.0
        %1368 = vmatpush1.xpose.msra.mxu0 0.0
        %1369 = vmatprep.subr.mxu0 0.0
        %1370 = vmatpush1.xpose.msra.mxu0 0.0
        %1371 = vmatprep.subr.mxu0 0.0
        %1372 = vmatpush1.xpose.msra.mxu0 0.0
        %1373 = vmatprep.subr.mxu0 0.0
        %1374 = vmatpush1.xpose.msra.mxu0 0.0
        %1375 = vmatprep.subr.mxu0 0.0
        %1376 = vmatpush1.xpose.msra.mxu0 0.0
        %1377 = vmatprep.subr.mxu0 0.0
        %1378 = vmatpush1.xpose.msra.mxu0 0.0
        %1379 = vmatprep.subr.mxu0 0.0
        %1380 = vmatpush1.xpose.msra.mxu0 0.0
        %1381 = vmatprep.subr.mxu0 0.0
        %1382 = vmatpush1.xpose.msra.mxu0 0.0
        %1383 = vmatprep.subr.mxu0 0.0
        %1384 = vmatpush1.xpose.msra.mxu0 0.0
        %1385 = vmatprep.subr.mxu0 0.0
        %1386 = vmatpush1.xpose.msra.mxu0 0.0
        %1387 = vmatprep.subr.mxu0 0.0
        %1388 = vmatpush1.xpose.msra.mxu0 0.0
        %1389 = vmatprep.mubr.f32.mxu0 0.0
        %1390 = vmatmul.mubr.f32.gmra.mrb[0].mxu0 %v1321
        %v1391 = vpop.f32.mrb[0].mxu0
        %v1392 = vadd.f32 0.0, %v1391
        %v1393 = vpop.f32.mrb[0].mxu0
        %1394 = vdwg.mxu0
        %1395 = vrot.lane.b32.xlu0 %v1166, 96
        %v1396 = vpop.permute.xlu0 %1395
        %v1397 = vsel %vm506, %v1166, 0
        %v1399 = vsel %vm506, %v1396, 0
        %1401 = vmatprep.subr.mxu0 0.0
        %1402 = vmatpush1.xpose.msra.mxu0 %v1399
        %1403 = vmatprep.subr.mxu0 0.0
        %1404 = vmatpush1.xpose.msra.mxu0 0.0
        %1405 = vmatprep.subr.mxu0 0.0
        %1406 = vmatpush1.xpose.msra.mxu0 0.0
        %1407 = vmatprep.subr.mxu0 0.0
        %1408 = vmatpush1.xpose.msra.mxu0 0.0
        %1409 = vmatprep.subr.mxu0 0.0
        %1410 = vmatpush1.xpose.msra.mxu0 0.0
        %1411 = vmatprep.subr.mxu0 0.0
        %1412 = vmatpush1.xpose.msra.mxu0 0.0
        %1413 = vmatprep.subr.mxu0 0.0
        %1414 = vmatpush1.xpose.msra.mxu0 0.0
        %1415 = vmatprep.subr.mxu0 0.0
        %1416 = vmatpush1.xpose.msra.mxu0 0.0
        %1417 = vmatprep.subr.mxu0 0.0
        %1418 = vmatpush1.xpose.msra.mxu0 0.0
        %1419 = vmatprep.subr.mxu0 0.0
        %1420 = vmatpush1.xpose.msra.mxu0 0.0
        %1421 = vmatprep.subr.mxu0 0.0
        %1422 = vmatpush1.xpose.msra.mxu0 0.0
        %1423 = vmatprep.subr.mxu0 0.0
        %1424 = vmatpush1.xpose.msra.mxu0 0.0
        %1425 = vmatprep.subr.mxu0 0.0
        %1426 = vmatpush1.xpose.msra.mxu0 0.0
        %1427 = vmatprep.subr.mxu0 0.0
        %1428 = vmatpush1.xpose.msra.mxu0 0.0
        %1429 = vmatprep.subr.mxu0 0.0
        %1430 = vmatpush1.xpose.msra.mxu0 0.0
        %1431 = vmatprep.subr.mxu0 0.0
        %1432 = vmatpush1.xpose.msra.mxu0 0.0
        %1433 = vmatprep.subr.mxu0 0.0
        %1434 = vmatpush1.xpose.msra.mxu0 0.0
        %1435 = vmatprep.subr.mxu0 0.0
        %1436 = vmatpush1.xpose.msra.mxu0 0.0
        %1437 = vmatprep.subr.mxu0 0.0
        %1438 = vmatpush1.xpose.msra.mxu0 0.0
        %1439 = vmatprep.subr.mxu0 0.0
        %1440 = vmatpush1.xpose.msra.mxu0 0.0
        %1441 = vmatprep.subr.mxu0 0.0
        %1442 = vmatpush1.xpose.msra.mxu0 0.0
        %1443 = vmatprep.subr.mxu0 0.0
        %1444 = vmatpush1.xpose.msra.mxu0 0.0
        %1445 = vmatprep.subr.mxu0 0.0
        %1446 = vmatpush1.xpose.msra.mxu0 0.0
        %1447 = vmatprep.subr.mxu0 0.0
        %1448 = vmatpush1.xpose.msra.mxu0 0.0
        %1449 = vmatprep.subr.mxu0 0.0
        %1450 = vmatpush1.xpose.msra.mxu0 0.0
        %1451 = vmatprep.subr.mxu0 0.0
        %1452 = vmatpush1.xpose.msra.mxu0 0.0
        %1453 = vmatprep.subr.mxu0 0.0
        %1454 = vmatpush1.xpose.msra.mxu0 0.0
        %1455 = vmatprep.subr.mxu0 0.0
        %1456 = vmatpush1.xpose.msra.mxu0 0.0
        %1457 = vmatprep.subr.mxu0 0.0
        %1458 = vmatpush1.xpose.msra.mxu0 0.0
        %1459 = vmatprep.subr.mxu0 0.0
        %1460 = vmatpush1.xpose.msra.mxu0 0.0
        %1461 = vmatprep.subr.mxu0 0.0
        %1462 = vmatpush1.xpose.msra.mxu0 0.0
        %1463 = vmatprep.subr.mxu0 0.0
        %1464 = vmatpush1.xpose.msra.mxu0 0.0
        %1465 = vmatprep.mubr.f32.mxu0 0.0
        %1466 = vmatmul.mubr.f32.gmra.mrb[0].mxu0 %v1397
        %v1467 = vpop.f32.mrb[0].mxu0
        %v1468 = vadd.f32 0.0, %v1467
        %v1469 = vpop.f32.mrb[0].mxu0
        %1470 = vdwg.mxu0
        %v1471 = vmul.f32 %v1240, 0.35355338
        %v1472 = vmul.f32 %v1316, 0.35355338
        %v1473 = vmul.f32 %v1392, 0.35355338
        %v1474 = vmul.f32 %v1468, 0.35355338
        %v1475 = vsel %vm506, %v1471, -inf
        %1476 = vmax.xlane.f32.xlu0 %v1475
        %v1477 = vpop.xlane.xlu0 %1476
        %v1478 = vsel %vm506, %v1472, -inf
        %1479 = vmax.xlane.f32.xlu0 %v1478
        %v1480 = vpop.xlane.xlu0 %1479
        %v1481 = vsel %vm506, %v1473, -inf
        %1482 = vmax.xlane.f32.xlu0 %v1481
        %v1483 = vpop.xlane.xlu0 %1482
        %v1484 = vsel %vm506, %v1474, -inf
        %1485 = vmax.xlane.f32.xlu0 %v1484
        %v1486 = vpop.xlane.xlu0 %1485
        %v1487 = vsub.f32 %v1471, %v1477
        %v1488 = vsub.f32 %v1472, %v1480
        %v1489 = vsub.f32 %v1473, %v1483
        %v1490 = vsub.f32 %v1474, %v1486
        %v1491 = vmul.f32 %v1487, 1.442695
        %v1492 = vpow.pop %v1491
        %v1493 = vmul.f32 %v1488, 1.442695
        %v1494 = vpow.pop %v1493
        %v1495 = vmul.f32 %v1489, 1.442695
        %v1496 = vpow.pop %v1495
        %v1497 = vmul.f32 %v1490, 1.442695
        %v1498 = vpow.pop %v1497
        %v1499 = vsel %vm506, %v1492, 0.0
        %1500 = vadd.xlane.f32.xlu0 %v1499
        %v1501 = vpop.xlane.xlu0 %1500
        %v1502 = vsel %vm506, %v1494, 0.0
        %1503 = vadd.xlane.f32.xlu0 %v1502
        %v1504 = vpop.xlane.xlu0 %1503
        %v1505 = vsel %vm506, %v1496, 0.0
        %1506 = vadd.xlane.f32.xlu0 %v1505
        %v1507 = vpop.xlane.xlu0 %1506
        %v1508 = vsel %vm506, %v1498, 0.0
        %1509 = vadd.xlane.f32.xlu0 %v1508
        %v1510 = vpop.xlane.xlu0 %1509
        %v1511 = vrcp.pop %v1501
        %v1512 = vrcp.pop %v1504
        %v1513 = vrcp.pop %v1507
        %v1514 = vrcp.pop %v1510
        %v1515 = vmul.f32 %v1492, %v1511
        %v1516 = vmul.f32 %v1494, %v1512
        %v1517 = vmul.f32 %v1496, %v1513
        %v1518 = vmul.f32 %v1498, %v1514
        %1519 = vrot.lane.b32.xlu0 %v1157, 64
        %v1520 = vpop.permute.xlu0 %1519
        %v1523 = vsel %vm506, %v1515, 0
        %1525 = vmatprep.subr.mxu0 0.0
        %1526 = vmatpush1.msra.mxu0 %v1520
        %1527 = vmatprep.subr.mxu0 0.0
        %1528 = vmatpush1.msra.mxu0 0.0
        %1529 = vmatprep.subr.mxu0 0.0
        %1530 = vmatpush1.msra.mxu0 0.0
        %1531 = vmatprep.subr.mxu0 0.0
        %1532 = vmatpush1.msra.mxu0 0.0
        %1533 = vmatprep.subr.mxu0 0.0
        %1534 = vmatpush1.msra.mxu0 0.0
        %1535 = vmatprep.subr.mxu0 0.0
        %1536 = vmatpush1.msra.mxu0 0.0
        %1537 = vmatprep.subr.mxu0 0.0
        %1538 = vmatpush1.msra.mxu0 0.0
        %1539 = vmatprep.subr.mxu0 0.0
        %1540 = vmatpush1.msra.mxu0 0.0
        %1541 = vmatprep.subr.mxu0 0.0
        %1542 = vmatpush1.msra.mxu0 0.0
        %1543 = vmatprep.subr.mxu0 0.0
        %1544 = vmatpush1.msra.mxu0 0.0
        %1545 = vmatprep.subr.mxu0 0.0
        %1546 = vmatpush1.msra.mxu0 0.0
        %1547 = vmatprep.subr.mxu0 0.0
        %1548 = vmatpush1.msra.mxu0 0.0
        %1549 = vmatprep.subr.mxu0 0.0
        %1550 = vmatpush1.msra.mxu0 0.0
        %1551 = vmatprep.subr.mxu0 0.0
        %1552 = vmatpush1.msra.mxu0 0.0
        %1553 = vmatprep.subr.mxu0 0.0
        %1554 = vmatpush1.msra.mxu0 0.0
        %1555 = vmatprep.subr.mxu0 0.0
        %1556 = vmatpush1.msra.mxu0 0.0
        %1557 = vmatprep.subr.mxu0 0.0
        %1558 = vmatpush1.msra.mxu0 0.0
        %1559 = vmatprep.subr.mxu0 0.0
        %1560 = vmatpush1.msra.mxu0 0.0
        %1561 = vmatprep.subr.mxu0 0.0
        %1562 = vmatpush1.msra.mxu0 0.0
        %1563 = vmatprep.subr.mxu0 0.0
        %1564 = vmatpush1.msra.mxu0 0.0
        %1565 = vmatprep.subr.mxu0 0.0
        %1566 = vmatpush1.msra.mxu0 0.0
        %1567 = vmatprep.subr.mxu0 0.0
        %1568 = vmatpush1.msra.mxu0 0.0
        %1569 = vmatprep.subr.mxu0 0.0
        %1570 = vmatpush1.msra.mxu0 0.0
        %1571 = vmatprep.subr.mxu0 0.0
        %1572 = vmatpush1.msra.mxu0 0.0
        %1573 = vmatprep.subr.mxu0 0.0
        %1574 = vmatpush1.msra.mxu0 0.0
        %1575 = vmatprep.subr.mxu0 0.0
        %1576 = vmatpush1.msra.mxu0 0.0
        %1577 = vmatprep.subr.mxu0 0.0
        %1578 = vmatpush1.msra.mxu0 0.0
        %1579 = vmatprep.subr.mxu0 0.0
        %1580 = vmatpush1.msra.mxu0 0.0
        %1581 = vmatprep.subr.mxu0 0.0
        %1582 = vmatpush1.msra.mxu0 0.0
        %1583 = vmatprep.subr.mxu0 0.0
        %1584 = vmatpush1.msra.mxu0 0.0
        %1585 = vmatprep.subr.mxu0 0.0
        %1586 = vmatpush1.msra.mxu0 0.0
        %1587 = vmatprep.subr.mxu0 0.0
        %1588 = vmatpush1.msra.mxu0 0.0
        %1589 = vmatprep.mubr.f32.mxu0 0.0
        %1590 = vmatmul.mubr.f32.gmra.mrb[0].mxu0 %v1523
        %v1591 = vpop.f32.mrb[0].mxu0
        %v1592 = vadd.f32 0.0, %v1591
        %v1593 = vpop.f32.mrb[0].mxu0
        %1594 = vdwg.mxu0
        %1595 = vrot.lane.b32.xlu0 %v1162, 64
        %v1596 = vpop.permute.xlu0 %1595
        %v1599 = vsel %vm506, %v1516, 0
        %1601 = vmatprep.subr.mxu0 0.0
        %1602 = vmatpush1.msra.mxu0 %v1596
        %1603 = vmatprep.subr.mxu0 0.0
        %1604 = vmatpush1.msra.mxu0 0.0
        %1605 = vmatprep.subr.mxu0 0.0
        %1606 = vmatpush1.msra.mxu0 0.0
        %1607 = vmatprep.subr.mxu0 0.0
        %1608 = vmatpush1.msra.mxu0 0.0
        %1609 = vmatprep.subr.mxu0 0.0
        %1610 = vmatpush1.msra.mxu0 0.0
        %1611 = vmatprep.subr.mxu0 0.0
        %1612 = vmatpush1.msra.mxu0 0.0
        %1613 = vmatprep.subr.mxu0 0.0
        %1614 = vmatpush1.msra.mxu0 0.0
        %1615 = vmatprep.subr.mxu0 0.0
        %1616 = vmatpush1.msra.mxu0 0.0
        %1617 = vmatprep.subr.mxu0 0.0
        %1618 = vmatpush1.msra.mxu0 0.0
        %1619 = vmatprep.subr.mxu0 0.0
        %1620 = vmatpush1.msra.mxu0 0.0
        %1621 = vmatprep.subr.mxu0 0.0
        %1622 = vmatpush1.msra.mxu0 0.0
        %1623 = vmatprep.subr.mxu0 0.0
        %1624 = vmatpush1.msra.mxu0 0.0
        %1625 = vmatprep.subr.mxu0 0.0
        %1626 = vmatpush1.msra.mxu0 0.0
        %1627 = vmatprep.subr.mxu0 0.0
        %1628 = vmatpush1.msra.mxu0 0.0
        %1629 = vmatprep.subr.mxu0 0.0
        %1630 = vmatpush1.msra.mxu0 0.0
        %1631 = vmatprep.subr.mxu0 0.0
        %1632 = vmatpush1.msra.mxu0 0.0
        %1633 = vmatprep.subr.mxu0 0.0
        %1634 = vmatpush1.msra.mxu0 0.0
        %1635 = vmatprep.subr.mxu0 0.0
        %1636 = vmatpush1.msra.mxu0 0.0
        %1637 = vmatprep.subr.mxu0 0.0
        %1638 = vmatpush1.msra.mxu0 0.0
        %1639 = vmatprep.subr.mxu0 0.0
        %1640 = vmatpush1.msra.mxu0 0.0
        %1641 = vmatprep.subr.mxu0 0.0
        %1642 = vmatpush1.msra.mxu0 0.0
        %1643 = vmatprep.subr.mxu0 0.0
        %1644 = vmatpush1.msra.mxu0 0.0
        %1645 = vmatprep.subr.mxu0 0.0
        %1646 = vmatpush1.msra.mxu0 0.0
        %1647 = vmatprep.subr.mxu0 0.0
        %1648 = vmatpush1.msra.mxu0 0.0
        %1649 = vmatprep.subr.mxu0 0.0
        %1650 = vmatpush1.msra.mxu0 0.0
        %1651 = vmatprep.subr.mxu0 0.0
        %1652 = vmatpush1.msra.mxu0 0.0
        %1653 = vmatprep.subr.mxu0 0.0
        %1654 = vmatpush1.msra.mxu0 0.0
        %1655 = vmatprep.subr.mxu0 0.0
        %1656 = vmatpush1.msra.mxu0 0.0
        %1657 = vmatprep.subr.mxu0 0.0
        %1658 = vmatpush1.msra.mxu0 0.0
        %1659 = vmatprep.subr.mxu0 0.0
        %1660 = vmatpush1.msra.mxu0 0.0
        %1661 = vmatprep.subr.mxu0 0.0
        %1662 = vmatpush1.msra.mxu0 0.0
        %1663 = vmatprep.subr.mxu0 0.0
        %1664 = vmatpush1.msra.mxu0 0.0
        %1665 = vmatprep.mubr.f32.mxu0 0.0
        %1666 = vmatmul.mubr.f32.gmra.mrb[0].mxu0 %v1599
        %v1667 = vpop.f32.mrb[0].mxu0
        %v1668 = vadd.f32 0.0, %v1667
        %v1669 = vpop.f32.mrb[0].mxu0
        %1670 = vdwg.mxu0
        %1671 = vrot.lane.b32.xlu0 %v1164, 64
        %v1672 = vpop.permute.xlu0 %1671
        %v1675 = vsel %vm506, %v1517, 0
        %1677 = vmatprep.subr.mxu0 0.0
        %1678 = vmatpush1.msra.mxu0 %v1672
        %1679 = vmatprep.subr.mxu0 0.0
        %1680 = vmatpush1.msra.mxu0 0.0
        %1681 = vmatprep.subr.mxu0 0.0
        %1682 = vmatpush1.msra.mxu0 0.0
        %1683 = vmatprep.subr.mxu0 0.0
        %1684 = vmatpush1.msra.mxu0 0.0
        %1685 = vmatprep.subr.mxu0 0.0
        %1686 = vmatpush1.msra.mxu0 0.0
        %1687 = vmatprep.subr.mxu0 0.0
        %1688 = vmatpush1.msra.mxu0 0.0
        %1689 = vmatprep.subr.mxu0 0.0
        %1690 = vmatpush1.msra.mxu0 0.0
        %1691 = vmatprep.subr.mxu0 0.0
        %1692 = vmatpush1.msra.mxu0 0.0
        %1693 = vmatprep.subr.mxu0 0.0
        %1694 = vmatpush1.msra.mxu0 0.0
        %1695 = vmatprep.subr.mxu0 0.0
        %1696 = vmatpush1.msra.mxu0 0.0
        %1697 = vmatprep.subr.mxu0 0.0
        %1698 = vmatpush1.msra.mxu0 0.0
        %1699 = vmatprep.subr.mxu0 0.0
        %1700 = vmatpush1.msra.mxu0 0.0
        %1701 = vmatprep.subr.mxu0 0.0
        %1702 = vmatpush1.msra.mxu0 0.0
        %1703 = vmatprep.subr.mxu0 0.0
        %1704 = vmatpush1.msra.mxu0 0.0
        %1705 = vmatprep.subr.mxu0 0.0
        %1706 = vmatpush1.msra.mxu0 0.0
        %1707 = vmatprep.subr.mxu0 0.0
        %1708 = vmatpush1.msra.mxu0 0.0
        %1709 = vmatprep.subr.mxu0 0.0
        %1710 = vmatpush1.msra.mxu0 0.0
        %1711 = vmatprep.subr.mxu0 0.0
        %1712 = vmatpush1.msra.mxu0 0.0
        %1713 = vmatprep.subr.mxu0 0.0
        %1714 = vmatpush1.msra.mxu0 0.0
        %1715 = vmatprep.subr.mxu0 0.0
        %1716 = vmatpush1.msra.mxu0 0.0
        %1717 = vmatprep.subr.mxu0 0.0
        %1718 = vmatpush1.msra.mxu0 0.0
        %1719 = vmatprep.subr.mxu0 0.0
        %1720 = vmatpush1.msra.mxu0 0.0
        %1721 = vmatprep.subr.mxu0 0.0
        %1722 = vmatpush1.msra.mxu0 0.0
        %1723 = vmatprep.subr.mxu0 0.0
        %1724 = vmatpush1.msra.mxu0 0.0
        %1725 = vmatprep.subr.mxu0 0.0
        %1726 = vmatpush1.msra.mxu0 0.0
        %1727 = vmatprep.subr.mxu0 0.0
        %1728 = vmatpush1.msra.mxu0 0.0
        %1729 = vmatprep.subr.mxu0 0.0
        %1730 = vmatpush1.msra.mxu0 0.0
        %1731 = vmatprep.subr.mxu0 0.0
        %1732 = vmatpush1.msra.mxu0 0.0
        %1733 = vmatprep.subr.mxu0 0.0
        %1734 = vmatpush1.msra.mxu0 0.0
        %1735 = vmatprep.subr.mxu0 0.0
        %1736 = vmatpush1.msra.mxu0 0.0
        %1737 = vmatprep.subr.mxu0 0.0
        %1738 = vmatpush1.msra.mxu0 0.0
        %1739 = vmatprep.subr.mxu0 0.0
        %1740 = vmatpush1.msra.mxu0 0.0
        %1741 = vmatprep.mubr.f32.mxu0 0.0
        %1742 = vmatmul.mubr.f32.gmra.mrb[0].mxu0 %v1675
        %v1743 = vpop.f32.mrb[0].mxu0
        %v1744 = vadd.f32 0.0, %v1743
        %v1745 = vpop.f32.mrb[0].mxu0
        %1746 = vdwg.mxu0
        %1747 = vrot.lane.b32.xlu0 %v1166, 64
        %v1748 = vpop.permute.xlu0 %1747
        %v1751 = vsel %vm506, %v1518, 0
        %1753 = vmatprep.subr.mxu0 0.0
        %1754 = vmatpush1.msra.mxu0 %v1748
        %1755 = vmatprep.subr.mxu0 0.0
        %1756 = vmatpush1.msra.mxu0 0.0
        %1757 = vmatprep.subr.mxu0 0.0
        %1758 = vmatpush1.msra.mxu0 0.0
        %1759 = vmatprep.subr.mxu0 0.0
        %1760 = vmatpush1.msra.mxu0 0.0
        %1761 = vmatprep.subr.mxu0 0.0
        %1762 = vmatpush1.msra.mxu0 0.0
        %1763 = vmatprep.subr.mxu0 0.0
        %1764 = vmatpush1.msra.mxu0 0.0
        %1765 = vmatprep.subr.mxu0 0.0
        %1766 = vmatpush1.msra.mxu0 0.0
        %1767 = vmatprep.subr.mxu0 0.0
        %1768 = vmatpush1.msra.mxu0 0.0
        %1769 = vmatprep.subr.mxu0 0.0
        %1770 = vmatpush1.msra.mxu0 0.0
        %1771 = vmatprep.subr.mxu0 0.0
        %1772 = vmatpush1.msra.mxu0 0.0
        %1773 = vmatprep.subr.mxu0 0.0
        %1774 = vmatpush1.msra.mxu0 0.0
        %1775 = vmatprep.subr.mxu0 0.0
        %1776 = vmatpush1.msra.mxu0 0.0
        %1777 = vmatprep.subr.mxu0 0.0
        %1778 = vmatpush1.msra.mxu0 0.0
        %1779 = vmatprep.subr.mxu0 0.0
        %1780 = vmatpush1.msra.mxu0 0.0
        %1781 = vmatprep.subr.mxu0 0.0
        %1782 = vmatpush1.msra.mxu0 0.0
        %1783 = vmatprep.subr.mxu0 0.0
        %1784 = vmatpush1.msra.mxu0 0.0
        %1785 = vmatprep.subr.mxu0 0.0
        %1786 = vmatpush1.msra.mxu0 0.0
        %1787 = vmatprep.subr.mxu0 0.0
        %1788 = vmatpush1.msra.mxu0 0.0
        %1789 = vmatprep.subr.mxu0 0.0
        %1790 = vmatpush1.msra.mxu0 0.0
        %1791 = vmatprep.subr.mxu0 0.0
        %1792 = vmatpush1.msra.mxu0 0.0
        %1793 = vmatprep.subr.mxu0 0.0
        %1794 = vmatpush1.msra.mxu0 0.0
        %1795 = vmatprep.subr.mxu0 0.0
        %1796 = vmatpush1.msra.mxu0 0.0
        %1797 = vmatprep.subr.mxu0 0.0
        %1798 = vmatpush1.msra.mxu0 0.0
        %1799 = vmatprep.subr.mxu0 0.0
        %1800 = vmatpush1.msra.mxu0 0.0
        %1801 = vmatprep.subr.mxu0 0.0
        %1802 = vmatpush1.msra.mxu0 0.0
        %1803 = vmatprep.subr.mxu0 0.0
        %1804 = vmatpush1.msra.mxu0 0.0
        %1805 = vmatprep.subr.mxu0 0.0
        %1806 = vmatpush1.msra.mxu0 0.0
        %1807 = vmatprep.subr.mxu0 0.0
        %1808 = vmatpush1.msra.mxu0 0.0
        %1809 = vmatprep.subr.mxu0 0.0
        %1810 = vmatpush1.msra.mxu0 0.0
        %1811 = vmatprep.subr.mxu0 0.0
        %1812 = vmatpush1.msra.mxu0 0.0
        %1813 = vmatprep.subr.mxu0 0.0
        %1814 = vmatpush1.msra.mxu0 0.0
        %1815 = vmatprep.subr.mxu0 0.0
        %1816 = vmatpush1.msra.mxu0 0.0
        %1817 = vmatprep.mubr.f32.mxu0 0.0
        %1818 = vmatmul.mubr.f32.gmra.mrb[0].mxu0 %v1751
        %v1819 = vpop.f32.mrb[0].mxu0
        %v1820 = vadd.f32 0.0, %v1819
        %v1821 = vpop.f32.mrb[0].mxu0
        %1822 = vdwg.mxu0
        %1824 = vrot.lane.b32.xlu0 %v1668, 8
        %v1825 = vpop.permute.xlu0 %1824
        %1828 = vrot.lane.b32.xlu0 %v1744, 16
        %v1829 = vpop.permute.xlu0 %1828
        %1832 = vrot.lane.b32.xlu0 %v1820, 24
        %v1833 = vpop.permute.xlu0 %1832
        %v1835 = vsel %vm506, %v1592, %v1825
        %vm1836 = vcmask 130048
        %v1837 = vsel %vm1836, %v1835, %v1829
        %vm1838 = vcmask 195584
        %v1839 = vsel %vm1838, %v1837, %v1833
        %v1840 = vld [vmem:[#allocation4 + $0xc8] sm:$0xff]
        %v1841 = vld [vmem:[#allocation4 + $0xd0] sm:$0xff]
        %v1842 = vld [vmem:[#allocation4 + $0xd8] sm:$0xff]
        %v1843 = vld [vmem:[#allocation4 + $0xe0] sm:$0xff]
        %v1845 = vsel %vm1058, %v1839, 0
        %1847 = vmatprep.subr.mxu0 0.0
        %1848 = vmatpush1.msra.mxu0 %v1840
        %1849 = vmatprep.subr.mxu0 0.0
        %1850 = vmatpush1.msra.mxu0 %v1841
        %1851 = vmatprep.subr.mxu0 0.0
        %1852 = vmatpush1.msra.mxu0 %v1842
        %1853 = vmatprep.subr.mxu0 0.0
        %1854 = vmatpush1.msra.mxu0 %v1843
        %1855 = vmatprep.subr.mxu0 0.0
        %1856 = vmatpush1.msra.mxu0 0.0
        %1857 = vmatprep.subr.mxu0 0.0
        %1858 = vmatpush1.msra.mxu0 0.0
        %1859 = vmatprep.subr.mxu0 0.0
        %1860 = vmatpush1.msra.mxu0 0.0
        %1861 = vmatprep.subr.mxu0 0.0
        %1862 = vmatpush1.msra.mxu0 0.0
        %1863 = vmatprep.subr.mxu0 0.0
        %1864 = vmatpush1.msra.mxu0 0.0
        %1865 = vmatprep.subr.mxu0 0.0
        %1866 = vmatpush1.msra.mxu0 0.0
        %1867 = vmatprep.subr.mxu0 0.0
        %1868 = vmatpush1.msra.mxu0 0.0
        %1869 = vmatprep.subr.mxu0 0.0
        %1870 = vmatpush1.msra.mxu0 0.0
        %1871 = vmatprep.subr.mxu0 0.0
        %1872 = vmatpush1.msra.mxu0 0.0
        %1873 = vmatprep.subr.mxu0 0.0
        %1874 = vmatpush1.msra.mxu0 0.0
        %1875 = vmatprep.subr.mxu0 0.0
        %1876 = vmatpush1.msra.mxu0 0.0
        %1877 = vmatprep.subr.mxu0 0.0
        %1878 = vmatpush1.msra.mxu0 0.0
        %1879 = vmatprep.subr.mxu0 0.0
        %1880 = vmatpush1.msra.mxu0 0.0
        %1881 = vmatprep.subr.mxu0 0.0
        %1882 = vmatpush1.msra.mxu0 0.0
        %1883 = vmatprep.subr.mxu0 0.0
        %1884 = vmatpush1.msra.mxu0 0.0
        %1885 = vmatprep.subr.mxu0 0.0
        %1886 = vmatpush1.msra.mxu0 0.0
        %1887 = vmatprep.subr.mxu0 0.0
        %1888 = vmatpush1.msra.mxu0 0.0
        %1889 = vmatprep.subr.mxu0 0.0
        %1890 = vmatpush1.msra.mxu0 0.0
        %1891 = vmatprep.subr.mxu0 0.0
        %1892 = vmatpush1.msra.mxu0 0.0
        %1893 = vmatprep.subr.mxu0 0.0
        %1894 = vmatpush1.msra.mxu0 0.0
        %1895 = vmatprep.subr.mxu0 0.0
        %1896 = vmatpush1.msra.mxu0 0.0
        %1897 = vmatprep.subr.mxu0 0.0
        %1898 = vmatpush1.msra.mxu0 0.0
        %1899 = vmatprep.subr.mxu0 0.0
        %1900 = vmatpush1.msra.mxu0 0.0
        %1901 = vmatprep.subr.mxu0 0.0
        %1902 = vmatpush1.msra.mxu0 0.0
        %1903 = vmatprep.subr.mxu0 0.0
        %1904 = vmatpush1.msra.mxu0 0.0
        %1905 = vmatprep.subr.mxu0 0.0
        %1906 = vmatpush1.msra.mxu0 0.0
        %1907 = vmatprep.subr.mxu0 0.0
        %1908 = vmatpush1.msra.mxu0 0.0
        %1909 = vmatprep.subr.mxu0 0.0
        %1910 = vmatpush1.msra.mxu0 0.0
        %1911 = vmatprep.mubr.f32.mxu0 0.0
        %1912 = vmatmul.mubr.f32.gmra.mrb[0].mxu0 %v1845
        %v1913 = vpop.f32.mrb[0].mxu0
        %v1914 = vadd.f32 0.0, %v1913
        %v1915 = vpop.f32.mrb[0].mxu0
        %1916 = vdwg.mxu0
        %v1917 = vadd.f32 %v1055, %v1914
        %v1918 = vld [vmem:[#allocation6 + $0xc] sm:$0x1]
        %v1919 = vlaneseq
        %v1920 = vshrl.u32 %v1919, 7
        %v1921 = vsub.s32 0, %v1920
        %v1922 = vrot.slane %v1918, %v1921
        %v1923 = vadd.f32 %v1917, %v1922
        %v1924 = vld [vmem:[#allocation6 + $0xd] sm:$0x1]
        %v1925 = vld [vmem:[#allocation6 + $0xe] sm:$0x1]
        %v1926 = vsel %vm1058, %v1923, 0.0
        %1927 = vadd.xlane.f32.xlu0 %v1926
        %v1928 = vpop.xlane.xlu0 %1927
        %v1929 = vmul.f32 %v1928, %v1062
        %v1930 = vsub.f32 %v1923, %v1929
        %v1931 = vmul.f32 %v1930, %v1930
        %v1932 = vsel %vm1058, %v1931, 0.0
        %1933 = vadd.xlane.f32.xlu0 %v1932
        %v1934 = vpop.xlane.xlu0 %1933
        %v1935 = vmul.f32 %v1934, %v1062
        %v1936 = vadd.f32 %v1935, 1e-05
        %v1937 = vrsqrt.pop %v1936
        %v1938 = vmul.f32 %v1930, %v1937
        %v1939 = vlaneseq
        %v1940 = vshrl.u32 %v1939, 7
        %v1941 = vsub.s32 0, %v1940
        %v1942 = vrot.slane %v1924, %v1941
        %v1943 = vmul.f32 %v1938, %v1942
        %v1944 = vlaneseq
        %v1945 = vshrl.u32 %v1944, 7
        %v1946 = vsub.s32 0, %v1945
        %v1947 = vrot.slane %v1925, %v1946
        %v1948 = vadd.f32 %v1943, %v1947
        %v1949 = vld [vmem:[#allocation4 + $0xe8] sm:$0xff]
        %v1950 = vld [vmem:[#allocation4 + $0xf0] sm:$0xff]
        %v1951 = vld [vmem:[#allocation4 + $0xf8] sm:$0xff]
        %v1952 = vld [vmem:[#allocation4 + $0x100] sm:$0xff]
        %v1953 = vld [vmem:[#allocation6 + $0xf] sm:$0x1]
        %v1954 = vlaneseq
        %v1955 = vshrl.u32 %v1954, 7
        %v1956 = vsub.s32 0, %v1955
        %v1957 = vrot.slane %v1953, %v1956
        %v1959 = vsel %vm1058, %v1948, 0
        %1961 = vmatprep.subr.mxu0 0.0
        %1962 = vmatpush1.msra.mxu0 %v1949
        %1963 = vmatprep.subr.mxu0 0.0
        %1964 = vmatpush1.msra.mxu0 %v1950
        %1965 = vmatprep.subr.mxu0 0.0
        %1966 = vmatpush1.msra.mxu0 %v1951
        %1967 = vmatprep.subr.mxu0 0.0
        %1968 = vmatpush1.msra.mxu0 %v1952
        %1969 = vmatprep.subr.mxu0 0.0
        %1970 = vmatpush1.msra.mxu0 0.0
        %1971 = vmatprep.subr.mxu0 0.0
        %1972 = vmatpush1.msra.mxu0 0.0
        %1973 = vmatprep.subr.mxu0 0.0
        %1974 = vmatpush1.msra.mxu0 0.0
        %1975 = vmatprep.subr.mxu0 0.0
        %1976 = vmatpush1.msra.mxu0 0.0
        %1977 = vmatprep.subr.mxu0 0.0
        %1978 = vmatpush1.msra.mxu0 0.0
        %1979 = vmatprep.subr.mxu0 0.0
        %1980 = vmatpush1.msra.mxu0 0.0
        %1981 = vmatprep.subr.mxu0 0.0
        %1982 = vmatpush1.msra.mxu0 0.0
        %1983 = vmatprep.subr.mxu0 0.0
        %1984 = vmatpush1.msra.mxu0 0.0
        %1985 = vmatprep.subr.mxu0 0.0
        %1986 = vmatpush1.msra.mxu0 0.0
        %1987 = vmatprep.subr.mxu0 0.0
        %1988 = vmatpush1.msra.mxu0 0.0
        %1989 = vmatprep.subr.mxu0 0.0
        %1990 = vmatpush1.msra.mxu0 0.0
        %1991 = vmatprep.subr.mxu0 0.0
        %1992 = vmatpush1.msra.mxu0 0.0
        %1993 = vmatprep.subr.mxu0 0.0
        %1994 = vmatpush1.msra.mxu0 0.0
        %1995 = vmatprep.subr.mxu0 0.0
        %1996 = vmatpush1.msra.mxu0 0.0
        %1997 = vmatprep.subr.mxu0 0.0
        %1998 = vmatpush1.msra.mxu0 0.0
        %1999 = vmatprep.subr.mxu0 0.0
        %2000 = vmatpush1.msra.mxu0 0.0
        %2001 = vmatprep.subr.mxu0 0.0
        %2002 = vmatpush1.msra.mxu0 0.0
        %2003 = vmatprep.subr.mxu0 0.0
        %2004 = vmatpush1.msra.mxu0 0.0
        %2005 = vmatprep.subr.mxu0 0.0
        %2006 = vmatpush1.msra.mxu0 0.0
        %2007 = vmatprep.subr.mxu0 0.0
        %2008 = vmatpush1.msra.mxu0 0.0
        %2009 = vmatprep.subr.mxu0 0.0
        %2010 = vmatpush1.msra.mxu0 0.0
        %2011 = vmatprep.subr.mxu0 0.0
        %2012 = vmatpush1.msra.mxu0 0.0
        %2013 = vmatprep.subr.mxu0 0.0
        %2014 = vmatpush1.msra.mxu0 0.0
        %2015 = vmatprep.subr.mxu0 0.0
        %2016 = vmatpush1.msra.mxu0 0.0
        %2017 = vmatprep.subr.mxu0 0.0
        %2018 = vmatpush1.msra.mxu0 0.0
        %2019 = vmatprep.subr.mxu0 0.0
        %2020 = vmatpush1.msra.mxu0 0.0
        %2021 = vmatprep.subr.mxu0 0.0
        %2022 = vmatpush1.msra.mxu0 0.0
        %2023 = vmatprep.subr.mxu0 0.0
        %2024 = vmatpush1.msra.mxu0 0.0
        %2025 = vmatprep.mubr.f32.mxu0 0.0
        %2026 = vmatmul.mubr.f32.gmra.mrb[0].mxu0 %v1959
        %v2027 = vpop.f32.mrb[0].mxu0
        %v2028 = vadd.f32 %v1957, %v2027
        %v2029 = vpop.f32.mrb[0].mxu0
        %2030 = vdwg.mxu0
        %v2031 = vmax.f32 %v2028, 0.0
        %v2032 = vld [vmem:[#allocation4 + $0x108] sm:$0xff]
        %v2033 = vld [vmem:[#allocation4 + $0x110] sm:$0xff]
        %v2034 = vld [vmem:[#allocation4 + $0x118] sm:$0xff]
        %v2035 = vld [vmem:[#allocation4 + $0x120] sm:$0xff]
        %v2036 = vld [vmem:[#allocation4 + $0x128] sm:$0xff]
        %v2037 = vld [vmem:[#allocation4 + $0x130] sm:$0xff]
        %v2038 = vld [vmem:[#allocation4 + $0x138] sm:$0xff]
        %v2039 = vld [vmem:[#allocation4 + $0x140] sm:$0xff]
        %v2040 = vld [vmem:[#allocation4 + $0x148] sm:$0xff]
        %v2041 = vld [vmem:[#allocation4 + $0x150] sm:$0xff]
        %v2042 = vld [vmem:[#allocation4 + $0x158] sm:$0xff]
        %v2043 = vld [vmem:[#allocation4 + $0x160] sm:$0xff]
        %v2044 = vld [vmem:[#allocation4 + $0x168] sm:$0xff]
        %v2045 = vld [vmem:[#allocation4 + $0x170] sm:$0xff]
        %v2046 = vld [vmem:[#allocation4 + $0x178] sm:$0xff]
        %v2047 = vld [vmem:[#allocation4 + $0x180] sm:$0xff]
        %v2048 = vld [vmem:[#allocation6 + $0x10] sm:$0x1]
        %v2049 = vlaneseq
        %v2050 = vshrl.u32 %v2049, 7
        %v2051 = vsub.s32 0, %v2050
        %v2052 = vrot.slane %v2048, %v2051
        %2053 = vmatprep.subr.mxu0 0.0
        %2054 = vmatpush1.msra.mxu0 %v2032
        %2055 = vmatprep.subr.mxu0 0.0
        %2056 = vmatpush1.msra.mxu0 %v2033
        %2057 = vmatprep.subr.mxu0 0.0
        %2058 = vmatpush1.msra.mxu0 %v2034
        %2059 = vmatprep.subr.mxu0 0.0
        %2060 = vmatpush1.msra.mxu0 %v2035
        %2061 = vmatprep.subr.mxu0 0.0
        %2062 = vmatpush1.msra.mxu0 %v2036
        %2063 = vmatprep.subr.mxu0 0.0
        %2064 = vmatpush1.msra.mxu0 %v2037
        %2065 = vmatprep.subr.mxu0 0.0
        %2066 = vmatpush1.msra.mxu0 %v2038
        %2067 = vmatprep.subr.mxu0 0.0
        %2068 = vmatpush1.msra.mxu0 %v2039
        %2069 = vmatprep.subr.mxu0 0.0
        %2070 = vmatpush1.msra.mxu0 %v2040
        %2071 = vmatprep.subr.mxu0 0.0
        %2072 = vmatpush1.msra.mxu0 %v2041
        %2073 = vmatprep.subr.mxu0 0.0
        %2074 = vmatpush1.msra.mxu0 %v2042
        %2075 = vmatprep.subr.mxu0 0.0
        %2076 = vmatpush1.msra.mxu0 %v2043
        %2077 = vmatprep.subr.mxu0 0.0
        %2078 = vmatpush1.msra.mxu0 %v2044
        %2079 = vmatprep.subr.mxu0 0.0
        %2080 = vmatpush1.msra.mxu0 %v2045
        %2081 = vmatprep.subr.mxu0 0.0
        %2082 = vmatpush1.msra.mxu0 %v2046
        %2083 = vmatprep.subr.mxu0 0.0
        %2084 = vmatpush1.msra.mxu0 %v2047
        %2085 = vmatprep.subr.mxu0 0.0
        %2086 = vmatpush1.msra.mxu0 0.0
        %2087 = vmatprep.subr.mxu0 0.0
        %2088 = vmatpush1.msra.mxu0 0.0
        %2089 = vmatprep.subr.mxu0 0.0
        %2090 = vmatpush1.msra.mxu0 0.0
        %2091 = vmatprep.subr.mxu0 0.0
        %2092 = vmatpush1.msra.mxu0 0.0
        %2093 = vmatprep.subr.mxu0 0.0
        %2094 = vmatpush1.msra.mxu0 0.0
        %2095 = vmatprep.subr.mxu0 0.0
        %2096 = vmatpush1.msra.mxu0 0.0
        %2097 = vmatprep.subr.mxu0 0.0
        %2098 = vmatpush1.msra.mxu0 0.0
        %2099 = vmatprep.subr.mxu0 0.0
        %2100 = vmatpush1.msra.mxu0 0.0
        %2101 = vmatprep.subr.mxu0 0.0
        %2102 = vmatpush1.msra.mxu0 0.0
        %2103 = vmatprep.subr.mxu0 0.0
        %2104 = vmatpush1.msra.mxu0 0.0
        %2105 = vmatprep.subr.mxu0 0.0
        %2106 = vmatpush1.msra.mxu0 0.0
        %2107 = vmatprep.subr.mxu0 0.0
        %2108 = vmatpush1.msra.mxu0 0.0
        %2109 = vmatprep.subr.mxu0 0.0
        %2110 = vmatpush1.msra.mxu0 0.0
        %2111 = vmatprep.subr.mxu0 0.0
        %2112 = vmatpush1.msra.mxu0 0.0
        %2113 = vmatprep.subr.mxu0 0.0
        %2114 = vmatpush1.msra.mxu0 0.0
        %2115 = vmatprep.subr.mxu0 0.0
        %2116 = vmatpush1.msra.mxu0 0.0
        %2117 = vmatprep.mubr.f32.mxu0 0.0
        %2118 = vmatmul.mubr.f32.gmra.mrb[0].mxu0 %v2031
        %v2119 = vpop.f32.mrb[0].mxu0
        %v2120 = vadd.f32 %v2052, %v2119
        %v2121 = vpop.f32.mrb[0].mxu0
        %2122 = vdwg.mxu0
        %v2123 = vadd.f32 %v1923, %v2120
        %v2124 = vld [vmem:[#allocation4 + $0x188] sm:$0xff]
        %v2125 = vld [vmem:[#allocation4 + $0x190] sm:$0xff]
        %v2126 = vld [vmem:[#allocation4 + $0x198] sm:$0xff]
        %v2127 = vld [vmem:[#allocation4 + $0x1a0] sm:$0xff]
        %v2128 = vld [vmem:[#allocation6 + $0x11] sm:$0x1]
        %v2129 = vlaneseq
        %v2130 = vshrl.u32 %v2129, 7
        %v2131 = vsub.s32 0, %v2130
        %v2132 = vrot.slane %v2128, %v2131
        %v2134 = vsel %vm1058, %v2123, 0
        %2136 = vmatprep.subr.mxu0 0.0
        %2137 = vmatpush1.msra.mxu0 %v2124
        %2138 = vmatprep.subr.mxu0 0.0
        %2139 = vmatpush1.msra.mxu0 %v2125
        %2140 = vmatprep.subr.mxu0 0.0
        %2141 = vmatpush1.msra.mxu0 %v2126
        %2142 = vmatprep.subr.mxu0 0.0
        %2143 = vmatpush1.msra.mxu0 %v2127
        %2144 = vmatprep.subr.mxu0 0.0
        %2145 = vmatpush1.msra.mxu0 0.0
        %2146 = vmatprep.subr.mxu0 0.0
        %2147 = vmatpush1.msra.mxu0 0.0
        %2148 = vmatprep.subr.mxu0 0.0
        %2149 = vmatpush1.msra.mxu0 0.0
        %2150 = vmatprep.subr.mxu0 0.0
        %2151 = vmatpush1.msra.mxu0 0.0
        %2152 = vmatprep.subr.mxu0 0.0
        %2153 = vmatpush1.msra.mxu0 0.0
        %2154 = vmatprep.subr.mxu0 0.0
        %2155 = vmatpush1.msra.mxu0 0.0
        %2156 = vmatprep.subr.mxu0 0.0
        %2157 = vmatpush1.msra.mxu0 0.0
        %2158 = vmatprep.subr.mxu0 0.0
        %2159 = vmatpush1.msra.mxu0 0.0
        %2160 = vmatprep.subr.mxu0 0.0
        %2161 = vmatpush1.msra.mxu0 0.0
        %2162 = vmatprep.subr.mxu0 0.0
        %2163 = vmatpush1.msra.mxu0 0.0
        %2164 = vmatprep.subr.mxu0 0.0
        %2165 = vmatpush1.msra.mxu0 0.0
        %2166 = vmatprep.subr.mxu0 0.0
        %2167 = vmatpush1.msra.mxu0 0.0
        %2168 = vmatprep.subr.mxu0 0.0
        %2169 = vmatpush1.msra.mxu0 0.0
        %2170 = vmatprep.subr.mxu0 0.0
        %2171 = vmatpush1.msra.mxu0 0.0
        %2172 = vmatprep.subr.mxu0 0.0
        %2173 = vmatpush1.msra.mxu0 0.0
        %2174 = vmatprep.subr.mxu0 0.0
        %2175 = vmatpush1.msra.mxu0 0.0
        %2176 = vmatprep.subr.mxu0 0.0
        %2177 = vmatpush1.msra.mxu0 0.0
        %2178 = vmatprep.subr.mxu0 0.0
        %2179 = vmatpush1.msra.mxu0 0.0
        %2180 = vmatprep.subr.mxu0 0.0
        %2181 = vmatpush1.msra.mxu0 0.0
        %2182 = vmatprep.subr.mxu0 0.0
        %2183 = vmatpush1.msra.mxu0 0.0
        %2184 = vmatprep.subr.mxu0 0.0
        %2185 = vmatpush1.msra.mxu0 0.0
        %2186 = vmatprep.subr.mxu0 0.0
        %2187 = vmatpush1.msra.mxu0 0.0
        %2188 = vmatprep.subr.mxu0 0.0
        %2189 = vmatpush1.msra.mxu0 0.0
        %2190 = vmatprep.subr.mxu0 0.0
        %2191 = vmatpush1.msra.mxu0 0.0
        %2192 = vmatprep.subr.mxu0 0.0
        %2193 = vmatpush1.msra.mxu0 0.0
        %2194 = vmatprep.subr.mxu0 0.0
        %2195 = vmatpush1.msra.mxu0 0.0
        %2196 = vmatprep.subr.mxu0 0.0
        %2197 = vmatpush1.msra.mxu0 0.0
        %2198 = vmatprep.subr.mxu0 0.0
        %2199 = vmatpush1.msra.mxu0 0.0
        %2200 = vmatprep.mubr.f32.mxu0 0.0
        %2201 = vmatmul.mubr.f32.gmra.mrb[0].mxu0 %v2134
        %v2202 = vpop.f32.mrb[0].mxu0
        %v2203 = vadd.f32 %v2132, %v2202
        %v2204 = vpop.f32.mrb[0].mxu0
        %2205 = vdwg.mxu0
        %v2206 = vmax.f32 %v2203, 0.0
        %v2207 = vld [vmem:[#allocation6 + $0x12] sm:$0x1]
        %v2208 = vld [vmem:[#allocation6 + $0x13] sm:$0x1]
        %v2209 = vsel %vm1836, %v2206, 0.0
        %2210 = vadd.xlane.f32.xlu0 %v2209
        %v2211 = vpop.xlane.xlu0 %2210
        %v2212 = vrcp.pop 16.0
        %v2213 = vmul.f32 %v2211, %v2212
        %v2214 = vsub.f32 %v2206, %v2213
        %v2215 = vmul.f32 %v2214, %v2214
        %v2216 = vsel %vm1836, %v2215, 0.0
        %2217 = vadd.xlane.f32.xlu0 %v2216
        %v2218 = vpop.xlane.xlu0 %2217
        %v2219 = vmul.f32 %v2218, %v2212
        %v2220 = vadd.f32 %v2219, 1e-05
        %v2221 = vrsqrt.pop %v2220
        %v2222 = vmul.f32 %v2214, %v2221
        %v2223 = vlaneseq
        %v2224 = vshrl.u32 %v2223, 7
        %v2225 = vsub.s32 0, %v2224
        %v2226 = vrot.slane %v2207, %v2225
        %v2227 = vmul.f32 %v2222, %v2226
        %v2228 = vlaneseq
        %v2229 = vshrl.u32 %v2228, 7
        %v2230 = vsub.s32 0, %v2229
        %v2231 = vrot.slane %v2208, %v2230
        %v2232 = vadd.f32 %v2227, %v2231
        %v2233 = vld [vmem:[#allocation4 + $0x1a8] sm:$0xff]
        %v2234 = vld [vmem:[#allocation4 + $0x1b0] sm:$0xff]
        %v2236 = vsel %vm1836, %v2232, 0
        %2238 = vmatprep.subr.mxu0 0.0
        %2239 = vmatpush1.msra.mxu0 %v2233
        %2240 = vmatprep.subr.mxu0 0.0
        %2241 = vmatpush1.msra.mxu0 %v2234
        %2242 = vmatprep.subr.mxu0 0.0
        %2243 = vmatpush1.msra.mxu0 0.0
        %2244 = vmatprep.subr.mxu0 0.0
        %2245 = vmatpush1.msra.mxu0 0.0
        %2246 = vmatprep.subr.mxu0 0.0
        %2247 = vmatpush1.msra.mxu0 0.0
        %2248 = vmatprep.subr.mxu0 0.0
        %2249 = vmatpush1.msra.mxu0 0.0
        %2250 = vmatprep.subr.mxu0 0.0
        %2251 = vmatpush1.msra.mxu0 0.0
        %2252 = vmatprep.subr.mxu0 0.0
        %2253 = vmatpush1.msra.mxu0 0.0
        %2254 = vmatprep.subr.mxu0 0.0
        %2255 = vmatpush1.msra.mxu0 0.0
        %2256 = vmatprep.subr.mxu0 0.0
        %2257 = vmatpush1.msra.mxu0 0.0
        %2258 = vmatprep.subr.mxu0 0.0
        %2259 = vmatpush1.msra.mxu0 0.0
        %2260 = vmatprep.subr.mxu0 0.0
        %2261 = vmatpush1.msra.mxu0 0.0
        %2262 = vmatprep.subr.mxu0 0.0
        %2263 = vmatpush1.msra.mxu0 0.0
        %2264 = vmatprep.subr.mxu0 0.0
        %2265 = vmatpush1.msra.mxu0 0.0
        %2266 = vmatprep.subr.mxu0 0.0
        %2267 = vmatpush1.msra.mxu0 0.0
        %2268 = vmatprep.subr.mxu0 0.0
        %2269 = vmatpush1.msra.mxu0 0.0
        %2270 = vmatprep.subr.mxu0 0.0
        %2271 = vmatpush1.msra.mxu0 0.0
        %2272 = vmatprep.subr.mxu0 0.0
        %2273 = vmatpush1.msra.mxu0 0.0
        %2274 = vmatprep.subr.mxu0 0.0
        %2275 = vmatpush1.msra.mxu0 0.0
        %2276 = vmatprep.subr.mxu0 0.0
        %2277 = vmatpush1.msra.mxu0 0.0
        %2278 = vmatprep.subr.mxu0 0.0
        %2279 = vmatpush1.msra.mxu0 0.0
        %2280 = vmatprep.subr.mxu0 0.0
        %2281 = vmatpush1.msra.mxu0 0.0
        %2282 = vmatprep.subr.mxu0 0.0
        %2283 = vmatpush1.msra.mxu0 0.0
        %2284 = vmatprep.subr.mxu0 0.0
        %2285 = vmatpush1.msra.mxu0 0.0
        %2286 = vmatprep.subr.mxu0 0.0
        %2287 = vmatpush1.msra.mxu0 0.0
        %2288 = vmatprep.subr.mxu0 0.0
        %2289 = vmatpush1.msra.mxu0 0.0
        %2290 = vmatprep.subr.mxu0 0.0
        %2291 = vmatpush1.msra.mxu0 0.0
        %2292 = vmatprep.subr.mxu0 0.0
        %2293 = vmatpush1.msra.mxu0 0.0
        %2294 = vmatprep.subr.mxu0 0.0
        %2295 = vmatpush1.msra.mxu0 0.0
        %2296 = vmatprep.subr.mxu0 0.0
        %2297 = vmatpush1.msra.mxu0 0.0
        %2298 = vmatprep.subr.mxu0 0.0
        %2299 = vmatpush1.msra.mxu0 0.0
        %2300 = vmatprep.subr.mxu0 0.0
        %2301 = vmatpush1.msra.mxu0 0.0
        %2302 = vmatprep.mubr.f32.mxu0 0.0
        %2303 = vmatmul.mubr.f32.gmra.mrb[0].mxu0 %v2236
        %v2304 = vpop.f32.mrb[0].mxu0
        %v2305 = vadd.f32 0.0, %v2304
        %v2306 = vpop.f32.mrb[0].mxu0
        %2307 = vdwg.mxu0
        %2309 = vrot.lane.b32.xlu0 %v2305, 124
        %v2310 = vpop.permute.xlu0 %2309
        %2311 = vrot.lane.b32.xlu0 %v2305, 120
        %v2312 = vpop.permute.xlu0 %2311
        %2313 = vrot.lane.b32.xlu0 %v2305, 116
        %v2314 = vpop.permute.xlu0 %2313
        %2315 = vrot.lane.b32.xlu0 %v2305, 112
        %v2316 = vpop.permute.xlu0 %2315
        %vm2317 = vcmask 31744
        %v2318 = vsel %vm2317, %v2305, 0
        %v2320 = vsel %vm2317, %v2316, 0
        %2322 = vmatprep.subr.mxu0 0.0
        %2323 = vmatpush1.xpose.msra.mxu0 %v2320
        %2324 = vmatprep.subr.mxu0 0.0
        %2325 = vmatpush1.xpose.msra.mxu0 0.0
        %2326 = vmatprep.subr.mxu0 0.0
        %2327 = vmatpush1.xpose.msra.mxu0 0.0
        %2328 = vmatprep.subr.mxu0 0.0
        %2329 = vmatpush1.xpose.msra.mxu0 0.0
        %2330 = vmatprep.subr.mxu0 0.0
        %2331 = vmatpush1.xpose.msra.mxu0 0.0
        %2332 = vmatprep.subr.mxu0 0.0
        %2333 = vmatpush1.xpose.msra.mxu0 0.0
        %2334 = vmatprep.subr.mxu0 0.0
        %2335 = vmatpush1.xpose.msra.mxu0 0.0
        %2336 = vmatprep.subr.mxu0 0.0
        %2337 = vmatpush1.xpose.msra.mxu0 0.0
        %2338 = vmatprep.subr.mxu0 0.0
        %2339 = vmatpush1.xpose.msra.mxu0 0.0
        %2340 = vmatprep.subr.mxu0 0.0
        %2341 = vmatpush1.xpose.msra.mxu0 0.0
        %2342 = vmatprep.subr.mxu0 0.0
        %2343 = vmatpush1.xpose.msra.mxu0 0.0
        %2344 = vmatprep.subr.mxu0 0.0
        %2345 = vmatpush1.xpose.msra.mxu0 0.0
        %2346 = vmatprep.subr.mxu0 0.0
        %2347 = vmatpush1.xpose.msra.mxu0 0.0
        %2348 = vmatprep.subr.mxu0 0.0
        %2349 = vmatpush1.xpose.msra.mxu0 0.0
        %2350 = vmatprep.subr.mxu0 0.0
        %2351 = vmatpush1.xpose.msra.mxu0 0.0
        %2352 = vmatprep.subr.mxu0 0.0
        %2353 = vmatpush1.xpose.msra.mxu0 0.0
        %2354 = vmatprep.subr.mxu0 0.0
        %2355 = vmatpush1.xpose.msra.mxu0 0.0
        %2356 = vmatprep.subr.mxu0 0.0
        %2357 = vmatpush1.xpose.msra.mxu0 0.0
        %2358 = vmatprep.subr.mxu0 0.0
        %2359 = vmatpush1.xpose.msra.mxu0 0.0
        %2360 = vmatprep.subr.mxu0 0.0
        %2361 = vmatpush1.xpose.msra.mxu0 0.0
        %2362 = vmatprep.subr.mxu0 0.0
        %2363 = vmatpush1.xpose.msra.mxu0 0.0
        %2364 = vmatprep.subr.mxu0 0.0
        %2365 = vmatpush1.xpose.msra.mxu0 0.0
        %2366 = vmatprep.subr.mxu0 0.0
        %2367 = vmatpush1.xpose.msra.mxu0 0.0
        %2368 = vmatprep.subr.mxu0 0.0
        %2369 = vmatpush1.xpose.msra.mxu0 0.0
        %2370 = vmatprep.subr.mxu0 0.0
        %2371 = vmatpush1.xpose.msra.mxu0 0.0
        %2372 = vmatprep.subr.mxu0 0.0
        %2373 = vmatpush1.xpose.msra.mxu0 0.0
        %2374 = vmatprep.subr.mxu0 0.0
        %2375 = vmatpush1.xpose.msra.mxu0 0.0
        %2376 = vmatprep.subr.mxu0 0.0
        %2377 = vmatpush1.xpose.msra.mxu0 0.0
        %2378 = vmatprep.subr.mxu0 0.0
        %2379 = vmatpush1.xpose.msra.mxu0 0.0
        %2380 = vmatprep.subr.mxu0 0.0
        %2381 = vmatpush1.xpose.msra.mxu0 0.0
        %2382 = vmatprep.subr.mxu0 0.0
        %2383 = vmatpush1.xpose.msra.mxu0 0.0
        %2384 = vmatprep.subr.mxu0 0.0
        %2385 = vmatpush1.xpose.msra.mxu0 0.0
        %2386 = vmatprep.mubr.f32.mxu0 0.0
        %2387 = vmatmul.mubr.f32.gmra.mrb[0].mxu0 %v2318
        %v2388 = vpop.f32.mrb[0].mxu0
        %v2389 = vadd.f32 0.0, %v2388
        %v2390 = vpop.f32.mrb[0].mxu0
        %2391 = vdwg.mxu0
        %2392 = vrot.lane.b32.xlu0 %v2310, 112
        %v2393 = vpop.permute.xlu0 %2392
        %v2394 = vsel %vm2317, %v2310, 0
        %v2396 = vsel %vm2317, %v2393, 0
        %2398 = vmatprep.subr.mxu0 0.0
        %2399 = vmatpush1.xpose.msra.mxu0 %v2396
        %2400 = vmatprep.subr.mxu0 0.0
        %2401 = vmatpush1.xpose.msra.mxu0 0.0
        %2402 = vmatprep.subr.mxu0 0.0
        %2403 = vmatpush1.xpose.msra.mxu0 0.0
        %2404 = vmatprep.subr.mxu0 0.0
        %2405 = vmatpush1.xpose.msra.mxu0 0.0
        %2406 = vmatprep.subr.mxu0 0.0
        %2407 = vmatpush1.xpose.msra.mxu0 0.0
        %2408 = vmatprep.subr.mxu0 0.0
        %2409 = vmatpush1.xpose.msra.mxu0 0.0
        %2410 = vmatprep.subr.mxu0 0.0
        %2411 = vmatpush1.xpose.msra.mxu0 0.0
        %2412 = vmatprep.subr.mxu0 0.0
        %2413 = vmatpush1.xpose.msra.mxu0 0.0
        %2414 = vmatprep.subr.mxu0 0.0
        %2415 = vmatpush1.xpose.msra.mxu0 0.0
        %2416 = vmatprep.subr.mxu0 0.0
        %2417 = vmatpush1.xpose.msra.mxu0 0.0
        %2418 = vmatprep.subr.mxu0 0.0
        %2419 = vmatpush1.xpose.msra.mxu0 0.0
        %2420 = vmatprep.subr.mxu0 0.0
        %2421 = vmatpush1.xpose.msra.mxu0 0.0
        %2422 = vmatprep.subr.mxu0 0.0
        %2423 = vmatpush1.xpose.msra.mxu0 0.0
        %2424 = vmatprep.subr.mxu0 0.0
        %2425 = vmatpush1.xpose.msra.mxu0 0.0
        %2426 = vmatprep.subr.mxu0 0.0
        %2427 = vmatpush1.xpose.msra.mxu0 0.0
        %2428 = vmatprep.subr.mxu0 0.0
        %2429 = vmatpush1.xpose.msra.mxu0 0.0
        %2430 = vmatprep.subr.mxu0 0.0
        %2431 = vmatpush1.xpose.msra.mxu0 0.0
        %2432 = vmatprep.subr.mxu0 0.0
        %2433 = vmatpush1.xpose.msra.mxu0 0.0
        %2434 = vmatprep.subr.mxu0 0.0
        %2435 = vmatpush1.xpose.msra.mxu0 0.0
        %2436 = vmatprep.subr.mxu0 0.0
        %2437 = vmatpush1.xpose.msra.mxu0 0.0
        %2438 = vmatprep.subr.mxu0 0.0
        %2439 = vmatpush1.xpose.msra.mxu0 0.0
        %2440 = vmatprep.subr.mxu0 0.0
        %2441 = vmatpush1.xpose.msra.mxu0 0.0
        %2442 = vmatprep.subr.mxu0 0.0
        %2443 = vmatpush1.xpose.msra.mxu0 0.0
        %2444 = vmatprep.subr.mxu0 0.0
        %2445 = vmatpush1.xpose.msra.mxu0 0.0
        %2446 = vmatprep.subr.mxu0 0.0
        %2447 = vmatpush1.xpose.msra.mxu0 0.0
        %2448 = vmatprep.subr.mxu0 0.0
        %2449 = vmatpush1.xpose.msra.mxu0 0.0
        %2450 = vmatprep.subr.mxu0 0.0
        %2451 = vmatpush1.xpose.msra.mxu0 0.0
        %2452 = vmatprep.subr.mxu0 0.0
        %2453 = vmatpush1.xpose.msra.mxu0 0.0
        %2454 = vmatprep.subr.mxu0 0.0
        %2455 = vmatpush1.xpose.msra.mxu0 0.0
        %2456 = vmatprep.subr.mxu0 0.0
        %2457 = vmatpush1.xpose.msra.mxu0 0.0
        %2458 = vmatprep.subr.mxu0 0.0
        %2459 = vmatpush1.xpose.msra.mxu0 0.0
        %2460 = vmatprep.subr.mxu0 0.0
        %2461 = vmatpush1.xpose.msra.mxu0 0.0
        %2462 = vmatprep.mubr.f32.mxu0 0.0
        %2463 = vmatmul.mubr.f32.gmra.mrb[0].mxu0 %v2394
        %v2464 = vpop.f32.mrb[0].mxu0
        %v2465 = vadd.f32 0.0, %v2464
        %v2466 = vpop.f32.mrb[0].mxu0
        %2467 = vdwg.mxu0
        %2468 = vrot.lane.b32.xlu0 %v2312, 112
        %v2469 = vpop.permute.xlu0 %2468
        %v2470 = vsel %vm2317, %v2312, 0
        %v2472 = vsel %vm2317, %v2469, 0
        %2474 = vmatprep.subr.mxu0 0.0
        %2475 = vmatpush1.xpose.msra.mxu0 %v2472
        %2476 = vmatprep.subr.mxu0 0.0
        %2477 = vmatpush1.xpose.msra.mxu0 0.0
        %2478 = vmatprep.subr.mxu0 0.0
        %2479 = vmatpush1.xpose.msra.mxu0 0.0
        %2480 = vmatprep.subr.mxu0 0.0
        %2481 = vmatpush1.xpose.msra.mxu0 0.0
        %2482 = vmatprep.subr.mxu0 0.0
        %2483 = vmatpush1.xpose.msra.mxu0 0.0
        %2484 = vmatprep.subr.mxu0 0.0
        %2485 = vmatpush1.xpose.msra.mxu0 0.0
        %2486 = vmatprep.subr.mxu0 0.0
        %2487 = vmatpush1.xpose.msra.mxu0 0.0
        %2488 = vmatprep.subr.mxu0 0.0
        %2489 = vmatpush1.xpose.msra.mxu0 0.0
        %2490 = vmatprep.subr.mxu0 0.0
        %2491 = vmatpush1.xpose.msra.mxu0 0.0
        %2492 = vmatprep.subr.mxu0 0.0
        %2493 = vmatpush1.xpose.msra.mxu0 0.0
        %2494 = vmatprep.subr.mxu0 0.0
        %2495 = vmatpush1.xpose.msra.mxu0 0.0
        %2496 = vmatprep.subr.mxu0 0.0
        %2497 = vmatpush1.xpose.msra.mxu0 0.0
        %2498 = vmatprep.subr.mxu0 0.0
        %2499 = vmatpush1.xpose.msra.mxu0 0.0
        %2500 = vmatprep.subr.mxu0 0.0
        %2501 = vmatpush1.xpose.msra.mxu0 0.0
        %2502 = vmatprep.subr.mxu0 0.0
        %2503 = vmatpush1.xpose.msra.mxu0 0.0
        %2504 = vmatprep.subr.mxu0 0.0
        %2505 = vmatpush1.xpose.msra.mxu0 0.0
        %2506 = vmatprep.subr.mxu0 0.0
        %2507 = vmatpush1.xpose.msra.mxu0 0.0
        %2508 = vmatprep.subr.mxu0 0.0
        %2509 = vmatpush1.xpose.msra.mxu0 0.0
        %2510 = vmatprep.subr.mxu0 0.0
        %2511 = vmatpush1.xpose.msra.mxu0 0.0
        %2512 = vmatprep.subr.mxu0 0.0
        %2513 = vmatpush1.xpose.msra.mxu0 0.0
        %2514 = vmatprep.subr.mxu0 0.0
        %2515 = vmatpush1.xpose.msra.mxu0 0.0
        %2516 = vmatprep.subr.mxu0 0.0
        %2517 = vmatpush1.xpose.msra.mxu0 0.0
        %2518 = vmatprep.subr.mxu0 0.0
        %2519 = vmatpush1.xpose.msra.mxu0 0.0
        %2520 = vmatprep.subr.mxu0 0.0
        %2521 = vmatpush1.xpose.msra.mxu0 0.0
        %2522 = vmatprep.subr.mxu0 0.0
        %2523 = vmatpush1.xpose.msra.mxu0 0.0
        %2524 = vmatprep.subr.mxu0 0.0
        %2525 = vmatpush1.xpose.msra.mxu0 0.0
        %2526 = vmatprep.subr.mxu0 0.0
        %2527 = vmatpush1.xpose.msra.mxu0 0.0
        %2528 = vmatprep.subr.mxu0 0.0
        %2529 = vmatpush1.xpose.msra.mxu0 0.0
        %2530 = vmatprep.subr.mxu0 0.0
        %2531 = vmatpush1.xpose.msra.mxu0 0.0
        %2532 = vmatprep.subr.mxu0 0.0
        %2533 = vmatpush1.xpose.msra.mxu0 0.0
        %2534 = vmatprep.subr.mxu0 0.0
        %2535 = vmatpush1.xpose.msra.mxu0 0.0
        %2536 = vmatprep.subr.mxu0 0.0
        %2537 = vmatpush1.xpose.msra.mxu0 0.0
        %2538 = vmatprep.mubr.f32.mxu0 0.0
        %2539 = vmatmul.mubr.f32.gmra.mrb[0].mxu0 %v2470
        %v2540 = vpop.f32.mrb[0].mxu0
        %v2541 = vadd.f32 0.0, %v2540
        %v2542 = vpop.f32.mrb[0].mxu0
        %2543 = vdwg.mxu0
        %2544 = vrot.lane.b32.xlu0 %v2314, 112
        %v2545 = vpop.permute.xlu0 %2544
        %v2546 = vsel %vm2317, %v2314, 0
        %v2548 = vsel %vm2317, %v2545, 0
        %2550 = vmatprep.subr.mxu0 0.0
        %2551 = vmatpush1.xpose.msra.mxu0 %v2548
        %2552 = vmatprep.subr.mxu0 0.0
        %2553 = vmatpush1.xpose.msra.mxu0 0.0
        %2554 = vmatprep.subr.mxu0 0.0
        %2555 = vmatpush1.xpose.msra.mxu0 0.0
        %2556 = vmatprep.subr.mxu0 0.0
        %2557 = vmatpush1.xpose.msra.mxu0 0.0
        %2558 = vmatprep.subr.mxu0 0.0
        %2559 = vmatpush1.xpose.msra.mxu0 0.0
        %2560 = vmatprep.subr.mxu0 0.0
        %2561 = vmatpush1.xpose.msra.mxu0 0.0
        %2562 = vmatprep.subr.mxu0 0.0
        %2563 = vmatpush1.xpose.msra.mxu0 0.0
        %2564 = vmatprep.subr.mxu0 0.0
        %2565 = vmatpush1.xpose.msra.mxu0 0.0
        %2566 = vmatprep.subr.mxu0 0.0
        %2567 = vmatpush1.xpose.msra.mxu0 0.0
        %2568 = vmatprep.subr.mxu0 0.0
        %2569 = vmatpush1.xpose.msra.mxu0 0.0
        %2570 = vmatprep.subr.mxu0 0.0
        %2571 = vmatpush1.xpose.msra.mxu0 0.0
        %2572 = vmatprep.subr.mxu0 0.0
        %2573 = vmatpush1.xpose.msra.mxu0 0.0
        %2574 = vmatprep.subr.mxu0 0.0
        %2575 = vmatpush1.xpose.msra.mxu0 0.0
        %2576 = vmatprep.subr.mxu0 0.0
        %2577 = vmatpush1.xpose.msra.mxu0 0.0
        %2578 = vmatprep.subr.mxu0 0.0
        %2579 = vmatpush1.xpose.msra.mxu0 0.0
        %2580 = vmatprep.subr.mxu0 0.0
        %2581 = vmatpush1.xpose.msra.mxu0 0.0
        %2582 = vmatprep.subr.mxu0 0.0
        %2583 = vmatpush1.xpose.msra.mxu0 0.0
        %2584 = vmatprep.subr.mxu0 0.0
        %2585 = vmatpush1.xpose.msra.mxu0 0.0
        %2586 = vmatprep.subr.mxu0 0.0
        %2587 = vmatpush1.xpose.msra.mxu0 0.0
        %2588 = vmatprep.subr.mxu0 0.0
        %2589 = vmatpush1.xpose.msra.mxu0 0.0
        %2590 = vmatprep.subr.mxu0 0.0
        %2591 = vmatpush1.xpose.msra.mxu0 0.0
        %2592 = vmatprep.subr.mxu0 0.0
        %2593 = vmatpush1.xpose.msra.mxu0 0.0
        %2594 = vmatprep.subr.mxu0 0.0
        %2595 = vmatpush1.xpose.msra.mxu0 0.0
        %2596 = vmatprep.subr.mxu0 0.0
        %2597 = vmatpush1.xpose.msra.mxu0 0.0
        %2598 = vmatprep.subr.mxu0 0.0
        %2599 = vmatpush1.xpose.msra.mxu0 0.0
        %2600 = vmatprep.subr.mxu0 0.0
        %2601 = vmatpush1.xpose.msra.mxu0 0.0
        %2602 = vmatprep.subr.mxu0 0.0
        %2603 = vmatpush1.xpose.msra.mxu0 0.0
        %2604 = vmatprep.subr.mxu0 0.0
        %2605 = vmatpush1.xpose.msra.mxu0 0.0
        %2606 = vmatprep.subr.mxu0 0.0
        %2607 = vmatpush1.xpose.msra.mxu0 0.0
        %2608 = vmatprep.subr.mxu0 0.0
        %2609 = vmatpush1.xpose.msra.mxu0 0.0
        %2610 = vmatprep.subr.mxu0 0.0
        %2611 = vmatpush1.xpose.msra.mxu0 0.0
        %2612 = vmatprep.subr.mxu0 0.0
        %2613 = vmatpush1.xpose.msra.mxu0 0.0
        %2614 = vmatprep.mubr.f32.mxu0 0.0
        %2615 = vmatmul.mubr.f32.gmra.mrb[0].mxu0 %v2546
        %v2616 = vpop.f32.mrb[0].mxu0
        %v2617 = vadd.f32 0.0, %v2616
        %v2618 = vpop.f32.mrb[0].mxu0
        %2619 = vdwg.mxu0
        %v2620 = vmul.f32 %v2389, 0.5
        %v2621 = vmul.f32 %v2465, 0.5
        %v2622 = vmul.f32 %v2541, 0.5
        %v2623 = vmul.f32 %v2617, 0.5
        %v2624 = vsel %vm506, %v2620, -inf
        %2625 = vmax.xlane.f32.xlu0 %v2624
        %v2626 = vpop.xlane.xlu0 %2625
        %v2627 = vsel %vm506, %v2621, -inf
        %2628 = vmax.xlane.f32.xlu0 %v2627
        %v2629 = vpop.xlane.xlu0 %2628
        %v2630 = vsel %vm506, %v2622, -inf
        %2631 = vmax.xlane.f32.xlu0 %v2630
        %v2632 = vpop.xlane.xlu0 %2631
        %v2633 = vsel %vm506, %v2623, -inf
        %2634 = vmax.xlane.f32.xlu0 %v2633
        %v2635 = vpop.xlane.xlu0 %2634
        %v2636 = vsub.f32 %v2620, %v2626
        %v2637 = vsub.f32 %v2621, %v2629
        %v2638 = vsub.f32 %v2622, %v2632
        %v2639 = vsub.f32 %v2623, %v2635
        %v2640 = vmul.f32 %v2636, 1.442695
        %v2641 = vpow.pop %v2640
        %v2642 = vmul.f32 %v2637, 1.442695
        %v2643 = vpow.pop %v2642
        %v2644 = vmul.f32 %v2638, 1.442695
        %v2645 = vpow.pop %v2644
        %v2646 = vmul.f32 %v2639, 1.442695
        %v2647 = vpow.pop %v2646
        %v2648 = vsel %vm506, %v2641, 0.0
        %2649 = vadd.xlane.f32.xlu0 %v2648
        %v2650 = vpop.xlane.xlu0 %2649
        %v2651 = vsel %vm506, %v2643, 0.0
        %2652 = vadd.xlane.f32.xlu0 %v2651
        %v2653 = vpop.xlane.xlu0 %2652
        %v2654 = vsel %vm506, %v2645, 0.0
        %2655 = vadd.xlane.f32.xlu0 %v2654
        %v2656 = vpop.xlane.xlu0 %2655
        %v2657 = vsel %vm506, %v2647, 0.0
        %2658 = vadd.xlane.f32.xlu0 %v2657
        %v2659 = vpop.xlane.xlu0 %2658
        %v2660 = vrcp.pop %v2650
        %v2661 = vrcp.pop %v2653
        %v2662 = vrcp.pop %v2656
        %v2663 = vrcp.pop %v2659
        %v2664 = vmul.f32 %v2641, %v2660
        %v2665 = vmul.f32 %v2643, %v2661
        %v2666 = vmul.f32 %v2645, %v2662
        %v2667 = vmul.f32 %v2647, %v2663
        %2668 = vrot.lane.b32.xlu0 %v2305, 96
        %v2669 = vpop.permute.xlu0 %2668
        %v2672 = vsel %vm506, %v2664, 0
        %2674 = vmatprep.subr.mxu0 0.0
        %2675 = vmatpush1.msra.mxu0 %v2669
        %2676 = vmatprep.subr.mxu0 0.0
        %2677 = vmatpush1.msra.mxu0 0.0
        %2678 = vmatprep.subr.mxu0 0.0
        %2679 = vmatpush1.msra.mxu0 0.0
        %2680 = vmatprep.subr.mxu0 0.0
        %2681 = vmatpush1.msra.mxu0 0.0
        %2682 = vmatprep.subr.mxu0 0.0
        %2683 = vmatpush1.msra.mxu0 0.0
        %2684 = vmatprep.subr.mxu0 0.0
        %2685 = vmatpush1.msra.mxu0 0.0
        %2686 = vmatprep.subr.mxu0 0.0
        %2687 = vmatpush1.msra.mxu0 0.0
        %2688 = vmatprep.subr.mxu0 0.0
        %2689 = vmatpush1.msra.mxu0 0.0
        %2690 = vmatprep.subr.mxu0 0.0
        %2691 = vmatpush1.msra.mxu0 0.0
        %2692 = vmatprep.subr.mxu0 0.0
        %2693 = vmatpush1.msra.mxu0 0.0
        %2694 = vmatprep.subr.mxu0 0.0
        %2695 = vmatpush1.msra.mxu0 0.0
        %2696 = vmatprep.subr.mxu0 0.0
        %2697 = vmatpush1.msra.mxu0 0.0
        %2698 = vmatprep.subr.mxu0 0.0
        %2699 = vmatpush1.msra.mxu0 0.0
        %2700 = vmatprep.subr.mxu0 0.0
        %2701 = vmatpush1.msra.mxu0 0.0
        %2702 = vmatprep.subr.mxu0 0.0
        %2703 = vmatpush1.msra.mxu0 0.0
        %2704 = vmatprep.subr.mxu0 0.0
        %2705 = vmatpush1.msra.mxu0 0.0
        %2706 = vmatprep.subr.mxu0 0.0
        %2707 = vmatpush1.msra.mxu0 0.0
        %2708 = vmatprep.subr.mxu0 0.0
        %2709 = vmatpush1.msra.mxu0 0.0
        %2710 = vmatprep.subr.mxu0 0.0
        %2711 = vmatpush1.msra.mxu0 0.0
        %2712 = vmatprep.subr.mxu0 0.0
        %2713 = vmatpush1.msra.mxu0 0.0
        %2714 = vmatprep.subr.mxu0 0.0
        %2715 = vmatpush1.msra.mxu0 0.0
        %2716 = vmatprep.subr.mxu0 0.0
        %2717 = vmatpush1.msra.mxu0 0.0
        %2718 = vmatprep.subr.mxu0 0.0
        %2719 = vmatpush1.msra.mxu0 0.0
        %2720 = vmatprep.subr.mxu0 0.0
        %2721 = vmatpush1.msra.mxu0 0.0
        %2722 = vmatprep.subr.mxu0 0.0
        %2723 = vmatpush1.msra.mxu0 0.0
        %2724 = vmatprep.subr.mxu0 0.0
        %2725 = vmatpush1.msra.mxu0 0.0
        %2726 = vmatprep.subr.mxu0 0.0
        %2727 = vmatpush1.msra.mxu0 0.0
        %2728 = vmatprep.subr.mxu0 0.0
        %2729 = vmatpush1.msra.mxu0 0.0
        %2730 = vmatprep.subr.mxu0 0.0
        %2731 = vmatpush1.msra.mxu0 0.0
        %2732 = vmatprep.subr.mxu0 0.0
        %2733 = vmatpush1.msra.mxu0 0.0
        %2734 = vmatprep.subr.mxu0 0.0
        %2735 = vmatpush1.msra.mxu0 0.0
        %2736 = vmatprep.subr.mxu0 0.0
        %2737 = vmatpush1.msra.mxu0 0.0
        %2738 = vmatprep.mubr.f32.mxu0 0.0
        %2739 = vmatmul.mubr.f32.gmra.mrb[0].mxu0 %v2672
        %v2740 = vpop.f32.mrb[0].mxu0
        %v2741 = vadd.f32 0.0, %v2740
        %v2742 = vpop.f32.mrb[0].mxu0
        %2743 = vdwg.mxu0
        %2744 = vrot.lane.b32.xlu0 %v2310, 96
        %v2745 = vpop.permute.xlu0 %2744
        %v2748 = vsel %vm506, %v2665, 0
        %2750 = vmatprep.subr.mxu0 0.0
        %2751 = vmatpush1.msra.mxu0 %v2745
        %2752 = vmatprep.subr.mxu0 0.0
        %2753 = vmatpush1.msra.mxu0 0.0
        %2754 = vmatprep.subr.mxu0 0.0
        %2755 = vmatpush1.msra.mxu0 0.0
        %2756 = vmatprep.subr.mxu0 0.0
        %2757 = vmatpush1.msra.mxu0 0.0
        %2758 = vmatprep.subr.mxu0 0.0
        %2759 = vmatpush1.msra.mxu0 0.0
        %2760 = vmatprep.subr.mxu0 0.0
        %2761 = vmatpush1.msra.mxu0 0.0
        %2762 = vmatprep.subr.mxu0 0.0
        %2763 = vmatpush1.msra.mxu0 0.0
        %2764 = vmatprep.subr.mxu0 0.0
        %2765 = vmatpush1.msra.mxu0 0.0
        %2766 = vmatprep.subr.mxu0 0.0
        %2767 = vmatpush1.msra.mxu0 0.0
        %2768 = vmatprep.subr.mxu0 0.0
        %2769 = vmatpush1.msra.mxu0 0.0
        %2770 = vmatprep.subr.mxu0 0.0
        %2771 = vmatpush1.msra.mxu0 0.0
        %2772 = vmatprep.subr.mxu0 0.0
        %2773 = vmatpush1.msra.mxu0 0.0
        %2774 = vmatprep.subr.mxu0 0.0
        %2775 = vmatpush1.msra.mxu0 0.0
        %2776 = vmatprep.subr.mxu0 0.0
        %2777 = vmatpush1.msra.mxu0 0.0
        %2778 = vmatprep.subr.mxu0 0.0
        %2779 = vmatpush1.msra.mxu0 0.0
        %2780 = vmatprep.subr.mxu0 0.0
        %2781 = vmatpush1.msra.mxu0 0.0
        %2782 = vmatprep.subr.mxu0 0.0
        %2783 = vmatpush1.msra.mxu0 0.0
        %2784 = vmatprep.subr.mxu0 0.0
        %2785 = vmatpush1.msra.mxu0 0.0
        %2786 = vmatprep.subr.mxu0 0.0
        %2787 = vmatpush1.msra.mxu0 0.0
        %2788 = vmatprep.subr.mxu0 0.0
        %2789 = vmatpush1.msra.mxu0 0.0
        %2790 = vmatprep.subr.mxu0 0.0
        %2791 = vmatpush1.msra.mxu0 0.0
        %2792 = vmatprep.subr.mxu0 0.0
        %2793 = vmatpush1.msra.mxu0 0.0
        %2794 = vmatprep.subr.mxu0 0.0
        %2795 = vmatpush1.msra.mxu0 0.0
        %2796 = vmatprep.subr.mxu0 0.0
        %2797 = vmatpush1.msra.mxu0 0.0
        %2798 = vmatprep.subr.mxu0 0.0
        %2799 = vmatpush1.msra.mxu0 0.0
        %2800 = vmatprep.subr.mxu0 0.0
        %2801 = vmatpush1.msra.mxu0 0.0
        %2802 = vmatprep.subr.mxu0 0.0
        %2803 = vmatpush1.msra.mxu0 0.0
        %2804 = vmatprep.subr.mxu0 0.0
        %2805 = vmatpush1.msra.mxu0 0.0
        %2806 = vmatprep.subr.mxu0 0.0
        %2807 = vmatpush1.msra.mxu0 0.0
        %2808 = vmatprep.subr.mxu0 0.0
        %2809 = vmatpush1.msra.mxu0 0.0
        %2810 = vmatprep.subr.mxu0 0.0
        %2811 = vmatpush1.msra.mxu0 0.0
        %2812 = vmatprep.subr.mxu0 0.0
        %2813 = vmatpush1.msra.mxu0 0.0
        %2814 = vmatprep.mubr.f32.mxu0 0.0
        %2815 = vmatmul.mubr.f32.gmra.mrb[0].mxu0 %v2748
        %v2816 = vpop.f32.mrb[0].mxu0
        %v2817 = vadd.f32 0.0, %v2816
        %v2818 = vpop.f32.mrb[0].mxu0
        %2819 = vdwg.mxu0
        %2820 = vrot.lane.b32.xlu0 %v2312, 96
        %v2821 = vpop.permute.xlu0 %2820
        %v2824 = vsel %vm506, %v2666, 0
        %2826 = vmatprep.subr.mxu0 0.0
        %2827 = vmatpush1.msra.mxu0 %v2821
        %2828 = vmatprep.subr.mxu0 0.0
        %2829 = vmatpush1.msra.mxu0 0.0
        %2830 = vmatprep.subr.mxu0 0.0
        %2831 = vmatpush1.msra.mxu0 0.0
        %2832 = vmatprep.subr.mxu0 0.0
        %2833 = vmatpush1.msra.mxu0 0.0
        %2834 = vmatprep.subr.mxu0 0.0
        %2835 = vmatpush1.msra.mxu0 0.0
        %2836 = vmatprep.subr.mxu0 0.0
        %2837 = vmatpush1.msra.mxu0 0.0
        %2838 = vmatprep.subr.mxu0 0.0
        %2839 = vmatpush1.msra.mxu0 0.0
        %2840 = vmatprep.subr.mxu0 0.0
        %2841 = vmatpush1.msra.mxu0 0.0
        %2842 = vmatprep.subr.mxu0 0.0
        %2843 = vmatpush1.msra.mxu0 0.0
        %2844 = vmatprep.subr.mxu0 0.0
        %2845 = vmatpush1.msra.mxu0 0.0
        %2846 = vmatprep.subr.mxu0 0.0
        %2847 = vmatpush1.msra.mxu0 0.0
        %2848 = vmatprep.subr.mxu0 0.0
        %2849 = vmatpush1.msra.mxu0 0.0
        %2850 = vmatprep.subr.mxu0 0.0
        %2851 = vmatpush1.msra.mxu0 0.0
        %2852 = vmatprep.subr.mxu0 0.0
        %2853 = vmatpush1.msra.mxu0 0.0
        %2854 = vmatprep.subr.mxu0 0.0
        %2855 = vmatpush1.msra.mxu0 0.0
        %2856 = vmatprep.subr.mxu0 0.0
        %2857 = vmatpush1.msra.mxu0 0.0
        %2858 = vmatprep.subr.mxu0 0.0
        %2859 = vmatpush1.msra.mxu0 0.0
        %2860 = vmatprep.subr.mxu0 0.0
        %2861 = vmatpush1.msra.mxu0 0.0
        %2862 = vmatprep.subr.mxu0 0.0
        %2863 = vmatpush1.msra.mxu0 0.0
        %2864 = vmatprep.subr.mxu0 0.0
        %2865 = vmatpush1.msra.mxu0 0.0
        %2866 = vmatprep.subr.mxu0 0.0
        %2867 = vmatpush1.msra.mxu0 0.0
        %2868 = vmatprep.subr.mxu0 0.0
        %2869 = vmatpush1.msra.mxu0 0.0
        %2870 = vmatprep.subr.mxu0 0.0
        %2871 = vmatpush1.msra.mxu0 0.0
        %2872 = vmatprep.subr.mxu0 0.0
        %2873 = vmatpush1.msra.mxu0 0.0
        %2874 = vmatprep.subr.mxu0 0.0
        %2875 = vmatpush1.msra.mxu0 0.0
        %2876 = vmatprep.subr.mxu0 0.0
        %2877 = vmatpush1.msra.mxu0 0.0
        %2878 = vmatprep.subr.mxu0 0.0
        %2879 = vmatpush1.msra.mxu0 0.0
        %2880 = vmatprep.subr.mxu0 0.0
        %2881 = vmatpush1.msra.mxu0 0.0
        %2882 = vmatprep.subr.mxu0 0.0
        %2883 = vmatpush1.msra.mxu0 0.0
        %2884 = vmatprep.subr.mxu0 0.0
        %2885 = vmatpush1.msra.mxu0 0.0
        %2886 = vmatprep.subr.mxu0 0.0
        %2887 = vmatpush1.msra.mxu0 0.0
        %2888 = vmatprep.subr.mxu0 0.0
        %2889 = vmatpush1.msra.mxu0 0.0
        %2890 = vmatprep.mubr.f32.mxu0 0.0
        %2891 = vmatmul.mubr.f32.gmra.mrb[0].mxu0 %v2824
        %v2892 = vpop.f32.mrb[0].mxu0
        %v2893 = vadd.f32 0.0, %v2892
        %v2894 = vpop.f32.mrb[0].mxu0
        %2895 = vdwg.mxu0
        %2896 = vrot.lane.b32.xlu0 %v2314, 96
        %v2897 = vpop.permute.xlu0 %2896
        %v2900 = vsel %vm506, %v2667, 0
        %2902 = vmatprep.subr.mxu0 0.0
        %2903 = vmatpush1.msra.mxu0 %v2897
        %2904 = vmatprep.subr.mxu0 0.0
        %2905 = vmatpush1.msra.mxu0 0.0
        %2906 = vmatprep.subr.mxu0 0.0
        %2907 = vmatpush1.msra.mxu0 0.0
        %2908 = vmatprep.subr.mxu0 0.0
        %2909 = vmatpush1.msra.mxu0 0.0
        %2910 = vmatprep.subr.mxu0 0.0
        %2911 = vmatpush1.msra.mxu0 0.0
        %2912 = vmatprep.subr.mxu0 0.0
        %2913 = vmatpush1.msra.mxu0 0.0
        %2914 = vmatprep.subr.mxu0 0.0
        %2915 = vmatpush1.msra.mxu0 0.0
        %2916 = vmatprep.subr.mxu0 0.0
        %2917 = vmatpush1.msra.mxu0 0.0
        %2918 = vmatprep.subr.mxu0 0.0
        %2919 = vmatpush1.msra.mxu0 0.0
        %2920 = vmatprep.subr.mxu0 0.0
        %2921 = vmatpush1.msra.mxu0 0.0
        %2922 = vmatprep.subr.mxu0 0.0
        %2923 = vmatpush1.msra.mxu0 0.0
        %2924 = vmatprep.subr.mxu0 0.0
        %2925 = vmatpush1.msra.mxu0 0.0
        %2926 = vmatprep.subr.mxu0 0.0
        %2927 = vmatpush1.msra.mxu0 0.0
        %2928 = vmatprep.subr.mxu0 0.0
        %2929 = vmatpush1.msra.mxu0 0.0
        %2930 = vmatprep.subr.mxu0 0.0
        %2931 = vmatpush1.msra.mxu0 0.0
        %2932 = vmatprep.subr.mxu0 0.0
        %2933 = vmatpush1.msra.mxu0 0.0
        %2934 = vmatprep.subr.mxu0 0.0
        %2935 = vmatpush1.msra.mxu0 0.0
        %2936 = vmatprep.subr.mxu0 0.0
        %2937 = vmatpush1.msra.mxu0 0.0
        %2938 = vmatprep.subr.mxu0 0.0
        %2939 = vmatpush1.msra.mxu0 0.0
        %2940 = vmatprep.subr.mxu0 0.0
        %2941 = vmatpush1.msra.mxu0 0.0
        %2942 = vmatprep.subr.mxu0 0.0
        %2943 = vmatpush1.msra.mxu0 0.0
        %2944 = vmatprep.subr.mxu0 0.0
        %2945 = vmatpush1.msra.mxu0 0.0
        %2946 = vmatprep.subr.mxu0 0.0
        %2947 = vmatpush1.msra.mxu0 0.0
        %2948 = vmatprep.subr.mxu0 0.0
        %2949 = vmatpush1.msra.mxu0 0.0
        %2950 = vmatprep.subr.mxu0 0.0
        %2951 = vmatpush1.msra.mxu0 0.0
        %2952 = vmatprep.subr.mxu0 0.0
        %2953 = vmatpush1.msra.mxu0 0.0
        %2954 = vmatprep.subr.mxu0 0.0
        %2955 = vmatpush1.msra.mxu0 0.0
        %2956 = vmatprep.subr.mxu0 0.0
        %2957 = vmatpush1.msra.mxu0 0.0
        %2958 = vmatprep.subr.mxu0 0.0
        %2959 = vmatpush1.msra.mxu0 0.0
        %2960 = vmatprep.subr.mxu0 0.0
        %2961 = vmatpush1.msra.mxu0 0.0
        %2962 = vmatprep.subr.mxu0 0.0
        %2963 = vmatpush1.msra.mxu0 0.0
        %2964 = vmatprep.subr.mxu0 0.0
        %2965 = vmatpush1.msra.mxu0 0.0
        %2966 = vmatprep.mubr.f32.mxu0 0.0
        %2967 = vmatmul.mubr.f32.gmra.mrb[0].mxu0 %v2900
        %v2968 = vpop.f32.mrb[0].mxu0
        %v2969 = vadd.f32 0.0, %v2968
        %v2970 = vpop.f32.mrb[0].mxu0
        %2971 = vdwg.mxu0
        %2973 = vrot.lane.b32.xlu0 %v2817, 4
        %v2974 = vpop.permute.xlu0 %2973
        %2977 = vrot.lane.b32.xlu0 %v2893, 8
        %v2978 = vpop.permute.xlu0 %2977
        %2981 = vrot.lane.b32.xlu0 %v2969, 12
        %v2982 = vpop.permute.xlu0 %2981
        %v2984 = vsel %vm2317, %v2741, %v2974
        %v2985 = vsel %vm506, %v2984, %v2978
        %vm2986 = vcmask 97280
        %v2987 = vsel %vm2986, %v2985, %v2982
        %v2988 = vld [vmem:[#allocation4 + $0x1b8] sm:$0xff]
        %v2989 = vld [vmem:[#allocation4 + $0x1c0] sm:$0xff]
        %v2991 = vsel %vm1836, %v2987, 0
        %2993 = vmatprep.subr.mxu0 0.0
        %2994 = vmatpush1.msra.mxu0 %v2988
        %2995 = vmatprep.subr.mxu0 0.0
        %2996 = vmatpush1.msra.mxu0 %v2989
        %2997 = vmatprep.subr.mxu0 0.0
        %2998 = vmatpush1.msra.mxu0 0.0
        %2999 = vmatprep.subr.mxu0 0.0
        %3000 = vmatpush1.msra.mxu0 0.0
        %3001 = vmatprep.subr.mxu0 0.0
        %3002 = vmatpush1.msra.mxu0 0.0
        %3003 = vmatprep.subr.mxu0 0.0
        %3004 = vmatpush1.msra.mxu0 0.0
        %3005 = vmatprep.subr.mxu0 0.0
        %3006 = vmatpush1.msra.mxu0 0.0
        %3007 = vmatprep.subr.mxu0 0.0
        %3008 = vmatpush1.msra.mxu0 0.0
        %3009 = vmatprep.subr.mxu0 0.0
        %3010 = vmatpush1.msra.mxu0 0.0
        %3011 = vmatprep.subr.mxu0 0.0
        %3012 = vmatpush1.msra.mxu0 0.0
        %3013 = vmatprep.subr.mxu0 0.0
        %3014 = vmatpush1.msra.mxu0 0.0
        %3015 = vmatprep.subr.mxu0 0.0
        %3016 = vmatpush1.msra.mxu0 0.0
        %3017 = vmatprep.subr.mxu0 0.0
        %3018 = vmatpush1.msra.mxu0 0.0
        %3019 = vmatprep.subr.mxu0 0.0
        %3020 = vmatpush1.msra.mxu0 0.0
        %3021 = vmatprep.subr.mxu0 0.0
        %3022 = vmatpush1.msra.mxu0 0.0
        %3023 = vmatprep.subr.mxu0 0.0
        %3024 = vmatpush1.msra.mxu0 0.0
        %3025 = vmatprep.subr.mxu0 0.0
        %3026 = vmatpush1.msra.mxu0 0.0
        %3027 = vmatprep.subr.mxu0 0.0
        %3028 = vmatpush1.msra.mxu0 0.0
        %3029 = vmatprep.subr.mxu0 0.0
        %3030 = vmatpush1.msra.mxu0 0.0
        %3031 = vmatprep.subr.mxu0 0.0
        %3032 = vmatpush1.msra.mxu0 0.0
        %3033 = vmatprep.subr.mxu0 0.0
        %3034 = vmatpush1.msra.mxu0 0.0
        %3035 = vmatprep.subr.mxu0 0.0
        %3036 = vmatpush1.msra.mxu0 0.0
        %3037 = vmatprep.subr.mxu0 0.0
        %3038 = vmatpush1.msra.mxu0 0.0
        %3039 = vmatprep.subr.mxu0 0.0
        %3040 = vmatpush1.msra.mxu0 0.0
        %3041 = vmatprep.subr.mxu0 0.0
        %3042 = vmatpush1.msra.mxu0 0.0
        %3043 = vmatprep.subr.mxu0 0.0
        %3044 = vmatpush1.msra.mxu0 0.0
        %3045 = vmatprep.subr.mxu0 0.0
        %3046 = vmatpush1.msra.mxu0 0.0
        %3047 = vmatprep.subr.mxu0 0.0
        %3048 = vmatpush1.msra.mxu0 0.0
        %3049 = vmatprep.subr.mxu0 0.0
        %3050 = vmatpush1.msra.mxu0 0.0
        %3051 = vmatprep.subr.mxu0 0.0
        %3052 = vmatpush1.msra.mxu0 0.0
        %3053 = vmatprep.subr.mxu0 0.0
        %3054 = vmatpush1.msra.mxu0 0.0
        %3055 = vmatprep.subr.mxu0 0.0
        %3056 = vmatpush1.msra.mxu0 0.0
        %3057 = vmatprep.mubr.f32.mxu0 0.0
        %3058 = vmatmul.mubr.f32.gmra.mrb[0].mxu0 %v2991
        %v3059 = vpop.f32.mrb[0].mxu0
        %v3060 = vadd.f32 0.0, %v3059
        %v3061 = vpop.f32.mrb[0].mxu0
        %3062 = vdwg.mxu0
        %v3063 = vadd.f32 %v2206, %v3060
        %v3064 = vld [vmem:[#allocation6 + $0x14] sm:$0x1]
        %v3065 = vlaneseq
        %v3066 = vshrl.u32 %v3065, 7
        %v3067 = vsub.s32 0, %v3066
        %v3068 = vrot.slane %v3064, %v3067
        %v3069 = vadd.f32 %v3063, %v3068
        %v3070 = vld [vmem:[#allocation6 + $0x15] sm:$0x1]
        %v3071 = vld [vmem:[#allocation6 + $0x16] sm:$0x1]
        %v3072 = vsel %vm1836, %v3069, 0.0
        %3073 = vadd.xlane.f32.xlu0 %v3072
        %v3074 = vpop.xlane.xlu0 %3073
        %v3075 = vmul.f32 %v3074, %v2212
        %v3076 = vsub.f32 %v3069, %v3075
        %v3077 = vmul.f32 %v3076, %v3076
        %v3078 = vsel %vm1836, %v3077, 0.0
        %3079 = vadd.xlane.f32.xlu0 %v3078
        %v3080 = vpop.xlane.xlu0 %3079
        %v3081 = vmul.f32 %v3080, %v2212
        %v3082 = vadd.f32 %v3081, 1e-05
        %v3083 = vrsqrt.pop %v3082
        %v3084 = vmul.f32 %v3076, %v3083
        %v3085 = vlaneseq
        %v3086 = vshrl.u32 %v3085, 7
        %v3087 = vsub.s32 0, %v3086
        %v3088 = vrot.slane %v3070, %v3087
        %v3089 = vmul.f32 %v3084, %v3088
        %v3090 = vlaneseq
        %v3091 = vshrl.u32 %v3090, 7
        %v3092 = vsub.s32 0, %v3091
        %v3093 = vrot.slane %v3071, %v3092
        %v3094 = vadd.f32 %v3089, %v3093
        %v3095 = vld [vmem:[#allocation4 + $0x1c8] sm:$0xff]
        %v3096 = vld [vmem:[#allocation4 + $0x1d0] sm:$0xff]
        %v3097 = vld [vmem:[#allocation6 + $0x17] sm:$0x1]
        %v3098 = vlaneseq
        %v3099 = vshrl.u32 %v3098, 7
        %v3100 = vsub.s32 0, %v3099
        %v3101 = vrot.slane %v3097, %v3100
        %v3103 = vsel %vm1836, %v3094, 0
        %3105 = vmatprep.subr.mxu0 0.0
        %3106 = vmatpush1.msra.mxu0 %v3095
        %3107 = vmatprep.subr.mxu0 0.0
        %3108 = vmatpush1.msra.mxu0 %v3096
        %3109 = vmatprep.subr.mxu0 0.0
        %3110 = vmatpush1.msra.mxu0 0.0
        %3111 = vmatprep.subr.mxu0 0.0
        %3112 = vmatpush1.msra.mxu0 0.0
        %3113 = vmatprep.subr.mxu0 0.0
        %3114 = vmatpush1.msra.mxu0 0.0
        %3115 = vmatprep.subr.mxu0 0.0
        %3116 = vmatpush1.msra.mxu0 0.0
        %3117 = vmatprep.subr.mxu0 0.0
        %3118 = vmatpush1.msra.mxu0 0.0
        %3119 = vmatprep.subr.mxu0 0.0
        %3120 = vmatpush1.msra.mxu0 0.0
        %3121 = vmatprep.subr.mxu0 0.0
        %3122 = vmatpush1.msra.mxu0 0.0
        %3123 = vmatprep.subr.mxu0 0.0
        %3124 = vmatpush1.msra.mxu0 0.0
        %3125 = vmatprep.subr.mxu0 0.0
        %3126 = vmatpush1.msra.mxu0 0.0
        %3127 = vmatprep.subr.mxu0 0.0
        %3128 = vmatpush1.msra.mxu0 0.0
        %3129 = vmatprep.subr.mxu0 0.0
        %3130 = vmatpush1.msra.mxu0 0.0
        %3131 = vmatprep.subr.mxu0 0.0
        %3132 = vmatpush1.msra.mxu0 0.0
        %3133 = vmatprep.subr.mxu0 0.0
        %3134 = vmatpush1.msra.mxu0 0.0
        %3135 = vmatprep.subr.mxu0 0.0
        %3136 = vmatpush1.msra.mxu0 0.0
        %3137 = vmatprep.subr.mxu0 0.0
        %3138 = vmatpush1.msra.mxu0 0.0
        %3139 = vmatprep.subr.mxu0 0.0
        %3140 = vmatpush1.msra.mxu0 0.0
        %3141 = vmatprep.subr.mxu0 0.0
        %3142 = vmatpush1.msra.mxu0 0.0
        %3143 = vmatprep.subr.mxu0 0.0
        %3144 = vmatpush1.msra.mxu0 0.0
        %3145 = vmatprep.subr.mxu0 0.0
        %3146 = vmatpush1.msra.mxu0 0.0
        %3147 = vmatprep.subr.mxu0 0.0
        %3148 = vmatpush1.msra.mxu0 0.0
        %3149 = vmatprep.subr.mxu0 0.0
        %3150 = vmatpush1.msra.mxu0 0.0
        %3151 = vmatprep.subr.mxu0 0.0
        %3152 = vmatpush1.msra.mxu0 0.0
        %3153 = vmatprep.subr.mxu0 0.0
        %3154 = vmatpush1.msra.mxu0 0.0
        %3155 = vmatprep.subr.mxu0 0.0
        %3156 = vmatpush1.msra.mxu0 0.0
        %3157 = vmatprep.subr.mxu0 0.0
        %3158 = vmatpush1.msra.mxu0 0.0
        %3159 = vmatprep.subr.mxu0 0.0
        %3160 = vmatpush1.msra.mxu0 0.0
        %3161 = vmatprep.subr.mxu0 0.0
        %3162 = vmatpush1.msra.mxu0 0.0
        %3163 = vmatprep.subr.mxu0 0.0
        %3164 = vmatpush1.msra.mxu0 0.0
        %3165 = vmatprep.subr.mxu0 0.0
        %3166 = vmatpush1.msra.mxu0 0.0
        %3167 = vmatprep.subr.mxu0 0.0
        %3168 = vmatpush1.msra.mxu0 0.0
        %3169 = vmatprep.mubr.f32.mxu0 0.0
        %3170 = vmatmul.mubr.f32.gmra.mrb[0].mxu0 %v3103
        %v3171 = vpop.f32.mrb[0].mxu0
        %v3172 = vadd.f32 %v3101, %v3171
        %v3173 = vpop.f32.mrb[0].mxu0
        %3174 = vdwg.mxu0
        %v3175 = vmax.f32 %v3172, 0.0
        %v3176 = vld [vmem:[#allocation4 + $0x1d8] sm:$0xff]
        %v3177 = vld [vmem:[#allocation4 + $0x1e0] sm:$0xff]
        %v3178 = vld [vmem:[#allocation4 + $0x1e8] sm:$0xff]
        %v3179 = vld [vmem:[#allocation4 + $0x1f0] sm:$0xff]
        %v3180 = vld [vmem:[#allocation4 + $0x1f8] sm:$0xff]
        %v3181 = vld [vmem:[#allocation4 + $0x200] sm:$0xff]
        %v3182 = vld [vmem:[#allocation4 + $0x208] sm:$0xff]
        %v3183 = vld [vmem:[#allocation4 + $0x210] sm:$0xff]
        %v3184 = vld [vmem:[#allocation6 + $0x18] sm:$0x1]
        %v3185 = vlaneseq
        %v3186 = vshrl.u32 %v3185, 7
        %v3187 = vsub.s32 0, %v3186
        %v3188 = vrot.slane %v3184, %v3187
        %vm3189 = vcmask 523264
        %v3191 = vsel %vm3189, %v3175, 0
        %3193 = vmatprep.subr.mxu0 0.0
        %3194 = vmatpush1.msra.mxu0 %v3176
        %3195 = vmatprep.subr.mxu0 0.0
        %3196 = vmatpush1.msra.mxu0 %v3177
        %3197 = vmatprep.subr.mxu0 0.0
        %3198 = vmatpush1.msra.mxu0 %v3178
        %3199 = vmatprep.subr.mxu0 0.0
        %3200 = vmatpush1.msra.mxu0 %v3179
        %3201 = vmatprep.subr.mxu0 0.0
        %3202 = vmatpush1.msra.mxu0 %v3180
        %3203 = vmatprep.subr.mxu0 0.0
        %3204 = vmatpush1.msra.mxu0 %v3181
        %3205 = vmatprep.subr.mxu0 0.0
        %3206 = vmatpush1.msra.mxu0 %v3182
        %3207 = vmatprep.subr.mxu0 0.0
        %3208 = vmatpush1.msra.mxu0 %v3183
        %3209 = vmatprep.subr.mxu0 0.0
        %3210 = vmatpush1.msra.mxu0 0.0
        %3211 = vmatprep.subr.mxu0 0.0
        %3212 = vmatpush1.msra.mxu0 0.0
        %3213 = vmatprep.subr.mxu0 0.0
        %3214 = vmatpush1.msra.mxu0 0.0
        %3215 = vmatprep.subr.mxu0 0.0
        %3216 = vmatpush1.msra.mxu0 0.0
        %3217 = vmatprep.subr.mxu0 0.0
        %3218 = vmatpush1.msra.mxu0 0.0
        %3219 = vmatprep.subr.mxu0 0.0
        %3220 = vmatpush1.msra.mxu0 0.0
        %3221 = vmatprep.subr.mxu0 0.0
        %3222 = vmatpush1.msra.mxu0 0.0
        %3223 = vmatprep.subr.mxu0 0.0
        %3224 = vmatpush1.msra.mxu0 0.0
        %3225 = vmatprep.subr.mxu0 0.0
        %3226 = vmatpush1.msra.mxu0 0.0
        %3227 = vmatprep.subr.mxu0 0.0
        %3228 = vmatpush1.msra.mxu0 0.0
        %3229 = vmatprep.subr.mxu0 0.0
        %3230 = vmatpush1.msra.mxu0 0.0
        %3231 = vmatprep.subr.mxu0 0.0
        %3232 = vmatpush1.msra.mxu0 0.0
        %3233 = vmatprep.subr.mxu0 0.0
        %3234 = vmatpush1.msra.mxu0 0.0
        %3235 = vmatprep.subr.mxu0 0.0
        %3236 = vmatpush1.msra.mxu0 0.0
        %3237 = vmatprep.subr.mxu0 0.0
        %3238 = vmatpush1.msra.mxu0 0.0
        %3239 = vmatprep.subr.mxu0 0.0
        %3240 = vmatpush1.msra.mxu0 0.0
        %3241 = vmatprep.subr.mxu0 0.0
        %3242 = vmatpush1.msra.mxu0 0.0
        %3243 = vmatprep.subr.mxu0 0.0
        %3244 = vmatpush1.msra.mxu0 0.0
        %3245 = vmatprep.subr.mxu0 0.0
        %3246 = vmatpush1.msra.mxu0 0.0
        %3247 = vmatprep.subr.mxu0 0.0
        %3248 = vmatpush1.msra.mxu0 0.0
        %3249 = vmatprep.subr.mxu0 0.0
        %3250 = vmatpush1.msra.mxu0 0.0
        %3251 = vmatprep.subr.mxu0 0.0
        %3252 = vmatpush1.msra.mxu0 0.0
        %3253 = vmatprep.subr.mxu0 0.0
        %3254 = vmatpush1.msra.mxu0 0.0
        %3255 = vmatprep.subr.mxu0 0.0
        %3256 = vmatpush1.msra.mxu0 0.0
        %3257 = vmatprep.mubr.f32.mxu0 0.0
        %3258 = vmatmul.mubr.f32.gmra.mrb[0].mxu0 %v3191
        %v3259 = vpop.f32.mrb[0].mxu0
        %v3260 = vadd.f32 %v3188, %v3259
        %v3261 = vpop.f32.mrb[0].mxu0
        %3262 = vdwg.mxu0
        %v3263 = vadd.f32 %v3069, %v3260
        %v3264 = vld [vmem:[#allocation4 + $0x218] sm:$0xff]
        %v3265 = vld [vmem:[#allocation4 + $0x220] sm:$0xff]
        %v3266 = vld [vmem:[#allocation6 + $0x19] sm:$0x1]
        %v3267 = vlaneseq
        %v3268 = vshrl.u32 %v3267, 7
        %v3269 = vsub.s32 0, %v3268
        %v3270 = vrot.slane %v3266, %v3269
        %v3272 = vsel %vm1836, %v3263, 0
        %3274 = vmatprep.subr.mxu0 0.0
        %3275 = vmatpush1.msra.mxu0 %v3264
        %3276 = vmatprep.subr.mxu0 0.0
        %3277 = vmatpush1.msra.mxu0 %v3265
        %3278 = vmatprep.subr.mxu0 0.0
        %3279 = vmatpush1.msra.mxu0 0.0
        %3280 = vmatprep.subr.mxu0 0.0
        %3281 = vmatpush1.msra.mxu0 0.0
        %3282 = vmatprep.subr.mxu0 0.0
        %3283 = vmatpush1.msra.mxu0 0.0
        %3284 = vmatprep.subr.mxu0 0.0
        %3285 = vmatpush1.msra.mxu0 0.0
        %3286 = vmatprep.subr.mxu0 0.0
        %3287 = vmatpush1.msra.mxu0 0.0
        %3288 = vmatprep.subr.mxu0 0.0
        %3289 = vmatpush1.msra.mxu0 0.0
        %3290 = vmatprep.subr.mxu0 0.0
        %3291 = vmatpush1.msra.mxu0 0.0
        %3292 = vmatprep.subr.mxu0 0.0
        %3293 = vmatpush1.msra.mxu0 0.0
        %3294 = vmatprep.subr.mxu0 0.0
        %3295 = vmatpush1.msra.mxu0 0.0
        %3296 = vmatprep.subr.mxu0 0.0
        %3297 = vmatpush1.msra.mxu0 0.0
        %3298 = vmatprep.subr.mxu0 0.0
        %3299 = vmatpush1.msra.mxu0 0.0
        %3300 = vmatprep.subr.mxu0 0.0
        %3301 = vmatpush1.msra.mxu0 0.0
        %3302 = vmatprep.subr.mxu0 0.0
        %3303 = vmatpush1.msra.mxu0 0.0
        %3304 = vmatprep.subr.mxu0 0.0
        %3305 = vmatpush1.msra.mxu0 0.0
        %3306 = vmatprep.subr.mxu0 0.0
        %3307 = vmatpush1.msra.mxu0 0.0
        %3308 = vmatprep.subr.mxu0 0.0
        %3309 = vmatpush1.msra.mxu0 0.0
        %3310 = vmatprep.subr.mxu0 0.0
        %3311 = vmatpush1.msra.mxu0 0.0
        %3312 = vmatprep.subr.mxu0 0.0
        %3313 = vmatpush1.msra.mxu0 0.0
        %3314 = vmatprep.subr.mxu0 0.0
        %3315 = vmatpush1.msra.mxu0 0.0
        %3316 = vmatprep.subr.mxu0 0.0
        %3317 = vmatpush1.msra.mxu0 0.0
        %3318 = vmatprep.subr.mxu0 0.0
        %3319 = vmatpush1.msra.mxu0 0.0
        %3320 = vmatprep.subr.mxu0 0.0
        %3321 = vmatpush1.msra.mxu0 0.0
        %3322 = vmatprep.subr.mxu0 0.0
        %3323 = vmatpush1.msra.mxu0 0.0
        %3324 = vmatprep.subr.mxu0 0.0
        %3325 = vmatpush1.msra.mxu0 0.0
        %3326 = vmatprep.subr.mxu0 0.0
        %3327 = vmatpush1.msra.mxu0 0.0
        %3328 = vmatprep.subr.mxu0 0.0
        %3329 = vmatpush1.msra.mxu0 0.0
        %3330 = vmatprep.subr.mxu0 0.0
        %3331 = vmatpush1.msra.mxu0 0.0
        %3332 = vmatprep.subr.mxu0 0.0
        %3333 = vmatpush1.msra.mxu0 0.0
        %3334 = vmatprep.subr.mxu0 0.0
        %3335 = vmatpush1.msra.mxu0 0.0
        %3336 = vmatprep.subr.mxu0 0.0
        %3337 = vmatpush1.msra.mxu0 0.0
        %3338 = vmatprep.mubr.f32.mxu0 0.0
        %3339 = vmatmul.mubr.f32.gmra.mrb[0].mxu0 %v3272
        %v3340 = vpop.f32.mrb[0].mxu0
        %v3341 = vadd.f32 %v3270, %v3340
        %v3342 = vpop.f32.mrb[0].mxu0
        %3343 = vdwg.mxu0
        %v3344 = vld [vmem:[#allocation6 + $0x1a] sm:$0x1]
        %v3345 = vld [vmem:[#allocation6 + $0x1b] sm:$0x1]
        %v3346 = vsel %vm506, %v3341, 0.0
        %3347 = vadd.xlane.f32.xlu0 %v3346
        %v3348 = vpop.xlane.xlu0 %3347
        %v3349 = vrcp.pop 8.0
        %v3350 = vmul.f32 %v3348, %v3349
        %v3351 = vsub.f32 %v3341, %v3350
        %v3352 = vmul.f32 %v3351, %v3351
        %v3353 = vsel %vm506, %v3352, 0.0
        %3354 = vadd.xlane.f32.xlu0 %v3353
        %v3355 = vpop.xlane.xlu0 %3354
        %v3356 = vmul.f32 %v3355, %v3349
        %v3357 = vadd.f32 %v3356, 1e-05
        %v3358 = vrsqrt.pop %v3357
        %v3359 = vmul.f32 %v3351, %v3358
        %v3360 = vlaneseq
        %v3361 = vshrl.u32 %v3360, 7
        %v3362 = vsub.s32 0, %v3361
        %v3363 = vrot.slane %v3344, %v3362
        %v3364 = vmul.f32 %v3359, %v3363
        %v3365 = vlaneseq
        %v3366 = vshrl.u32 %v3365, 7
        %v3367 = vsub.s32 0, %v3366
        %v3368 = vrot.slane %v3345, %v3367
        %v3369 = vadd.f32 %v3364, %v3368
        %v3370 = vld [vmem:[#allocation4 + $0x228] sm:$0xff]
        %v3372 = vsel %vm506, %v3369, 0
        %3374 = vmatprep.subr.mxu0 0.0
        %3375 = vmatpush1.msra.mxu0 %v3370
        %3376 = vmatprep.subr.mxu0 0.0
        %3377 = vmatpush1.msra.mxu0 0.0
        %3378 = vmatprep.subr.mxu0 0.0
        %3379 = vmatpush1.msra.mxu0 0.0
        %3380 = vmatprep.subr.mxu0 0.0
        %3381 = vmatpush1.msra.mxu0 0.0
        %3382 = vmatprep.subr.mxu0 0.0
        %3383 = vmatpush1.msra.mxu0 0.0
        %3384 = vmatprep.subr.mxu0 0.0
        %3385 = vmatpush1.msra.mxu0 0.0
        %3386 = vmatprep.subr.mxu0 0.0
        %3387 = vmatpush1.msra.mxu0 0.0
        %3388 = vmatprep.subr.mxu0 0.0
        %3389 = vmatpush1.msra.mxu0 0.0
        %3390 = vmatprep.subr.mxu0 0.0
        %3391 = vmatpush1.msra.mxu0 0.0
        %3392 = vmatprep.subr.mxu0 0.0
        %3393 = vmatpush1.msra.mxu0 0.0
        %3394 = vmatprep.subr.mxu0 0.0
        %3395 = vmatpush1.msra.mxu0 0.0
        %3396 = vmatprep.subr.mxu0 0.0
        %3397 = vmatpush1.msra.mxu0 0.0
        %3398 = vmatprep.subr.mxu0 0.0
        %3399 = vmatpush1.msra.mxu0 0.0
        %3400 = vmatprep.subr.mxu0 0.0
        %3401 = vmatpush1.msra.mxu0 0.0
        %3402 = vmatprep.subr.mxu0 0.0
        %3403 = vmatpush1.msra.mxu0 0.0
        %3404 = vmatprep.subr.mxu0 0.0
        %3405 = vmatpush1.msra.mxu0 0.0
        %3406 = vmatprep.subr.mxu0 0.0
        %3407 = vmatpush1.msra.mxu0 0.0
        %3408 = vmatprep.subr.mxu0 0.0
        %3409 = vmatpush1.msra.mxu0 0.0
        %3410 = vmatprep.subr.mxu0 0.0
        %3411 = vmatpush1.msra.mxu0 0.0
        %3412 = vmatprep.subr.mxu0 0.0
        %3413 = vmatpush1.msra.mxu0 0.0
        %3414 = vmatprep.subr.mxu0 0.0
        %3415 = vmatpush1.msra.mxu0 0.0
        %3416 = vmatprep.subr.mxu0 0.0
        %3417 = vmatpush1.msra.mxu0 0.0
        %3418 = vmatprep.subr.mxu0 0.0
        %3419 = vmatpush1.msra.mxu0 0.0
        %3420 = vmatprep.subr.mxu0 0.0
        %3421 = vmatpush1.msra.mxu0 0.0
        %3422 = vmatprep.subr.mxu0 0.0
        %3423 = vmatpush1.msra.mxu0 0.0
        %3424 = vmatprep.subr.mxu0 0.0
        %3425 = vmatpush1.msra.mxu0 0.0
        %3426 = vmatprep.subr.mxu0 0.0
        %3427 = vmatpush1.msra.mxu0 0.0
        %3428 = vmatprep.subr.mxu0 0.0
        %3429 = vmatpush1.msra.mxu0 0.0
        %3430 = vmatprep.subr.mxu0 0.0
        %3431 = vmatpush1.msra.mxu0 0.0
        %3432 = vmatprep.subr.mxu0 0.0
        %3433 = vmatpush1.msra.mxu0 0.0
        %3434 = vmatprep.subr.mxu0 0.0
        %3435 = vmatpush1.msra.mxu0 0.0
        %3436 = vmatprep.subr.mxu0 0.0
        %3437 = vmatpush1.msra.mxu0 0.0
        %3438 = vmatprep.mubr.f32.mxu0 0.0
        %3439 = vmatmul.mubr.f32.gmra.mrb[0].mxu0 %v3372
        %v3440 = vpop.f32.mrb[0].mxu0
        %v3441 = vadd.f32 0.0, %v3440
        %v3442 = vpop.f32.mrb[0].mxu0
        %3443 = vdwg.mxu0
        %3445 = vrot.lane.b32.xlu0 %v3441, 124
        %v3446 = vpop.permute.xlu0 %3445
        %3447 = vrot.lane.b32.xlu0 %v3441, 120
        %v3448 = vpop.permute.xlu0 %3447
        %v3449 = vsel %vm2317, %v3441, 0
        %v3451 = vsel %vm2317, %v3448, 0
        %3453 = vmatprep.subr.mxu0 0.0
        %3454 = vmatpush1.xpose.msra.mxu0 %v3451
        %3455 = vmatprep.subr.mxu0 0.0
        %3456 = vmatpush1.xpose.msra.mxu0 0.0
        %3457 = vmatprep.subr.mxu0 0.0
        %3458 = vmatpush1.xpose.msra.mxu0 0.0
        %3459 = vmatprep.subr.mxu0 0.0
        %3460 = vmatpush1.xpose.msra.mxu0 0.0
        %3461 = vmatprep.subr.mxu0 0.0
        %3462 = vmatpush1.xpose.msra.mxu0 0.0
        %3463 = vmatprep.subr.mxu0 0.0
        %3464 = vmatpush1.xpose.msra.mxu0 0.0
        %3465 = vmatprep.subr.mxu0 0.0
        %3466 = vmatpush1.xpose.msra.mxu0 0.0
        %3467 = vmatprep.subr.mxu0 0.0
        %3468 = vmatpush1.xpose.msra.mxu0 0.0
        %3469 = vmatprep.subr.mxu0 0.0
        %3470 = vmatpush1.xpose.msra.mxu0 0.0
        %3471 = vmatprep.subr.mxu0 0.0
        %3472 = vmatpush1.xpose.msra.mxu0 0.0
        %3473 = vmatprep.subr.mxu0 0.0
        %3474 = vmatpush1.xpose.msra.mxu0 0.0
        %3475 = vmatprep.subr.mxu0 0.0
        %3476 = vmatpush1.xpose.msra.mxu0 0.0
        %3477 = vmatprep.subr.mxu0 0.0
        %3478 = vmatpush1.xpose.msra.mxu0 0.0
        %3479 = vmatprep.subr.mxu0 0.0
        %3480 = vmatpush1.xpose.msra.mxu0 0.0
        %3481 = vmatprep.subr.mxu0 0.0
        %3482 = vmatpush1.xpose.msra.mxu0 0.0
        %3483 = vmatprep.subr.mxu0 0.0
        %3484 = vmatpush1.xpose.msra.mxu0 0.0
        %3485 = vmatprep.subr.mxu0 0.0
        %3486 = vmatpush1.xpose.msra.mxu0 0.0
        %3487 = vmatprep.subr.mxu0 0.0
        %3488 = vmatpush1.xpose.msra.mxu0 0.0
        %3489 = vmatprep.subr.mxu0 0.0
        %3490 = vmatpush1.xpose.msra.mxu0 0.0
        %3491 = vmatprep.subr.mxu0 0.0
        %3492 = vmatpush1.xpose.msra.mxu0 0.0
        %3493 = vmatprep.subr.mxu0 0.0
        %3494 = vmatpush1.xpose.msra.mxu0 0.0
        %3495 = vmatprep.subr.mxu0 0.0
        %3496 = vmatpush1.xpose.msra.mxu0 0.0
        %3497 = vmatprep.subr.mxu0 0.0
        %3498 = vmatpush1.xpose.msra.mxu0 0.0
        %3499 = vmatprep.subr.mxu0 0.0
        %3500 = vmatpush1.xpose.msra.mxu0 0.0
        %3501 = vmatprep.subr.mxu0 0.0
        %3502 = vmatpush1.xpose.msra.mxu0 0.0
        %3503 = vmatprep.subr.mxu0 0.0
        %3504 = vmatpush1.xpose.msra.mxu0 0.0
        %3505 = vmatprep.subr.mxu0 0.0
        %3506 = vmatpush1.xpose.msra.mxu0 0.0
        %3507 = vmatprep.subr.mxu0 0.0
        %3508 = vmatpush1.xpose.msra.mxu0 0.0
        %3509 = vmatprep.subr.mxu0 0.0
        %3510 = vmatpush1.xpose.msra.mxu0 0.0
        %3511 = vmatprep.subr.mxu0 0.0
        %3512 = vmatpush1.xpose.msra.mxu0 0.0
        %3513 = vmatprep.subr.mxu0 0.0
        %3514 = vmatpush1.xpose.msra.mxu0 0.0
        %3515 = vmatprep.subr.mxu0 0.0
        %3516 = vmatpush1.xpose.msra.mxu0 0.0
        %3517 = vmatprep.mubr.f32.mxu0 0.0
        %3518 = vmatmul.mubr.f32.gmra.mrb[0].mxu0 %v3449
        %v3519 = vpop.f32.mrb[0].mxu0
        %v3520 = vadd.f32 0.0, %v3519
        %v3521 = vpop.f32.mrb[0].mxu0
        %3522 = vdwg.mxu0
        %3523 = vrot.lane.b32.xlu0 %v3446, 120
        %v3524 = vpop.permute.xlu0 %3523
        %v3525 = vsel %vm2317, %v3446, 0
        %v3527 = vsel %vm2317, %v3524, 0
        %3529 = vmatprep.subr.mxu0 0.0
        %3530 = vmatpush1.xpose.msra.mxu0 %v3527
        %3531 = vmatprep.subr.mxu0 0.0
        %3532 = vmatpush1.xpose.msra.mxu0 0.0
        %3533 = vmatprep.subr.mxu0 0.0
        %3534 = vmatpush1.xpose.msra.mxu0 0.0
        %3535 = vmatprep.subr.mxu0 0.0
        %3536 = vmatpush1.xpose.msra.mxu0 0.0
        %3537 = vmatprep.subr.mxu0 0.0
        %3538 = vmatpush1.xpose.msra.mxu0 0.0
        %3539 = vmatprep.subr.mxu0 0.0
        %3540 = vmatpush1.xpose.msra.mxu0 0.0
        %3541 = vmatprep.subr.mxu0 0.0
        %3542 = vmatpush1.xpose.msra.mxu0 0.0
        %3543 = vmatprep.subr.mxu0 0.0
        %3544 = vmatpush1.xpose.msra.mxu0 0.0
        %3545 = vmatprep.subr.mxu0 0.0
        %3546 = vmatpush1.xpose.msra.mxu0 0.0
        %3547 = vmatprep.subr.mxu0 0.0
        %3548 = vmatpush1.xpose.msra.mxu0 0.0
        %3549 = vmatprep.subr.mxu0 0.0
        %3550 = vmatpush1.xpose.msra.mxu0 0.0
        %3551 = vmatprep.subr.mxu0 0.0
        %3552 = vmatpush1.xpose.msra.mxu0 0.0
        %3553 = vmatprep.subr.mxu0 0.0
        %3554 = vmatpush1.xpose.msra.mxu0 0.0
        %3555 = vmatprep.subr.mxu0 0.0
        %3556 = vmatpush1.xpose.msra.mxu0 0.0
        %3557 = vmatprep.subr.mxu0 0.0
        %3558 = vmatpush1.xpose.msra.mxu0 0.0
        %3559 = vmatprep.subr.mxu0 0.0
        %3560 = vmatpush1.xpose.msra.mxu0 0.0
        %3561 = vmatprep.subr.mxu0 0.0
        %3562 = vmatpush1.xpose.msra.mxu0 0.0
        %3563 = vmatprep.subr.mxu0 0.0
        %3564 = vmatpush1.xpose.msra.mxu0 0.0
        %3565 = vmatprep.subr.mxu0 0.0
        %3566 = vmatpush1.xpose.msra.mxu0 0.0
        %3567 = vmatprep.subr.mxu0 0.0
        %3568 = vmatpush1.xpose.msra.mxu0 0.0
        %3569 = vmatprep.subr.mxu0 0.0
        %3570 = vmatpush1.xpose.msra.mxu0 0.0
        %3571 = vmatprep.subr.mxu0 0.0
        %3572 = vmatpush1.xpose.msra.mxu0 0.0
        %3573 = vmatprep.subr.mxu0 0.0
        %3574 = vmatpush1.xpose.msra.mxu0 0.0
        %3575 = vmatprep.subr.mxu0 0.0
        %3576 = vmatpush1.xpose.msra.mxu0 0.0
        %3577 = vmatprep.subr.mxu0 0.0
        %3578 = vmatpush1.xpose.msra.mxu0 0.0
        %3579 = vmatprep.subr.mxu0 0.0
        %3580 = vmatpush1.xpose.msra.mxu0 0.0
        %3581 = vmatprep.subr.mxu0 0.0
        %3582 = vmatpush1.xpose.msra.mxu0 0.0
        %3583 = vmatprep.subr.mxu0 0.0
        %3584 = vmatpush1.xpose.msra.mxu0 0.0
        %3585 = vmatprep.subr.mxu0 0.0
        %3586 = vmatpush1.xpose.msra.mxu0 0.0
        %3587 = vmatprep.subr.mxu0 0.0
        %3588 = vmatpush1.xpose.msra.mxu0 0.0
        %3589 = vmatprep.subr.mxu0 0.0
        %3590 = vmatpush1.xpose.msra.mxu0 0.0
        %3591 = vmatprep.subr.mxu0 0.0
        %3592 = vmatpush1.xpose.msra.mxu0 0.0
        %3593 = vmatprep.mubr.f32.mxu0 0.0
        %3594 = vmatmul.mubr.f32.gmra.mrb[0].mxu0 %v3525
        %v3595 = vpop.f32.mrb[0].mxu0
        %v3596 = vadd.f32 0.0, %v3595
        %v3597 = vpop.f32.mrb[0].mxu0
        %3598 = vdwg.mxu0
        %v3599 = vmul.f32 %v3520, 0.5
        %v3600 = vmul.f32 %v3596, 0.5
        %v3601 = vsel %vm506, %v3599, -inf
        %3602 = vmax.xlane.f32.xlu0 %v3601
        %v3603 = vpop.xlane.xlu0 %3602
        %v3604 = vsel %vm506, %v3600, -inf
        %3605 = vmax.xlane.f32.xlu0 %v3604
        %v3606 = vpop.xlane.xlu0 %3605
        %v3607 = vsub.f32 %v3599, %v3603
        %v3608 = vsub.f32 %v3600, %v3606
        %v3609 = vmul.f32 %v3607, 1.442695
        %v3610 = vpow.pop %v3609
        %v3611 = vmul.f32 %v3608, 1.442695
        %v3612 = vpow.pop %v3611
        %v3613 = vsel %vm506, %v3610, 0.0
        %3614 = vadd.xlane.f32.xlu0 %v3613
        %v3615 = vpop.xlane.xlu0 %3614
        %v3616 = vsel %vm506, %v3612, 0.0
        %3617 = vadd.xlane.f32.xlu0 %v3616
        %v3618 = vpop.xlane.xlu0 %3617
        %v3619 = vrcp.pop %v3615
        %v3620 = vrcp.pop %v3618
        %v3621 = vmul.f32 %v3610, %v3619
        %v3622 = vmul.f32 %v3612, %v3620
        %3623 = vrot.lane.b32.xlu0 %v3441, 112
        %v3624 = vpop.permute.xlu0 %3623
        %v3627 = vsel %vm506, %v3621, 0
        %3629 = vmatprep.subr.mxu0 0.0
        %3630 = vmatpush1.msra.mxu0 %v3624
        %3631 = vmatprep.subr.mxu0 0.0
        %3632 = vmatpush1.msra.mxu0 0.0
        %3633 = vmatprep.subr.mxu0 0.0
        %3634 = vmatpush1.msra.mxu0 0.0
        %3635 = vmatprep.subr.mxu0 0.0
        %3636 = vmatpush1.msra.mxu0 0.0
        %3637 = vmatprep.subr.mxu0 0.0
        %3638 = vmatpush1.msra.mxu0 0.0
        %3639 = vmatprep.subr.mxu0 0.0
        %3640 = vmatpush1.msra.mxu0 0.0
        %3641 = vmatprep.subr.mxu0 0.0
        %3642 = vmatpush1.msra.mxu0 0.0
        %3643 = vmatprep.subr.mxu0 0.0
        %3644 = vmatpush1.msra.mxu0 0.0
        %3645 = vmatprep.subr.mxu0 0.0
        %3646 = vmatpush1.msra.mxu0 0.0
        %3647 = vmatprep.subr.mxu0 0.0
        %3648 = vmatpush1.msra.mxu0 0.0
        %3649 = vmatprep.subr.mxu0 0.0
        %3650 = vmatpush1.msra.mxu0 0.0
        %3651 = vmatprep.subr.mxu0 0.0
        %3652 = vmatpush1.msra.mxu0 0.0
        %3653 = vmatprep.subr.mxu0 0.0
        %3654 = vmatpush1.msra.mxu0 0.0
        %3655 = vmatprep.subr.mxu0 0.0
        %3656 = vmatpush1.msra.mxu0 0.0
        %3657 = vmatprep.subr.mxu0 0.0
        %3658 = vmatpush1.msra.mxu0 0.0
        %3659 = vmatprep.subr.mxu0 0.0
        %3660 = vmatpush1.msra.mxu0 0.0
        %3661 = vmatprep.subr.mxu0 0.0
        %3662 = vmatpush1.msra.mxu0 0.0
        %3663 = vmatprep.subr.mxu0 0.0
        %3664 = vmatpush1.msra.mxu0 0.0
        %3665 = vmatprep.subr.mxu0 0.0
        %3666 = vmatpush1.msra.mxu0 0.0
        %3667 = vmatprep.subr.mxu0 0.0
        %3668 = vmatpush1.msra.mxu0 0.0
        %3669 = vmatprep.subr.mxu0 0.0
        %3670 = vmatpush1.msra.mxu0 0.0
        %3671 = vmatprep.subr.mxu0 0.0
        %3672 = vmatpush1.msra.mxu0 0.0
        %3673 = vmatprep.subr.mxu0 0.0
        %3674 = vmatpush1.msra.mxu0 0.0
        %3675 = vmatprep.subr.mxu0 0.0
        %3676 = vmatpush1.msra.mxu0 0.0
        %3677 = vmatprep.subr.mxu0 0.0
        %3678 = vmatpush1.msra.mxu0 0.0
        %3679 = vmatprep.subr.mxu0 0.0
        %3680 = vmatpush1.msra.mxu0 0.0
        %3681 = vmatprep.subr.mxu0 0.0
        %3682 = vmatpush1.msra.mxu0 0.0
        %3683 = vmatprep.subr.mxu0 0.0
        %3684 = vmatpush1.msra.mxu0 0.0
        %3685 = vmatprep.subr.mxu0 0.0
        %3686 = vmatpush1.msra.mxu0 0.0
        %3687 = vmatprep.subr.mxu0 0.0
        %3688 = vmatpush1.msra.mxu0 0.0
        %3689 = vmatprep.subr.mxu0 0.0
        %3690 = vmatpush1.msra.mxu0 0.0
        %3691 = vmatprep.subr.mxu0 0.0
        %3692 = vmatpush1.msra.mxu0 0.0
        %3693 = vmatprep.mubr.f32.mxu0 0.0
        %3694 = vmatmul.mubr.f32.gmra.mrb[0].mxu0 %v3627
        %v3695 = vpop.f32.mrb[0].mxu0
        %v3696 = vadd.f32 0.0, %v3695
        %v3697 = vpop.f32.mrb[0].mxu0
        %3698 = vdwg.mxu0
        %3699 = vrot.lane.b32.xlu0 %v3446, 112
        %v3700 = vpop.permute.xlu0 %3699
        %v3703 = vsel %vm506, %v3622, 0
        %3705 = vmatprep.subr.mxu0 0.0
        %3706 = vmatpush1.msra.mxu0 %v3700
        %3707 = vmatprep.subr.mxu0 0.0
        %3708 = vmatpush1.msra.mxu0 0.0
        %3709 = vmatprep.subr.mxu0 0.0
        %3710 = vmatpush1.msra.mxu0 0.0
        %3711 = vmatprep.subr.mxu0 0.0
        %3712 = vmatpush1.msra.mxu0 0.0
        %3713 = vmatprep.subr.mxu0 0.0
        %3714 = vmatpush1.msra.mxu0 0.0
        %3715 = vmatprep.subr.mxu0 0.0
        %3716 = vmatpush1.msra.mxu0 0.0
        %3717 = vmatprep.subr.mxu0 0.0
        %3718 = vmatpush1.msra.mxu0 0.0
        %3719 = vmatprep.subr.mxu0 0.0
        %3720 = vmatpush1.msra.mxu0 0.0
        %3721 = vmatprep.subr.mxu0 0.0
        %3722 = vmatpush1.msra.mxu0 0.0
        %3723 = vmatprep.subr.mxu0 0.0
        %3724 = vmatpush1.msra.mxu0 0.0
        %3725 = vmatprep.subr.mxu0 0.0
        %3726 = vmatpush1.msra.mxu0 0.0
        %3727 = vmatprep.subr.mxu0 0.0
        %3728 = vmatpush1.msra.mxu0 0.0
        %3729 = vmatprep.subr.mxu0 0.0
        %3730 = vmatpush1.msra.mxu0 0.0
        %3731 = vmatprep.subr.mxu0 0.0
        %3732 = vmatpush1.msra.mxu0 0.0
        %3733 = vmatprep.subr.mxu0 0.0
        %3734 = vmatpush1.msra.mxu0 0.0
        %3735 = vmatprep.subr.mxu0 0.0
        %3736 = vmatpush1.msra.mxu0 0.0
        %3737 = vmatprep.subr.mxu0 0.0
        %3738 = vmatpush1.msra.mxu0 0.0
        %3739 = vmatprep.subr.mxu0 0.0
        %3740 = vmatpush1.msra.mxu0 0.0
        %3741 = vmatprep.subr.mxu0 0.0
        %3742 = vmatpush1.msra.mxu0 0.0
        %3743 = vmatprep.subr.mxu0 0.0
        %3744 = vmatpush1.msra.mxu0 0.0
        %3745 = vmatprep.subr.mxu0 0.0
        %3746 = vmatpush1.msra.mxu0 0.0
        %3747 = vmatprep.subr.mxu0 0.0
        %3748 = vmatpush1.msra.mxu0 0.0
        %3749 = vmatprep.subr.mxu0 0.0
        %3750 = vmatpush1.msra.mxu0 0.0
        %3751 = vmatprep.subr.mxu0 0.0
        %3752 = vmatpush1.msra.mxu0 0.0
        %3753 = vmatprep.subr.mxu0 0.0
        %3754 = vmatpush1.msra.mxu0 0.0
        %3755 = vmatprep.subr.mxu0 0.0
        %3756 = vmatpush1.msra.mxu0 0.0
        %3757 = vmatprep.subr.mxu0 0.0
        %3758 = vmatpush1.msra.mxu0 0.0
        %3759 = vmatprep.subr.mxu0 0.0
        %3760 = vmatpush1.msra.mxu0 0.0
        %3761 = vmatprep.subr.mxu0 0.0
        %3762 = vmatpush1.msra.mxu0 0.0
        %3763 = vmatprep.subr.mxu0 0.0
        %3764 = vmatpush1.msra.mxu0 0.0
        %3765 = vmatprep.subr.mxu0 0.0
        %3766 = vmatpush1.msra.mxu0 0.0
        %3767 = vmatprep.subr.mxu0 0.0
        %3768 = vmatpush1.msra.mxu0 0.0
        %3769 = vmatprep.mubr.f32.mxu0 0.0
        %3770 = vmatmul.mubr.f32.gmra.mrb[0].mxu0 %v3703
        %v3771 = vpop.f32.mrb[0].mxu0
        %v3772 = vadd.f32 0.0, %v3771
        %v3773 = vpop.f32.mrb[0].mxu0
        %3774 = vdwg.mxu0
        %3776 = vrot.lane.b32.xlu0 %v3772, 4
        %v3777 = vpop.permute.xlu0 %3776
        %v3779 = vsel %vm2317, %v3696, %v3777
        %v3780 = vld [vmem:[#allocation4 + $0x230] sm:$0xff]
        %v3782 = vsel %vm506, %v3779, 0
        %3784 = vmatprep.subr.mxu0 0.0
        %3785 = vmatpush1.msra.mxu0 %v3780
        %3786 = vmatprep.subr.mxu0 0.0
        %3787 = vmatpush1.msra.mxu0 0.0
        %3788 = vmatprep.subr.mxu0 0.0
        %3789 = vmatpush1.msra.mxu0 0.0
        %3790 = vmatprep.subr.mxu0 0.0
        %3791 = vmatpush1.msra.mxu0 0.0
        %3792 = vmatprep.subr.mxu0 0.0
        %3793 = vmatpush1.msra.mxu0 0.0
        %3794 = vmatprep.subr.mxu0 0.0
        %3795 = vmatpush1.msra.mxu0 0.0
        %3796 = vmatprep.subr.mxu0 0.0
        %3797 = vmatpush1.msra.mxu0 0.0
        %3798 = vmatprep.subr.mxu0 0.0
        %3799 = vmatpush1.msra.mxu0 0.0
        %3800 = vmatprep.subr.mxu0 0.0
        %3801 = vmatpush1.msra.mxu0 0.0
        %3802 = vmatprep.subr.mxu0 0.0
        %3803 = vmatpush1.msra.mxu0 0.0
        %3804 = vmatprep.subr.mxu0 0.0
        %3805 = vmatpush1.msra.mxu0 0.0
        %3806 = vmatprep.subr.mxu0 0.0
        %3807 = vmatpush1.msra.mxu0 0.0
        %3808 = vmatprep.subr.mxu0 0.0
        %3809 = vmatpush1.msra.mxu0 0.0
        %3810 = vmatprep.subr.mxu0 0.0
        %3811 = vmatpush1.msra.mxu0 0.0
        %3812 = vmatprep.subr.mxu0 0.0
        %3813 = vmatpush1.msra.mxu0 0.0
        %3814 = vmatprep.subr.mxu0 0.0
        %3815 = vmatpush1.msra.mxu0 0.0
        %3816 = vmatprep.subr.mxu0 0.0
        %3817 = vmatpush1.msra.mxu0 0.0
        %3818 = vmatprep.subr.mxu0 0.0
        %3819 = vmatpush1.msra.mxu0 0.0
        %3820 = vmatprep.subr.mxu0 0.0
        %3821 = vmatpush1.msra.mxu0 0.0
        %3822 = vmatprep.subr.mxu0 0.0
        %3823 = vmatpush1.msra.mxu0 0.0
        %3824 = vmatprep.subr.mxu0 0.0
        %3825 = vmatpush1.msra.mxu0 0.0
        %3826 = vmatprep.subr.mxu0 0.0
        %3827 = vmatpush1.msra.mxu0 0.0
        %3828 = vmatprep.subr.mxu0 0.0
        %3829 = vmatpush1.msra.mxu0 0.0
        %3830 = vmatprep.subr.mxu0 0.0
        %3831 = vmatpush1.msra.mxu0 0.0
        %3832 = vmatprep.subr.mxu0 0.0
        %3833 = vmatpush1.msra.mxu0 0.0
        %3834 = vmatprep.subr.mxu0 0.0
        %3835 = vmatpush1.msra.mxu0 0.0
        %3836 = vmatprep.subr.mxu0 0.0
        %3837 = vmatpush1.msra.mxu0 0.0
        %3838 = vmatprep.subr.mxu0 0.0
        %3839 = vmatpush1.msra.mxu0 0.0
        %3840 = vmatprep.subr.mxu0 0.0
        %3841 = vmatpush1.msra.mxu0 0.0
        %3842 = vmatprep.subr.mxu0 0.0
        %3843 = vmatpush1.msra.mxu0 0.0
        %3844 = vmatprep.subr.mxu0 0.0
        %3845 = vmatpush1.msra.mxu0 0.0
        %3846 = vmatprep.subr.mxu0 0.0
        %3847 = vmatpush1.msra.mxu0 0.0
        %3848 = vmatprep.mubr.f32.mxu0 0.0
        %3849 = vmatmul.mubr.f32.gmra.mrb[0].mxu0 %v3782
        %v3850 = vpop.f32.mrb[0].mxu0
        %v3851 = vadd.f32 0.0, %v3850
        %v3852 = vpop.f32.mrb[0].mxu0
        %3853 = vdwg.mxu0
        %v3854 = vadd.f32 %v3341, %v3851
        %v3855 = vld [vmem:[#allocation6 + $0x1c] sm:$0x1]
        %v3856 = vlaneseq
        %v3857 = vshrl.u32 %v3856, 7
        %v3858 = vsub.s32 0, %v3857
        %v3859 = vrot.slane %v3855, %v3858
        %v3860 = vadd.f32 %v3854, %v3859
        %v3861 = vld [vmem:[#allocation6 + $0x1d] sm:$0x1]
        %v3862 = vld [vmem:[#allocation6 + $0x1e] sm:$0x1]
        %v3863 = vsel %vm506, %v3860, 0.0
        %3864 = vadd.xlane.f32.xlu0 %v3863
        %v3865 = vpop.xlane.xlu0 %3864
        %v3866 = vmul.f32 %v3865, %v3349
        %v3867 = vsub.f32 %v3860, %v3866
        %v3868 = vmul.f32 %v3867, %v3867
        %v3869 = vsel %vm506, %v3868, 0.0
        %3870 = vadd.xlane.f32.xlu0 %v3869
        %v3871 = vpop.xlane.xlu0 %3870
        %v3872 = vmul.f32 %v3871, %v3349
        %v3873 = vadd.f32 %v3872, 1e-05
        %v3874 = vrsqrt.pop %v3873
        %v3875 = vmul.f32 %v3867, %v3874
        %v3876 = vlaneseq
        %v3877 = vshrl.u32 %v3876, 7
        %v3878 = vsub.s32 0, %v3877
        %v3879 = vrot.slane %v3861, %v3878
        %v3880 = vmul.f32 %v3875, %v3879
        %v3881 = vlaneseq
        %v3882 = vshrl.u32 %v3881, 7
        %v3883 = vsub.s32 0, %v3882
        %v3884 = vrot.slane %v3862, %v3883
        %v3885 = vadd.f32 %v3880, %v3884
        %v3886 = vld [vmem:[#allocation4 + $0x238] sm:$0xff]
        %v3887 = vld [vmem:[#allocation6 + $0x1f] sm:$0x1]
        %v3888 = vlaneseq
        %v3889 = vshrl.u32 %v3888, 7
        %v3890 = vsub.s32 0, %v3889
        %v3891 = vrot.slane %v3887, %v3890
        %v3893 = vsel %vm506, %v3885, 0
        %3895 = vmatprep.subr.mxu0 0.0
        %3896 = vmatpush1.msra.mxu0 %v3886
        %3897 = vmatprep.subr.mxu0 0.0
        %3898 = vmatpush1.msra.mxu0 0.0
        %3899 = vmatprep.subr.mxu0 0.0
        %3900 = vmatpush1.msra.mxu0 0.0
        %3901 = vmatprep.subr.mxu0 0.0
        %3902 = vmatpush1.msra.mxu0 0.0
        %3903 = vmatprep.subr.mxu0 0.0
        %3904 = vmatpush1.msra.mxu0 0.0
        %3905 = vmatprep.subr.mxu0 0.0
        %3906 = vmatpush1.msra.mxu0 0.0
        %3907 = vmatprep.subr.mxu0 0.0
        %3908 = vmatpush1.msra.mxu0 0.0
        %3909 = vmatprep.subr.mxu0 0.0
        %3910 = vmatpush1.msra.mxu0 0.0
        %3911 = vmatprep.subr.mxu0 0.0
        %3912 = vmatpush1.msra.mxu0 0.0
        %3913 = vmatprep.subr.mxu0 0.0
        %3914 = vmatpush1.msra.mxu0 0.0
        %3915 = vmatprep.subr.mxu0 0.0
        %3916 = vmatpush1.msra.mxu0 0.0
        %3917 = vmatprep.subr.mxu0 0.0
        %3918 = vmatpush1.msra.mxu0 0.0
        %3919 = vmatprep.subr.mxu0 0.0
        %3920 = vmatpush1.msra.mxu0 0.0
        %3921 = vmatprep.subr.mxu0 0.0
        %3922 = vmatpush1.msra.mxu0 0.0
        %3923 = vmatprep.subr.mxu0 0.0
        %3924 = vmatpush1.msra.mxu0 0.0
        %3925 = vmatprep.subr.mxu0 0.0
        %3926 = vmatpush1.msra.mxu0 0.0
        %3927 = vmatprep.subr.mxu0 0.0
        %3928 = vmatpush1.msra.mxu0 0.0
        %3929 = vmatprep.subr.mxu0 0.0
        %3930 = vmatpush1.msra.mxu0 0.0
        %3931 = vmatprep.subr.mxu0 0.0
        %3932 = vmatpush1.msra.mxu0 0.0
        %3933 = vmatprep.subr.mxu0 0.0
        %3934 = vmatpush1.msra.mxu0 0.0
        %3935 = vmatprep.subr.mxu0 0.0
        %3936 = vmatpush1.msra.mxu0 0.0
        %3937 = vmatprep.subr.mxu0 0.0
        %3938 = vmatpush1.msra.mxu0 0.0
        %3939 = vmatprep.subr.mxu0 0.0
        %3940 = vmatpush1.msra.mxu0 0.0
        %3941 = vmatprep.subr.mxu0 0.0
        %3942 = vmatpush1.msra.mxu0 0.0
        %3943 = vmatprep.subr.mxu0 0.0
        %3944 = vmatpush1.msra.mxu0 0.0
        %3945 = vmatprep.subr.mxu0 0.0
        %3946 = vmatpush1.msra.mxu0 0.0
        %3947 = vmatprep.subr.mxu0 0.0
        %3948 = vmatpush1.msra.mxu0 0.0
        %3949 = vmatprep.subr.mxu0 0.0
        %3950 = vmatpush1.msra.mxu0 0.0
        %3951 = vmatprep.subr.mxu0 0.0
        %3952 = vmatpush1.msra.mxu0 0.0
        %3953 = vmatprep.subr.mxu0 0.0
        %3954 = vmatpush1.msra.mxu0 0.0
        %3955 = vmatprep.subr.mxu0 0.0
        %3956 = vmatpush1.msra.mxu0 0.0
        %3957 = vmatprep.subr.mxu0 0.0
        %3958 = vmatpush1.msra.mxu0 0.0
        %3959 = vmatprep.mubr.f32.mxu0 0.0
        %3960 = vmatmul.mubr.f32.gmra.mrb[0].mxu0 %v3893
        %v3961 = vpop.f32.mrb[0].mxu0
        %v3962 = vadd.f32 %v3891, %v3961
        %v3963 = vpop.f32.mrb[0].mxu0
        %3964 = vdwg.mxu0
        %v3965 = vmax.f32 %v3962, 0.0
        %v3966 = vld [vmem:[#allocation4 + $0x240] sm:$0xff]
        %v3967 = vld [vmem:[#allocation4 + $0x248] sm:$0xff]
        %v3968 = vld [vmem:[#allocation4 + $0x250] sm:$0xff]
        %v3969 = vld [vmem:[#allocation4 + $0x258] sm:$0xff]
        %v3970 = vld [vmem:[#allocation6 + $0x20] sm:$0x1]
        %v3971 = vlaneseq
        %v3972 = vshrl.u32 %v3971, 7
        %v3973 = vsub.s32 0, %v3972
        %v3974 = vrot.slane %v3970, %v3973
        %v3976 = vsel %vm1058, %v3965, 0
        %3978 = vmatprep.subr.mxu0 0.0
        %3979 = vmatpush1.msra.mxu0 %v3966
        %3980 = vmatprep.subr.mxu0 0.0
        %3981 = vmatpush1.msra.mxu0 %v3967
        %3982 = vmatprep.subr.mxu0 0.0
        %3983 = vmatpush1.msra.mxu0 %v3968
        %3984 = vmatprep.subr.mxu0 0.0
        %3985 = vmatpush1.msra.mxu0 %v3969
        %3986 = vmatprep.subr.mxu0 0.0
        %3987 = vmatpush1.msra.mxu0 0.0
        %3988 = vmatprep.subr.mxu0 0.0
        %3989 = vmatpush1.msra.mxu0 0.0
        %3990 = vmatprep.subr.mxu0 0.0
        %3991 = vmatpush1.msra.mxu0 0.0
        %3992 = vmatprep.subr.mxu0 0.0
        %3993 = vmatpush1.msra.mxu0 0.0
        %3994 = vmatprep.subr.mxu0 0.0
        %3995 = vmatpush1.msra.mxu0 0.0
        %3996 = vmatprep.subr.mxu0 0.0
        %3997 = vmatpush1.msra.mxu0 0.0
        %3998 = vmatprep.subr.mxu0 0.0
        %3999 = vmatpush1.msra.mxu0 0.0
        %4000 = vmatprep.subr.mxu0 0.0
        %4001 = vmatpush1.msra.mxu0 0.0
        %4002 = vmatprep.subr.mxu0 0.0
        %4003 = vmatpush1.msra.mxu0 0.0
        %4004 = vmatprep.subr.mxu0 0.0
        %4005 = vmatpush1.msra.mxu0 0.0
        %4006 = vmatprep.subr.mxu0 0.0
        %4007 = vmatpush1.msra.mxu0 0.0
        %4008 = vmatprep.subr.mxu0 0.0
        %4009 = vmatpush1.msra.mxu0 0.0
        %4010 = vmatprep.subr.mxu0 0.0
        %4011 = vmatpush1.msra.mxu0 0.0
        %4012 = vmatprep.subr.mxu0 0.0
        %4013 = vmatpush1.msra.mxu0 0.0
        %4014 = vmatprep.subr.mxu0 0.0
        %4015 = vmatpush1.msra.mxu0 0.0
        %4016 = vmatprep.subr.mxu0 0.0
        %4017 = vmatpush1.msra.mxu0 0.0
        %4018 = vmatprep.subr.mxu0 0.0
        %4019 = vmatpush1.msra.mxu0 0.0
        %4020 = vmatprep.subr.mxu0 0.0
        %4021 = vmatpush1.msra.mxu0 0.0
        %4022 = vmatprep.subr.mxu0 0.0
        %4023 = vmatpush1.msra.mxu0 0.0
        %4024 = vmatprep.subr.mxu0 0.0
        %4025 = vmatpush1.msra.mxu0 0.0
        %4026 = vmatprep.subr.mxu0 0.0
        %4027 = vmatpush1.msra.mxu0 0.0
        %4028 = vmatprep.subr.mxu0 0.0
        %4029 = vmatpush1.msra.mxu0 0.0
        %4030 = vmatprep.subr.mxu0 0.0
        %4031 = vmatpush1.msra.mxu0 0.0
        %4032 = vmatprep.subr.mxu0 0.0
        %4033 = vmatpush1.msra.mxu0 0.0
        %4034 = vmatprep.subr.mxu0 0.0
        %4035 = vmatpush1.msra.mxu0 0.0
        %4036 = vmatprep.subr.mxu0 0.0
        %4037 = vmatpush1.msra.mxu0 0.0
        %4038 = vmatprep.subr.mxu0 0.0
        %4039 = vmatpush1.msra.mxu0 0.0
        %4040 = vmatprep.subr.mxu0 0.0
        %4041 = vmatpush1.msra.mxu0 0.0
        %4042 = vmatprep.mubr.f32.mxu0 0.0
        %4043 = vmatmul.mubr.f32.gmra.mrb[0].mxu0 %v3976
        %v4044 = vpop.f32.mrb[0].mxu0
        %v4045 = vadd.f32 %v3974, %v4044
        %v4046 = vpop.f32.mrb[0].mxu0
        %4047 = vdwg.mxu0
        %v4048 = vadd.f32 %v3860, %v4045
        %v4049 = vld [vmem:[#allocation4 + $0x260] sm:$0xff]
        %v4050 = vld [vmem:[#allocation6 + $0x21] sm:$0x1]
        %v4051 = vlaneseq
        %v4052 = vshrl.u32 %v4051, 7
        %v4053 = vsub.s32 0, %v4052
        %v4054 = vrot.slane %v4050, %v4053
        %v4056 = vsel %vm506, %v4048, 0
        %4058 = vmatprep.subr.mxu0 0.0
        %4059 = vmatpush1.msra.mxu0 %v4049
        %4060 = vmatprep.subr.mxu0 0.0
        %4061 = vmatpush1.msra.mxu0 0.0
        %4062 = vmatprep.subr.mxu0 0.0
        %4063 = vmatpush1.msra.mxu0 0.0
        %4064 = vmatprep.subr.mxu0 0.0
        %4065 = vmatpush1.msra.mxu0 0.0
        %4066 = vmatprep.subr.mxu0 0.0
        %4067 = vmatpush1.msra.mxu0 0.0
        %4068 = vmatprep.subr.mxu0 0.0
        %4069 = vmatpush1.msra.mxu0 0.0
        %4070 = vmatprep.subr.mxu0 0.0
        %4071 = vmatpush1.msra.mxu0 0.0
        %4072 = vmatprep.subr.mxu0 0.0
        %4073 = vmatpush1.msra.mxu0 0.0
        %4074 = vmatprep.subr.mxu0 0.0
        %4075 = vmatpush1.msra.mxu0 0.0
        %4076 = vmatprep.subr.mxu0 0.0
        %4077 = vmatpush1.msra.mxu0 0.0
        %4078 = vmatprep.subr.mxu0 0.0
        %4079 = vmatpush1.msra.mxu0 0.0
        %4080 = vmatprep.subr.mxu0 0.0
        %4081 = vmatpush1.msra.mxu0 0.0
        %4082 = vmatprep.subr.mxu0 0.0
        %4083 = vmatpush1.msra.mxu0 0.0
        %4084 = vmatprep.subr.mxu0 0.0
        %4085 = vmatpush1.msra.mxu0 0.0
        %4086 = vmatprep.subr.mxu0 0.0
        %4087 = vmatpush1.msra.mxu0 0.0
        %4088 = vmatprep.subr.mxu0 0.0
        %4089 = vmatpush1.msra.mxu0 0.0
        %4090 = vmatprep.subr.mxu0 0.0
        %4091 = vmatpush1.msra.mxu0 0.0
        %4092 = vmatprep.subr.mxu0 0.0
        %4093 = vmatpush1.msra.mxu0 0.0
        %4094 = vmatprep.subr.mxu0 0.0
        %4095 = vmatpush1.msra.mxu0 0.0
        %4096 = vmatprep.subr.mxu0 0.0
        %4097 = vmatpush1.msra.mxu0 0.0
        %4098 = vmatprep.subr.mxu0 0.0
        %4099 = vmatpush1.msra.mxu0 0.0
        %4100 = vmatprep.subr.mxu0 0.0
        %4101 = vmatpush1.msra.mxu0 0.0
        %4102 = vmatprep.subr.mxu0 0.0
        %4103 = vmatpush1.msra.mxu0 0.0
        %4104 = vmatprep.subr.mxu0 0.0
        %4105 = vmatpush1.msra.mxu0 0.0
        %4106 = vmatprep.subr.mxu0 0.0
        %4107 = vmatpush1.msra.mxu0 0.0
        %4108 = vmatprep.subr.mxu0 0.0
        %4109 = vmatpush1.msra.mxu0 0.0
        %4110 = vmatprep.subr.mxu0 0.0
        %4111 = vmatpush1.msra.mxu0 0.0
        %4112 = vmatprep.subr.mxu0 0.0
        %4113 = vmatpush1.msra.mxu0 0.0
        %4114 = vmatprep.subr.mxu0 0.0
        %4115 = vmatpush1.msra.mxu0 0.0
        %4116 = vmatprep.subr.mxu0 0.0
        %4117 = vmatpush1.msra.mxu0 0.0
        %4118 = vmatprep.subr.mxu0 0.0
        %4119 = vmatpush1.msra.mxu0 0.0
        %4120 = vmatprep.subr.mxu0 0.0
        %4121 = vmatpush1.msra.mxu0 0.0
        %4122 = vmatprep.mubr.f32.mxu0 0.0
        %4123 = vmatmul.mubr.f32.gmra.mrb[0].mxu0 %v4056
        %v4124 = vpop.f32.mrb[0].mxu0
        %v4125 = vadd.f32 %v4054, %v4124
        %v4126 = vpop.f32.mrb[0].mxu0
        %4127 = vdwg.mxu0
        %v4128 = vmax.f32 %v4125, 0.0
        %v4129 = vld [vmem:[#allocation6 + $0x22] sm:$0x1]
        %v4130 = vld [vmem:[#allocation6 + $0x23] sm:$0x1]
        %v4131 = vsel %vm1836, %v4128, 0.0
        %4132 = vadd.xlane.f32.xlu0 %v4131
        %v4133 = vpop.xlane.xlu0 %4132
        %v4134 = vmul.f32 %v4133, %v2212
        %v4135 = vsub.f32 %v4128, %v4134
        %v4136 = vmul.f32 %v4135, %v4135
        %v4137 = vsel %vm1836, %v4136, 0.0
        %4138 = vadd.xlane.f32.xlu0 %v4137
        %v4139 = vpop.xlane.xlu0 %4138
        %v4140 = vmul.f32 %v4139, %v2212
        %v4141 = vadd.f32 %v4140, 1e-05
        %v4142 = vrsqrt.pop %v4141
        %v4143 = vmul.f32 %v4135, %v4142
        %v4144 = vlaneseq
        %v4145 = vshrl.u32 %v4144, 7
        %v4146 = vsub.s32 0, %v4145
        %v4147 = vrot.slane %v4129, %v4146
        %v4148 = vmul.f32 %v4143, %v4147
        %v4149 = vlaneseq
        %v4150 = vshrl.u32 %v4149, 7
        %v4151 = vsub.s32 0, %v4150
        %v4152 = vrot.slane %v4130, %v4151
        %v4153 = vadd.f32 %v4148, %v4152
        %v4154 = vld [vmem:[#allocation4 + $0x268] sm:$0xff]
        %v4155 = vld [vmem:[#allocation4 + $0x270] sm:$0xff]
        %v4157 = vsel %vm1836, %v4153, 0
        %4159 = vmatprep.subr.mxu0 0.0
        %4160 = vmatpush1.msra.mxu0 %v4154
        %4161 = vmatprep.subr.mxu0 0.0
        %4162 = vmatpush1.msra.mxu0 %v4155
        %4163 = vmatprep.subr.mxu0 0.0
        %4164 = vmatpush1.msra.mxu0 0.0
        %4165 = vmatprep.subr.mxu0 0.0
        %4166 = vmatpush1.msra.mxu0 0.0
        %4167 = vmatprep.subr.mxu0 0.0
        %4168 = vmatpush1.msra.mxu0 0.0
        %4169 = vmatprep.subr.mxu0 0.0
        %4170 = vmatpush1.msra.mxu0 0.0
        %4171 = vmatprep.subr.mxu0 0.0
        %4172 = vmatpush1.msra.mxu0 0.0
        %4173 = vmatprep.subr.mxu0 0.0
        %4174 = vmatpush1.msra.mxu0 0.0
        %4175 = vmatprep.subr.mxu0 0.0
        %4176 = vmatpush1.msra.mxu0 0.0
        %4177 = vmatprep.subr.mxu0 0.0
        %4178 = vmatpush1.msra.mxu0 0.0
        %4179 = vmatprep.subr.mxu0 0.0
        %4180 = vmatpush1.msra.mxu0 0.0
        %4181 = vmatprep.subr.mxu0 0.0
        %4182 = vmatpush1.msra.mxu0 0.0
        %4183 = vmatprep.subr.mxu0 0.0
        %4184 = vmatpush1.msra.mxu0 0.0
        %4185 = vmatprep.subr.mxu0 0.0
        %4186 = vmatpush1.msra.mxu0 0.0
        %4187 = vmatprep.subr.mxu0 0.0
        %4188 = vmatpush1.msra.mxu0 0.0
        %4189 = vmatprep.subr.mxu0 0.0
        %4190 = vmatpush1.msra.mxu0 0.0
        %4191 = vmatprep.subr.mxu0 0.0
        %4192 = vmatpush1.msra.mxu0 0.0
        %4193 = vmatprep.subr.mxu0 0.0
        %4194 = vmatpush1.msra.mxu0 0.0
        %4195 = vmatprep.subr.mxu0 0.0
        %4196 = vmatpush1.msra.mxu0 0.0
        %4197 = vmatprep.subr.mxu0 0.0
        %4198 = vmatpush1.msra.mxu0 0.0
        %4199 = vmatprep.subr.mxu0 0.0
        %4200 = vmatpush1.msra.mxu0 0.0
        %4201 = vmatprep.subr.mxu0 0.0
        %4202 = vmatpush1.msra.mxu0 0.0
        %4203 = vmatprep.subr.mxu0 0.0
        %4204 = vmatpush1.msra.mxu0 0.0
        %4205 = vmatprep.subr.mxu0 0.0
        %4206 = vmatpush1.msra.mxu0 0.0
        %4207 = vmatprep.subr.mxu0 0.0
        %4208 = vmatpush1.msra.mxu0 0.0
        %4209 = vmatprep.subr.mxu0 0.0
        %4210 = vmatpush1.msra.mxu0 0.0
        %4211 = vmatprep.subr.mxu0 0.0
        %4212 = vmatpush1.msra.mxu0 0.0
        %4213 = vmatprep.subr.mxu0 0.0
        %4214 = vmatpush1.msra.mxu0 0.0
        %4215 = vmatprep.subr.mxu0 0.0
        %4216 = vmatpush1.msra.mxu0 0.0
        %4217 = vmatprep.subr.mxu0 0.0
        %4218 = vmatpush1.msra.mxu0 0.0
        %4219 = vmatprep.subr.mxu0 0.0
        %4220 = vmatpush1.msra.mxu0 0.0
        %4221 = vmatprep.subr.mxu0 0.0
        %4222 = vmatpush1.msra.mxu0 0.0
        %4223 = vmatprep.mubr.f32.mxu0 0.0
        %4224 = vmatmul.mubr.f32.gmra.mrb[0].mxu0 %v4157
        %v4225 = vpop.f32.mrb[0].mxu0
        %v4226 = vadd.f32 0.0, %v4225
        %v4227 = vpop.f32.mrb[0].mxu0
        %4228 = vdwg.mxu0
        %4230 = vrot.lane.b32.xlu0 %v4226, 124
        %v4231 = vpop.permute.xlu0 %4230
        %4232 = vrot.lane.b32.xlu0 %v4226, 120
        %v4233 = vpop.permute.xlu0 %4232
        %4234 = vrot.lane.b32.xlu0 %v4226, 116
        %v4235 = vpop.permute.xlu0 %4234
        %4236 = vrot.lane.b32.xlu0 %v4226, 112
        %v4237 = vpop.permute.xlu0 %4236
        %v4238 = vsel %vm2317, %v4226, 0
        %v4240 = vsel %vm2317, %v4237, 0
        %4242 = vmatprep.subr.mxu0 0.0
        %4243 = vmatpush1.xpose.msra.mxu0 %v4240
        %4244 = vmatprep.subr.mxu0 0.0
        %4245 = vmatpush1.xpose.msra.mxu0 0.0
        %4246 = vmatprep.subr.mxu0 0.0
        %4247 = vmatpush1.xpose.msra.mxu0 0.0
        %4248 = vmatprep.subr.mxu0 0.0
        %4249 = vmatpush1.xpose.msra.mxu0 0.0
        %4250 = vmatprep.subr.mxu0 0.0
        %4251 = vmatpush1.xpose.msra.mxu0 0.0
        %4252 = vmatprep.subr.mxu0 0.0
        %4253 = vmatpush1.xpose.msra.mxu0 0.0
        %4254 = vmatprep.subr.mxu0 0.0
        %4255 = vmatpush1.xpose.msra.mxu0 0.0
        %4256 = vmatprep.subr.mxu0 0.0
        %4257 = vmatpush1.xpose.msra.mxu0 0.0
        %4258 = vmatprep.subr.mxu0 0.0
        %4259 = vmatpush1.xpose.msra.mxu0 0.0
        %4260 = vmatprep.subr.mxu0 0.0
        %4261 = vmatpush1.xpose.msra.mxu0 0.0
        %4262 = vmatprep.subr.mxu0 0.0
        %4263 = vmatpush1.xpose.msra.mxu0 0.0
        %4264 = vmatprep.subr.mxu0 0.0
        %4265 = vmatpush1.xpose.msra.mxu0 0.0
        %4266 = vmatprep.subr.mxu0 0.0
        %4267 = vmatpush1.xpose.msra.mxu0 0.0
        %4268 = vmatprep.subr.mxu0 0.0
        %4269 = vmatpush1.xpose.msra.mxu0 0.0
        %4270 = vmatprep.subr.mxu0 0.0
        %4271 = vmatpush1.xpose.msra.mxu0 0.0
        %4272 = vmatprep.subr.mxu0 0.0
        %4273 = vmatpush1.xpose.msra.mxu0 0.0
        %4274 = vmatprep.subr.mxu0 0.0
        %4275 = vmatpush1.xpose.msra.mxu0 0.0
        %4276 = vmatprep.subr.mxu0 0.0
        %4277 = vmatpush1.xpose.msra.mxu0 0.0
        %4278 = vmatprep.subr.mxu0 0.0
        %4279 = vmatpush1.xpose.msra.mxu0 0.0
        %4280 = vmatprep.subr.mxu0 0.0
        %4281 = vmatpush1.xpose.msra.mxu0 0.0
        %4282 = vmatprep.subr.mxu0 0.0
        %4283 = vmatpush1.xpose.msra.mxu0 0.0
        %4284 = vmatprep.subr.mxu0 0.0
        %4285 = vmatpush1.xpose.msra.mxu0 0.0
        %4286 = vmatprep.subr.mxu0 0.0
        %4287 = vmatpush1.xpose.msra.mxu0 0.0
        %4288 = vmatprep.subr.mxu0 0.0
        %4289 = vmatpush1.xpose.msra.mxu0 0.0
        %4290 = vmatprep.subr.mxu0 0.0
        %4291 = vmatpush1.xpose.msra.mxu0 0.0
        %4292 = vmatprep.subr.mxu0 0.0
        %4293 = vmatpush1.xpose.msra.mxu0 0.0
        %4294 = vmatprep.subr.mxu0 0.0
        %4295 = vmatpush1.xpose.msra.mxu0 0.0
        %4296 = vmatprep.subr.mxu0 0.0
        %4297 = vmatpush1.xpose.msra.mxu0 0.0
        %4298 = vmatprep.subr.mxu0 0.0
        %4299 = vmatpush1.xpose.msra.mxu0 0.0
        %4300 = vmatprep.subr.mxu0 0.0
        %4301 = vmatpush1.xpose.msra.mxu0 0.0
        %4302 = vmatprep.subr.mxu0 0.0
        %4303 = vmatpush1.xpose.msra.mxu0 0.0
        %4304 = vmatprep.subr.mxu0 0.0
        %4305 = vmatpush1.xpose.msra.mxu0 0.0
        %4306 = vmatprep.mubr.f32.mxu0 0.0
        %4307 = vmatmul.mubr.f32.gmra.mrb[0].mxu0 %v4238
        %v4308 = vpop.f32.mrb[0].mxu0
        %v4309 = vadd.f32 0.0, %v4308
        %v4310 = vpop.f32.mrb[0].mxu0
        %4311 = vdwg.mxu0
        %4312 = vrot.lane.b32.xlu0 %v4231, 112
        %v4313 = vpop.permute.xlu0 %4312
        %v4314 = vsel %vm2317, %v4231, 0
        %v4316 = vsel %vm2317, %v4313, 0
        %4318 = vmatprep.subr.mxu0 0.0
        %4319 = vmatpush1.xpose.msra.mxu0 %v4316
        %4320 = vmatprep.subr.mxu0 0.0
        %4321 = vmatpush1.xpose.msra.mxu0 0.0
        %4322 = vmatprep.subr.mxu0 0.0
        %4323 = vmatpush1.xpose.msra.mxu0 0.0
        %4324 = vmatprep.subr.mxu0 0.0
        %4325 = vmatpush1.xpose.msra.mxu0 0.0
        %4326 = vmatprep.subr.mxu0 0.0
        %4327 = vmatpush1.xpose.msra.mxu0 0.0
        %4328 = vmatprep.subr.mxu0 0.0
        %4329 = vmatpush1.xpose.msra.mxu0 0.0
        %4330 = vmatprep.subr.mxu0 0.0
        %4331 = vmatpush1.xpose.msra.mxu0 0.0
        %4332 = vmatprep.subr.mxu0 0.0
        %4333 = vmatpush1.xpose.msra.mxu0 0.0
        %4334 = vmatprep.subr.mxu0 0.0
        %4335 = vmatpush1.xpose.msra.mxu0 0.0
        %4336 = vmatprep.subr.mxu0 0.0
        %4337 = vmatpush1.xpose.msra.mxu0 0.0
        %4338 = vmatprep.subr.mxu0 0.0
        %4339 = vmatpush1.xpose.msra.mxu0 0.0
        %4340 = vmatprep.subr.mxu0 0.0
        %4341 = vmatpush1.xpose.msra.mxu0 0.0
        %4342 = vmatprep.subr.mxu0 0.0
        %4343 = vmatpush1.xpose.msra.mxu0 0.0
        %4344 = vmatprep.subr.mxu0 0.0
        %4345 = vmatpush1.xpose.msra.mxu0 0.0
        %4346 = vmatprep.subr.mxu0 0.0
        %4347 = vmatpush1.xpose.msra.mxu0 0.0
        %4348 = vmatprep.subr.mxu0 0.0
        %4349 = vmatpush1.xpose.msra.mxu0 0.0
        %4350 = vmatprep.subr.mxu0 0.0
        %4351 = vmatpush1.xpose.msra.mxu0 0.0
        %4352 = vmatprep.subr.mxu0 0.0
        %4353 = vmatpush1.xpose.msra.mxu0 0.0
        %4354 = vmatprep.subr.mxu0 0.0
        %4355 = vmatpush1.xpose.msra.mxu0 0.0
        %4356 = vmatprep.subr.mxu0 0.0
        %4357 = vmatpush1.xpose.msra.mxu0 0.0
        %4358 = vmatprep.subr.mxu0 0.0
        %4359 = vmatpush1.xpose.msra.mxu0 0.0
        %4360 = vmatprep.subr.mxu0 0.0
        %4361 = vmatpush1.xpose.msra.mxu0 0.0
        %4362 = vmatprep.subr.mxu0 0.0
        %4363 = vmatpush1.xpose.msra.mxu0 0.0
        %4364 = vmatprep.subr.mxu0 0.0
        %4365 = vmatpush1.xpose.msra.mxu0 0.0
        %4366 = vmatprep.subr.mxu0 0.0
        %4367 = vmatpush1.xpose.msra.mxu0 0.0
        %4368 = vmatprep.subr.mxu0 0.0
        %4369 = vmatpush1.xpose.msra.mxu0 0.0
        %4370 = vmatprep.subr.mxu0 0.0
        %4371 = vmatpush1.xpose.msra.mxu0 0.0
        %4372 = vmatprep.subr.mxu0 0.0
        %4373 = vmatpush1.xpose.msra.mxu0 0.0
        %4374 = vmatprep.subr.mxu0 0.0
        %4375 = vmatpush1.xpose.msra.mxu0 0.0
        %4376 = vmatprep.subr.mxu0 0.0
        %4377 = vmatpush1.xpose.msra.mxu0 0.0
        %4378 = vmatprep.subr.mxu0 0.0
        %4379 = vmatpush1.xpose.msra.mxu0 0.0
        %4380 = vmatprep.subr.mxu0 0.0
        %4381 = vmatpush1.xpose.msra.mxu0 0.0
        %4382 = vmatprep.mubr.f32.mxu0 0.0
        %4383 = vmatmul.mubr.f32.gmra.mrb[0].mxu0 %v4314
        %v4384 = vpop.f32.mrb[0].mxu0
        %v4385 = vadd.f32 0.0, %v4384
        %v4386 = vpop.f32.mrb[0].mxu0
        %4387 = vdwg.mxu0
        %4388 = vrot.lane.b32.xlu0 %v4233, 112
        %v4389 = vpop.permute.xlu0 %4388
        %v4390 = vsel %vm2317, %v4233, 0
        %v4392 = vsel %vm2317, %v4389, 0
        %4394 = vmatprep.subr.mxu0 0.0
        %4395 = vmatpush1.xpose.msra.mxu0 %v4392
        %4396 = vmatprep.subr.mxu0 0.0
        %4397 = vmatpush1.xpose.msra.mxu0 0.0
        %4398 = vmatprep.subr.mxu0 0.0
        %4399 = vmatpush1.xpose.msra.mxu0 0.0
        %4400 = vmatprep.subr.mxu0 0.0
        %4401 = vmatpush1.xpose.msra.mxu0 0.0
        %4402 = vmatprep.subr.mxu0 0.0
        %4403 = vmatpush1.xpose.msra.mxu0 0.0
        %4404 = vmatprep.subr.mxu0 0.0
        %4405 = vmatpush1.xpose.msra.mxu0 0.0
        %4406 = vmatprep.subr.mxu0 0.0
        %4407 = vmatpush1.xpose.msra.mxu0 0.0
        %4408 = vmatprep.subr.mxu0 0.0
        %4409 = vmatpush1.xpose.msra.mxu0 0.0
        %4410 = vmatprep.subr.mxu0 0.0
        %4411 = vmatpush1.xpose.msra.mxu0 0.0
        %4412 = vmatprep.subr.mxu0 0.0
        %4413 = vmatpush1.xpose.msra.mxu0 0.0
        %4414 = vmatprep.subr.mxu0 0.0
        %4415 = vmatpush1.xpose.msra.mxu0 0.0
        %4416 = vmatprep.subr.mxu0 0.0
        %4417 = vmatpush1.xpose.msra.mxu0 0.0
        %4418 = vmatprep.subr.mxu0 0.0
        %4419 = vmatpush1.xpose.msra.mxu0 0.0
        %4420 = vmatprep.subr.mxu0 0.0
        %4421 = vmatpush1.xpose.msra.mxu0 0.0
        %4422 = vmatprep.subr.mxu0 0.0
        %4423 = vmatpush1.xpose.msra.mxu0 0.0
        %4424 = vmatprep.subr.mxu0 0.0
        %4425 = vmatpush1.xpose.msra.mxu0 0.0
        %4426 = vmatprep.subr.mxu0 0.0
        %4427 = vmatpush1.xpose.msra.mxu0 0.0
        %4428 = vmatprep.subr.mxu0 0.0
        %4429 = vmatpush1.xpose.msra.mxu0 0.0
        %4430 = vmatprep.subr.mxu0 0.0
        %4431 = vmatpush1.xpose.msra.mxu0 0.0
        %4432 = vmatprep.subr.mxu0 0.0
        %4433 = vmatpush1.xpose.msra.mxu0 0.0
        %4434 = vmatprep.subr.mxu0 0.0
        %4435 = vmatpush1.xpose.msra.mxu0 0.0
        %4436 = vmatprep.subr.mxu0 0.0
        %4437 = vmatpush1.xpose.msra.mxu0 0.0
        %4438 = vmatprep.subr.mxu0 0.0
        %4439 = vmatpush1.xpose.msra.mxu0 0.0
        %4440 = vmatprep.subr.mxu0 0.0
        %4441 = vmatpush1.xpose.msra.mxu0 0.0
        %4442 = vmatprep.subr.mxu0 0.0
        %4443 = vmatpush1.xpose.msra.mxu0 0.0
        %4444 = vmatprep.subr.mxu0 0.0
        %4445 = vmatpush1.xpose.msra.mxu0 0.0
        %4446 = vmatprep.subr.mxu0 0.0
        %4447 = vmatpush1.xpose.msra.mxu0 0.0
        %4448 = vmatprep.subr.mxu0 0.0
        %4449 = vmatpush1.xpose.msra.mxu0 0.0
        %4450 = vmatprep.subr.mxu0 0.0
        %4451 = vmatpush1.xpose.msra.mxu0 0.0
        %4452 = vmatprep.subr.mxu0 0.0
        %4453 = vmatpush1.xpose.msra.mxu0 0.0
        %4454 = vmatprep.subr.mxu0 0.0
        %4455 = vmatpush1.xpose.msra.mxu0 0.0
        %4456 = vmatprep.subr.mxu0 0.0
        %4457 = vmatpush1.xpose.msra.mxu0 0.0
        %4458 = vmatprep.mubr.f32.mxu0 0.0
        %4459 = vmatmul.mubr.f32.gmra.mrb[0].mxu0 %v4390
        %v4460 = vpop.f32.mrb[0].mxu0
        %v4461 = vadd.f32 0.0, %v4460
        %v4462 = vpop.f32.mrb[0].mxu0
        %4463 = vdwg.mxu0
        %4464 = vrot.lane.b32.xlu0 %v4235, 112
        %v4465 = vpop.permute.xlu0 %4464
        %v4466 = vsel %vm2317, %v4235, 0
        %v4468 = vsel %vm2317, %v4465, 0
        %4470 = vmatprep.subr.mxu0 0.0
        %4471 = vmatpush1.xpose.msra.mxu0 %v4468
        %4472 = vmatprep.subr.mxu0 0.0
        %4473 = vmatpush1.xpose.msra.mxu0 0.0
        %4474 = vmatprep.subr.mxu0 0.0
        %4475 = vmatpush1.xpose.msra.mxu0 0.0
        %4476 = vmatprep.subr.mxu0 0.0
        %4477 = vmatpush1.xpose.msra.mxu0 0.0
        %4478 = vmatprep.subr.mxu0 0.0
        %4479 = vmatpush1.xpose.msra.mxu0 0.0
        %4480 = vmatprep.subr.mxu0 0.0
        %4481 = vmatpush1.xpose.msra.mxu0 0.0
        %4482 = vmatprep.subr.mxu0 0.0
        %4483 = vmatpush1.xpose.msra.mxu0 0.0
        %4484 = vmatprep.subr.mxu0 0.0
        %4485 = vmatpush1.xpose.msra.mxu0 0.0
        %4486 = vmatprep.subr.mxu0 0.0
        %4487 = vmatpush1.xpose.msra.mxu0 0.0
        %4488 = vmatprep.subr.mxu0 0.0
        %4489 = vmatpush1.xpose.msra.mxu0 0.0
        %4490 = vmatprep.subr.mxu0 0.0
        %4491 = vmatpush1.xpose.msra.mxu0 0.0
        %4492 = vmatprep.subr.mxu0 0.0
        %4493 = vmatpush1.xpose.msra.mxu0 0.0
        %4494 = vmatprep.subr.mxu0 0.0
        %4495 = vmatpush1.xpose.msra.mxu0 0.0
        %4496 = vmatprep.subr.mxu0 0.0
        %4497 = vmatpush1.xpose.msra.mxu0 0.0
        %4498 = vmatprep.subr.mxu0 0.0
        %4499 = vmatpush1.xpose.msra.mxu0 0.0
        %4500 = vmatprep.subr.mxu0 0.0
        %4501 = vmatpush1.xpose.msra.mxu0 0.0
        %4502 = vmatprep.subr.mxu0 0.0
        %4503 = vmatpush1.xpose.msra.mxu0 0.0
        %4504 = vmatprep.subr.mxu0 0.0
        %4505 = vmatpush1.xpose.msra.mxu0 0.0
        %4506 = vmatprep.subr.mxu0 0.0
        %4507 = vmatpush1.xpose.msra.mxu0 0.0
        %4508 = vmatprep.subr.mxu0 0.0
        %4509 = vmatpush1.xpose.msra.mxu0 0.0
        %4510 = vmatprep.subr.mxu0 0.0
        %4511 = vmatpush1.xpose.msra.mxu0 0.0
        %4512 = vmatprep.subr.mxu0 0.0
        %4513 = vmatpush1.xpose.msra.mxu0 0.0
        %4514 = vmatprep.subr.mxu0 0.0
        %4515 = vmatpush1.xpose.msra.mxu0 0.0
        %4516 = vmatprep.subr.mxu0 0.0
        %4517 = vmatpush1.xpose.msra.mxu0 0.0
        %4518 = vmatprep.subr.mxu0 0.0
        %4519 = vmatpush1.xpose.msra.mxu0 0.0
        %4520 = vmatprep.subr.mxu0 0.0
        %4521 = vmatpush1.xpose.msra.mxu0 0.0
        %4522 = vmatprep.subr.mxu0 0.0
        %4523 = vmatpush1.xpose.msra.mxu0 0.0
        %4524 = vmatprep.subr.mxu0 0.0
        %4525 = vmatpush1.xpose.msra.mxu0 0.0
        %4526 = vmatprep.subr.mxu0 0.0
        %4527 = vmatpush1.xpose.msra.mxu0 0.0
        %4528 = vmatprep.subr.mxu0 0.0
        %4529 = vmatpush1.xpose.msra.mxu0 0.0
        %4530 = vmatprep.subr.mxu0 0.0
        %4531 = vmatpush1.xpose.msra.mxu0 0.0
        %4532 = vmatprep.subr.mxu0 0.0
        %4533 = vmatpush1.xpose.msra.mxu0 0.0
        %4534 = vmatprep.mubr.f32.mxu0 0.0
        %4535 = vmatmul.mubr.f32.gmra.mrb[0].mxu0 %v4466
        %v4536 = vpop.f32.mrb[0].mxu0
        %v4537 = vadd.f32 0.0, %v4536
        %v4538 = vpop.f32.mrb[0].mxu0
        %4539 = vdwg.mxu0
        %v4540 = vmul.f32 %v4309, 0.5
        %v4541 = vmul.f32 %v4385, 0.5
        %v4542 = vmul.f32 %v4461, 0.5
        %v4543 = vmul.f32 %v4537, 0.5
        %v4544 = vsel %vm506, %v4540, -inf
        %4545 = vmax.xlane.f32.xlu0 %v4544
        %v4546 = vpop.xlane.xlu0 %4545
        %v4547 = vsel %vm506, %v4541, -inf
        %4548 = vmax.xlane.f32.xlu0 %v4547
        %v4549 = vpop.xlane.xlu0 %4548
        %v4550 = vsel %vm506, %v4542, -inf
        %4551 = vmax.xlane.f32.xlu0 %v4550
        %v4552 = vpop.xlane.xlu0 %4551
        %v4553 = vsel %vm506, %v4543, -inf
        %4554 = vmax.xlane.f32.xlu0 %v4553
        %v4555 = vpop.xlane.xlu0 %4554
        %v4556 = vsub.f32 %v4540, %v4546
        %v4557 = vsub.f32 %v4541, %v4549
        %v4558 = vsub.f32 %v4542, %v4552
        %v4559 = vsub.f32 %v4543, %v4555
        %v4560 = vmul.f32 %v4556, 1.442695
        %v4561 = vpow.pop %v4560
        %v4562 = vmul.f32 %v4557, 1.442695
        %v4563 = vpow.pop %v4562
        %v4564 = vmul.f32 %v4558, 1.442695
        %v4565 = vpow.pop %v4564
        %v4566 = vmul.f32 %v4559, 1.442695
        %v4567 = vpow.pop %v4566
        %v4568 = vsel %vm506, %v4561, 0.0
        %4569 = vadd.xlane.f32.xlu0 %v4568
        %v4570 = vpop.xlane.xlu0 %4569
        %v4571 = vsel %vm506, %v4563, 0.0
        %4572 = vadd.xlane.f32.xlu0 %v4571
        %v4573 = vpop.xlane.xlu0 %4572
        %v4574 = vsel %vm506, %v4565, 0.0
        %4575 = vadd.xlane.f32.xlu0 %v4574
        %v4576 = vpop.xlane.xlu0 %4575
        %v4577 = vsel %vm506, %v4567, 0.0
        %4578 = vadd.xlane.f32.xlu0 %v4577
        %v4579 = vpop.xlane.xlu0 %4578
        %v4580 = vrcp.pop %v4570
        %v4581 = vrcp.pop %v4573
        %v4582 = vrcp.pop %v4576
        %v4583 = vrcp.pop %v4579
        %v4584 = vmul.f32 %v4561, %v4580
        %v4585 = vmul.f32 %v4563, %v4581
        %v4586 = vmul.f32 %v4565, %v4582
        %v4587 = vmul.f32 %v4567, %v4583
        %4588 = vrot.lane.b32.xlu0 %v4226, 96
        %v4589 = vpop.permute.xlu0 %4588
        %v4592 = vsel %vm506, %v4584, 0
        %4594 = vmatprep.subr.mxu0 0.0
        %4595 = vmatpush1.msra.mxu0 %v4589
        %4596 = vmatprep.subr.mxu0 0.0
        %4597 = vmatpush1.msra.mxu0 0.0
        %4598 = vmatprep.subr.mxu0 0.0
        %4599 = vmatpush1.msra.mxu0 0.0
        %4600 = vmatprep.subr.mxu0 0.0
        %4601 = vmatpush1.msra.mxu0 0.0
        %4602 = vmatprep.subr.mxu0 0.0
        %4603 = vmatpush1.msra.mxu0 0.0
        %4604 = vmatprep.subr.mxu0 0.0
        %4605 = vmatpush1.msra.mxu0 0.0
        %4606 = vmatprep.subr.mxu0 0.0
        %4607 = vmatpush1.msra.mxu0 0.0
        %4608 = vmatprep.subr.mxu0 0.0
        %4609 = vmatpush1.msra.mxu0 0.0
        %4610 = vmatprep.subr.mxu0 0.0
        %4611 = vmatpush1.msra.mxu0 0.0
        %4612 = vmatprep.subr.mxu0 0.0
        %4613 = vmatpush1.msra.mxu0 0.0
        %4614 = vmatprep.subr.mxu0 0.0
        %4615 = vmatpush1.msra.mxu0 0.0
        %4616 = vmatprep.subr.mxu0 0.0
        %4617 = vmatpush1.msra.mxu0 0.0
        %4618 = vmatprep.subr.mxu0 0.0
        %4619 = vmatpush1.msra.mxu0 0.0
        %4620 = vmatprep.subr.mxu0 0.0
        %4621 = vmatpush1.msra.mxu0 0.0
        %4622 = vmatprep.subr.mxu0 0.0
        %4623 = vmatpush1.msra.mxu0 0.0
        %4624 = vmatprep.subr.mxu0 0.0
        %4625 = vmatpush1.msra.mxu0 0.0
        %4626 = vmatprep.subr.mxu0 0.0
        %4627 = vmatpush1.msra.mxu0 0.0
        %4628 = vmatprep.subr.mxu0 0.0
        %4629 = vmatpush1.msra.mxu0 0.0
        %4630 = vmatprep.subr.mxu0 0.0
        %4631 = vmatpush1.msra.mxu0 0.0
        %4632 = vmatprep.subr.mxu0 0.0
        %4633 = vmatpush1.msra.mxu0 0.0
        %4634 = vmatprep.subr.mxu0 0.0
        %4635 = vmatpush1.msra.mxu0 0.0
        %4636 = vmatprep.subr.mxu0 0.0
        %4637 = vmatpush1.msra.mxu0 0.0
        %4638 = vmatprep.subr.mxu0 0.0
        %4639 = vmatpush1.msra.mxu0 0.0
        %4640 = vmatprep.subr.mxu0 0.0
        %4641 = vmatpush1.msra.mxu0 0.0
        %4642 = vmatprep.subr.mxu0 0.0
        %4643 = vmatpush1.msra.mxu0 0.0
        %4644 = vmatprep.subr.mxu0 0.0
        %4645 = vmatpush1.msra.mxu0 0.0
        %4646 = vmatprep.subr.mxu0 0.0
        %4647 = vmatpush1.msra.mxu0 0.0
        %4648 = vmatprep.subr.mxu0 0.0
        %4649 = vmatpush1.msra.mxu0 0.0
        %4650 = vmatprep.subr.mxu0 0.0
        %4651 = vmatpush1.msra.mxu0 0.0
        %4652 = vmatprep.subr.mxu0 0.0
        %4653 = vmatpush1.msra.mxu0 0.0
        %4654 = vmatprep.subr.mxu0 0.0
        %4655 = vmatpush1.msra.mxu0 0.0
        %4656 = vmatprep.subr.mxu0 0.0
        %4657 = vmatpush1.msra.mxu0 0.0
        %4658 = vmatprep.mubr.f32.mxu0 0.0
        %4659 = vmatmul.mubr.f32.gmra.mrb[0].mxu0 %v4592
        %v4660 = vpop.f32.mrb[0].mxu0
        %v4661 = vadd.f32 0.0, %v4660
        %v4662 = vpop.f32.mrb[0].mxu0
        %4663 = vdwg.mxu0
        %4664 = vrot.lane.b32.xlu0 %v4231, 96
        %v4665 = vpop.permute.xlu0 %4664
        %v4668 = vsel %vm506, %v4585, 0
        %4670 = vmatprep.subr.mxu0 0.0
        %4671 = vmatpush1.msra.mxu0 %v4665
        %4672 = vmatprep.subr.mxu0 0.0
        %4673 = vmatpush1.msra.mxu0 0.0
        %4674 = vmatprep.subr.mxu0 0.0
        %4675 = vmatpush1.msra.mxu0 0.0
        %4676 = vmatprep.subr.mxu0 0.0
        %4677 = vmatpush1.msra.mxu0 0.0
        %4678 = vmatprep.subr.mxu0 0.0
        %4679 = vmatpush1.msra.mxu0 0.0
        %4680 = vmatprep.subr.mxu0 0.0
        %4681 = vmatpush1.msra.mxu0 0.0
        %4682 = vmatprep.subr.mxu0 0.0
        %4683 = vmatpush1.msra.mxu0 0.0
        %4684 = vmatprep.subr.mxu0 0.0
        %4685 = vmatpush1.msra.mxu0 0.0
        %4686 = vmatprep.subr.mxu0 0.0
        %4687 = vmatpush1.msra.mxu0 0.0
        %4688 = vmatprep.subr.mxu0 0.0
        %4689 = vmatpush1.msra.mxu0 0.0
        %4690 = vmatprep.subr.mxu0 0.0
        %4691 = vmatpush1.msra.mxu0 0.0
        %4692 = vmatprep.subr.mxu0 0.0
        %4693 = vmatpush1.msra.mxu0 0.0
        %4694 = vmatprep.subr.mxu0 0.0
        %4695 = vmatpush1.msra.mxu0 0.0
        %4696 = vmatprep.subr.mxu0 0.0
        %4697 = vmatpush1.msra.mxu0 0.0
        %4698 = vmatprep.subr.mxu0 0.0
        %4699 = vmatpush1.msra.mxu0 0.0
        %4700 = vmatprep.subr.mxu0 0.0
        %4701 = vmatpush1.msra.mxu0 0.0
        %4702 = vmatprep.subr.mxu0 0.0
        %4703 = vmatpush1.msra.mxu0 0.0
        %4704 = vmatprep.subr.mxu0 0.0
        %4705 = vmatpush1.msra.mxu0 0.0
        %4706 = vmatprep.subr.mxu0 0.0
        %4707 = vmatpush1.msra.mxu0 0.0
        %4708 = vmatprep.subr.mxu0 0.0
        %4709 = vmatpush1.msra.mxu0 0.0
        %4710 = vmatprep.subr.mxu0 0.0
        %4711 = vmatpush1.msra.mxu0 0.0
        %4712 = vmatprep.subr.mxu0 0.0
        %4713 = vmatpush1.msra.mxu0 0.0
        %4714 = vmatprep.subr.mxu0 0.0
        %4715 = vmatpush1.msra.mxu0 0.0
        %4716 = vmatprep.subr.mxu0 0.0
        %4717 = vmatpush1.msra.mxu0 0.0
        %4718 = vmatprep.subr.mxu0 0.0
        %4719 = vmatpush1.msra.mxu0 0.0
        %4720 = vmatprep.subr.mxu0 0.0
        %4721 = vmatpush1.msra.mxu0 0.0
        %4722 = vmatprep.subr.mxu0 0.0
        %4723 = vmatpush1.msra.mxu0 0.0
        %4724 = vmatprep.subr.mxu0 0.0
        %4725 = vmatpush1.msra.mxu0 0.0
        %4726 = vmatprep.subr.mxu0 0.0
        %4727 = vmatpush1.msra.mxu0 0.0
        %4728 = vmatprep.subr.mxu0 0.0
        %4729 = vmatpush1.msra.mxu0 0.0
        %4730 = vmatprep.subr.mxu0 0.0
        %4731 = vmatpush1.msra.mxu0 0.0
        %4732 = vmatprep.subr.mxu0 0.0
        %4733 = vmatpush1.msra.mxu0 0.0
        %4734 = vmatprep.mubr.f32.mxu0 0.0
        %4735 = vmatmul.mubr.f32.gmra.mrb[0].mxu0 %v4668
        %v4736 = vpop.f32.mrb[0].mxu0
        %v4737 = vadd.f32 0.0, %v4736
        %v4738 = vpop.f32.mrb[0].mxu0
        %4739 = vdwg.mxu0
        %4740 = vrot.lane.b32.xlu0 %v4233, 96
        %v4741 = vpop.permute.xlu0 %4740
        %v4744 = vsel %vm506, %v4586, 0
        %4746 = vmatprep.subr.mxu0 0.0
        %4747 = vmatpush1.msra.mxu0 %v4741
        %4748 = vmatprep.subr.mxu0 0.0
        %4749 = vmatpush1.msra.mxu0 0.0
        %4750 = vmatprep.subr.mxu0 0.0
        %4751 = vmatpush1.msra.mxu0 0.0
        %4752 = vmatprep.subr.mxu0 0.0
        %4753 = vmatpush1.msra.mxu0 0.0
        %4754 = vmatprep.subr.mxu0 0.0
        %4755 = vmatpush1.msra.mxu0 0.0
        %4756 = vmatprep.subr.mxu0 0.0
        %4757 = vmatpush1.msra.mxu0 0.0
        %4758 = vmatprep.subr.mxu0 0.0
        %4759 = vmatpush1.msra.mxu0 0.0
        %4760 = vmatprep.subr.mxu0 0.0
        %4761 = vmatpush1.msra.mxu0 0.0
        %4762 = vmatprep.subr.mxu0 0.0
        %4763 = vmatpush1.msra.mxu0 0.0
        %4764 = vmatprep.subr.mxu0 0.0
        %4765 = vmatpush1.msra.mxu0 0.0
        %4766 = vmatprep.subr.mxu0 0.0
        %4767 = vmatpush1.msra.mxu0 0.0
        %4768 = vmatprep.subr.mxu0 0.0
        %4769 = vmatpush1.msra.mxu0 0.0
        %4770 = vmatprep.subr.mxu0 0.0
        %4771 = vmatpush1.msra.mxu0 0.0
        %4772 = vmatprep.subr.mxu0 0.0
        %4773 = vmatpush1.msra.mxu0 0.0
        %4774 = vmatprep.subr.mxu0 0.0
        %4775 = vmatpush1.msra.mxu0 0.0
        %4776 = vmatprep.subr.mxu0 0.0
        %4777 = vmatpush1.msra.mxu0 0.0
        %4778 = vmatprep.subr.mxu0 0.0
        %4779 = vmatpush1.msra.mxu0 0.0
        %4780 = vmatprep.subr.mxu0 0.0
        %4781 = vmatpush1.msra.mxu0 0.0
        %4782 = vmatprep.subr.mxu0 0.0
        %4783 = vmatpush1.msra.mxu0 0.0
        %4784 = vmatprep.subr.mxu0 0.0
        %4785 = vmatpush1.msra.mxu0 0.0
        %4786 = vmatprep.subr.mxu0 0.0
        %4787 = vmatpush1.msra.mxu0 0.0
        %4788 = vmatprep.subr.mxu0 0.0
        %4789 = vmatpush1.msra.mxu0 0.0
        %4790 = vmatprep.subr.mxu0 0.0
        %4791 = vmatpush1.msra.mxu0 0.0
        %4792 = vmatprep.subr.mxu0 0.0
        %4793 = vmatpush1.msra.mxu0 0.0
        %4794 = vmatprep.subr.mxu0 0.0
        %4795 = vmatpush1.msra.mxu0 0.0
        %4796 = vmatprep.subr.mxu0 0.0
        %4797 = vmatpush1.msra.mxu0 0.0
        %4798 = vmatprep.subr.mxu0 0.0
        %4799 = vmatpush1.msra.mxu0 0.0
        %4800 = vmatprep.subr.mxu0 0.0
        %4801 = vmatpush1.msra.mxu0 0.0
        %4802 = vmatprep.subr.mxu0 0.0
        %4803 = vmatpush1.msra.mxu0 0.0
        %4804 = vmatprep.subr.mxu0 0.0
        %4805 = vmatpush1.msra.mxu0 0.0
        %4806 = vmatprep.subr.mxu0 0.0
        %4807 = vmatpush1.msra.mxu0 0.0
        %4808 = vmatprep.subr.mxu0 0.0
        %4809 = vmatpush1.msra.mxu0 0.0
        %4810 = vmatprep.mubr.f32.mxu0 0.0
        %4811 = vmatmul.mubr.f32.gmra.mrb[0].mxu0 %v4744
        %v4812 = vpop.f32.mrb[0].mxu0
        %v4813 = vadd.f32 0.0, %v4812
        %v4814 = vpop.f32.mrb[0].mxu0
        %4815 = vdwg.mxu0
        %4816 = vrot.lane.b32.xlu0 %v4235, 96
        %v4817 = vpop.permute.xlu0 %4816
        %v4820 = vsel %vm506, %v4587, 0
        %4822 = vmatprep.subr.mxu0 0.0
        %4823 = vmatpush1.msra.mxu0 %v4817
        %4824 = vmatprep.subr.mxu0 0.0
        %4825 = vmatpush1.msra.mxu0 0.0
        %4826 = vmatprep.subr.mxu0 0.0
        %4827 = vmatpush1.msra.mxu0 0.0
        %4828 = vmatprep.subr.mxu0 0.0
        %4829 = vmatpush1.msra.mxu0 0.0
        %4830 = vmatprep.subr.mxu0 0.0
        %4831 = vmatpush1.msra.mxu0 0.0
        %4832 = vmatprep.subr.mxu0 0.0
        %4833 = vmatpush1.msra.mxu0 0.0
        %4834 = vmatprep.subr.mxu0 0.0
        %4835 = vmatpush1.msra.mxu0 0.0
        %4836 = vmatprep.subr.mxu0 0.0
        %4837 = vmatpush1.msra.mxu0 0.0
        %4838 = vmatprep.subr.mxu0 0.0
        %4839 = vmatpush1.msra.mxu0 0.0
        %4840 = vmatprep.subr.mxu0 0.0
        %4841 = vmatpush1.msra.mxu0 0.0
        %4842 = vmatprep.subr.mxu0 0.0
        %4843 = vmatpush1.msra.mxu0 0.0
        %4844 = vmatprep.subr.mxu0 0.0
        %4845 = vmatpush1.msra.mxu0 0.0
        %4846 = vmatprep.subr.mxu0 0.0
        %4847 = vmatpush1.msra.mxu0 0.0
        %4848 = vmatprep.subr.mxu0 0.0
        %4849 = vmatpush1.msra.mxu0 0.0
        %4850 = vmatprep.subr.mxu0 0.0
        %4851 = vmatpush1.msra.mxu0 0.0
        %4852 = vmatprep.subr.mxu0 0.0
        %4853 = vmatpush1.msra.mxu0 0.0
        %4854 = vmatprep.subr.mxu0 0.0
        %4855 = vmatpush1.msra.mxu0 0.0
        %4856 = vmatprep.subr.mxu0 0.0
        %4857 = vmatpush1.msra.mxu0 0.0
        %4858 = vmatprep.subr.mxu0 0.0
        %4859 = vmatpush1.msra.mxu0 0.0
        %4860 = vmatprep.subr.mxu0 0.0
        %4861 = vmatpush1.msra.mxu0 0.0
        %4862 = vmatprep.subr.mxu0 0.0
        %4863 = vmatpush1.msra.mxu0 0.0
        %4864 = vmatprep.subr.mxu0 0.0
        %4865 = vmatpush1.msra.mxu0 0.0
        %4866 = vmatprep.subr.mxu0 0.0
        %4867 = vmatpush1.msra.mxu0 0.0
        %4868 = vmatprep.subr.mxu0 0.0
        %4869 = vmatpush1.msra.mxu0 0.0
        %4870 = vmatprep.subr.mxu0 0.0
        %4871 = vmatpush1.msra.mxu0 0.0
        %4872 = vmatprep.subr.mxu0 0.0
        %4873 = vmatpush1.msra.mxu0 0.0
        %4874 = vmatprep.subr.mxu0 0.0
        %4875 = vmatpush1.msra.mxu0 0.0
        %4876 = vmatprep.subr.mxu0 0.0
        %4877 = vmatpush1.msra.mxu0 0.0
        %4878 = vmatprep.subr.mxu0 0.0
        %4879 = vmatpush1.msra.mxu0 0.0
        %4880 = vmatprep.subr.mxu0 0.0
        %4881 = vmatpush1.msra.mxu0 0.0
        %4882 = vmatprep.subr.mxu0 0.0
        %4883 = vmatpush1.msra.mxu0 0.0
        %4884 = vmatprep.subr.mxu0 0.0
        %4885 = vmatpush1.msra.mxu0 0.0
        %4886 = vmatprep.mubr.f32.mxu0 0.0
        %4887 = vmatmul.mubr.f32.gmra.mrb[0].mxu0 %v4820
        %v4888 = vpop.f32.mrb[0].mxu0
        %v4889 = vadd.f32 0.0, %v4888
        %v4890 = vpop.f32.mrb[0].mxu0
        %4891 = vdwg.mxu0
        %4893 = vrot.lane.b32.xlu0 %v4737, 4
        %v4894 = vpop.permute.xlu0 %4893
        %4897 = vrot.lane.b32.xlu0 %v4813, 8
        %v4898 = vpop.permute.xlu0 %4897
        %4901 = vrot.lane.b32.xlu0 %v4889, 12
        %v4902 = vpop.permute.xlu0 %4901
        %v4904 = vsel %vm2317, %v4661, %v4894
        %v4905 = vsel %vm506, %v4904, %v4898
        %v4906 = vsel %vm2986, %v4905, %v4902
        %v4907 = vld [vmem:[#allocation4 + $0x278] sm:$0xff]
        %v4908 = vld [vmem:[#allocation4 + $0x280] sm:$0xff]
        %v4910 = vsel %vm1836, %v4906, 0
        %4912 = vmatprep.subr.mxu0 0.0
        %4913 = vmatpush1.msra.mxu0 %v4907
        %4914 = vmatprep.subr.mxu0 0.0
        %4915 = vmatpush1.msra.mxu0 %v4908
        %4916 = vmatprep.subr.mxu0 0.0
        %4917 = vmatpush1.msra.mxu0 0.0
        %4918 = vmatprep.subr.mxu0 0.0
        %4919 = vmatpush1.msra.mxu0 0.0
        %4920 = vmatprep.subr.mxu0 0.0
        %4921 = vmatpush1.msra.mxu0 0.0
        %4922 = vmatprep.subr.mxu0 0.0
        %4923 = vmatpush1.msra.mxu0 0.0
        %4924 = vmatprep.subr.mxu0 0.0
        %4925 = vmatpush1.msra.mxu0 0.0
        %4926 = vmatprep.subr.mxu0 0.0
        %4927 = vmatpush1.msra.mxu0 0.0
        %4928 = vmatprep.subr.mxu0 0.0
        %4929 = vmatpush1.msra.mxu0 0.0
        %4930 = vmatprep.subr.mxu0 0.0
        %4931 = vmatpush1.msra.mxu0 0.0
        %4932 = vmatprep.subr.mxu0 0.0
        %4933 = vmatpush1.msra.mxu0 0.0
        %4934 = vmatprep.subr.mxu0 0.0
        %4935 = vmatpush1.msra.mxu0 0.0
        %4936 = vmatprep.subr.mxu0 0.0
        %4937 = vmatpush1.msra.mxu0 0.0
        %4938 = vmatprep.subr.mxu0 0.0
        %4939 = vmatpush1.msra.mxu0 0.0
        %4940 = vmatprep.subr.mxu0 0.0
        %4941 = vmatpush1.msra.mxu0 0.0
        %4942 = vmatprep.subr.mxu0 0.0
        %4943 = vmatpush1.msra.mxu0 0.0
        %4944 = vmatprep.subr.mxu0 0.0
        %4945 = vmatpush1.msra.mxu0 0.0
        %4946 = vmatprep.subr.mxu0 0.0
        %4947 = vmatpush1.msra.mxu0 0.0
        %4948 = vmatprep.subr.mxu0 0.0
        %4949 = vmatpush1.msra.mxu0 0.0
        %4950 = vmatprep.subr.mxu0 0.0
        %4951 = vmatpush1.msra.mxu0 0.0
        %4952 = vmatprep.subr.mxu0 0.0
        %4953 = vmatpush1.msra.mxu0 0.0
        %4954 = vmatprep.subr.mxu0 0.0
        %4955 = vmatpush1.msra.mxu0 0.0
        %4956 = vmatprep.subr.mxu0 0.0
        %4957 = vmatpush1.msra.mxu0 0.0
        %4958 = vmatprep.subr.mxu0 0.0
        %4959 = vmatpush1.msra.mxu0 0.0
        %4960 = vmatprep.subr.mxu0 0.0
        %4961 = vmatpush1.msra.mxu0 0.0
        %4962 = vmatprep.subr.mxu0 0.0
        %4963 = vmatpush1.msra.mxu0 0.0
        %4964 = vmatprep.subr.mxu0 0.0
        %4965 = vmatpush1.msra.mxu0 0.0
        %4966 = vmatprep.subr.mxu0 0.0
        %4967 = vmatpush1.msra.mxu0 0.0
        %4968 = vmatprep.subr.mxu0 0.0
        %4969 = vmatpush1.msra.mxu0 0.0
        %4970 = vmatprep.subr.mxu0 0.0
        %4971 = vmatpush1.msra.mxu0 0.0
        %4972 = vmatprep.subr.mxu0 0.0
        %4973 = vmatpush1.msra.mxu0 0.0
        %4974 = vmatprep.subr.mxu0 0.0
        %4975 = vmatpush1.msra.mxu0 0.0
        %4976 = vmatprep.mubr.f32.mxu0 0.0
        %4977 = vmatmul.mubr.f32.gmra.mrb[0].mxu0 %v4910
        %v4978 = vpop.f32.mrb[0].mxu0
        %v4979 = vadd.f32 0.0, %v4978
        %v4980 = vpop.f32.mrb[0].mxu0
        %4981 = vdwg.mxu0
        %v4982 = vadd.f32 %v4128, %v4979
        %v4983 = vld [vmem:[#allocation6 + $0x24] sm:$0x1]
        %v4984 = vlaneseq
        %v4985 = vshrl.u32 %v4984, 7
        %v4986 = vsub.s32 0, %v4985
        %v4987 = vrot.slane %v4983, %v4986
        %v4988 = vadd.f32 %v4982, %v4987
        %v4989 = vld [vmem:[#allocation6 + $0x25] sm:$0x1]
        %v4990 = vld [vmem:[#allocation6 + $0x26] sm:$0x1]
        %v4991 = vsel %vm1836, %v4988, 0.0
        %4992 = vadd.xlane.f32.xlu0 %v4991
        %v4993 = vpop.xlane.xlu0 %4992
        %v4994 = vmul.f32 %v4993, %v2212
        %v4995 = vsub.f32 %v4988, %v4994
        %v4996 = vmul.f32 %v4995, %v4995
        %v4997 = vsel %vm1836, %v4996, 0.0
        %4998 = vadd.xlane.f32.xlu0 %v4997
        %v4999 = vpop.xlane.xlu0 %4998
        %v5000 = vmul.f32 %v4999, %v2212
        %v5001 = vadd.f32 %v5000, 1e-05
        %v5002 = vrsqrt.pop %v5001
        %v5003 = vmul.f32 %v4995, %v5002
        %v5004 = vlaneseq
        %v5005 = vshrl.u32 %v5004, 7
        %v5006 = vsub.s32 0, %v5005
        %v5007 = vrot.slane %v4989, %v5006
        %v5008 = vmul.f32 %v5003, %v5007
        %v5009 = vlaneseq
        %v5010 = vshrl.u32 %v5009, 7
        %v5011 = vsub.s32 0, %v5010
        %v5012 = vrot.slane %v4990, %v5011
        %v5013 = vadd.f32 %v5008, %v5012
        %v5014 = vld [vmem:[#allocation4 + $0x288] sm:$0xff]
        %v5015 = vld [vmem:[#allocation4 + $0x290] sm:$0xff]
        %v5016 = vld [vmem:[#allocation6 + $0x27] sm:$0x1]
        %v5017 = vlaneseq
        %v5018 = vshrl.u32 %v5017, 7
        %v5019 = vsub.s32 0, %v5018
        %v5020 = vrot.slane %v5016, %v5019
        %v5022 = vsel %vm1836, %v5013, 0
        %5024 = vmatprep.subr.mxu0 0.0
        %5025 = vmatpush1.msra.mxu0 %v5014
        %5026 = vmatprep.subr.mxu0 0.0
        %5027 = vmatpush1.msra.mxu0 %v5015
        %5028 = vmatprep.subr.mxu0 0.0
        %5029 = vmatpush1.msra.mxu0 0.0
        %5030 = vmatprep.subr.mxu0 0.0
        %5031 = vmatpush1.msra.mxu0 0.0
        %5032 = vmatprep.subr.mxu0 0.0
        %5033 = vmatpush1.msra.mxu0 0.0
        %5034 = vmatprep.subr.mxu0 0.0
        %5035 = vmatpush1.msra.mxu0 0.0
        %5036 = vmatprep.subr.mxu0 0.0
        %5037 = vmatpush1.msra.mxu0 0.0
        %5038 = vmatprep.subr.mxu0 0.0
        %5039 = vmatpush1.msra.mxu0 0.0
        %5040 = vmatprep.subr.mxu0 0.0
        %5041 = vmatpush1.msra.mxu0 0.0
        %5042 = vmatprep.subr.mxu0 0.0
        %5043 = vmatpush1.msra.mxu0 0.0
        %5044 = vmatprep.subr.mxu0 0.0
        %5045 = vmatpush1.msra.mxu0 0.0
        %5046 = vmatprep.subr.mxu0 0.0
        %5047 = vmatpush1.msra.mxu0 0.0
        %5048 = vmatprep.subr.mxu0 0.0
        %5049 = vmatpush1.msra.mxu0 0.0
        %5050 = vmatprep.subr.mxu0 0.0
        %5051 = vmatpush1.msra.mxu0 0.0
        %5052 = vmatprep.subr.mxu0 0.0
        %5053 = vmatpush1.msra.mxu0 0.0
        %5054 = vmatprep.subr.mxu0 0.0
        %5055 = vmatpush1.msra.mxu0 0.0
        %5056 = vmatprep.subr.mxu0 0.0
        %5057 = vmatpush1.msra.mxu0 0.0
        %5058 = vmatprep.subr.mxu0 0.0
        %5059 = vmatpush1.msra.mxu0 0.0
        %5060 = vmatprep.subr.mxu0 0.0
        %5061 = vmatpush1.msra.mxu0 0.0
        %5062 = vmatprep.subr.mxu0 0.0
        %5063 = vmatpush1.msra.mxu0 0.0
        %5064 = vmatprep.subr.mxu0 0.0
        %5065 = vmatpush1.msra.mxu0 0.0
        %5066 = vmatprep.subr.mxu0 0.0
        %5067 = vmatpush1.msra.mxu0 0.0
        %5068 = vmatprep.subr.mxu0 0.0
        %5069 = vmatpush1.msra.mxu0 0.0
        %5070 = vmatprep.subr.mxu0 0.0
        %5071 = vmatpush1.msra.mxu0 0.0
        %5072 = vmatprep.subr.mxu0 0.0
        %5073 = vmatpush1.msra.mxu0 0.0
        %5074 = vmatprep.subr.mxu0 0.0
        %5075 = vmatpush1.msra.mxu0 0.0
        %5076 = vmatprep.subr.mxu0 0.0
        %5077 = vmatpush1.msra.mxu0 0.0
        %5078 = vmatprep.subr.mxu0 0.0
        %5079 = vmatpush1.msra.mxu0 0.0
        %5080 = vmatprep.subr.mxu0 0.0
        %5081 = vmatpush1.msra.mxu0 0.0
        %5082 = vmatprep.subr.mxu0 0.0
        %5083 = vmatpush1.msra.mxu0 0.0
        %5084 = vmatprep.subr.mxu0 0.0
        %5085 = vmatpush1.msra.mxu0 0.0
        %5086 = vmatprep.subr.mxu0 0.0
        %5087 = vmatpush1.msra.mxu0 0.0
        %5088 = vmatprep.mubr.f32.mxu0 0.0
        %5089 = vmatmul.mubr.f32.gmra.mrb[0].mxu0 %v5022
        %v5090 = vpop.f32.mrb[0].mxu0
        %v5091 = vadd.f32 %v5020, %v5090
        %v5092 = vpop.f32.mrb[0].mxu0
        %5093 = vdwg.mxu0
        %v5094 = vmax.f32 %v5091, 0.0
        %v5095 = vld [vmem:[#allocation4 + $0x298] sm:$0xff]
        %v5096 = vld [vmem:[#allocation4 + $0x2a0] sm:$0xff]
        %v5097 = vld [vmem:[#allocation4 + $0x2a8] sm:$0xff]
        %v5098 = vld [vmem:[#allocation4 + $0x2b0] sm:$0xff]
        %v5099 = vld [vmem:[#allocation4 + $0x2b8] sm:$0xff]
        %v5100 = vld [vmem:[#allocation4 + $0x2c0] sm:$0xff]
        %v5101 = vld [vmem:[#allocation4 + $0x2c8] sm:$0xff]
        %v5102 = vld [vmem:[#allocation4 + $0x2d0] sm:$0xff]
        %v5103 = vld [vmem:[#allocation6 + $0x28] sm:$0x1]
        %v5104 = vlaneseq
        %v5105 = vshrl.u32 %v5104, 7
        %v5106 = vsub.s32 0, %v5105
        %v5107 = vrot.slane %v5103, %v5106
        %v5109 = vsel %vm3189, %v5094, 0
        %5111 = vmatprep.subr.mxu0 0.0
        %5112 = vmatpush1.msra.mxu0 %v5095
        %5113 = vmatprep.subr.mxu0 0.0
        %5114 = vmatpush1.msra.mxu0 %v5096
        %5115 = vmatprep.subr.mxu0 0.0
        %5116 = vmatpush1.msra.mxu0 %v5097
        %5117 = vmatprep.subr.mxu0 0.0
        %5118 = vmatpush1.msra.mxu0 %v5098
        %5119 = vmatprep.subr.mxu0 0.0
        %5120 = vmatpush1.msra.mxu0 %v5099
        %5121 = vmatprep.subr.mxu0 0.0
        %5122 = vmatpush1.msra.mxu0 %v5100
        %5123 = vmatprep.subr.mxu0 0.0
        %5124 = vmatpush1.msra.mxu0 %v5101
        %5125 = vmatprep.subr.mxu0 0.0
        %5126 = vmatpush1.msra.mxu0 %v5102
        %5127 = vmatprep.subr.mxu0 0.0
        %5128 = vmatpush1.msra.mxu0 0.0
        %5129 = vmatprep.subr.mxu0 0.0
        %5130 = vmatpush1.msra.mxu0 0.0
        %5131 = vmatprep.subr.mxu0 0.0
        %5132 = vmatpush1.msra.mxu0 0.0
        %5133 = vmatprep.subr.mxu0 0.0
        %5134 = vmatpush1.msra.mxu0 0.0
        %5135 = vmatprep.subr.mxu0 0.0
        %5136 = vmatpush1.msra.mxu0 0.0
        %5137 = vmatprep.subr.mxu0 0.0
        %5138 = vmatpush1.msra.mxu0 0.0
        %5139 = vmatprep.subr.mxu0 0.0
        %5140 = vmatpush1.msra.mxu0 0.0
        %5141 = vmatprep.subr.mxu0 0.0
        %5142 = vmatpush1.msra.mxu0 0.0
        %5143 = vmatprep.subr.mxu0 0.0
        %5144 = vmatpush1.msra.mxu0 0.0
        %5145 = vmatprep.subr.mxu0 0.0
        %5146 = vmatpush1.msra.mxu0 0.0
        %5147 = vmatprep.subr.mxu0 0.0
        %5148 = vmatpush1.msra.mxu0 0.0
        %5149 = vmatprep.subr.mxu0 0.0
        %5150 = vmatpush1.msra.mxu0 0.0
        %5151 = vmatprep.subr.mxu0 0.0
        %5152 = vmatpush1.msra.mxu0 0.0
        %5153 = vmatprep.subr.mxu0 0.0
        %5154 = vmatpush1.msra.mxu0 0.0
        %5155 = vmatprep.subr.mxu0 0.0
        %5156 = vmatpush1.msra.mxu0 0.0
        %5157 = vmatprep.subr.mxu0 0.0
        %5158 = vmatpush1.msra.mxu0 0.0
        %5159 = vmatprep.subr.mxu0 0.0
        %5160 = vmatpush1.msra.mxu0 0.0
        %5161 = vmatprep.subr.mxu0 0.0
        %5162 = vmatpush1.msra.mxu0 0.0
        %5163 = vmatprep.subr.mxu0 0.0
        %5164 = vmatpush1.msra.mxu0 0.0
        %5165 = vmatprep.subr.mxu0 0.0
        %5166 = vmatpush1.msra.mxu0 0.0
        %5167 = vmatprep.subr.mxu0 0.0
        %5168 = vmatpush1.msra.mxu0 0.0
        %5169 = vmatprep.subr.mxu0 0.0
        %5170 = vmatpush1.msra.mxu0 0.0
        %5171 = vmatprep.subr.mxu0 0.0
        %5172 = vmatpush1.msra.mxu0 0.0
        %5173 = vmatprep.subr.mxu0 0.0
        %5174 = vmatpush1.msra.mxu0 0.0
        %5175 = vmatprep.mubr.f32.mxu0 0.0
        %5176 = vmatmul.mubr.f32.gmra.mrb[0].mxu0 %v5109
        %v5177 = vpop.f32.mrb[0].mxu0
        %v5178 = vadd.f32 %v5107, %v5177
        %v5179 = vpop.f32.mrb[0].mxu0
        %5180 = vdwg.mxu0
        %v5181 = vadd.f32 %v4988, %v5178
        %v5182 = vld [vmem:[#allocation4 + $0x2d8] sm:$0xff]
        %v5183 = vld [vmem:[#allocation4 + $0x2e0] sm:$0xff]
        %v5184 = vld [vmem:[#allocation6 + $0x29] sm:$0x1]
        %v5185 = vlaneseq
        %v5186 = vshrl.u32 %v5185, 7
        %v5187 = vsub.s32 0, %v5186
        %v5188 = vrot.slane %v5184, %v5187
        %v5190 = vsel %vm1836, %v5181, 0
        %5192 = vmatprep.subr.mxu0 0.0
        %5193 = vmatpush1.msra.mxu0 %v5182
        %5194 = vmatprep.subr.mxu0 0.0
        %5195 = vmatpush1.msra.mxu0 %v5183
        %5196 = vmatprep.subr.mxu0 0.0
        %5197 = vmatpush1.msra.mxu0 0.0
        %5198 = vmatprep.subr.mxu0 0.0
        %5199 = vmatpush1.msra.mxu0 0.0
        %5200 = vmatprep.subr.mxu0 0.0
        %5201 = vmatpush1.msra.mxu0 0.0
        %5202 = vmatprep.subr.mxu0 0.0
        %5203 = vmatpush1.msra.mxu0 0.0
        %5204 = vmatprep.subr.mxu0 0.0
        %5205 = vmatpush1.msra.mxu0 0.0
        %5206 = vmatprep.subr.mxu0 0.0
        %5207 = vmatpush1.msra.mxu0 0.0
        %5208 = vmatprep.subr.mxu0 0.0
        %5209 = vmatpush1.msra.mxu0 0.0
        %5210 = vmatprep.subr.mxu0 0.0
        %5211 = vmatpush1.msra.mxu0 0.0
        %5212 = vmatprep.subr.mxu0 0.0
        %5213 = vmatpush1.msra.mxu0 0.0
        %5214 = vmatprep.subr.mxu0 0.0
        %5215 = vmatpush1.msra.mxu0 0.0
        %5216 = vmatprep.subr.mxu0 0.0
        %5217 = vmatpush1.msra.mxu0 0.0
        %5218 = vmatprep.subr.mxu0 0.0
        %5219 = vmatpush1.msra.mxu0 0.0
        %5220 = vmatprep.subr.mxu0 0.0
        %5221 = vmatpush1.msra.mxu0 0.0
        %5222 = vmatprep.subr.mxu0 0.0
        %5223 = vmatpush1.msra.mxu0 0.0
        %5224 = vmatprep.subr.mxu0 0.0
        %5225 = vmatpush1.msra.mxu0 0.0
        %5226 = vmatprep.subr.mxu0 0.0
        %5227 = vmatpush1.msra.mxu0 0.0
        %5228 = vmatprep.subr.mxu0 0.0
        %5229 = vmatpush1.msra.mxu0 0.0
        %5230 = vmatprep.subr.mxu0 0.0
        %5231 = vmatpush1.msra.mxu0 0.0
        %5232 = vmatprep.subr.mxu0 0.0
        %5233 = vmatpush1.msra.mxu0 0.0
        %5234 = vmatprep.subr.mxu0 0.0
        %5235 = vmatpush1.msra.mxu0 0.0
        %5236 = vmatprep.subr.mxu0 0.0
        %5237 = vmatpush1.msra.mxu0 0.0
        %5238 = vmatprep.subr.mxu0 0.0
        %5239 = vmatpush1.msra.mxu0 0.0
        %5240 = vmatprep.subr.mxu0 0.0
        %5241 = vmatpush1.msra.mxu0 0.0
        %5242 = vmatprep.subr.mxu0 0.0
        %5243 = vmatpush1.msra.mxu0 0.0
        %5244 = vmatprep.subr.mxu0 0.0
        %5245 = vmatpush1.msra.mxu0 0.0
        %5246 = vmatprep.subr.mxu0 0.0
        %5247 = vmatpush1.msra.mxu0 0.0
        %5248 = vmatprep.subr.mxu0 0.0
        %5249 = vmatpush1.msra.mxu0 0.0
        %5250 = vmatprep.subr.mxu0 0.0
        %5251 = vmatpush1.msra.mxu0 0.0
        %5252 = vmatprep.subr.mxu0 0.0
        %5253 = vmatpush1.msra.mxu0 0.0
        %5254 = vmatprep.subr.mxu0 0.0
        %5255 = vmatpush1.msra.mxu0 0.0
        %5256 = vmatprep.mubr.f32.mxu0 0.0
        %5257 = vmatmul.mubr.f32.gmra.mrb[0].mxu0 %v5190
        %v5258 = vpop.f32.mrb[0].mxu0
        %v5259 = vadd.f32 %v5188, %v5258
        %v5260 = vpop.f32.mrb[0].mxu0
        %5261 = vdwg.mxu0
        %v5262 = vmax.f32 %v5259, 0.0
        %v5263 = vld [vmem:[#allocation6 + $0x2a] sm:$0x1]
        %v5264 = vld [vmem:[#allocation6 + $0x2b] sm:$0x1]
        %v5265 = vsel %vm1058, %v5262, 0.0
        %5266 = vadd.xlane.f32.xlu0 %v5265
        %v5267 = vpop.xlane.xlu0 %5266
        %v5268 = vmul.f32 %v5267, %v1062
        %v5269 = vsub.f32 %v5262, %v5268
        %v5270 = vmul.f32 %v5269, %v5269
        %v5271 = vsel %vm1058, %v5270, 0.0
        %5272 = vadd.xlane.f32.xlu0 %v5271
        %v5273 = vpop.xlane.xlu0 %5272
        %v5274 = vmul.f32 %v5273, %v1062
        %v5275 = vadd.f32 %v5274, 1e-05
        %v5276 = vrsqrt.pop %v5275
        %v5277 = vmul.f32 %v5269, %v5276
        %v5278 = vlaneseq
        %v5279 = vshrl.u32 %v5278, 7
        %v5280 = vsub.s32 0, %v5279
        %v5281 = vrot.slane %v5263, %v5280
        %v5282 = vmul.f32 %v5277, %v5281
        %v5283 = vlaneseq
        %v5284 = vshrl.u32 %v5283, 7
        %v5285 = vsub.s32 0, %v5284
        %v5286 = vrot.slane %v5264, %v5285
        %v5287 = vadd.f32 %v5282, %v5286
        %v5288 = vld [vmem:[#allocation4 + $0x2e8] sm:$0xff]
        %v5289 = vld [vmem:[#allocation4 + $0x2f0] sm:$0xff]
        %v5290 = vld [vmem:[#allocation4 + $0x2f8] sm:$0xff]
        %v5291 = vld [vmem:[#allocation4 + $0x300] sm:$0xff]
        %v5293 = vsel %vm1058, %v5287, 0
        %5295 = vmatprep.subr.mxu0 0.0
        %5296 = vmatpush1.msra.mxu0 %v5288
        %5297 = vmatprep.subr.mxu0 0.0
        %5298 = vmatpush1.msra.mxu0 %v5289
        %5299 = vmatprep.subr.mxu0 0.0
        %5300 = vmatpush1.msra.mxu0 %v5290
        %5301 = vmatprep.subr.mxu0 0.0
        %5302 = vmatpush1.msra.mxu0 %v5291
        %5303 = vmatprep.subr.mxu0 0.0
        %5304 = vmatpush1.msra.mxu0 0.0
        %5305 = vmatprep.subr.mxu0 0.0
        %5306 = vmatpush1.msra.mxu0 0.0
        %5307 = vmatprep.subr.mxu0 0.0
        %5308 = vmatpush1.msra.mxu0 0.0
        %5309 = vmatprep.subr.mxu0 0.0
        %5310 = vmatpush1.msra.mxu0 0.0
        %5311 = vmatprep.subr.mxu0 0.0
        %5312 = vmatpush1.msra.mxu0 0.0
        %5313 = vmatprep.subr.mxu0 0.0
        %5314 = vmatpush1.msra.mxu0 0.0
        %5315 = vmatprep.subr.mxu0 0.0
        %5316 = vmatpush1.msra.mxu0 0.0
        %5317 = vmatprep.subr.mxu0 0.0
        %5318 = vmatpush1.msra.mxu0 0.0
        %5319 = vmatprep.subr.mxu0 0.0
        %5320 = vmatpush1.msra.mxu0 0.0
        %5321 = vmatprep.subr.mxu0 0.0
        %5322 = vmatpush1.msra.mxu0 0.0
        %5323 = vmatprep.subr.mxu0 0.0
        %5324 = vmatpush1.msra.mxu0 0.0
        %5325 = vmatprep.subr.mxu0 0.0
        %5326 = vmatpush1.msra.mxu0 0.0
        %5327 = vmatprep.subr.mxu0 0.0
        %5328 = vmatpush1.msra.mxu0 0.0
        %5329 = vmatprep.subr.mxu0 0.0
        %5330 = vmatpush1.msra.mxu0 0.0
        %5331 = vmatprep.subr.mxu0 0.0
        %5332 = vmatpush1.msra.mxu0 0.0
        %5333 = vmatprep.subr.mxu0 0.0
        %5334 = vmatpush1.msra.mxu0 0.0
        %5335 = vmatprep.subr.mxu0 0.0
        %5336 = vmatpush1.msra.mxu0 0.0
        %5337 = vmatprep.subr.mxu0 0.0
        %5338 = vmatpush1.msra.mxu0 0.0
        %5339 = vmatprep.subr.mxu0 0.0
        %5340 = vmatpush1.msra.mxu0 0.0
        %5341 = vmatprep.subr.mxu0 0.0
        %5342 = vmatpush1.msra.mxu0 0.0
        %5343 = vmatprep.subr.mxu0 0.0
        %5344 = vmatpush1.msra.mxu0 0.0
        %5345 = vmatprep.subr.mxu0 0.0
        %5346 = vmatpush1.msra.mxu0 0.0
        %5347 = vmatprep.subr.mxu0 0.0
        %5348 = vmatpush1.msra.mxu0 0.0
        %5349 = vmatprep.subr.mxu0 0.0
        %5350 = vmatpush1.msra.mxu0 0.0
        %5351 = vmatprep.subr.mxu0 0.0
        %5352 = vmatpush1.msra.mxu0 0.0
        %5353 = vmatprep.subr.mxu0 0.0
        %5354 = vmatpush1.msra.mxu0 0.0
        %5355 = vmatprep.subr.mxu0 0.0
        %5356 = vmatpush1.msra.mxu0 0.0
        %5357 = vmatprep.subr.mxu0 0.0
        %5358 = vmatpush1.msra.mxu0 0.0
        %5359 = vmatprep.mubr.f32.mxu0 0.0
        %5360 = vmatmul.mubr.f32.gmra.mrb[0].mxu0 %v5293
        %v5361 = vpop.f32.mrb[0].mxu0
        %v5362 = vadd.f32 0.0, %v5361
        %v5363 = vpop.f32.mrb[0].mxu0
        %5364 = vdwg.mxu0
        %5366 = vrot.lane.b32.xlu0 %v5362, 120
        %v5367 = vpop.permute.xlu0 %5366
        %5368 = vrot.lane.b32.xlu0 %v5362, 112
        %v5369 = vpop.permute.xlu0 %5368
        %5370 = vrot.lane.b32.xlu0 %v5362, 104
        %v5371 = vpop.permute.xlu0 %5370
        %5372 = vrot.lane.b32.xlu0 %v5362, 96
        %v5373 = vpop.permute.xlu0 %5372
        %v5374 = vsel %vm506, %v5362, 0
        %v5376 = vsel %vm506, %v5373, 0
        %5378 = vmatprep.subr.mxu0 0.0
        %5379 = vmatpush1.xpose.msra.mxu0 %v5376
        %5380 = vmatprep.subr.mxu0 0.0
        %5381 = vmatpush1.xpose.msra.mxu0 0.0
        %5382 = vmatprep.subr.mxu0 0.0
        %5383 = vmatpush1.xpose.msra.mxu0 0.0
        %5384 = vmatprep.subr.mxu0 0.0
        %5385 = vmatpush1.xpose.msra.mxu0 0.0
        %5386 = vmatprep.subr.mxu0 0.0
        %5387 = vmatpush1.xpose.msra.mxu0 0.0
        %5388 = vmatprep.subr.mxu0 0.0
        %5389 = vmatpush1.xpose.msra.mxu0 0.0
        %5390 = vmatprep.subr.mxu0 0.0
        %5391 = vmatpush1.xpose.msra.mxu0 0.0
        %5392 = vmatprep.subr.mxu0 0.0
        %5393 = vmatpush1.xpose.msra.mxu0 0.0
        %5394 = vmatprep.subr.mxu0 0.0
        %5395 = vmatpush1.xpose.msra.mxu0 0.0
        %5396 = vmatprep.subr.mxu0 0.0
        %5397 = vmatpush1.xpose.msra.mxu0 0.0
        %5398 = vmatprep.subr.mxu0 0.0
        %5399 = vmatpush1.xpose.msra.mxu0 0.0
        %5400 = vmatprep.subr.mxu0 0.0
        %5401 = vmatpush1.xpose.msra.mxu0 0.0
        %5402 = vmatprep.subr.mxu0 0.0
        %5403 = vmatpush1.xpose.msra.mxu0 0.0
        %5404 = vmatprep.subr.mxu0 0.0
        %5405 = vmatpush1.xpose.msra.mxu0 0.0
        %5406 = vmatprep.subr.mxu0 0.0
        %5407 = vmatpush1.xpose.msra.mxu0 0.0
        %5408 = vmatprep.subr.mxu0 0.0
        %5409 = vmatpush1.xpose.msra.mxu0 0.0
        %5410 = vmatprep.subr.mxu0 0.0
        %5411 = vmatpush1.xpose.msra.mxu0 0.0
        %5412 = vmatprep.subr.mxu0 0.0
        %5413 = vmatpush1.xpose.msra.mxu0 0.0
        %5414 = vmatprep.subr.mxu0 0.0
        %5415 = vmatpush1.xpose.msra.mxu0 0.0
        %5416 = vmatprep.subr.mxu0 0.0
        %5417 = vmatpush1.xpose.msra.mxu0 0.0
        %5418 = vmatprep.subr.mxu0 0.0
        %5419 = vmatpush1.xpose.msra.mxu0 0.0
        %5420 = vmatprep.subr.mxu0 0.0
        %5421 = vmatpush1.xpose.msra.mxu0 0.0
        %5422 = vmatprep.subr.mxu0 0.0
        %5423 = vmatpush1.xpose.msra.mxu0 0.0
        %5424 = vmatprep.subr.mxu0 0.0
        %5425 = vmatpush1.xpose.msra.mxu0 0.0
        %5426 = vmatprep.subr.mxu0 0.0
        %5427 = vmatpush1.xpose.msra.mxu0 0.0
        %5428 = vmatprep.subr.mxu0 0.0
        %5429 = vmatpush1.xpose.msra.mxu0 0.0
        %5430 = vmatprep.subr.mxu0 0.0
        %5431 = vmatpush1.xpose.msra.mxu0 0.0
        %5432 = vmatprep.subr.mxu0 0.0
        %5433 = vmatpush1.xpose.msra.mxu0 0.0
        %5434 = vmatprep.subr.mxu0 0.0
        %5435 = vmatpush1.xpose.msra.mxu0 0.0
        %5436 = vmatprep.subr.mxu0 0.0
        %5437 = vmatpush1.xpose.msra.mxu0 0.0
        %5438 = vmatprep.subr.mxu0 0.0
        %5439 = vmatpush1.xpose.msra.mxu0 0.0
        %5440 = vmatprep.subr.mxu0 0.0
        %5441 = vmatpush1.xpose.msra.mxu0 0.0
        %5442 = vmatprep.mubr.f32.mxu0 0.0
        %5443 = vmatmul.mubr.f32.gmra.mrb[0].mxu0 %v5374
        %v5444 = vpop.f32.mrb[0].mxu0
        %v5445 = vadd.f32 0.0, %v5444
        %v5446 = vpop.f32.mrb[0].mxu0
        %5447 = vdwg.mxu0
        %5448 = vrot.lane.b32.xlu0 %v5367, 96
        %v5449 = vpop.permute.xlu0 %5448
        %v5450 = vsel %vm506, %v5367, 0
        %v5452 = vsel %vm506, %v5449, 0
        %5454 = vmatprep.subr.mxu0 0.0
        %5455 = vmatpush1.xpose.msra.mxu0 %v5452
        %5456 = vmatprep.subr.mxu0 0.0
        %5457 = vmatpush1.xpose.msra.mxu0 0.0
        %5458 = vmatprep.subr.mxu0 0.0
        %5459 = vmatpush1.xpose.msra.mxu0 0.0
        %5460 = vmatprep.subr.mxu0 0.0
        %5461 = vmatpush1.xpose.msra.mxu0 0.0
        %5462 = vmatprep.subr.mxu0 0.0
        %5463 = vmatpush1.xpose.msra.mxu0 0.0
        %5464 = vmatprep.subr.mxu0 0.0
        %5465 = vmatpush1.xpose.msra.mxu0 0.0
        %5466 = vmatprep.subr.mxu0 0.0
        %5467 = vmatpush1.xpose.msra.mxu0 0.0
        %5468 = vmatprep.subr.mxu0 0.0
        %5469 = vmatpush1.xpose.msra.mxu0 0.0
        %5470 = vmatprep.subr.mxu0 0.0
        %5471 = vmatpush1.xpose.msra.mxu0 0.0
        %5472 = vmatprep.subr.mxu0 0.0
        %5473 = vmatpush1.xpose.msra.mxu0 0.0
        %5474 = vmatprep.subr.mxu0 0.0
        %5475 = vmatpush1.xpose.msra.mxu0 0.0
        %5476 = vmatprep.subr.mxu0 0.0
        %5477 = vmatpush1.xpose.msra.mxu0 0.0
        %5478 = vmatprep.subr.mxu0 0.0
        %5479 = vmatpush1.xpose.msra.mxu0 0.0
        %5480 = vmatprep.subr.mxu0 0.0
        %5481 = vmatpush1.xpose.msra.mxu0 0.0
        %5482 = vmatprep.subr.mxu0 0.0
        %5483 = vmatpush1.xpose.msra.mxu0 0.0
        %5484 = vmatprep.subr.mxu0 0.0
        %5485 = vmatpush1.xpose.msra.mxu0 0.0
        %5486 = vmatprep.subr.mxu0 0.0
        %5487 = vmatpush1.xpose.msra.mxu0 0.0
        %5488 = vmatprep.subr.mxu0 0.0
        %5489 = vmatpush1.xpose.msra.mxu0 0.0
        %5490 = vmatprep.subr.mxu0 0.0
        %5491 = vmatpush1.xpose.msra.mxu0 0.0
        %5492 = vmatprep.subr.mxu0 0.0
        %5493 = vmatpush1.xpose.msra.mxu0 0.0
        %5494 = vmatprep.subr.mxu0 0.0
        %5495 = vmatpush1.xpose.msra.mxu0 0.0
        %5496 = vmatprep.subr.mxu0 0.0
        %5497 = vmatpush1.xpose.msra.mxu0 0.0
        %5498 = vmatprep.subr.mxu0 0.0
        %5499 = vmatpush1.xpose.msra.mxu0 0.0
        %5500 = vmatprep.subr.mxu0 0.0
        %5501 = vmatpush1.xpose.msra.mxu0 0.0
        %5502 = vmatprep.subr.mxu0 0.0
        %5503 = vmatpush1.xpose.msra.mxu0 0.0
        %5504 = vmatprep.subr.mxu0 0.0
        %5505 = vmatpush1.xpose.msra.mxu0 0.0
        %5506 = vmatprep.subr.mxu0 0.0
        %5507 = vmatpush1.xpose.msra.mxu0 0.0
        %5508 = vmatprep.subr.mxu0 0.0
        %5509 = vmatpush1.xpose.msra.mxu0 0.0
        %5510 = vmatprep.subr.mxu0 0.0
        %5511 = vmatpush1.xpose.msra.mxu0 0.0
        %5512 = vmatprep.subr.mxu0 0.0
        %5513 = vmatpush1.xpose.msra.mxu0 0.0
        %5514 = vmatprep.subr.mxu0 0.0
        %5515 = vmatpush1.xpose.msra.mxu0 0.0
        %5516 = vmatprep.subr.mxu0 0.0
        %5517 = vmatpush1.xpose.msra.mxu0 0.0
        %5518 = vmatprep.mubr.f32.mxu0 0.0
        %5519 = vmatmul.mubr.f32.gmra.mrb[0].mxu0 %v5450
        %v5520 = vpop.f32.mrb[0].mxu0
        %v5521 = vadd.f32 0.0, %v5520
        %v5522 = vpop.f32.mrb[0].mxu0
        %5523 = vdwg.mxu0
        %5524 = vrot.lane.b32.xlu0 %v5369, 96
        %v5525 = vpop.permute.xlu0 %5524
        %v5526 = vsel %vm506, %v5369, 0
        %v5528 = vsel %vm506, %v5525, 0
        %5530 = vmatprep.subr.mxu0 0.0
        %5531 = vmatpush1.xpose.msra.mxu0 %v5528
        %5532 = vmatprep.subr.mxu0 0.0
        %5533 = vmatpush1.xpose.msra.mxu0 0.0
        %5534 = vmatprep.subr.mxu0 0.0
        %5535 = vmatpush1.xpose.msra.mxu0 0.0
        %5536 = vmatprep.subr.mxu0 0.0
        %5537 = vmatpush1.xpose.msra.mxu0 0.0
        %5538 = vmatprep.subr.mxu0 0.0
        %5539 = vmatpush1.xpose.msra.mxu0 0.0
        %5540 = vmatprep.subr.mxu0 0.0
        %5541 = vmatpush1.xpose.msra.mxu0 0.0
        %5542 = vmatprep.subr.mxu0 0.0
        %5543 = vmatpush1.xpose.msra.mxu0 0.0
        %5544 = vmatprep.subr.mxu0 0.0
        %5545 = vmatpush1.xpose.msra.mxu0 0.0
        %5546 = vmatprep.subr.mxu0 0.0
        %5547 = vmatpush1.xpose.msra.mxu0 0.0
        %5548 = vmatprep.subr.mxu0 0.0
        %5549 = vmatpush1.xpose.msra.mxu0 0.0
        %5550 = vmatprep.subr.mxu0 0.0
        %5551 = vmatpush1.xpose.msra.mxu0 0.0
        %5552 = vmatprep.subr.mxu0 0.0
        %5553 = vmatpush1.xpose.msra.mxu0 0.0
        %5554 = vmatprep.subr.mxu0 0.0
        %5555 = vmatpush1.xpose.msra.mxu0 0.0
        %5556 = vmatprep.subr.mxu0 0.0
        %5557 = vmatpush1.xpose.msra.mxu0 0.0
        %5558 = vmatprep.subr.mxu0 0.0
        %5559 = vmatpush1.xpose.msra.mxu0 0.0
        %5560 = vmatprep.subr.mxu0 0.0
        %5561 = vmatpush1.xpose.msra.mxu0 0.0
        %5562 = vmatprep.subr.mxu0 0.0
        %5563 = vmatpush1.xpose.msra.mxu0 0.0
        %5564 = vmatprep.subr.mxu0 0.0
        %5565 = vmatpush1.xpose.msra.mxu0 0.0
        %5566 = vmatprep.subr.mxu0 0.0
        %5567 = vmatpush1.xpose.msra.mxu0 0.0
        %5568 = vmatprep.subr.mxu0 0.0
        %5569 = vmatpush1.xpose.msra.mxu0 0.0
        %5570 = vmatprep.subr.mxu0 0.0
        %5571 = vmatpush1.xpose.msra.mxu0 0.0
        %5572 = vmatprep.subr.mxu0 0.0
        %5573 = vmatpush1.xpose.msra.mxu0 0.0
        %5574 = vmatprep.subr.mxu0 0.0
        %5575 = vmatpush1.xpose.msra.mxu0 0.0
        %5576 = vmatprep.subr.mxu0 0.0
        %5577 = vmatpush1.xpose.msra.mxu0 0.0
        %5578 = vmatprep.subr.mxu0 0.0
        %5579 = vmatpush1.xpose.msra.mxu0 0.0
        %5580 = vmatprep.subr.mxu0 0.0
        %5581 = vmatpush1.xpose.msra.mxu0 0.0
        %5582 = vmatprep.subr.mxu0 0.0
        %5583 = vmatpush1.xpose.msra.mxu0 0.0
        %5584 = vmatprep.subr.mxu0 0.0
        %5585 = vmatpush1.xpose.msra.mxu0 0.0
        %5586 = vmatprep.subr.mxu0 0.0
        %5587 = vmatpush1.xpose.msra.mxu0 0.0
        %5588 = vmatprep.subr.mxu0 0.0
        %5589 = vmatpush1.xpose.msra.mxu0 0.0
        %5590 = vmatprep.subr.mxu0 0.0
        %5591 = vmatpush1.xpose.msra.mxu0 0.0
        %5592 = vmatprep.subr.mxu0 0.0
        %5593 = vmatpush1.xpose.msra.mxu0 0.0
        %5594 = vmatprep.mubr.f32.mxu0 0.0
        %5595 = vmatmul.mubr.f32.gmra.mrb[0].mxu0 %v5526
        %v5596 = vpop.f32.mrb[0].mxu0
        %v5597 = vadd.f32 0.0, %v5596
        %v5598 = vpop.f32.mrb[0].mxu0
        %5599 = vdwg.mxu0
        %5600 = vrot.lane.b32.xlu0 %v5371, 96
        %v5601 = vpop.permute.xlu0 %5600
        %v5602 = vsel %vm506, %v5371, 0
        %v5604 = vsel %vm506, %v5601, 0
        %5606 = vmatprep.subr.mxu0 0.0
        %5607 = vmatpush1.xpose.msra.mxu0 %v5604
        %5608 = vmatprep.subr.mxu0 0.0
        %5609 = vmatpush1.xpose.msra.mxu0 0.0
        %5610 = vmatprep.subr.mxu0 0.0
        %5611 = vmatpush1.xpose.msra.mxu0 0.0
        %5612 = vmatprep.subr.mxu0 0.0
        %5613 = vmatpush1.xpose.msra.mxu0 0.0
        %5614 = vmatprep.subr.mxu0 0.0
        %5615 = vmatpush1.xpose.msra.mxu0 0.0
        %5616 = vmatprep.subr.mxu0 0.0
        %5617 = vmatpush1.xpose.msra.mxu0 0.0
        %5618 = vmatprep.subr.mxu0 0.0
        %5619 = vmatpush1.xpose.msra.mxu0 0.0
        %5620 = vmatprep.subr.mxu0 0.0
        %5621 = vmatpush1.xpose.msra.mxu0 0.0
        %5622 = vmatprep.subr.mxu0 0.0
        %5623 = vmatpush1.xpose.msra.mxu0 0.0
        %5624 = vmatprep.subr.mxu0 0.0
        %5625 = vmatpush1.xpose.msra.mxu0 0.0
        %5626 = vmatprep.subr.mxu0 0.0
        %5627 = vmatpush1.xpose.msra.mxu0 0.0
        %5628 = vmatprep.subr.mxu0 0.0
        %5629 = vmatpush1.xpose.msra.mxu0 0.0
        %5630 = vmatprep.subr.mxu0 0.0
        %5631 = vmatpush1.xpose.msra.mxu0 0.0
        %5632 = vmatprep.subr.mxu0 0.0
        %5633 = vmatpush1.xpose.msra.mxu0 0.0
        %5634 = vmatprep.subr.mxu0 0.0
        %5635 = vmatpush1.xpose.msra.mxu0 0.0
        %5636 = vmatprep.subr.mxu0 0.0
        %5637 = vmatpush1.xpose.msra.mxu0 0.0
        %5638 = vmatprep.subr.mxu0 0.0
        %5639 = vmatpush1.xpose.msra.mxu0 0.0
        %5640 = vmatprep.subr.mxu0 0.0
        %5641 = vmatpush1.xpose.msra.mxu0 0.0
        %5642 = vmatprep.subr.mxu0 0.0
        %5643 = vmatpush1.xpose.msra.mxu0 0.0
        %5644 = vmatprep.subr.mxu0 0.0
        %5645 = vmatpush1.xpose.msra.mxu0 0.0
        %5646 = vmatprep.subr.mxu0 0.0
        %5647 = vmatpush1.xpose.msra.mxu0 0.0
        %5648 = vmatprep.subr.mxu0 0.0
        %5649 = vmatpush1.xpose.msra.mxu0 0.0
        %5650 = vmatprep.subr.mxu0 0.0
        %5651 = vmatpush1.xpose.msra.mxu0 0.0
        %5652 = vmatprep.subr.mxu0 0.0
        %5653 = vmatpush1.xpose.msra.mxu0 0.0
        %5654 = vmatprep.subr.mxu0 0.0
        %5655 = vmatpush1.xpose.msra.mxu0 0.0
        %5656 = vmatprep.subr.mxu0 0.0
        %5657 = vmatpush1.xpose.msra.mxu0 0.0
        %5658 = vmatprep.subr.mxu0 0.0
        %5659 = vmatpush1.xpose.msra.mxu0 0.0
        %5660 = vmatprep.subr.mxu0 0.0
        %5661 = vmatpush1.xpose.msra.mxu0 0.0
        %5662 = vmatprep.subr.mxu0 0.0
        %5663 = vmatpush1.xpose.msra.mxu0 0.0
        %5664 = vmatprep.subr.mxu0 0.0
        %5665 = vmatpush1.xpose.msra.mxu0 0.0
        %5666 = vmatprep.subr.mxu0 0.0
        %5667 = vmatpush1.xpose.msra.mxu0 0.0
        %5668 = vmatprep.subr.mxu0 0.0
        %5669 = vmatpush1.xpose.msra.mxu0 0.0
        %5670 = vmatprep.mubr.f32.mxu0 0.0
        %5671 = vmatmul.mubr.f32.gmra.mrb[0].mxu0 %v5602
        %v5672 = vpop.f32.mrb[0].mxu0
        %v5673 = vadd.f32 0.0, %v5672
        %v5674 = vpop.f32.mrb[0].mxu0
        %5675 = vdwg.mxu0
        %v5676 = vmul.f32 %v5445, 0.35355338
        %v5677 = vmul.f32 %v5521, 0.35355338
        %v5678 = vmul.f32 %v5597, 0.35355338
        %v5679 = vmul.f32 %v5673, 0.35355338
        %v5680 = vsel %vm506, %v5676, -inf
        %5681 = vmax.xlane.f32.xlu0 %v5680
        %v5682 = vpop.xlane.xlu0 %5681
        %v5683 = vsel %vm506, %v5677, -inf
        %5684 = vmax.xlane.f32.xlu0 %v5683
        %v5685 = vpop.xlane.xlu0 %5684
        %v5686 = vsel %vm506, %v5678, -inf
        %5687 = vmax.xlane.f32.xlu0 %v5686
        %v5688 = vpop.xlane.xlu0 %5687
        %v5689 = vsel %vm506, %v5679, -inf
        %5690 = vmax.xlane.f32.xlu0 %v5689
        %v5691 = vpop.xlane.xlu0 %5690
        %v5692 = vsub.f32 %v5676, %v5682
        %v5693 = vsub.f32 %v5677, %v5685
        %v5694 = vsub.f32 %v5678, %v5688
        %v5695 = vsub.f32 %v5679, %v5691
        %v5696 = vmul.f32 %v5692, 1.442695
        %v5697 = vpow.pop %v5696
        %v5698 = vmul.f32 %v5693, 1.442695
        %v5699 = vpow.pop %v5698
        %v5700 = vmul.f32 %v5694, 1.442695
        %v5701 = vpow.pop %v5700
        %v5702 = vmul.f32 %v5695, 1.442695
        %v5703 = vpow.pop %v5702
        %v5704 = vsel %vm506, %v5697, 0.0
        %5705 = vadd.xlane.f32.xlu0 %v5704
        %v5706 = vpop.xlane.xlu0 %5705
        %v5707 = vsel %vm506, %v5699, 0.0
        %5708 = vadd.xlane.f32.xlu0 %v5707
        %v5709 = vpop.xlane.xlu0 %5708
        %v5710 = vsel %vm506, %v5701, 0.0
        %5711 = vadd.xlane.f32.xlu0 %v5710
        %v5712 = vpop.xlane.xlu0 %5711
        %v5713 = vsel %vm506, %v5703, 0.0
        %5714 = vadd.xlane.f32.xlu0 %v5713
        %v5715 = vpop.xlane.xlu0 %5714
        %v5716 = vrcp.pop %v5706
        %v5717 = vrcp.pop %v5709
        %v5718 = vrcp.pop %v5712
        %v5719 = vrcp.pop %v5715
        %v5720 = vmul.f32 %v5697, %v5716
        %v5721 = vmul.f32 %v5699, %v5717
        %v5722 = vmul.f32 %v5701, %v5718
        %v5723 = vmul.f32 %v5703, %v5719
        %5724 = vrot.lane.b32.xlu0 %v5362, 64
        %v5725 = vpop.permute.xlu0 %5724
        %v5728 = vsel %vm506, %v5720, 0
        %5730 = vmatprep.subr.mxu0 0.0
        %5731 = vmatpush1.msra.mxu0 %v5725
        %5732 = vmatprep.subr.mxu0 0.0
        %5733 = vmatpush1.msra.mxu0 0.0
        %5734 = vmatprep.subr.mxu0 0.0
        %5735 = vmatpush1.msra.mxu0 0.0
        %5736 = vmatprep.subr.mxu0 0.0
        %5737 = vmatpush1.msra.mxu0 0.0
        %5738 = vmatprep.subr.mxu0 0.0
        %5739 = vmatpush1.msra.mxu0 0.0
        %5740 = vmatprep.subr.mxu0 0.0
        %5741 = vmatpush1.msra.mxu0 0.0
        %5742 = vmatprep.subr.mxu0 0.0
        %5743 = vmatpush1.msra.mxu0 0.0
        %5744 = vmatprep.subr.mxu0 0.0
        %5745 = vmatpush1.msra.mxu0 0.0
        %5746 = vmatprep.subr.mxu0 0.0
        %5747 = vmatpush1.msra.mxu0 0.0
        %5748 = vmatprep.subr.mxu0 0.0
        %5749 = vmatpush1.msra.mxu0 0.0
        %5750 = vmatprep.subr.mxu0 0.0
        %5751 = vmatpush1.msra.mxu0 0.0
        %5752 = vmatprep.subr.mxu0 0.0
        %5753 = vmatpush1.msra.mxu0 0.0
        %5754 = vmatprep.subr.mxu0 0.0
        %5755 = vmatpush1.msra.mxu0 0.0
        %5756 = vmatprep.subr.mxu0 0.0
        %5757 = vmatpush1.msra.mxu0 0.0
        %5758 = vmatprep.subr.mxu0 0.0
        %5759 = vmatpush1.msra.mxu0 0.0
        %5760 = vmatprep.subr.mxu0 0.0
        %5761 = vmatpush1.msra.mxu0 0.0
        %5762 = vmatprep.subr.mxu0 0.0
        %5763 = vmatpush1.msra.mxu0 0.0
        %5764 = vmatprep.subr.mxu0 0.0
        %5765 = vmatpush1.msra.mxu0 0.0
        %5766 = vmatprep.subr.mxu0 0.0
        %5767 = vmatpush1.msra.mxu0 0.0
        %5768 = vmatprep.subr.mxu0 0.0
        %5769 = vmatpush1.msra.mxu0 0.0
        %5770 = vmatprep.subr.mxu0 0.0
        %5771 = vmatpush1.msra.mxu0 0.0
        %5772 = vmatprep.subr.mxu0 0.0
        %5773 = vmatpush1.msra.mxu0 0.0
        %5774 = vmatprep.subr.mxu0 0.0
        %5775 = vmatpush1.msra.mxu0 0.0
        %5776 = vmatprep.subr.mxu0 0.0
        %5777 = vmatpush1.msra.mxu0 0.0
        %5778 = vmatprep.subr.mxu0 0.0
        %5779 = vmatpush1.msra.mxu0 0.0
        %5780 = vmatprep.subr.mxu0 0.0
        %5781 = vmatpush1.msra.mxu0 0.0
        %5782 = vmatprep.subr.mxu0 0.0
        %5783 = vmatpush1.msra.mxu0 0.0
        %5784 = vmatprep.subr.mxu0 0.0
        %5785 = vmatpush1.msra.mxu0 0.0
        %5786 = vmatprep.subr.mxu0 0.0
        %5787 = vmatpush1.msra.mxu0 0.0
        %5788 = vmatprep.subr.mxu0 0.0
        %5789 = vmatpush1.msra.mxu0 0.0
        %5790 = vmatprep.subr.mxu0 0.0
        %5791 = vmatpush1.msra.mxu0 0.0
        %5792 = vmatprep.subr.mxu0 0.0
        %5793 = vmatpush1.msra.mxu0 0.0
        %5794 = vmatprep.mubr.f32.mxu0 0.0
        %5795 = vmatmul.mubr.f32.gmra.mrb[0].mxu0 %v5728
        %v5796 = vpop.f32.mrb[0].mxu0
        %v5797 = vadd.f32 0.0, %v5796
        %v5798 = vpop.f32.mrb[0].mxu0
        %5799 = vdwg.mxu0
        %5800 = vrot.lane.b32.xlu0 %v5367, 64
        %v5801 = vpop.permute.xlu0 %5800
        %v5804 = vsel %vm506, %v5721, 0
        %5806 = vmatprep.subr.mxu0 0.0
        %5807 = vmatpush1.msra.mxu0 %v5801
        %5808 = vmatprep.subr.mxu0 0.0
        %5809 = vmatpush1.msra.mxu0 0.0
        %5810 = vmatprep.subr.mxu0 0.0
        %5811 = vmatpush1.msra.mxu0 0.0
        %5812 = vmatprep.subr.mxu0 0.0
        %5813 = vmatpush1.msra.mxu0 0.0
        %5814 = vmatprep.subr.mxu0 0.0
        %5815 = vmatpush1.msra.mxu0 0.0
        %5816 = vmatprep.subr.mxu0 0.0
        %5817 = vmatpush1.msra.mxu0 0.0
        %5818 = vmatprep.subr.mxu0 0.0
        %5819 = vmatpush1.msra.mxu0 0.0
        %5820 = vmatprep.subr.mxu0 0.0
        %5821 = vmatpush1.msra.mxu0 0.0
        %5822 = vmatprep.subr.mxu0 0.0
        %5823 = vmatpush1.msra.mxu0 0.0
        %5824 = vmatprep.subr.mxu0 0.0
        %5825 = vmatpush1.msra.mxu0 0.0
        %5826 = vmatprep.subr.mxu0 0.0
        %5827 = vmatpush1.msra.mxu0 0.0
        %5828 = vmatprep.subr.mxu0 0.0
        %5829 = vmatpush1.msra.mxu0 0.0
        %5830 = vmatprep.subr.mxu0 0.0
        %5831 = vmatpush1.msra.mxu0 0.0
        %5832 = vmatprep.subr.mxu0 0.0
        %5833 = vmatpush1.msra.mxu0 0.0
        %5834 = vmatprep.subr.mxu0 0.0
        %5835 = vmatpush1.msra.mxu0 0.0
        %5836 = vmatprep.subr.mxu0 0.0
        %5837 = vmatpush1.msra.mxu0 0.0
        %5838 = vmatprep.subr.mxu0 0.0
        %5839 = vmatpush1.msra.mxu0 0.0
        %5840 = vmatprep.subr.mxu0 0.0
        %5841 = vmatpush1.msra.mxu0 0.0
        %5842 = vmatprep.subr.mxu0 0.0
        %5843 = vmatpush1.msra.mxu0 0.0
        %5844 = vmatprep.subr.mxu0 0.0
        %5845 = vmatpush1.msra.mxu0 0.0
        %5846 = vmatprep.subr.mxu0 0.0
        %5847 = vmatpush1.msra.mxu0 0.0
        %5848 = vmatprep.subr.mxu0 0.0
        %5849 = vmatpush1.msra.mxu0 0.0
        %5850 = vmatprep.subr.mxu0 0.0
        %5851 = vmatpush1.msra.mxu0 0.0
        %5852 = vmatprep.subr.mxu0 0.0
        %5853 = vmatpush1.msra.mxu0 0.0
        %5854 = vmatprep.subr.mxu0 0.0
        %5855 = vmatpush1.msra.mxu0 0.0
        %5856 = vmatprep.subr.mxu0 0.0
        %5857 = vmatpush1.msra.mxu0 0.0
        %5858 = vmatprep.subr.mxu0 0.0
        %5859 = vmatpush1.msra.mxu0 0.0
        %5860 = vmatprep.subr.mxu0 0.0
        %5861 = vmatpush1.msra.mxu0 0.0
        %5862 = vmatprep.subr.mxu0 0.0
        %5863 = vmatpush1.msra.mxu0 0.0
        %5864 = vmatprep.subr.mxu0 0.0
        %5865 = vmatpush1.msra.mxu0 0.0
        %5866 = vmatprep.subr.mxu0 0.0
        %5867 = vmatpush1.msra.mxu0 0.0
        %5868 = vmatprep.subr.mxu0 0.0
        %5869 = vmatpush1.msra.mxu0 0.0
        %5870 = vmatprep.mubr.f32.mxu0 0.0
        %5871 = vmatmul.mubr.f32.gmra.mrb[0].mxu0 %v5804
        %v5872 = vpop.f32.mrb[0].mxu0
        %v5873 = vadd.f32 0.0, %v5872
        %v5874 = vpop.f32.mrb[0].mxu0
        %5875 = vdwg.mxu0
        %5876 = vrot.lane.b32.xlu0 %v5369, 64
        %v5877 = vpop.permute.xlu0 %5876
        %v5880 = vsel %vm506, %v5722, 0
        %5882 = vmatprep.subr.mxu0 0.0
        %5883 = vmatpush1.msra.mxu0 %v5877
        %5884 = vmatprep.subr.mxu0 0.0
        %5885 = vmatpush1.msra.mxu0 0.0
        %5886 = vmatprep.subr.mxu0 0.0
        %5887 = vmatpush1.msra.mxu0 0.0
        %5888 = vmatprep.subr.mxu0 0.0
        %5889 = vmatpush1.msra.mxu0 0.0
        %5890 = vmatprep.subr.mxu0 0.0
        %5891 = vmatpush1.msra.mxu0 0.0
        %5892 = vmatprep.subr.mxu0 0.0
        %5893 = vmatpush1.msra.mxu0 0.0
        %5894 = vmatprep.subr.mxu0 0.0
        %5895 = vmatpush1.msra.mxu0 0.0
        %5896 = vmatprep.subr.mxu0 0.0
        %5897 = vmatpush1.msra.mxu0 0.0
        %5898 = vmatprep.subr.mxu0 0.0
        %5899 = vmatpush1.msra.mxu0 0.0
        %5900 = vmatprep.subr.mxu0 0.0
        %5901 = vmatpush1.msra.mxu0 0.0
        %5902 = vmatprep.subr.mxu0 0.0
        %5903 = vmatpush1.msra.mxu0 0.0
        %5904 = vmatprep.subr.mxu0 0.0
        %5905 = vmatpush1.msra.mxu0 0.0
        %5906 = vmatprep.subr.mxu0 0.0
        %5907 = vmatpush1.msra.mxu0 0.0
        %5908 = vmatprep.subr.mxu0 0.0
        %5909 = vmatpush1.msra.mxu0 0.0
        %5910 = vmatprep.subr.mxu0 0.0
        %5911 = vmatpush1.msra.mxu0 0.0
        %5912 = vmatprep.subr.mxu0 0.0
        %5913 = vmatpush1.msra.mxu0 0.0
        %5914 = vmatprep.subr.mxu0 0.0
        %5915 = vmatpush1.msra.mxu0 0.0
        %5916 = vmatprep.subr.mxu0 0.0
        %5917 = vmatpush1.msra.mxu0 0.0
        %5918 = vmatprep.subr.mxu0 0.0
        %5919 = vmatpush1.msra.mxu0 0.0
        %5920 = vmatprep.subr.mxu0 0.0
        %5921 = vmatpush1.msra.mxu0 0.0
        %5922 = vmatprep.subr.mxu0 0.0
        %5923 = vmatpush1.msra.mxu0 0.0
        %5924 = vmatprep.subr.mxu0 0.0
        %5925 = vmatpush1.msra.mxu0 0.0
        %5926 = vmatprep.subr.mxu0 0.0
        %5927 = vmatpush1.msra.mxu0 0.0
        %5928 = vmatprep.subr.mxu0 0.0
        %5929 = vmatpush1.msra.mxu0 0.0
        %5930 = vmatprep.subr.mxu0 0.0
        %5931 = vmatpush1.msra.mxu0 0.0
        %5932 = vmatprep.subr.mxu0 0.0
        %5933 = vmatpush1.msra.mxu0 0.0
        %5934 = vmatprep.subr.mxu0 0.0
        %5935 = vmatpush1.msra.mxu0 0.0
        %5936 = vmatprep.subr.mxu0 0.0
        %5937 = vmatpush1.msra.mxu0 0.0
        %5938 = vmatprep.subr.mxu0 0.0
        %5939 = vmatpush1.msra.mxu0 0.0
        %5940 = vmatprep.subr.mxu0 0.0
        %5941 = vmatpush1.msra.mxu0 0.0
        %5942 = vmatprep.subr.mxu0 0.0
        %5943 = vmatpush1.msra.mxu0 0.0
        %5944 = vmatprep.subr.mxu0 0.0
        %5945 = vmatpush1.msra.mxu0 0.0
        %5946 = vmatprep.mubr.f32.mxu0 0.0
        %5947 = vmatmul.mubr.f32.gmra.mrb[0].mxu0 %v5880
        %v5948 = vpop.f32.mrb[0].mxu0
        %v5949 = vadd.f32 0.0, %v5948
        %v5950 = vpop.f32.mrb[0].mxu0
        %5951 = vdwg.mxu0
        %5952 = vrot.lane.b32.xlu0 %v5371, 64
        %v5953 = vpop.permute.xlu0 %5952
        %v5956 = vsel %vm506, %v5723, 0
        %5958 = vmatprep.subr.mxu0 0.0
        %5959 = vmatpush1.msra.mxu0 %v5953
        %5960 = vmatprep.subr.mxu0 0.0
        %5961 = vmatpush1.msra.mxu0 0.0
        %5962 = vmatprep.subr.mxu0 0.0
        %5963 = vmatpush1.msra.mxu0 0.0
        %5964 = vmatprep.subr.mxu0 0.0
        %5965 = vmatpush1.msra.mxu0 0.0
        %5966 = vmatprep.subr.mxu0 0.0
        %5967 = vmatpush1.msra.mxu0 0.0
        %5968 = vmatprep.subr.mxu0 0.0
        %5969 = vmatpush1.msra.mxu0 0.0
        %5970 = vmatprep.subr.mxu0 0.0
        %5971 = vmatpush1.msra.mxu0 0.0
        %5972 = vmatprep.subr.mxu0 0.0
        %5973 = vmatpush1.msra.mxu0 0.0
        %5974 = vmatprep.subr.mxu0 0.0
        %5975 = vmatpush1.msra.mxu0 0.0
        %5976 = vmatprep.subr.mxu0 0.0
        %5977 = vmatpush1.msra.mxu0 0.0
        %5978 = vmatprep.subr.mxu0 0.0
        %5979 = vmatpush1.msra.mxu0 0.0
        %5980 = vmatprep.subr.mxu0 0.0
        %5981 = vmatpush1.msra.mxu0 0.0
        %5982 = vmatprep.subr.mxu0 0.0
        %5983 = vmatpush1.msra.mxu0 0.0
        %5984 = vmatprep.subr.mxu0 0.0
        %5985 = vmatpush1.msra.mxu0 0.0
        %5986 = vmatprep.subr.mxu0 0.0
        %5987 = vmatpush1.msra.mxu0 0.0
        %5988 = vmatprep.subr.mxu0 0.0
        %5989 = vmatpush1.msra.mxu0 0.0
        %5990 = vmatprep.subr.mxu0 0.0
        %5991 = vmatpush1.msra.mxu0 0.0
        %5992 = vmatprep.subr.mxu0 0.0
        %5993 = vmatpush1.msra.mxu0 0.0
        %5994 = vmatprep.subr.mxu0 0.0
        %5995 = vmatpush1.msra.mxu0 0.0
        %5996 = vmatprep.subr.mxu0 0.0
        %5997 = vmatpush1.msra.mxu0 0.0
        %5998 = vmatprep.subr.mxu0 0.0
        %5999 = vmatpush1.msra.mxu0 0.0
        %6000 = vmatprep.subr.mxu0 0.0
        %6001 = vmatpush1.msra.mxu0 0.0
        %6002 = vmatprep.subr.mxu0 0.0
        %6003 = vmatpush1.msra.mxu0 0.0
        %6004 = vmatprep.subr.mxu0 0.0
        %6005 = vmatpush1.msra.mxu0 0.0
        %6006 = vmatprep.subr.mxu0 0.0
        %6007 = vmatpush1.msra.mxu0 0.0
        %6008 = vmatprep.subr.mxu0 0.0
        %6009 = vmatpush1.msra.mxu0 0.0
        %6010 = vmatprep.subr.mxu0 0.0
        %6011 = vmatpush1.msra.mxu0 0.0
        %6012 = vmatprep.subr.mxu0 0.0
        %6013 = vmatpush1.msra.mxu0 0.0
        %6014 = vmatprep.subr.mxu0 0.0
        %6015 = vmatpush1.msra.mxu0 0.0
        %6016 = vmatprep.subr.mxu0 0.0
        %6017 = vmatpush1.msra.mxu0 0.0
        %6018 = vmatprep.subr.mxu0 0.0
        %6019 = vmatpush1.msra.mxu0 0.0
        %6020 = vmatprep.subr.mxu0 0.0
        %6021 = vmatpush1.msra.mxu0 0.0
        %6022 = vmatprep.mubr.f32.mxu0 0.0
        %6023 = vmatmul.mubr.f32.gmra.mrb[0].mxu0 %v5956
        %v6024 = vpop.f32.mrb[0].mxu0
        %v6025 = vadd.f32 0.0, %v6024
        %v6026 = vpop.f32.mrb[0].mxu0
        %6027 = vdwg.mxu0
        %6029 = vrot.lane.b32.xlu0 %v5873, 8
        %v6030 = vpop.permute.xlu0 %6029
        %6033 = vrot.lane.b32.xlu0 %v5949, 16
        %v6034 = vpop.permute.xlu0 %6033
        %6037 = vrot.lane.b32.xlu0 %v6025, 24
        %v6038 = vpop.permute.xlu0 %6037
        %v6040 = vsel %vm506, %v5797, %v6030
        %v6041 = vsel %vm1836, %v6040, %v6034
        %v6042 = vsel %vm1838, %v6041, %v6038
        %v6043 = vld [vmem:[#allocation4 + $0x308] sm:$0xff]
        %v6044 = vld [vmem:[#allocation4 + $0x310] sm:$0xff]
        %v6045 = vld [vmem:[#allocation4 + $0x318] sm:$0xff]
        %v6046 = vld [vmem:[#allocation4 + $0x320] sm:$0xff]
        %v6048 = vsel %vm1058, %v6042, 0
        %6050 = vmatprep.subr.mxu0 0.0
        %6051 = vmatpush1.msra.mxu0 %v6043
        %6052 = vmatprep.subr.mxu0 0.0
        %6053 = vmatpush1.msra.mxu0 %v6044
        %6054 = vmatprep.subr.mxu0 0.0
        %6055 = vmatpush1.msra.mxu0 %v6045
        %6056 = vmatprep.subr.mxu0 0.0
        %6057 = vmatpush1.msra.mxu0 %v6046
        %6058 = vmatprep.subr.mxu0 0.0
        %6059 = vmatpush1.msra.mxu0 0.0
        %6060 = vmatprep.subr.mxu0 0.0
        %6061 = vmatpush1.msra.mxu0 0.0
        %6062 = vmatprep.subr.mxu0 0.0
        %6063 = vmatpush1.msra.mxu0 0.0
        %6064 = vmatprep.subr.mxu0 0.0
        %6065 = vmatpush1.msra.mxu0 0.0
        %6066 = vmatprep.subr.mxu0 0.0
        %6067 = vmatpush1.msra.mxu0 0.0
        %6068 = vmatprep.subr.mxu0 0.0
        %6069 = vmatpush1.msra.mxu0 0.0
        %6070 = vmatprep.subr.mxu0 0.0
        %6071 = vmatpush1.msra.mxu0 0.0
        %6072 = vmatprep.subr.mxu0 0.0
        %6073 = vmatpush1.msra.mxu0 0.0
        %6074 = vmatprep.subr.mxu0 0.0
        %6075 = vmatpush1.msra.mxu0 0.0
        %6076 = vmatprep.subr.mxu0 0.0
        %6077 = vmatpush1.msra.mxu0 0.0
        %6078 = vmatprep.subr.mxu0 0.0
        %6079 = vmatpush1.msra.mxu0 0.0
        %6080 = vmatprep.subr.mxu0 0.0
        %6081 = vmatpush1.msra.mxu0 0.0
        %6082 = vmatprep.subr.mxu0 0.0
        %6083 = vmatpush1.msra.mxu0 0.0
        %6084 = vmatprep.subr.mxu0 0.0
        %6085 = vmatpush1.msra.mxu0 0.0
        %6086 = vmatprep.subr.mxu0 0.0
        %6087 = vmatpush1.msra.mxu0 0.0
        %6088 = vmatprep.subr.mxu0 0.0
        %6089 = vmatpush1.msra.mxu0 0.0
        %6090 = vmatprep.subr.mxu0 0.0
        %6091 = vmatpush1.msra.mxu0 0.0
        %6092 = vmatprep.subr.mxu0 0.0
        %6093 = vmatpush1.msra.mxu0 0.0
        %6094 = vmatprep.subr.mxu0 0.0
        %6095 = vmatpush1.msra.mxu0 0.0
        %6096 = vmatprep.subr.mxu0 0.0
        %6097 = vmatpush1.msra.mxu0 0.0
        %6098 = vmatprep.subr.mxu0 0.0
        %6099 = vmatpush1.msra.mxu0 0.0
        %6100 = vmatprep.subr.mxu0 0.0
        %6101 = vmatpush1.msra.mxu0 0.0
        %6102 = vmatprep.subr.mxu0 0.0
        %6103 = vmatpush1.msra.mxu0 0.0
        %6104 = vmatprep.subr.mxu0 0.0
        %6105 = vmatpush1.msra.mxu0 0.0
        %6106 = vmatprep.subr.mxu0 0.0
        %6107 = vmatpush1.msra.mxu0 0.0
        %6108 = vmatprep.subr.mxu0 0.0
        %6109 = vmatpush1.msra.mxu0 0.0
        %6110 = vmatprep.subr.mxu0 0.0
        %6111 = vmatpush1.msra.mxu0 0.0
        %6112 = vmatprep.subr.mxu0 0.0
        %6113 = vmatpush1.msra.mxu0 0.0
        %6114 = vmatprep.mubr.f32.mxu0 0.0
        %6115 = vmatmul.mubr.f32.gmra.mrb[0].mxu0 %v6048
        %v6116 = vpop.f32.mrb[0].mxu0
        %v6117 = vadd.f32 0.0, %v6116
        %v6118 = vpop.f32.mrb[0].mxu0
        %6119 = vdwg.mxu0
        %v6120 = vadd.f32 %v5262, %v6117
        %v6121 = vld [vmem:[#allocation6 + $0x2c] sm:$0x1]
        %v6122 = vlaneseq
        %v6123 = vshrl.u32 %v6122, 7
        %v6124 = vsub.s32 0, %v6123
        %v6125 = vrot.slane %v6121, %v6124
        %v6126 = vadd.f32 %v6120, %v6125
        %v6127 = vld [vmem:[#allocation6 + $0x2d] sm:$0x1]
        %v6128 = vld [vmem:[#allocation6 + $0x2e] sm:$0x1]
        %v6129 = vsel %vm1058, %v6126, 0.0
        %6130 = vadd.xlane.f32.xlu0 %v6129
        %v6131 = vpop.xlane.xlu0 %6130
        %v6132 = vmul.f32 %v6131, %v1062
        %v6133 = vsub.f32 %v6126, %v6132
        %v6134 = vmul.f32 %v6133, %v6133
        %v6135 = vsel %vm1058, %v6134, 0.0
        %6136 = vadd.xlane.f32.xlu0 %v6135
        %v6137 = vpop.xlane.xlu0 %6136
        %v6138 = vmul.f32 %v6137, %v1062
        %v6139 = vadd.f32 %v6138, 1e-05
        %v6140 = vrsqrt.pop %v6139
        %v6141 = vmul.f32 %v6133, %v6140
        %v6142 = vlaneseq
        %v6143 = vshrl.u32 %v6142, 7
        %v6144 = vsub.s32 0, %v6143
        %v6145 = vrot.slane %v6127, %v6144
        %v6146 = vmul.f32 %v6141, %v6145
        %v6147 = vlaneseq
        %v6148 = vshrl.u32 %v6147, 7
        %v6149 = vsub.s32 0, %v6148
        %v6150 = vrot.slane %v6128, %v6149
        %v6151 = vadd.f32 %v6146, %v6150
        %v6152 = vld [vmem:[#allocation4 + $0x328] sm:$0xff]
        %v6153 = vld [vmem:[#allocation4 + $0x330] sm:$0xff]
        %v6154 = vld [vmem:[#allocation4 + $0x338] sm:$0xff]
        %v6155 = vld [vmem:[#allocation4 + $0x340] sm:$0xff]
        %v6156 = vld [vmem:[#allocation6 + $0x2f] sm:$0x1]
        %v6157 = vlaneseq
        %v6158 = vshrl.u32 %v6157, 7
        %v6159 = vsub.s32 0, %v6158
        %v6160 = vrot.slane %v6156, %v6159
        %v6162 = vsel %vm1058, %v6151, 0
        %6164 = vmatprep.subr.mxu0 0.0
        %6165 = vmatpush1.msra.mxu0 %v6152
        %6166 = vmatprep.subr.mxu0 0.0
        %6167 = vmatpush1.msra.mxu0 %v6153
        %6168 = vmatprep.subr.mxu0 0.0
        %6169 = vmatpush1.msra.mxu0 %v6154
        %6170 = vmatprep.subr.mxu0 0.0
        %6171 = vmatpush1.msra.mxu0 %v6155
        %6172 = vmatprep.subr.mxu0 0.0
        %6173 = vmatpush1.msra.mxu0 0.0
        %6174 = vmatprep.subr.mxu0 0.0
        %6175 = vmatpush1.msra.mxu0 0.0
        %6176 = vmatprep.subr.mxu0 0.0
        %6177 = vmatpush1.msra.mxu0 0.0
        %6178 = vmatprep.subr.mxu0 0.0
        %6179 = vmatpush1.msra.mxu0 0.0
        %6180 = vmatprep.subr.mxu0 0.0
        %6181 = vmatpush1.msra.mxu0 0.0
        %6182 = vmatprep.subr.mxu0 0.0
        %6183 = vmatpush1.msra.mxu0 0.0
        %6184 = vmatprep.subr.mxu0 0.0
        %6185 = vmatpush1.msra.mxu0 0.0
        %6186 = vmatprep.subr.mxu0 0.0
        %6187 = vmatpush1.msra.mxu0 0.0
        %6188 = vmatprep.subr.mxu0 0.0
        %6189 = vmatpush1.msra.mxu0 0.0
        %6190 = vmatprep.subr.mxu0 0.0
        %6191 = vmatpush1.msra.mxu0 0.0
        %6192 = vmatprep.subr.mxu0 0.0
        %6193 = vmatpush1.msra.mxu0 0.0
        %6194 = vmatprep.subr.mxu0 0.0
        %6195 = vmatpush1.msra.mxu0 0.0
        %6196 = vmatprep.subr.mxu0 0.0
        %6197 = vmatpush1.msra.mxu0 0.0
        %6198 = vmatprep.subr.mxu0 0.0
        %6199 = vmatpush1.msra.mxu0 0.0
        %6200 = vmatprep.subr.mxu0 0.0
        %6201 = vmatpush1.msra.mxu0 0.0
        %6202 = vmatprep.subr.mxu0 0.0
        %6203 = vmatpush1.msra.mxu0 0.0
        %6204 = vmatprep.subr.mxu0 0.0
        %6205 = vmatpush1.msra.mxu0 0.0
        %6206 = vmatprep.subr.mxu0 0.0
        %6207 = vmatpush1.msra.mxu0 0.0
        %6208 = vmatprep.subr.mxu0 0.0
        %6209 = vmatpush1.msra.mxu0 0.0
        %6210 = vmatprep.subr.mxu0 0.0
        %6211 = vmatpush1.msra.mxu0 0.0
        %6212 = vmatprep.subr.mxu0 0.0
        %6213 = vmatpush1.msra.mxu0 0.0
        %6214 = vmatprep.subr.mxu0 0.0
        %6215 = vmatpush1.msra.mxu0 0.0
        %6216 = vmatprep.subr.mxu0 0.0
        %6217 = vmatpush1.msra.mxu0 0.0
        %6218 = vmatprep.subr.mxu0 0.0
        %6219 = vmatpush1.msra.mxu0 0.0
        %6220 = vmatprep.subr.mxu0 0.0
        %6221 = vmatpush1.msra.mxu0 0.0
        %6222 = vmatprep.subr.mxu0 0.0
        %6223 = vmatpush1.msra.mxu0 0.0
        %6224 = vmatprep.subr.mxu0 0.0
        %6225 = vmatpush1.msra.mxu0 0.0
        %6226 = vmatprep.subr.mxu0 0.0
        %6227 = vmatpush1.msra.mxu0 0.0
        %6228 = vmatprep.mubr.f32.mxu0 0.0
        %6229 = vmatmul.mubr.f32.gmra.mrb[0].mxu0 %v6162
        %v6230 = vpop.f32.mrb[0].mxu0
        %v6231 = vadd.f32 %v6160, %v6230
        %v6232 = vpop.f32.mrb[0].mxu0
        %6233 = vdwg.mxu0
        %v6234 = vmax.f32 %v6231, 0.0
        %v6235 = vld [vmem:[#allocation4 + $0x348] sm:$0xff]
        %v6236 = vld [vmem:[#allocation4 + $0x350] sm:$0xff]
        %v6237 = vld [vmem:[#allocation4 + $0x358] sm:$0xff]
        %v6238 = vld [vmem:[#allocation4 + $0x360] sm:$0xff]
        %v6239 = vld [vmem:[#allocation4 + $0x368] sm:$0xff]
        %v6240 = vld [vmem:[#allocation4 + $0x370] sm:$0xff]
        %v6241 = vld [vmem:[#allocation4 + $0x378] sm:$0xff]
        %v6242 = vld [vmem:[#allocation4 + $0x380] sm:$0xff]
        %v6243 = vld [vmem:[#allocation4 + $0x388] sm:$0xff]
        %v6244 = vld [vmem:[#allocation4 + $0x390] sm:$0xff]
        %v6245 = vld [vmem:[#allocation4 + $0x398] sm:$0xff]
        %v6246 = vld [vmem:[#allocation4 + $0x3a0] sm:$0xff]
        %v6247 = vld [vmem:[#allocation4 + $0x3a8] sm:$0xff]
        %v6248 = vld [vmem:[#allocation4 + $0x3b0] sm:$0xff]
        %v6249 = vld [vmem:[#allocation4 + $0x3b8] sm:$0xff]
        %v6250 = vld [vmem:[#allocation4 + $0x3c0] sm:$0xff]
        %v6251 = vld [vmem:[#allocation6 + $0x30] sm:$0x1]
        %v6252 = vlaneseq
        %v6253 = vshrl.u32 %v6252, 7
        %v6254 = vsub.s32 0, %v6253
        %v6255 = vrot.slane %v6251, %v6254
        %6256 = vmatprep.subr.mxu0 0.0
        %6257 = vmatpush1.msra.mxu0 %v6235
        %6258 = vmatprep.subr.mxu0 0.0
        %6259 = vmatpush1.msra.mxu0 %v6236
        %6260 = vmatprep.subr.mxu0 0.0
        %6261 = vmatpush1.msra.mxu0 %v6237
        %6262 = vmatprep.subr.mxu0 0.0
        %6263 = vmatpush1.msra.mxu0 %v6238
        %6264 = vmatprep.subr.mxu0 0.0
        %6265 = vmatpush1.msra.mxu0 %v6239
        %6266 = vmatprep.subr.mxu0 0.0
        %6267 = vmatpush1.msra.mxu0 %v6240
        %6268 = vmatprep.subr.mxu0 0.0
        %6269 = vmatpush1.msra.mxu0 %v6241
        %6270 = vmatprep.subr.mxu0 0.0
        %6271 = vmatpush1.msra.mxu0 %v6242
        %6272 = vmatprep.subr.mxu0 0.0
        %6273 = vmatpush1.msra.mxu0 %v6243
        %6274 = vmatprep.subr.mxu0 0.0
        %6275 = vmatpush1.msra.mxu0 %v6244
        %6276 = vmatprep.subr.mxu0 0.0
        %6277 = vmatpush1.msra.mxu0 %v6245
        %6278 = vmatprep.subr.mxu0 0.0
        %6279 = vmatpush1.msra.mxu0 %v6246
        %6280 = vmatprep.subr.mxu0 0.0
        %6281 = vmatpush1.msra.mxu0 %v6247
        %6282 = vmatprep.subr.mxu0 0.0
        %6283 = vmatpush1.msra.mxu0 %v6248
        %6284 = vmatprep.subr.mxu0 0.0
        %6285 = vmatpush1.msra.mxu0 %v6249
        %6286 = vmatprep.subr.mxu0 0.0
        %6287 = vmatpush1.msra.mxu0 %v6250
        %6288 = vmatprep.subr.mxu0 0.0
        %6289 = vmatpush1.msra.mxu0 0.0
        %6290 = vmatprep.subr.mxu0 0.0
        %6291 = vmatpush1.msra.mxu0 0.0
        %6292 = vmatprep.subr.mxu0 0.0
        %6293 = vmatpush1.msra.mxu0 0.0
        %6294 = vmatprep.subr.mxu0 0.0
        %6295 = vmatpush1.msra.mxu0 0.0
        %6296 = vmatprep.subr.mxu0 0.0
        %6297 = vmatpush1.msra.mxu0 0.0
        %6298 = vmatprep.subr.mxu0 0.0
        %6299 = vmatpush1.msra.mxu0 0.0
        %6300 = vmatprep.subr.mxu0 0.0
        %6301 = vmatpush1.msra.mxu0 0.0
        %6302 = vmatprep.subr.mxu0 0.0
        %6303 = vmatpush1.msra.mxu0 0.0
        %6304 = vmatprep.subr.mxu0 0.0
        %6305 = vmatpush1.msra.mxu0 0.0
        %6306 = vmatprep.subr.mxu0 0.0
        %6307 = vmatpush1.msra.mxu0 0.0
        %6308 = vmatprep.subr.mxu0 0.0
        %6309 = vmatpush1.msra.mxu0 0.0
        %6310 = vmatprep.subr.mxu0 0.0
        %6311 = vmatpush1.msra.mxu0 0.0
        %6312 = vmatprep.subr.mxu0 0.0
        %6313 = vmatpush1.msra.mxu0 0.0
        %6314 = vmatprep.subr.mxu0 0.0
        %6315 = vmatpush1.msra.mxu0 0.0
        %6316 = vmatprep.subr.mxu0 0.0
        %6317 = vmatpush1.msra.mxu0 0.0
        %6318 = vmatprep.subr.mxu0 0.0
        %6319 = vmatpush1.msra.mxu0 0.0
        %6320 = vmatprep.mubr.f32.mxu0 0.0
        %6321 = vmatmul.mubr.f32.gmra.mrb[0].mxu0 %v6234
        %v6322 = vpop.f32.mrb[0].mxu0
        %v6323 = vadd.f32 %v6255, %v6322
        %v6324 = vpop.f32.mrb[0].mxu0
        %6325 = vdwg.mxu0
        %v6326 = vadd.f32 %v6126, %v6323
        %v6327 = vld [vmem:[#allocation4 + $0x3c8] sm:$0xff]
        %v6328 = vld [vmem:[#allocation4 + $0x3d0] sm:$0xff]
        %v6329 = vld [vmem:[#allocation4 + $0x3d8] sm:$0xff]
        %v6330 = vld [vmem:[#allocation4 + $0x3e0] sm:$0xff]
        %v6331 = vld [vmem:[#allocation6 + $0x31] sm:$0x1]
        %v6332 = vlaneseq
        %v6333 = vshrl.u32 %v6332, 7
        %v6334 = vsub.s32 0, %v6333
        %v6335 = vrot.slane %v6331, %v6334
        %v6337 = vsel %vm1058, %v6326, 0
        %6339 = vmatprep.subr.mxu0 0.0
        %6340 = vmatpush1.msra.mxu0 %v6327
        %6341 = vmatprep.subr.mxu0 0.0
        %6342 = vmatpush1.msra.mxu0 %v6328
        %6343 = vmatprep.subr.mxu0 0.0
        %6344 = vmatpush1.msra.mxu0 %v6329
        %6345 = vmatprep.subr.mxu0 0.0
        %6346 = vmatpush1.msra.mxu0 %v6330
        %6347 = vmatprep.subr.mxu0 0.0
        %6348 = vmatpush1.msra.mxu0 0.0
        %6349 = vmatprep.subr.mxu0 0.0
        %6350 = vmatpush1.msra.mxu0 0.0
        %6351 = vmatprep.subr.mxu0 0.0
        %6352 = vmatpush1.msra.mxu0 0.0
        %6353 = vmatprep.subr.mxu0 0.0
        %6354 = vmatpush1.msra.mxu0 0.0
        %6355 = vmatprep.subr.mxu0 0.0
        %6356 = vmatpush1.msra.mxu0 0.0
        %6357 = vmatprep.subr.mxu0 0.0
        %6358 = vmatpush1.msra.mxu0 0.0
        %6359 = vmatprep.subr.mxu0 0.0
        %6360 = vmatpush1.msra.mxu0 0.0
        %6361 = vmatprep.subr.mxu0 0.0
        %6362 = vmatpush1.msra.mxu0 0.0
        %6363 = vmatprep.subr.mxu0 0.0
        %6364 = vmatpush1.msra.mxu0 0.0
        %6365 = vmatprep.subr.mxu0 0.0
        %6366 = vmatpush1.msra.mxu0 0.0
        %6367 = vmatprep.subr.mxu0 0.0
        %6368 = vmatpush1.msra.mxu0 0.0
        %6369 = vmatprep.subr.mxu0 0.0
        %6370 = vmatpush1.msra.mxu0 0.0
        %6371 = vmatprep.subr.mxu0 0.0
        %6372 = vmatpush1.msra.mxu0 0.0
        %6373 = vmatprep.subr.mxu0 0.0
        %6374 = vmatpush1.msra.mxu0 0.0
        %6375 = vmatprep.subr.mxu0 0.0
        %6376 = vmatpush1.msra.mxu0 0.0
        %6377 = vmatprep.subr.mxu0 0.0
        %6378 = vmatpush1.msra.mxu0 0.0
        %6379 = vmatprep.subr.mxu0 0.0
        %6380 = vmatpush1.msra.mxu0 0.0
        %6381 = vmatprep.subr.mxu0 0.0
        %6382 = vmatpush1.msra.mxu0 0.0
        %6383 = vmatprep.subr.mxu0 0.0
        %6384 = vmatpush1.msra.mxu0 0.0
        %6385 = vmatprep.subr.mxu0 0.0
        %6386 = vmatpush1.msra.mxu0 0.0
        %6387 = vmatprep.subr.mxu0 0.0
        %6388 = vmatpush1.msra.mxu0 0.0
        %6389 = vmatprep.subr.mxu0 0.0
        %6390 = vmatpush1.msra.mxu0 0.0
        %6391 = vmatprep.subr.mxu0 0.0
        %6392 = vmatpush1.msra.mxu0 0.0
        %6393 = vmatprep.subr.mxu0 0.0
        %6394 = vmatpush1.msra.mxu0 0.0
        %6395 = vmatprep.subr.mxu0 0.0
        %6396 = vmatpush1.msra.mxu0 0.0
        %6397 = vmatprep.subr.mxu0 0.0
        %6398 = vmatpush1.msra.mxu0 0.0
        %6399 = vmatprep.subr.mxu0 0.0
        %6400 = vmatpush1.msra.mxu0 0.0
        %6401 = vmatprep.subr.mxu0 0.0
        %6402 = vmatpush1.msra.mxu0 0.0
        %6403 = vmatprep.mubr.f32.mxu0 0.0
        %6404 = vmatmul.mubr.f32.gmra.mrb[0].mxu0 %v6337
        %v6405 = vpop.f32.mrb[0].mxu0
        %v6406 = vadd.f32 %v6335, %v6405
        %v6407 = vpop.f32.mrb[0].mxu0
        %6408 = vdwg.mxu0
        %6409 = vst [vmem:[%s214] sm:$0xff] %v6406
        %p6410 = scmp.lt.s32.totalorder %s18, 1
        %s6411 = scalar_select %p6410, %s18, 1
        %s6412 = smul.addr %s6411, 8
        %s6413 = scalar_lea.vmem %s3, %s6412
        // Predicated region
        $region45: #{anomaly_detector_forward.1} parent=31 // pred_check
          %p6414 = pneg %p104
        $region46: #{anomaly_detector_forward.1} parent=31 // pred_check_branch
          %6416 = sbr.rel (%p6414) target = $region48
        $region47: #{anomaly_detector_forward.1} parent=31 // pred_region
          _
        $region48: #{anomaly_detector_forward.1} parent=31 // pred_fallthru
          _
      $region32: #{anomaly_detector_forward.1} parent=5 // pred_fallthru
        _
      %p6417 = scmp.le.s32.totalorder 2, %s13
      // Predicated region
      $region49: #{anomaly_detector_forward.1} parent=5 // pred_check
        %p6418 = pneg %p6417
      $region50: #{anomaly_detector_forward.1} parent=5 // pred_check_branch
        %6420 = sbr.rel (%p6418) target = $region52
      $region51: #{anomaly_detector_forward.1} parent=5 // pred_region
        %s6421 = ssub.s32 %s13, 2
        // Predicated region
        $region53: #{anomaly_detector_forward.1} parent=51 // pred_check
          %p6422 = pneg %p110
        $region54: #{anomaly_detector_forward.1} parent=51 // pred_check_branch
          %6424 = sbr.rel (%p6422) target = $region56
        $region55: #{anomaly_detector_forward.1} parent=51 // pred_region
          %p6425 = scmp.lt.s32.totalorder %s19, 1
          %s6426 = scalar_select %p6425, %s19, 1
          %s6427 = smul.addr %s6426, 8
          %s6428 = scalar_lea.vmem %s3, %s6427
        $region56: #{anomaly_detector_forward.1} parent=51 // pred_fallthru
          _
      $region52: #{anomaly_detector_forward.1} parent=5 // pred_fallthru
        _
    $region6: #{anomaly_detector_forward.1} parent=1 // loop_footer
      %s17 = sadd.s32 1, %s13
    $region7: #{anomaly_detector_forward.1} parent=1 // loop_footer_branch
      %12 = sbr.rel target = $region3
    $region8: #{anomaly_detector_forward.1} parent=1 // loop_exit
      _
    %6429 = vsyncpa [#allocation3], 1
    %s6430 = scalar_lea.sflag [#allocation3], 1
    %6431 = vsyncpa %s6430, 1
    %6432 = vsyncpa [#allocation5], 1

</llo_original>
